<compile_context>
chip_gen: v6e
topology: v6e:2x2x1
jax: 0.10.0
libtpu: 0.0.40
codegen_flags: <defaults>
</compile_context>

<pallas_src>
import functools

import jax
import jax.numpy as jnp
from jax import lax
from jax.experimental import pallas as pl
from jax.experimental.pallas import tpu as pltpu

BN_EPS = 1e-5
HEAD_PAD = 128          # lane-dense fused (policy || value) head width
NB = 8                  # images per grid step (multiple of 8 -> full tiles)


# ---------------------------------------------------------------------------
# Fused Pallas kernel: NB images per grid step, everything resident in VMEM.
# ---------------------------------------------------------------------------
def _make_fused_kernel(cfg):
    (nb, PH1, PW1, OH2, OW2, OH3, OW3, C1, C2, C3, K2, K3) = cfg
    ACC2 = (OH2 - 1) * PW1 + OW2      # strided conv2 accumulator rows (27)
    ACC3 = (OH3 - 1) * PW1 + OW3      # strided conv3 accumulator rows (11)

    # Window-accumulator safety: valid reads never leave the buffers and never
    # touch garbage columns (checked once at trace time for these shapes).
    assert OW2 <= PW1 and (OH2 - 1) + (K2 // 2) < PH1 + 1
    assert (OW3 - 1) + (K3 - 1) <= OW2 - 1
    assert (K3 - 1) * PW1 + (K3 - 1) + ACC3 <= ACC2

    def kernel(cols1_ref, w1_ref, b1_ref, w2_ref, b2_ref, w3_ref, b3_ref,
               wh_ref, bh_ref, out_ref, a1_ref, a2_ref, a3_ref):
        # ---- conv1 + BN + ReLU: one big MXU matmul on phase-ordered patches.
        a1_ref[...] = jnp.maximum(
            jnp.dot(cols1_ref[...], w1_ref[...],
                    preferred_element_type=jnp.float32) + b1_ref[...], 0.0)

        # ---- conv2 (K2xK2, stride 2) + BN + ReLU: strided-window accumulator.
        #      a1 row = phase*(PH1*PW1*nb) + h'*(PW1*nb) + w'*nb + n, so tap
        #      (i2,j2) is one contiguous slice of ACC2*nb rows per block.
        first = True
        for i2 in range(K2):
            for j2 in range(K2):
                pa, di = i2 % 2, i2 // 2
                pb, dj = j2 % 2, j2 // 2
                start = ((pa * 2 + pb) * PH1 * PW1 + di * PW1 + dj) * nb
                tap = i2 * K2 + j2
                contrib = jnp.dot(
                    a1_ref[start:start + ACC2 * nb, :],
                    w2_ref[tap * C1:(tap + 1) * C1, :],
                    preferred_element_type=jnp.float32)
                if first:
                    a2_ref[...] = contrib
                    first = False
                else:
                    a2_ref[...] += contrib
        a2_ref[...] = jnp.maximum(a2_ref[...] + b2_ref[...], 0.0)

        # ---- conv3 (K3xK3, stride 1) + BN + ReLU: same trick on a2.
        first = True
        for i3 in range(K3):
            for j3 in range(K3):
                start = (i3 * PW1 + j3) * nb
                tap = i3 * K3 + j3
                contrib = jnp.dot(
                    a2_ref[start:start + ACC3 * nb, :],
                    w3_ref[tap * C2:(tap + 1) * C2, :],
                    preferred_element_type=jnp.float32)
                if first:
                    a3_ref[...] = contrib
                    first = False
                else:
                    a3_ref[...] += contrib
        a3_ref[...] = jnp.maximum(a3_ref[...] + b3_ref[...], 0.0)

        # ---- fused policy||value head: one (nb, C3)@(C3, 128) dot per valid
        #      spatial position (head rows pre-permuted to (h, w, c) order).
        hacc = jnp.zeros((nb, HEAD_PAD), jnp.float32)
        for oh3 in range(OH3):
            for ow3 in range(OW3):
                s = (oh3 * PW1 + ow3) * nb
                f = oh3 * OW3 + ow3
                hacc = hacc + jnp.dot(
                    a3_ref[s:s + nb, :],
                    wh_ref[f * C3:(f + 1) * C3, :],
                    preferred_element_type=jnp.float32)
        out_ref[...] = hacc + bh_ref[...]

    return kernel, ACC2, ACC3


# ---------------------------------------------------------------------------
# Host-side preprocessing (pure permutations of the tiny raw input).
# ---------------------------------------------------------------------------
def _conv1_patches_blocked(x_nhwc, k, stride, nb):
    """im2col for conv1, rows ordered (block, h%2, w%2, h//2, w//2, n).

    Column order is (kh, kw, cin), matching w.reshape(k*k*cin, cout).  The
    phase-major / batch-innermost row order makes every conv2 stride-2 tap a
    single contiguous, sublane-aligned row slice inside the fused kernel.
    """
    B, H, W, C = x_nhwc.shape
    OH = (H - k) // stride + 1
    OW = (W - k) // stride + 1
    taps = []
    for i in range(k):
        for j in range(k):
            taps.append(x_nhwc[:, i:i + stride * OH:stride,
                               j:j + stride * OW:stride, :])
    p = jnp.stack(taps, axis=3).reshape(B, OH, OW, k * k * C)
    assert OH % 2 == 0 and OW % 2 == 0, "conv1 output H/W must be even"
    assert B % nb == 0
    PH, PW = OH // 2, OW // 2
    nblk = B // nb
    p = p.reshape(nblk, nb, PH, 2, PW, 2, k * k * C)
    p = jnp.transpose(p, (0, 3, 5, 2, 4, 1, 6))   # (blk, pa, pb, h', w', n, K)
    return p.reshape(nblk, 4 * PH * PW * nb, k * k * C), (OH, OW)


def fold_bn(conv_bias, gamma, beta, mean, var):
    scale = gamma / jnp.sqrt(var + BN_EPS)
    bias = beta + (conv_bias - mean) * scale
    return scale, bias


def prepare_params(params):
    """One-time parameter folding (hoisted out of the forward pass)."""
    prep = {}
    for idx, layer in enumerate(params["convs"], start=1):
        scale, bias = fold_bn(layer["b"], layer["gamma"], layer["beta"],
                              layer["mean"], layer["var"])
        kh, kw, cin, cout = layer["w"].shape
        prep[f"w{idx}"] = layer["w"].reshape(kh * kw * cin, cout) * scale[None, :]
        prep[f"b{idx}"] = bias.reshape(1, cout)

    # Heads: concat policy & value, permute rows from PyTorch NCHW-flatten
    # order (c*HW + h*W + w) to the kernel's (h, w, c) order, pad to 128 lanes.
    wh = jnp.concatenate([params["policy_w"], params["value_w"]], axis=1)
    bh = jnp.concatenate([params["policy_b"], params["value_b"]], axis=0)
    n_feat, n_heads = wh.shape
    c3 = params["convs"][2]["w"].shape[3]
    n_spatial = n_feat // c3
    j = jnp.arange(n_feat)
    r, c = j // c3, j % c3
    perm = c * n_spatial + r
    wh = wh[perm]
    prep["wh"] = jnp.pad(wh, ((0, 0), (0, HEAD_PAD - n_heads)))
    prep["bh"] = jnp.pad(bh, (0, HEAD_PAD - n_heads)).reshape(1, HEAD_PAD)
    return prep


# ---------------------------------------------------------------------------
# Forward pass (one fused pallas_call) and pure-JAX reference.
# ---------------------------------------------------------------------------
def nature_cnn_forward(x_nchw, prep, num_outputs, nb=NB):
    x = jnp.transpose(x_nchw, (0, 2, 3, 1)).astype(jnp.float32)   # NCHW -> NHWC
    B = x.shape[0]
    B_pad = ((B + nb - 1) // nb) * nb
    if B_pad != B:
        x = jnp.pad(x, ((0, B_pad - B), (0, 0), (0, 0), (0, 0)))
    cin = x.shape[-1]

    cols1, (OH1, OW1) = _conv1_patches_blocked(x, 8, 2, nb)
    PH1, PW1 = OH1 // 2, OW1 // 2
    OH2, OW2 = (OH1 - 4) // 2 + 1, (OW1 - 4) // 2 + 1
    OH3, OW3 = OH2 - 2, OW2 - 2
    C1, C2, C3 = 32, 64, 64
    K1 = 8 * 8 * cin
    assert OH3 * OW3 * C3 == prep["wh"].shape[0], "flatten size must be 512"

    nblk = B_pad // nb
    NROWS1 = 4 * PH1 * PW1 * nb

    kernel, ACC2, ACC3 = _make_fused_kernel(
        (nb, PH1, PW1, OH2, OW2, OH3, OW3, C1, C2, C3, 4, 3))

    flops = 2 * nblk * (NROWS1 * K1 * C1
                        + 16 * (ACC2 * nb) * C1 * C2
                        + 9 * (ACC3 * nb) * C2 * C3
                        + OH3 * OW3 * nb * C3 * HEAD_PAD)
    bytes_accessed = 4 * (cols1.size + prep["w1"].size + prep["w2"].size
                          + prep["w3"].size + prep["wh"].size
                          + B_pad * HEAD_PAD)

    out = pl.pallas_call(
        kernel,
        out_shape=jax.ShapeDtypeStruct((B_pad, HEAD_PAD), jnp.float32),
        grid=(nblk,),
        in_specs=[
            pl.BlockSpec((None, NROWS1, K1), lambda g: (g, 0, 0)),
            pl.BlockSpec((K1, C1), lambda g: (0, 0)),
            pl.BlockSpec((1, C1), lambda g: (0, 0)),
            pl.BlockSpec((16 * C1, C2), lambda g: (0, 0)),
            pl.BlockSpec((1, C2), lambda g: (0, 0)),
            pl.BlockSpec((9 * C2, C3), lambda g: (0, 0)),
            pl.BlockSpec((1, C3), lambda g: (0, 0)),
            pl.BlockSpec((OH3 * OW3 * C3, HEAD_PAD), lambda g: (0, 0)),
            pl.BlockSpec((1, HEAD_PAD), lambda g: (0, 0)),
        ],
        out_specs=pl.BlockSpec((nb, HEAD_PAD), lambda g: (g, 0)),
        scratch_shapes=[
            pltpu.VMEM((NROWS1, C1), jnp.float32),       # a1 (phase-ordered)
            pltpu.VMEM((ACC2 * nb, C2), jnp.float32),    # a2 (strided layout)
            pltpu.VMEM((ACC3 * nb, C3), jnp.float32),    # a3 (strided layout)
        ],
        compiler_params=pltpu.CompilerParams(
            dimension_semantics=("parallel",),
            vmem_limit_bytes=32 * 1024 * 1024),
        cost_estimate=pl.CostEstimate(
            flops=flops, transcendentals=0, bytes_accessed=bytes_accessed),
    )(cols1, prep["w1"], prep["b1"], prep["w2"], prep["b2"],
      prep["w3"], prep["b3"], prep["wh"], prep["bh"])

    heads = out[:B]                         # drop batch padding
    logits = heads[:, :num_outputs]
    value = heads[:, num_outputs]           # value_function().flatten()
    return logits, value


def ref_forward(x_nchw, params, num_outputs):
    x = jnp.transpose(x_nchw, (0, 2, 3, 1))
    for layer in params["convs"]:
        scale, bias = fold_bn(layer["b"], layer["gamma"], layer["beta"],
                              layer["mean"], layer["var"])
        s = layer["stride"]
        x = lax.conv_general_dilated(
            x, layer["w"], (s, s), "VALID",
            dimension_numbers=("NHWC", "HWIO", "NHWC"))
        x = jnp.maximum(x * scale + bias, 0.0)
    B = x.shape[0]
    feat = jnp.transpose(x, (0, 3, 1, 2)).reshape(B, -1)     # NCHW flatten
    logits = feat @ params["policy_w"] + params["policy_b"]
    value = (feat @ params["value_w"] + params["value_b"]).reshape(-1)
    return logits, value


# ---------------------------------------------------------------------------
# Parameter construction (deterministic, synthetic)
# ---------------------------------------------------------------------------
def init_params(key, num_outputs):
    conv_cfg = [  # (kh, kw, cin, cout, stride)
        (8, 8, 3, 32, 2),
        (4, 4, 32, 64, 2),
        (3, 3, 64, 64, 1),
    ]
    params = {"convs": []}
    for (kh, kw, cin, cout, stride) in conv_cfg:
        key, kw_, kb_, kg_, kbe_, km_, kv_ = jax.random.split(key, 7)
        layer = dict(
            w=jax.random.normal(kw_, (kh, kw, cin, cout), jnp.float32) * 0.05,
            b=jax.random.normal(kb_, (cout,), jnp.float32) * 0.1,
            gamma=jax.random.uniform(kg_, (cout,), jnp.float32, 0.5, 1.5),
            beta=jax.random.normal(kbe_, (cout,), jnp.float32) * 0.1,
            mean=jax.random.normal(km_, (cout,), jnp.float32) * 0.1,
            var=jax.random.uniform(kv_, (cout,), jnp.float32, 0.5, 1.5),
            stride=stride,
        )
        params["convs"].append(layer)

    key, kpw, kpb, kvw, kvb = jax.random.split(key, 5)
    params["policy_w"] = jax.random.normal(kpw, (512, num_outputs), jnp.float32) * 0.05
    params["policy_b"] = jax.random.normal(kpb, (num_outputs,), jnp.float32) * 0.1
    params["value_w"] = jax.random.normal(kvw, (512, 1), jnp.float32) * 0.05
    params["value_b"] = jax.random.normal(kvb, (1,), jnp.float32) * 0.1
    return params


# ---------------------------------------------------------------------------
if __name__ == "__main__":
    num_outputs = 6
    # Spatial size chosen so the flattened CNN feature is exactly 512
    # (26x34 -> 10x14 -> 4x6 -> 2x4; 64*2*4 = 512), matching Linear(512, ...).
    # B=12 exercises batch padding (padded to 16 -> grid=(2,), 2 TCs on v7x).
    B, C, H, W = 12, 3, 26, 34

    key = jax.random.PRNGKey(0)
    k_in, k_par = jax.random.split(key)
    x = jax.random.normal(k_in, (B, C, H, W), jnp.float32)
    params = init_params(k_par, num_outputs)
    prep = prepare_params(params)            # hoisted once, reused every call

    fwd = jax.jit(nature_cnn_forward, static_argnums=(2, 3))
    logits, value = fwd(x, prep, num_outputs, NB)
    jax.block_until_ready((logits, value))

    ref_logits, ref_value = ref_forward(x, params, num_outputs)
    assert logits.shape == (B, num_outputs) and value.shape == (B,)
    assert jnp.allclose(logits, ref_logits, atol=1e-3, rtol=1e-3)
    assert jnp.allclose(value, ref_value, atol=1e-3, rtol=1e-3)

    print("KERNEL_OK")
</pallas_src>

<mosaic_0001>
module attributes {stable_mosaic.version = 11 : i64} {
  func.func @kernel(%arg0: i32, %arg1: memref<1x1120x192xf32, #tpu.memory_space<vmem>>, %arg2: memref<192x32xf32, #tpu.memory_space<vmem>>, %arg3: memref<1x32xf32, #tpu.memory_space<vmem>>, %arg4: memref<512x64xf32, #tpu.memory_space<vmem>>, %arg5: memref<1x64xf32, #tpu.memory_space<vmem>>, %arg6: memref<576x64xf32, #tpu.memory_space<vmem>>, %arg7: memref<1x64xf32, #tpu.memory_space<vmem>>, %arg8: memref<512x128xf32, #tpu.memory_space<vmem>>, %arg9: memref<1x128xf32, #tpu.memory_space<vmem>>, %arg10: memref<8x128xf32, #tpu.memory_space<vmem>>, %arg11: memref<1120x32xf32, #tpu.memory_space<vmem>>, %arg12: memref<216x64xf32, #tpu.memory_space<vmem>>, %arg13: memref<88x64xf32, #tpu.memory_space<vmem>>) attributes {dimension_semantics = [#tpu.dimension_semantics<parallel>], iteration_bounds = array<i64: 2>, scalar_prefetch = 0 : i64, scratch_operands = 3 : i64, tpu.core_type = #tpu.core_type<tc>, window_params = [{transform_indices = @transform_0, window_bounds = array<i64: 1, 1120, 192>}, {pipeline_mode = #tpu.pipeline_mode<synchronous>, transform_indices = @transform_1, window_bounds = array<i64: 192, 32>}, {pipeline_mode = #tpu.pipeline_mode<synchronous>, transform_indices = @transform_2, window_bounds = array<i64: 1, 32>}, {pipeline_mode = #tpu.pipeline_mode<synchronous>, transform_indices = @transform_3, window_bounds = array<i64: 512, 64>}, {pipeline_mode = #tpu.pipeline_mode<synchronous>, transform_indices = @transform_4, window_bounds = array<i64: 1, 64>}, {pipeline_mode = #tpu.pipeline_mode<synchronous>, transform_indices = @transform_5, window_bounds = array<i64: 576, 64>}, {pipeline_mode = #tpu.pipeline_mode<synchronous>, transform_indices = @transform_6, window_bounds = array<i64: 1, 64>}, {pipeline_mode = #tpu.pipeline_mode<synchronous>, transform_indices = @transform_7, window_bounds = array<i64: 512, 128>}, {pipeline_mode = #tpu.pipeline_mode<synchronous>, transform_indices = @transform_8, window_bounds = array<i64: 1, 128>}, {transform_indices = @transform_9, window_bounds = array<i64: 8, 128>}]} {
    %c0 = arith.constant 0 : index
    %c0_0 = arith.constant 0 : index
    %c0_1 = arith.constant 0 : index
    %0 = vector.load %arg1[%c0, %c0_0, %c0_1] : memref<1x1120x192xf32, #tpu.memory_space<vmem>>, vector<1x1120x192xf32>
    %1 = vector.shape_cast %0 : vector<1x1120x192xf32> to vector<1120x192xf32>
    %c0_2 = arith.constant 0 : index
    %c0_3 = arith.constant 0 : index
    %2 = vector.load %arg2[%c0_2, %c0_3] : memref<192x32xf32, #tpu.memory_space<vmem>>, vector<192x32xf32>
    %cst = arith.constant dense<0.000000e+00> : vector<1120x32xf32>
    %3 = tpu.matmul %1, %2, %cst {dimension_numbers = #tpu.dot_dimension_numbers<[1], [0], [0], [1], [0, 0, 1, 1], [], []>} : vector<1120x192xf32>, vector<192x32xf32>, vector<1120x32xf32> -> vector<1120x32xf32>
    %c0_4 = arith.constant 0 : index
    %c0_5 = arith.constant 0 : index
    %4 = vector.load %arg3[%c0_4, %c0_5] : memref<1x32xf32, #tpu.memory_space<vmem>>, vector<1x32xf32>
    %5 = vector.broadcast %4 : vector<1x32xf32> to vector<1120x32xf32>
    %6 = arith.addf %3, %5 : vector<1120x32xf32>
    %cst_6 = arith.constant 0.000000e+00 : f32
    %7 = vector.broadcast %cst_6 : f32 to vector<1120x32xf32>
    %8 = arith.maximumf %6, %7 : vector<1120x32xf32>
    %c0_7 = arith.constant 0 : index
    %c0_8 = arith.constant 0 : index
    %9 = vector.load %arg11[%c0_7, %c0_8] : memref<1120x32xf32, #tpu.memory_space<vmem>>, vector<1120x32xf32>
    tpu.vector_store %arg11[%c0_7, %c0_8], %8 {strides = array<i32>} : memref<1120x32xf32, #tpu.memory_space<vmem>>, vector<1120x32xf32>,
    %c0_9 = arith.constant 0 : index
    %c0_10 = arith.constant 0 : index
    %10 = vector.load %arg11[%c0_9, %c0_10] : memref<1120x32xf32, #tpu.memory_space<vmem>>, vector<216x32xf32>
    %c0_11 = arith.constant 0 : index
    %c0_12 = arith.constant 0 : index
    %11 = vector.load %arg4[%c0_11, %c0_12] : memref<512x64xf32, #tpu.memory_space<vmem>>, vector<32x64xf32>
    %cst_13 = arith.constant dense<0.000000e+00> : vector<216x64xf32>
    %12 = tpu.matmul %10, %11, %cst_13 {dimension_numbers = #tpu.dot_dimension_numbers<[1], [0], [0], [1], [0, 0, 1, 1], [], []>} : vector<216x32xf32>, vector<32x64xf32>, vector<216x64xf32> -> vector<216x64xf32>
    %c0_14 = arith.constant 0 : index
    %c0_15 = arith.constant 0 : index
    %13 = vector.load %arg12[%c0_14, %c0_15] : memref<216x64xf32, #tpu.memory_space<vmem>>, vector<216x64xf32>
    tpu.vector_store %arg12[%c0_14, %c0_15], %12 {strides = array<i32>} : memref<216x64xf32, #tpu.memory_space<vmem>>, vector<216x64xf32>,
    %c280 = arith.constant 280 : index
    %c0_16 = arith.constant 0 : index
    %14 = vector.load %arg11[%c280, %c0_16] : memref<1120x32xf32, #tpu.memory_space<vmem>>, vector<216x32xf32>
    %c32 = arith.constant 32 : index
    %c0_17 = arith.constant 0 : index
    %15 = vector.load %arg4[%c32, %c0_17] : memref<512x64xf32, #tpu.memory_space<vmem>>, vector<32x64xf32>
    %cst_18 = arith.constant dense<0.000000e+00> : vector<216x64xf32>
    %16 = tpu.matmul %14, %15, %cst_18 {dimension_numbers = #tpu.dot_dimension_numbers<[1], [0], [0], [1], [0, 0, 1, 1], [], []>} : vector<216x32xf32>, vector<32x64xf32>, vector<216x64xf32> -> vector<216x64xf32>
    %c0_19 = arith.constant 0 : index
    %c0_20 = arith.constant 0 : index
    %17 = vector.load %arg12[%c0_19, %c0_20] : memref<216x64xf32, #tpu.memory_space<vmem>>, vector<216x64xf32>
    %18 = arith.addf %17, %16 : vector<216x64xf32>
    %c0_21 = arith.constant 0 : index
    %c0_22 = arith.constant 0 : index
    %19 = vector.load %arg12[%c0_21, %c0_22] : memref<216x64xf32, #tpu.memory_space<vmem>>, vector<216x64xf32>
    tpu.vector_store %arg12[%c0_21, %c0_22], %18 {strides = array<i32>} : memref<216x64xf32, #tpu.memory_space<vmem>>, vector<216x64xf32>,
    %c8 = arith.constant 8 : index
    %c0_23 = arith.constant 0 : index
    %20 = vector.load %arg11[%c8, %c0_23] : memref<1120x32xf32, #tpu.memory_space<vmem>>, vector<216x32xf32>
    %c64 = arith.constant 64 : index
    %c0_24 = arith.constant 0 : index
    %21 = vector.load %arg4[%c64, %c0_24] : memref<512x64xf32, #tpu.memory_space<vmem>>, vector<32x64xf32>
    %cst_25 = arith.constant dense<0.000000e+00> : vector<216x64xf32>
    %22 = tpu.matmul %20, %21, %cst_25 {dimension_numbers = #tpu.dot_dimension_numbers<[1], [0], [0], [1], [0, 0, 1, 1], [], []>} : vector<216x32xf32>, vector<32x64xf32>, vector<216x64xf32> -> vector<216x64xf32>
    %c0_26 = arith.constant 0 : index
    %c0_27 = arith.constant 0 : index
    %23 = vector.load %arg12[%c0_26, %c0_27] : memref<216x64xf32, #tpu.memory_space<vmem>>, vector<216x64xf32>
    %24 = arith.addf %23, %22 : vector<216x64xf32>
    %c0_28 = arith.constant 0 : index
    %c0_29 = arith.constant 0 : index
    %25 = vector.load %arg12[%c0_28, %c0_29] : memref<216x64xf32, #tpu.memory_space<vmem>>, vector<216x64xf32>
    tpu.vector_store %arg12[%c0_28, %c0_29], %24 {strides = array<i32>} : memref<216x64xf32, #tpu.memory_space<vmem>>, vector<216x64xf32>,
    %c288 = arith.constant 288 : index
    %c0_30 = arith.constant 0 : index
    %26 = vector.load %arg11[%c288, %c0_30] : memref<1120x32xf32, #tpu.memory_space<vmem>>, vector<216x32xf32>
    %c96 = arith.constant 96 : index
    %c0_31 = arith.constant 0 : index
    %27 = vector.load %arg4[%c96, %c0_31] : memref<512x64xf32, #tpu.memory_space<vmem>>, vector<32x64xf32>
    %cst_32 = arith.constant dense<0.000000e+00> : vector<216x64xf32>
    %28 = tpu.matmul %26, %27, %cst_32 {dimension_numbers = #tpu.dot_dimension_numbers<[1], [0], [0], [1], [0, 0, 1, 1], [], []>} : vector<216x32xf32>, vector<32x64xf32>, vector<216x64xf32> -> vector<216x64xf32>
    %c0_33 = arith.constant 0 : index
    %c0_34 = arith.constant 0 : index
    %29 = vector.load %arg12[%c0_33, %c0_34] : memref<216x64xf32, #tpu.memory_space<vmem>>, vector<216x64xf32>
    %30 = arith.addf %29, %28 : vector<216x64xf32>
    %c0_35 = arith.constant 0 : index
    %c0_36 = arith.constant 0 : index
    %31 = vector.load %arg12[%c0_35, %c0_36] : memref<216x64xf32, #tpu.memory_space<vmem>>, vector<216x64xf32>
    tpu.vector_store %arg12[%c0_35, %c0_36], %30 {strides = array<i32>} : memref<216x64xf32, #tpu.memory_space<vmem>>, vector<216x64xf32>,
    %c560 = arith.constant 560 : index
    %c0_37 = arith.constant 0 : index
    %32 = vector.load %arg11[%c560, %c0_37] : memref<1120x32xf32, #tpu.memory_space<vmem>>, vector<216x32xf32>
    %c128 = arith.constant 128 : index
    %c0_38 = arith.constant 0 : index
    %33 = vector.load %arg4[%c128, %c0_38] : memref<512x64xf32, #tpu.memory_space<vmem>>, vector<32x64xf32>
    %cst_39 = arith.constant dense<0.000000e+00> : vector<216x64xf32>
    %34 = tpu.matmul %32, %33, %cst_39 {dimension_numbers = #tpu.dot_dimension_numbers<[1], [0], [0], [1], [0, 0, 1, 1], [], []>} : vector<216x32xf32>, vector<32x64xf32>, vector<216x64xf32> -> vector<216x64xf32>
    %c0_40 = arith.constant 0 : index
    %c0_41 = arith.constant 0 : index
    %35 = vector.load %arg12[%c0_40, %c0_41] : memref<216x64xf32, #tpu.memory_space<vmem>>, vector<216x64xf32>
    %36 = arith.addf %35, %34 : vector<216x64xf32>
    %c0_42 = arith.constant 0 : index
    %c0_43 = arith.constant 0 : index
    %37 = vector.load %arg12[%c0_42, %c0_43] : memref<216x64xf32, #tpu.memory_space<vmem>>, vector<216x64xf32>
    tpu.vector_store %arg12[%c0_42, %c0_43], %36 {strides = array<i32>} : memref<216x64xf32, #tpu.memory_space<vmem>>, vector<216x64xf32>,
    %c840 = arith.constant 840 : index
    %c0_44 = arith.constant 0 : index
    %38 = vector.load %arg11[%c840, %c0_44] : memref<1120x32xf32, #tpu.memory_space<vmem>>, vector<216x32xf32>
    %c160 = arith.constant 160 : index
    %c0_45 = arith.constant 0 : index
    %39 = vector.load %arg4[%c160, %c0_45] : memref<512x64xf32, #tpu.memory_space<vmem>>, vector<32x64xf32>
    %cst_46 = arith.constant dense<0.000000e+00> : vector<216x64xf32>
    %40 = tpu.matmul %38, %39, %cst_46 {dimension_numbers = #tpu.dot_dimension_numbers<[1], [0], [0], [1], [0, 0, 1, 1], [], []>} : vector<216x32xf32>, vector<32x64xf32>, vector<216x64xf32> -> vector<216x64xf32>
    %c0_47 = arith.constant 0 : index
    %c0_48 = arith.constant 0 : index
    %41 = vector.load %arg12[%c0_47, %c0_48] : memref<216x64xf32, #tpu.memory_space<vmem>>, vector<216x64xf32>
    %42 = arith.addf %41, %40 : vector<216x64xf32>
    %c0_49 = arith.constant 0 : index
    %c0_50 = arith.constant 0 : index
    %43 = vector.load %arg12[%c0_49, %c0_50] : memref<216x64xf32, #tpu.memory_space<vmem>>, vector<216x64xf32>
    tpu.vector_store %arg12[%c0_49, %c0_50], %42 {strides = array<i32>} : memref<216x64xf32, #tpu.memory_space<vmem>>, vector<216x64xf32>,
    %c568 = arith.constant 568 : index
    %c0_51 = arith.constant 0 : index
    %44 = vector.load %arg11[%c568, %c0_51] : memref<1120x32xf32, #tpu.memory_space<vmem>>, vector<216x32xf32>
    %c192 = arith.constant 192 : index
    %c0_52 = arith.constant 0 : index
    %45 = vector.load %arg4[%c192, %c0_52] : memref<512x64xf32, #tpu.memory_space<vmem>>, vector<32x64xf32>
    %cst_53 = arith.constant dense<0.000000e+00> : vector<216x64xf32>
    %46 = tpu.matmul %44, %45, %cst_53 {dimension_numbers = #tpu.dot_dimension_numbers<[1], [0], [0], [1], [0, 0, 1, 1], [], []>} : vector<216x32xf32>, vector<32x64xf32>, vector<216x64xf32> -> vector<216x64xf32>
    %c0_54 = arith.constant 0 : index
    %c0_55 = arith.constant 0 : index
    %47 = vector.load %arg12[%c0_54, %c0_55] : memref<216x64xf32, #tpu.memory_space<vmem>>, vector<216x64xf32>
    %48 = arith.addf %47, %46 : vector<216x64xf32>
    %c0_56 = arith.constant 0 : index
    %c0_57 = arith.constant 0 : index
    %49 = vector.load %arg12[%c0_56, %c0_57] : memref<216x64xf32, #tpu.memory_space<vmem>>, vector<216x64xf32>
    tpu.vector_store %arg12[%c0_56, %c0_57], %48 {strides = array<i32>} : memref<216x64xf32, #tpu.memory_space<vmem>>, vector<216x64xf32>,
    %c848 = arith.constant 848 : index
    %c0_58 = arith.constant 0 : index
    %50 = vector.load %arg11[%c848, %c0_58] : memref<1120x32xf32, #tpu.memory_space<vmem>>, vector<216x32xf32>
    %c224 = arith.constant 224 : index
    %c0_59 = arith.constant 0 : index
    %51 = vector.load %arg4[%c224, %c0_59] : memref<512x64xf32, #tpu.memory_space<vmem>>, vector<32x64xf32>
    %cst_60 = arith.constant dense<0.000000e+00> : vector<216x64xf32>
    %52 = tpu.matmul %50, %51, %cst_60 {dimension_numbers = #tpu.dot_dimension_numbers<[1], [0], [0], [1], [0, 0, 1, 1], [], []>} : vector<216x32xf32>, vector<32x64xf32>, vector<216x64xf32> -> vector<216x64xf32>
    %c0_61 = arith.constant 0 : index
    %c0_62 = arith.constant 0 : index
    %53 = vector.load %arg12[%c0_61, %c0_62] : memref<216x64xf32, #tpu.memory_space<vmem>>, vector<216x64xf32>
    %54 = arith.addf %53, %52 : vector<216x64xf32>
    %c0_63 = arith.constant 0 : index
    %c0_64 = arith.constant 0 : index
    %55 = vector.load %arg12[%c0_63, %c0_64] : memref<216x64xf32, #tpu.memory_space<vmem>>, vector<216x64xf32>
    tpu.vector_store %arg12[%c0_63, %c0_64], %54 {strides = array<i32>} : memref<216x64xf32, #tpu.memory_space<vmem>>, vector<216x64xf32>,
    %c56 = arith.constant 56 : index
    %c0_65 = arith.constant 0 : index
    %56 = vector.load %arg11[%c56, %c0_65] : memref<1120x32xf32, #tpu.memory_space<vmem>>, vector<216x32xf32>
    %c256 = arith.constant 256 : index
    %c0_66 = arith.constant 0 : index
    %57 = vector.load %arg4[%c256, %c0_66] : memref<512x64xf32, #tpu.memory_space<vmem>>, vector<32x64xf32>
    %cst_67 = arith.constant dense<0.000000e+00> : vector<216x64xf32>
    %58 = tpu.matmul %56, %57, %cst_67 {dimension_numbers = #tpu.dot_dimension_numbers<[1], [0], [0], [1], [0, 0, 1, 1], [], []>} : vector<216x32xf32>, vector<32x64xf32>, vector<216x64xf32> -> vector<216x64xf32>
    %c0_68 = arith.constant 0 : index
    %c0_69 = arith.constant 0 : index
    %59 = vector.load %arg12[%c0_68, %c0_69] : memref<216x64xf32, #tpu.memory_space<vmem>>, vector<216x64xf32>
    %60 = arith.addf %59, %58 : vector<216x64xf32>
    %c0_70 = arith.constant 0 : index
    %c0_71 = arith.constant 0 : index
    %61 = vector.load %arg12[%c0_70, %c0_71] : memref<216x64xf32, #tpu.memory_space<vmem>>, vector<216x64xf32>
    tpu.vector_store %arg12[%c0_70, %c0_71], %60 {strides = array<i32>} : memref<216x64xf32, #tpu.memory_space<vmem>>, vector<216x64xf32>,
    %c336 = arith.constant 336 : index
    %c0_72 = arith.constant 0 : index
    %62 = vector.load %arg11[%c336, %c0_72] : memref<1120x32xf32, #tpu.memory_space<vmem>>, vector<216x32xf32>
    %c288_73 = arith.constant 288 : index
    %c0_74 = arith.constant 0 : index
    %63 = vector.load %arg4[%c288_73, %c0_74] : memref<512x64xf32, #tpu.memory_space<vmem>>, vector<32x64xf32>
    %cst_75 = arith.constant dense<0.000000e+00> : vector<216x64xf32>
    %64 = tpu.matmul %62, %63, %cst_75 {dimension_numbers = #tpu.dot_dimension_numbers<[1], [0], [0], [1], [0, 0, 1, 1], [], []>} : vector<216x32xf32>, vector<32x64xf32>, vector<216x64xf32> -> vector<216x64xf32>
    %c0_76 = arith.constant 0 : index
    %c0_77 = arith.constant 0 : index
    %65 = vector.load %arg12[%c0_76, %c0_77] : memref<216x64xf32, #tpu.memory_space<vmem>>, vector<216x64xf32>
    %66 = arith.addf %65, %64 : vector<216x64xf32>
    %c0_78 = arith.constant 0 : index
    %c0_79 = arith.constant 0 : index
    %67 = vector.load %arg12[%c0_78, %c0_79] : memref<216x64xf32, #tpu.memory_space<vmem>>, vector<216x64xf32>
    tpu.vector_store %arg12[%c0_78, %c0_79], %66 {strides = array<i32>} : memref<216x64xf32, #tpu.memory_space<vmem>>, vector<216x64xf32>,
    %c64_80 = arith.constant 64 : index
    %c0_81 = arith.constant 0 : index
    %68 = vector.load %arg11[%c64_80, %c0_81] : memref<1120x32xf32, #tpu.memory_space<vmem>>, vector<216x32xf32>
    %c320 = arith.constant 320 : index
    %c0_82 = arith.constant 0 : index
    %69 = vector.load %arg4[%c320, %c0_82] : memref<512x64xf32, #tpu.memory_space<vmem>>, vector<32x64xf32>
    %cst_83 = arith.constant dense<0.000000e+00> : vector<216x64xf32>
    %70 = tpu.matmul %68, %69, %cst_83 {dimension_numbers = #tpu.dot_dimension_numbers<[1], [0], [0], [1], [0, 0, 1, 1], [], []>} : vector<216x32xf32>, vector<32x64xf32>, vector<216x64xf32> -> vector<216x64xf32>
    %c0_84 = arith.constant 0 : index
    %c0_85 = arith.constant 0 : index
    %71 = vector.load %arg12[%c0_84, %c0_85] : memref<216x64xf32, #tpu.memory_space<vmem>>, vector<216x64xf32>
    %72 = arith.addf %71, %70 : vector<216x64xf32>
    %c0_86 = arith.constant 0 : index
    %c0_87 = arith.constant 0 : index
    %73 = vector.load %arg12[%c0_86, %c0_87] : memref<216x64xf32, #tpu.memory_space<vmem>>, vector<216x64xf32>
    tpu.vector_store %arg12[%c0_86, %c0_87], %72 {strides = array<i32>} : memref<216x64xf32, #tpu.memory_space<vmem>>, vector<216x64xf32>,
    %c344 = arith.constant 344 : index
    %c0_88 = arith.constant 0 : index
    %74 = vector.load %arg11[%c344, %c0_88] : memref<1120x32xf32, #tpu.memory_space<vmem>>, vector<216x32xf32>
    %c352 = arith.constant 352 : index
    %c0_89 = arith.constant 0 : index
    %75 = vector.load %arg4[%c352, %c0_89] : memref<512x64xf32, #tpu.memory_space<vmem>>, vector<32x64xf32>
    %cst_90 = arith.constant dense<0.000000e+00> : vector<216x64xf32>
    %76 = tpu.matmul %74, %75, %cst_90 {dimension_numbers = #tpu.dot_dimension_numbers<[1], [0], [0], [1], [0, 0, 1, 1], [], []>} : vector<216x32xf32>, vector<32x64xf32>, vector<216x64xf32> -> vector<216x64xf32>
    %c0_91 = arith.constant 0 : index
    %c0_92 = arith.constant 0 : index
    %77 = vector.load %arg12[%c0_91, %c0_92] : memref<216x64xf32, #tpu.memory_space<vmem>>, vector<216x64xf32>
    %78 = arith.addf %77, %76 : vector<216x64xf32>
    %c0_93 = arith.constant 0 : index
    %c0_94 = arith.constant 0 : index
    %79 = vector.load %arg12[%c0_93, %c0_94] : memref<216x64xf32, #tpu.memory_space<vmem>>, vector<216x64xf32>
    tpu.vector_store %arg12[%c0_93, %c0_94], %78 {strides = array<i32>} : memref<216x64xf32, #tpu.memory_space<vmem>>, vector<216x64xf32>,
    %c616 = arith.constant 616 : index
    %c0_95 = arith.constant 0 : index
    %80 = vector.load %arg11[%c616, %c0_95] : memref<1120x32xf32, #tpu.memory_space<vmem>>, vector<216x32xf32>
    %c384 = arith.constant 384 : index
    %c0_96 = arith.constant 0 : index
    %81 = vector.load %arg4[%c384, %c0_96] : memref<512x64xf32, #tpu.memory_space<vmem>>, vector<32x64xf32>
    %cst_97 = arith.constant dense<0.000000e+00> : vector<216x64xf32>
    %82 = tpu.matmul %80, %81, %cst_97 {dimension_numbers = #tpu.dot_dimension_numbers<[1], [0], [0], [1], [0, 0, 1, 1], [], []>} : vector<216x32xf32>, vector<32x64xf32>, vector<216x64xf32> -> vector<216x64xf32>
    %c0_98 = arith.constant 0 : index
    %c0_99 = arith.constant 0 : index
    %83 = vector.load %arg12[%c0_98, %c0_99] : memref<216x64xf32, #tpu.memory_space<vmem>>, vector<216x64xf32>
    %84 = arith.addf %83, %82 : vector<216x64xf32>
    %c0_100 = arith.constant 0 : index
    %c0_101 = arith.constant 0 : index
    %85 = vector.load %arg12[%c0_100, %c0_101] : memref<216x64xf32, #tpu.memory_space<vmem>>, vector<216x64xf32>
    tpu.vector_store %arg12[%c0_100, %c0_101], %84 {strides = array<i32>} : memref<216x64xf32, #tpu.memory_space<vmem>>, vector<216x64xf32>,
    %c896 = arith.constant 896 : index
    %c0_102 = arith.constant 0 : index
    %86 = vector.load %arg11[%c896, %c0_102] : memref<1120x32xf32, #tpu.memory_space<vmem>>, vector<216x32xf32>
    %c416 = arith.constant 416 : index
    %c0_103 = arith.constant 0 : index
    %87 = vector.load %arg4[%c416, %c0_103] : memref<512x64xf32, #tpu.memory_space<vmem>>, vector<32x64xf32>
    %cst_104 = arith.constant dense<0.000000e+00> : vector<216x64xf32>
    %88 = tpu.matmul %86, %87, %cst_104 {dimension_numbers = #tpu.dot_dimension_numbers<[1], [0], [0], [1], [0, 0, 1, 1], [], []>} : vector<216x32xf32>, vector<32x64xf32>, vector<216x64xf32> -> vector<216x64xf32>
    %c0_105 = arith.constant 0 : index
    %c0_106 = arith.constant 0 : index
    %89 = vector.load %arg12[%c0_105, %c0_106] : memref<216x64xf32, #tpu.memory_space<vmem>>, vector<216x64xf32>
    %90 = arith.addf %89, %88 : vector<216x64xf32>
    %c0_107 = arith.constant 0 : index
    %c0_108 = arith.constant 0 : index
    %91 = vector.load %arg12[%c0_107, %c0_108] : memref<216x64xf32, #tpu.memory_space<vmem>>, vector<216x64xf32>
    tpu.vector_store %arg12[%c0_107, %c0_108], %90 {strides = array<i32>} : memref<216x64xf32, #tpu.memory_space<vmem>>, vector<216x64xf32>,
    %c624 = arith.constant 624 : index
    %c0_109 = arith.constant 0 : index
    %92 = vector.load %arg11[%c624, %c0_109] : memref<1120x32xf32, #tpu.memory_space<vmem>>, vector<216x32xf32>
    %c448 = arith.constant 448 : index
    %c0_110 = arith.constant 0 : index
    %93 = vector.load %arg4[%c448, %c0_110] : memref<512x64xf32, #tpu.memory_space<vmem>>, vector<32x64xf32>
    %cst_111 = arith.constant dense<0.000000e+00> : vector<216x64xf32>
    %94 = tpu.matmul %92, %93, %cst_111 {dimension_numbers = #tpu.dot_dimension_numbers<[1], [0], [0], [1], [0, 0, 1, 1], [], []>} : vector<216x32xf32>, vector<32x64xf32>, vector<216x64xf32> -> vector<216x64xf32>
    %c0_112 = arith.constant 0 : index
    %c0_113 = arith.constant 0 : index
    %95 = vector.load %arg12[%c0_112, %c0_113] : memref<216x64xf32, #tpu.memory_space<vmem>>, vector<216x64xf32>
    %96 = arith.addf %95, %94 : vector<216x64xf32>
    %c0_114 = arith.constant 0 : index
    %c0_115 = arith.constant 0 : index
    %97 = vector.load %arg12[%c0_114, %c0_115] : memref<216x64xf32, #tpu.memory_space<vmem>>, vector<216x64xf32>
    tpu.vector_store %arg12[%c0_114, %c0_115], %96 {strides = array<i32>} : memref<216x64xf32, #tpu.memory_space<vmem>>, vector<216x64xf32>,
    %c904 = arith.constant 904 : index
    %c0_116 = arith.constant 0 : index
    %98 = vector.load %arg11[%c904, %c0_116] : memref<1120x32xf32, #tpu.memory_space<vmem>>, vector<216x32xf32>
    %c480 = arith.constant 480 : index
    %c0_117 = arith.constant 0 : index
    %99 = vector.load %arg4[%c480, %c0_117] : memref<512x64xf32, #tpu.memory_space<vmem>>, vector<32x64xf32>
    %cst_118 = arith.constant dense<0.000000e+00> : vector<216x64xf32>
    %100 = tpu.matmul %98, %99, %cst_118 {dimension_numbers = #tpu.dot_dimension_numbers<[1], [0], [0], [1], [0, 0, 1, 1], [], []>} : vector<216x32xf32>, vector<32x64xf32>, vector<216x64xf32> -> vector<216x64xf32>
    %c0_119 = arith.constant 0 : index
    %c0_120 = arith.constant 0 : index
    %101 = vector.load %arg12[%c0_119, %c0_120] : memref<216x64xf32, #tpu.memory_space<vmem>>, vector<216x64xf32>
    %102 = arith.addf %101, %100 : vector<216x64xf32>
    %c0_121 = arith.constant 0 : index
    %c0_122 = arith.constant 0 : index
    %103 = vector.load %arg12[%c0_121, %c0_122] : memref<216x64xf32, #tpu.memory_space<vmem>>, vector<216x64xf32>
    tpu.vector_store %arg12[%c0_121, %c0_122], %102 {strides = array<i32>} : memref<216x64xf32, #tpu.memory_space<vmem>>, vector<216x64xf32>,
    %c0_123 = arith.constant 0 : index
    %c0_124 = arith.constant 0 : index
    %104 = vector.load %arg12[%c0_123, %c0_124] : memref<216x64xf32, #tpu.memory_space<vmem>>, vector<216x64xf32>
    %c0_125 = arith.constant 0 : index
    %c0_126 = arith.constant 0 : index
    %105 = vector.load %arg5[%c0_125, %c0_126] : memref<1x64xf32, #tpu.memory_space<vmem>>, vector<1x64xf32>
    %106 = vector.broadcast %105 : vector<1x64xf32> to vector<216x64xf32>
    %107 = arith.addf %104, %106 : vector<216x64xf32>
    %cst_127 = arith.constant 0.000000e+00 : f32
    %108 = vector.broadcast %cst_127 : f32 to vector<216x64xf32>
    %109 = arith.maximumf %107, %108 : vector<216x64xf32>
    %c0_128 = arith.constant 0 : index
    %c0_129 = arith.constant 0 : index
    %110 = vector.load %arg12[%c0_128, %c0_129] : memref<216x64xf32, #tpu.memory_space<vmem>>, vector<216x64xf32>
    tpu.vector_store %arg12[%c0_128, %c0_129], %109 {strides = array<i32>} : memref<216x64xf32, #tpu.memory_space<vmem>>, vector<216x64xf32>,
    %c0_130 = arith.constant 0 : index
    %c0_131 = arith.constant 0 : index
    %111 = vector.load %arg12[%c0_130, %c0_131] : memref<216x64xf32, #tpu.memory_space<vmem>>, vector<88x64xf32>
    %c0_132 = arith.constant 0 : index
    %c0_133 = arith.constant 0 : index
    %112 = vector.load %arg6[%c0_132, %c0_133] : memref<576x64xf32, #tpu.memory_space<vmem>>, vector<64x64xf32>
    %cst_134 = arith.constant dense<0.000000e+00> : vector<88x64xf32>
    %113 = tpu.matmul %111, %112, %cst_134 {dimension_numbers = #tpu.dot_dimension_numbers<[1], [0], [0], [1], [0, 0, 1, 1], [], []>} : vector<88x64xf32>, vector<64x64xf32>, vector<88x64xf32> -> vector<88x64xf32>
    %c0_135 = arith.constant 0 : index
    %c0_136 = arith.constant 0 : index
    %114 = vector.load %arg13[%c0_135, %c0_136] : memref<88x64xf32, #tpu.memory_space<vmem>>, vector<88x64xf32>
    tpu.vector_store %arg13[%c0_135, %c0_136], %113 {strides = array<i32>} : memref<88x64xf32, #tpu.memory_space<vmem>>, vector<88x64xf32>,
    %c8_137 = arith.constant 8 : index
    %c0_138 = arith.constant 0 : index
    %115 = vector.load %arg12[%c8_137, %c0_138] : memref<216x64xf32, #tpu.memory_space<vmem>>, vector<88x64xf32>
    %c64_139 = arith.constant 64 : index
    %c0_140 = arith.constant 0 : index
    %116 = vector.load %arg6[%c64_139, %c0_140] : memref<576x64xf32, #tpu.memory_space<vmem>>, vector<64x64xf32>
    %cst_141 = arith.constant dense<0.000000e+00> : vector<88x64xf32>
    %117 = tpu.matmul %115, %116, %cst_141 {dimension_numbers = #tpu.dot_dimension_numbers<[1], [0], [0], [1], [0, 0, 1, 1], [], []>} : vector<88x64xf32>, vector<64x64xf32>, vector<88x64xf32> -> vector<88x64xf32>
    %c0_142 = arith.constant 0 : index
    %c0_143 = arith.constant 0 : index
    %118 = vector.load %arg13[%c0_142, %c0_143] : memref<88x64xf32, #tpu.memory_space<vmem>>, vector<88x64xf32>
    %119 = arith.addf %118, %117 : vector<88x64xf32>
    %c0_144 = arith.constant 0 : index
    %c0_145 = arith.constant 0 : index
    %120 = vector.load %arg13[%c0_144, %c0_145] : memref<88x64xf32, #tpu.memory_space<vmem>>, vector<88x64xf32>
    tpu.vector_store %arg13[%c0_144, %c0_145], %119 {strides = array<i32>} : memref<88x64xf32, #tpu.memory_space<vmem>>, vector<88x64xf32>,
    %c16 = arith.constant 16 : index
    %c0_146 = arith.constant 0 : index
    %121 = vector.load %arg12[%c16, %c0_146] : memref<216x64xf32, #tpu.memory_space<vmem>>, vector<88x64xf32>
    %c128_147 = arith.constant 128 : index
    %c0_148 = arith.constant 0 : index
    %122 = vector.load %arg6[%c128_147, %c0_148] : memref<576x64xf32, #tpu.memory_space<vmem>>, vector<64x64xf32>
    %cst_149 = arith.constant dense<0.000000e+00> : vector<88x64xf32>
    %123 = tpu.matmul %121, %122, %cst_149 {dimension_numbers = #tpu.dot_dimension_numbers<[1], [0], [0], [1], [0, 0, 1, 1], [], []>} : vector<88x64xf32>, vector<64x64xf32>, vector<88x64xf32> -> vector<88x64xf32>
    %c0_150 = arith.constant 0 : index
    %c0_151 = arith.constant 0 : index
    %124 = vector.load %arg13[%c0_150, %c0_151] : memref<88x64xf32, #tpu.memory_space<vmem>>, vector<88x64xf32>
    %125 = arith.addf %124, %123 : vector<88x64xf32>
    %c0_152 = arith.constant 0 : index
    %c0_153 = arith.constant 0 : index
    %126 = vector.load %arg13[%c0_152, %c0_153] : memref<88x64xf32, #tpu.memory_space<vmem>>, vector<88x64xf32>
    tpu.vector_store %arg13[%c0_152, %c0_153], %125 {strides = array<i32>} : memref<88x64xf32, #tpu.memory_space<vmem>>, vector<88x64xf32>,
    %c56_154 = arith.constant 56 : index
    %c0_155 = arith.constant 0 : index
    %127 = vector.load %arg12[%c56_154, %c0_155] : memref<216x64xf32, #tpu.memory_space<vmem>>, vector<88x64xf32>
    %c192_156 = arith.constant 192 : index
    %c0_157 = arith.constant 0 : index
    %128 = vector.load %arg6[%c192_156, %c0_157] : memref<576x64xf32, #tpu.memory_space<vmem>>, vector<64x64xf32>
    %cst_158 = arith.constant dense<0.000000e+00> : vector<88x64xf32>
    %129 = tpu.matmul %127, %128, %cst_158 {dimension_numbers = #tpu.dot_dimension_numbers<[1], [0], [0], [1], [0, 0, 1, 1], [], []>} : vector<88x64xf32>, vector<64x64xf32>, vector<88x64xf32> -> vector<88x64xf32>
    %c0_159 = arith.constant 0 : index
    %c0_160 = arith.constant 0 : index
    %130 = vector.load %arg13[%c0_159, %c0_160] : memref<88x64xf32, #tpu.memory_space<vmem>>, vector<88x64xf32>
    %131 = arith.addf %130, %129 : vector<88x64xf32>
    %c0_161 = arith.constant 0 : index
    %c0_162 = arith.constant 0 : index
    %132 = vector.load %arg13[%c0_161, %c0_162] : memref<88x64xf32, #tpu.memory_space<vmem>>, vector<88x64xf32>
    tpu.vector_store %arg13[%c0_161, %c0_162], %131 {strides = array<i32>} : memref<88x64xf32, #tpu.memory_space<vmem>>, vector<88x64xf32>,
    %c64_163 = arith.constant 64 : index
    %c0_164 = arith.constant 0 : index
    %133 = vector.load %arg12[%c64_163, %c0_164] : memref<216x64xf32, #tpu.memory_space<vmem>>, vector<88x64xf32>
    %c256_165 = arith.constant 256 : index
    %c0_166 = arith.constant 0 : index
    %134 = vector.load %arg6[%c256_165, %c0_166] : memref<576x64xf32, #tpu.memory_space<vmem>>, vector<64x64xf32>
    %cst_167 = arith.constant dense<0.000000e+00> : vector<88x64xf32>
    %135 = tpu.matmul %133, %134, %cst_167 {dimension_numbers = #tpu.dot_dimension_numbers<[1], [0], [0], [1], [0, 0, 1, 1], [], []>} : vector<88x64xf32>, vector<64x64xf32>, vector<88x64xf32> -> vector<88x64xf32>
    %c0_168 = arith.constant 0 : index
    %c0_169 = arith.constant 0 : index
    %136 = vector.load %arg13[%c0_168, %c0_169] : memref<88x64xf32, #tpu.memory_space<vmem>>, vector<88x64xf32>
    %137 = arith.addf %136, %135 : vector<88x64xf32>
    %c0_170 = arith.constant 0 : index
    %c0_171 = arith.constant 0 : index
    %138 = vector.load %arg13[%c0_170, %c0_171] : memref<88x64xf32, #tpu.memory_space<vmem>>, vector<88x64xf32>
    tpu.vector_store %arg13[%c0_170, %c0_171], %137 {strides = array<i32>} : memref<88x64xf32, #tpu.memory_space<vmem>>, vector<88x64xf32>,
    %c72 = arith.constant 72 : index
    %c0_172 = arith.constant 0 : index
    %139 = vector.load %arg12[%c72, %c0_172] : memref<216x64xf32, #tpu.memory_space<vmem>>, vector<88x64xf32>
    %c320_173 = arith.constant 320 : index
    %c0_174 = arith.constant 0 : index
    %140 = vector.load %arg6[%c320_173, %c0_174] : memref<576x64xf32, #tpu.memory_space<vmem>>, vector<64x64xf32>
    %cst_175 = arith.constant dense<0.000000e+00> : vector<88x64xf32>
    %141 = tpu.matmul %139, %140, %cst_175 {dimension_numbers = #tpu.dot_dimension_numbers<[1], [0], [0], [1], [0, 0, 1, 1], [], []>} : vector<88x64xf32>, vector<64x64xf32>, vector<88x64xf32> -> vector<88x64xf32>
    %c0_176 = arith.constant 0 : index
    %c0_177 = arith.constant 0 : index
    %142 = vector.load %arg13[%c0_176, %c0_177] : memref<88x64xf32, #tpu.memory_space<vmem>>, vector<88x64xf32>
    %143 = arith.addf %142, %141 : vector<88x64xf32>
    %c0_178 = arith.constant 0 : index
    %c0_179 = arith.constant 0 : index
    %144 = vector.load %arg13[%c0_178, %c0_179] : memref<88x64xf32, #tpu.memory_space<vmem>>, vector<88x64xf32>
    tpu.vector_store %arg13[%c0_178, %c0_179], %143 {strides = array<i32>} : memref<88x64xf32, #tpu.memory_space<vmem>>, vector<88x64xf32>,
    %c112 = arith.constant 112 : index
    %c0_180 = arith.constant 0 : index
    %145 = vector.load %arg12[%c112, %c0_180] : memref<216x64xf32, #tpu.memory_space<vmem>>, vector<88x64xf32>
    %c384_181 = arith.constant 384 : index
    %c0_182 = arith.constant 0 : index
    %146 = vector.load %arg6[%c384_181, %c0_182] : memref<576x64xf32, #tpu.memory_space<vmem>>, vector<64x64xf32>
    %cst_183 = arith.constant dense<0.000000e+00> : vector<88x64xf32>
    %147 = tpu.matmul %145, %146, %cst_183 {dimension_numbers = #tpu.dot_dimension_numbers<[1], [0], [0], [1], [0, 0, 1, 1], [], []>} : vector<88x64xf32>, vector<64x64xf32>, vector<88x64xf32> -> vector<88x64xf32>
    %c0_184 = arith.constant 0 : index
    %c0_185 = arith.constant 0 : index
    %148 = vector.load %arg13[%c0_184, %c0_185] : memref<88x64xf32, #tpu.memory_space<vmem>>, vector<88x64xf32>
    %149 = arith.addf %148, %147 : vector<88x64xf32>
    %c0_186 = arith.constant 0 : index
    %c0_187 = arith.constant 0 : index
    %150 = vector.load %arg13[%c0_186, %c0_187] : memref<88x64xf32, #tpu.memory_space<vmem>>, vector<88x64xf32>
    tpu.vector_store %arg13[%c0_186, %c0_187], %149 {strides = array<i32>} : memref<88x64xf32, #tpu.memory_space<vmem>>, vector<88x64xf32>,
    %c120 = arith.constant 120 : index
    %c0_188 = arith.constant 0 : index
    %151 = vector.load %arg12[%c120, %c0_188] : memref<216x64xf32, #tpu.memory_space<vmem>>, vector<88x64xf32>
    %c448_189 = arith.constant 448 : index
    %c0_190 = arith.constant 0 : index
    %152 = vector.load %arg6[%c448_189, %c0_190] : memref<576x64xf32, #tpu.memory_space<vmem>>, vector<64x64xf32>
    %cst_191 = arith.constant dense<0.000000e+00> : vector<88x64xf32>
    %153 = tpu.matmul %151, %152, %cst_191 {dimension_numbers = #tpu.dot_dimension_numbers<[1], [0], [0], [1], [0, 0, 1, 1], [], []>} : vector<88x64xf32>, vector<64x64xf32>, vector<88x64xf32> -> vector<88x64xf32>
    %c0_192 = arith.constant 0 : index
    %c0_193 = arith.constant 0 : index
    %154 = vector.load %arg13[%c0_192, %c0_193] : memref<88x64xf32, #tpu.memory_space<vmem>>, vector<88x64xf32>
    %155 = arith.addf %154, %153 : vector<88x64xf32>
    %c0_194 = arith.constant 0 : index
    %c0_195 = arith.constant 0 : index
    %156 = vector.load %arg13[%c0_194, %c0_195] : memref<88x64xf32, #tpu.memory_space<vmem>>, vector<88x64xf32>
    tpu.vector_store %arg13[%c0_194, %c0_195], %155 {strides = array<i32>} : memref<88x64xf32, #tpu.memory_space<vmem>>, vector<88x64xf32>,
    %c128_196 = arith.constant 128 : index
    %c0_197 = arith.constant 0 : index
    %157 = vector.load %arg12[%c128_196, %c0_197] : memref<216x64xf32, #tpu.memory_space<vmem>>, vector<88x64xf32>
    %c512 = arith.constant 512 : index
    %c0_198 = arith.constant 0 : index
    %158 = vector.load %arg6[%c512, %c0_198] : memref<576x64xf32, #tpu.memory_space<vmem>>, vector<64x64xf32>
    %cst_199 = arith.constant dense<0.000000e+00> : vector<88x64xf32>
    %159 = tpu.matmul %157, %158, %cst_199 {dimension_numbers = #tpu.dot_dimension_numbers<[1], [0], [0], [1], [0, 0, 1, 1], [], []>} : vector<88x64xf32>, vector<64x64xf32>, vector<88x64xf32> -> vector<88x64xf32>
    %c0_200 = arith.constant 0 : index
    %c0_201 = arith.constant 0 : index
    %160 = vector.load %arg13[%c0_200, %c0_201] : memref<88x64xf32, #tpu.memory_space<vmem>>, vector<88x64xf32>
    %161 = arith.addf %160, %159 : vector<88x64xf32>
    %c0_202 = arith.constant 0 : index
    %c0_203 = arith.constant 0 : index
    %162 = vector.load %arg13[%c0_202, %c0_203] : memref<88x64xf32, #tpu.memory_space<vmem>>, vector<88x64xf32>
    tpu.vector_store %arg13[%c0_202, %c0_203], %161 {strides = array<i32>} : memref<88x64xf32, #tpu.memory_space<vmem>>, vector<88x64xf32>,
    %c0_204 = arith.constant 0 : index
    %c0_205 = arith.constant 0 : index
    %163 = vector.load %arg13[%c0_204, %c0_205] : memref<88x64xf32, #tpu.memory_space<vmem>>, vector<88x64xf32>
    %c0_206 = arith.constant 0 : index
    %c0_207 = arith.constant 0 : index
    %164 = vector.load %arg7[%c0_206, %c0_207] : memref<1x64xf32, #tpu.memory_space<vmem>>, vector<1x64xf32>
    %165 = vector.broadcast %164 : vector<1x64xf32> to vector<88x64xf32>
    %166 = arith.addf %163, %165 : vector<88x64xf32>
    %cst_208 = arith.constant 0.000000e+00 : f32
    %167 = vector.broadcast %cst_208 : f32 to vector<88x64xf32>
    %168 = arith.maximumf %166, %167 : vector<88x64xf32>
    %c0_209 = arith.constant 0 : index
    %c0_210 = arith.constant 0 : index
    %169 = vector.load %arg13[%c0_209, %c0_210] : memref<88x64xf32, #tpu.memory_space<vmem>>, vector<88x64xf32>
    tpu.vector_store %arg13[%c0_209, %c0_210], %168 {strides = array<i32>} : memref<88x64xf32, #tpu.memory_space<vmem>>, vector<88x64xf32>,
    %cst_211 = arith.constant 0.000000e+00 : f32
    %170 = vector.broadcast %cst_211 : f32 to vector<8x128xf32>
    %c0_212 = arith.constant 0 : index
    %c0_213 = arith.constant 0 : index
    %171 = vector.load %arg13[%c0_212, %c0_213] : memref<88x64xf32, #tpu.memory_space<vmem>>, vector<8x64xf32>
    %c0_214 = arith.constant 0 : index
    %c0_215 = arith.constant 0 : index
    %172 = vector.load %arg8[%c0_214, %c0_215] : memref<512x128xf32, #tpu.memory_space<vmem>>, vector<64x128xf32>
    %cst_216 = arith.constant dense<0.000000e+00> : vector<8x128xf32>
    %173 = tpu.matmul %171, %172, %cst_216 {dimension_numbers = #tpu.dot_dimension_numbers<[1], [0], [0], [1], [0, 0, 1, 1], [], []>} : vector<8x64xf32>, vector<64x128xf32>, vector<8x128xf32> -> vector<8x128xf32>
    %174 = arith.addf %170, %173 : vector<8x128xf32>
    %c8_217 = arith.constant 8 : index
    %c0_218 = arith.constant 0 : index
    %175 = vector.load %arg13[%c8_217, %c0_218] : memref<88x64xf32, #tpu.memory_space<vmem>>, vector<8x64xf32>
    %c64_219 = arith.constant 64 : index
    %c0_220 = arith.constant 0 : index
    %176 = vector.load %arg8[%c64_219, %c0_220] : memref<512x128xf32, #tpu.memory_space<vmem>>, vector<64x128xf32>
    %cst_221 = arith.constant dense<0.000000e+00> : vector<8x128xf32>
    %177 = tpu.matmul %175, %176, %cst_221 {dimension_numbers = #tpu.dot_dimension_numbers<[1], [0], [0], [1], [0, 0, 1, 1], [], []>} : vector<8x64xf32>, vector<64x128xf32>, vector<8x128xf32> -> vector<8x128xf32>
    %178 = arith.addf %174, %177 : vector<8x128xf32>
    %c16_222 = arith.constant 16 : index
    %c0_223 = arith.constant 0 : index
    %179 = vector.load %arg13[%c16_222, %c0_223] : memref<88x64xf32, #tpu.memory_space<vmem>>, vector<8x64xf32>
    %c128_224 = arith.constant 128 : index
    %c0_225 = arith.constant 0 : index
    %180 = vector.load %arg8[%c128_224, %c0_225] : memref<512x128xf32, #tpu.memory_space<vmem>>, vector<64x128xf32>
    %cst_226 = arith.constant dense<0.000000e+00> : vector<8x128xf32>
    %181 = tpu.matmul %179, %180, %cst_226 {dimension_numbers = #tpu.dot_dimension_numbers<[1], [0], [0], [1], [0, 0, 1, 1], [], []>} : vector<8x64xf32>, vector<64x128xf32>, vector<8x128xf32> -> vector<8x128xf32>
    %182 = arith.addf %178, %181 : vector<8x128xf32>
    %c24 = arith.constant 24 : index
    %c0_227 = arith.constant 0 : index
    %183 = vector.load %arg13[%c24, %c0_227] : memref<88x64xf32, #tpu.memory_space<vmem>>, vector<8x64xf32>
    %c192_228 = arith.constant 192 : index
    %c0_229 = arith.constant 0 : index
    %184 = vector.load %arg8[%c192_228, %c0_229] : memref<512x128xf32, #tpu.memory_space<vmem>>, vector<64x128xf32>
    %cst_230 = arith.constant dense<0.000000e+00> : vector<8x128xf32>
    %185 = tpu.matmul %183, %184, %cst_230 {dimension_numbers = #tpu.dot_dimension_numbers<[1], [0], [0], [1], [0, 0, 1, 1], [], []>} : vector<8x64xf32>, vector<64x128xf32>, vector<8x128xf32> -> vector<8x128xf32>
    %186 = arith.addf %182, %185 : vector<8x128xf32>
    %c56_231 = arith.constant 56 : index
    %c0_232 = arith.constant 0 : index
    %187 = vector.load %arg13[%c56_231, %c0_232] : memref<88x64xf32, #tpu.memory_space<vmem>>, vector<8x64xf32>
    %c256_233 = arith.constant 256 : index
    %c0_234 = arith.constant 0 : index
    %188 = vector.load %arg8[%c256_233, %c0_234] : memref<512x128xf32, #tpu.memory_space<vmem>>, vector<64x128xf32>
    %cst_235 = arith.constant dense<0.000000e+00> : vector<8x128xf32>
    %189 = tpu.matmul %187, %188, %cst_235 {dimension_numbers = #tpu.dot_dimension_numbers<[1], [0], [0], [1], [0, 0, 1, 1], [], []>} : vector<8x64xf32>, vector<64x128xf32>, vector<8x128xf32> -> vector<8x128xf32>
    %190 = arith.addf %186, %189 : vector<8x128xf32>
    %c64_236 = arith.constant 64 : index
    %c0_237 = arith.constant 0 : index
    %191 = vector.load %arg13[%c64_236, %c0_237] : memref<88x64xf32, #tpu.memory_space<vmem>>, vector<8x64xf32>
    %c320_238 = arith.constant 320 : index
    %c0_239 = arith.constant 0 : index
    %192 = vector.load %arg8[%c320_238, %c0_239] : memref<512x128xf32, #tpu.memory_space<vmem>>, vector<64x128xf32>
    %cst_240 = arith.constant dense<0.000000e+00> : vector<8x128xf32>
    %193 = tpu.matmul %191, %192, %cst_240 {dimension_numbers = #tpu.dot_dimension_numbers<[1], [0], [0], [1], [0, 0, 1, 1], [], []>} : vector<8x64xf32>, vector<64x128xf32>, vector<8x128xf32> -> vector<8x128xf32>
    %194 = arith.addf %190, %193 : vector<8x128xf32>
    %c72_241 = arith.constant 72 : index
    %c0_242 = arith.constant 0 : index
    %195 = vector.load %arg13[%c72_241, %c0_242] : memref<88x64xf32, #tpu.memory_space<vmem>>, vector<8x64xf32>
    %c384_243 = arith.constant 384 : index
    %c0_244 = arith.constant 0 : index
    %196 = vector.load %arg8[%c384_243, %c0_244] : memref<512x128xf32, #tpu.memory_space<vmem>>, vector<64x128xf32>
    %cst_245 = arith.constant dense<0.000000e+00> : vector<8x128xf32>
    %197 = tpu.matmul %195, %196, %cst_245 {dimension_numbers = #tpu.dot_dimension_numbers<[1], [0], [0], [1], [0, 0, 1, 1], [], []>} : vector<8x64xf32>, vector<64x128xf32>, vector<8x128xf32> -> vector<8x128xf32>
    %198 = arith.addf %194, %197 : vector<8x128xf32>
    %c80 = arith.constant 80 : index
    %c0_246 = arith.constant 0 : index
    %199 = vector.load %arg13[%c80, %c0_246] : memref<88x64xf32, #tpu.memory_space<vmem>>, vector<8x64xf32>
    %c448_247 = arith.constant 448 : index
    %c0_248 = arith.constant 0 : index
    %200 = vector.load %arg8[%c448_247, %c0_248] : memref<512x128xf32, #tpu.memory_space<vmem>>, vector<64x128xf32>
    %cst_249 = arith.constant dense<0.000000e+00> : vector<8x128xf32>
    %201 = tpu.matmul %199, %200, %cst_249 {dimension_numbers = #tpu.dot_dimension_numbers<[1], [0], [0], [1], [0, 0, 1, 1], [], []>} : vector<8x64xf32>, vector<64x128xf32>, vector<8x128xf32> -> vector<8x128xf32>
    %202 = arith.addf %198, %201 : vector<8x128xf32>
    %c0_250 = arith.constant 0 : index
    %c0_251 = arith.constant 0 : index
    %203 = vector.load %arg9[%c0_250, %c0_251] : memref<1x128xf32, #tpu.memory_space<vmem>>, vector<1x128xf32>
    %204 = vector.broadcast %203 : vector<1x128xf32> to vector<8x128xf32>
    %205 = arith.addf %202, %204 : vector<8x128xf32>
    %c0_252 = arith.constant 0 : index
    %c0_253 = arith.constant 0 : index
    %206 = vector.load %arg10[%c0_252, %c0_253] : memref<8x128xf32, #tpu.memory_space<vmem>>, vector<8x128xf32>
    tpu.vector_store %arg10[%c0_252, %c0_253], %205 {strides = array<i32>} : memref<8x128xf32, #tpu.memory_space<vmem>>, vector<8x128xf32>,
    return
  }
  func.func @transform_0(%arg0: i32) -> (i32, i32, i32) {
    %c0_i32 = arith.constant 0 : i32
    %c0_i32_0 = arith.constant 0 : i32
    %c0_i32_1 = arith.constant 0 : i32
    return %arg0, %c0_i32, %c0_i32_0 : i32, i32, i32
  }
  func.func @transform_1(%arg0: i32) -> (i32, i32) {
    %c0_i32 = arith.constant 0 : i32
    %c0_i32_0 = arith.constant 0 : i32
    %c0_i32_1 = arith.constant 0 : i32
    return %c0_i32, %c0_i32_0 : i32, i32
  }
  func.func @transform_2(%arg0: i32) -> (i32, i32) {
    %c0_i32 = arith.constant 0 : i32
    %c0_i32_0 = arith.constant 0 : i32
    %c0_i32_1 = arith.constant 0 : i32
    return %c0_i32, %c0_i32_0 : i32, i32
  }
  func.func @transform_3(%arg0: i32) -> (i32, i32) {
    %c0_i32 = arith.constant 0 : i32
    %c0_i32_0 = arith.constant 0 : i32
    %c0_i32_1 = arith.constant 0 : i32
    return %c0_i32, %c0_i32_0 : i32, i32
  }
  func.func @transform_4(%arg0: i32) -> (i32, i32) {
    %c0_i32 = arith.constant 0 : i32
    %c0_i32_0 = arith.constant 0 : i32
    %c0_i32_1 = arith.constant 0 : i32
    return %c0_i32, %c0_i32_0 : i32, i32
  }
  func.func @transform_5(%arg0: i32) -> (i32, i32) {
    %c0_i32 = arith.constant 0 : i32
    %c0_i32_0 = arith.constant 0 : i32
    %c0_i32_1 = arith.constant 0 : i32
    return %c0_i32, %c0_i32_0 : i32, i32
  }
  func.func @transform_6(%arg0: i32) -> (i32, i32) {
    %c0_i32 = arith.constant 0 : i32
    %c0_i32_0 = arith.constant 0 : i32
    %c0_i32_1 = arith.constant 0 : i32
    return %c0_i32, %c0_i32_0 : i32, i32
  }
  func.func @transform_7(%arg0: i32) -> (i32, i32) {
    %c0_i32 = arith.constant 0 : i32
    %c0_i32_0 = arith.constant 0 : i32
    %c0_i32_1 = arith.constant 0 : i32
    return %c0_i32, %c0_i32_0 : i32, i32
  }
  func.func @transform_8(%arg0: i32) -> (i32, i32) {
    %c0_i32 = arith.constant 0 : i32
    %c0_i32_0 = arith.constant 0 : i32
    %c0_i32_1 = arith.constant 0 : i32
    return %c0_i32, %c0_i32_0 : i32, i32
  }
  func.func @transform_9(%arg0: i32) -> (i32, i32) {
    %c0_i32 = arith.constant 0 : i32
    %c0_i32_0 = arith.constant 0 : i32
    return %arg0, %c0_i32 : i32, i32
  }
}

</mosaic_0001>

<llo_original>
// kernel: nature_cnn_forward.1
$region0: #{nature_cnn_forward.1}
  #allocation0 [shape = 'u32[]', space=smem, size = 0x4, offset = 0x4, fixed_abs, tag = 'smem constant byte address 0x4 - core index']
  #allocation1 [shape = 'u32[144,128]{1,0:T(1,128)}', space=vmem, size = 0x12000, scoped, tag = 'internal scratch']
  #allocation2 [shape = 'f32[1120,32]{1,0:T(8,128)}', space=vmem, size = 0x8c000, scoped, tag = 'scratch operand']
  #allocation3 [shape = 'f32[216,64]{1,0:T(8,128)}', space=vmem, size = 0x1b000, scoped, tag = 'scratch operand']
  #allocation4 [shape = 'f32[88,64]{1,0:T(8,128)}', space=vmem, size = 0xb000, scoped, tag = 'scratch operand']
  %s0 = inlined_call_operand.vmem [shape: f32[2,1120,192], index: 0, kind: input, shape index: {}]
  %s1 = inlined_call_operand.vmem [shape: f32[192,32], index: 1, kind: input, shape index: {}]
  %s2 = inlined_call_operand.vmem [shape: f32[1,32], index: 2, kind: input, shape index: {}]
  %s3 = inlined_call_operand.vmem [shape: f32[512,64], index: 3, kind: input, shape index: {}]
  %s4 = inlined_call_operand.vmem [shape: f32[1,64], index: 4, kind: input, shape index: {}]
  %s5 = inlined_call_operand.vmem [shape: f32[576,64], index: 5, kind: input, shape index: {}]
  %s6 = inlined_call_operand.vmem [shape: f32[1,64], index: 6, kind: input, shape index: {}]
  %s7 = inlined_call_operand.vmem [shape: f32[512,128], index: 7, kind: input, shape index: {}]
  %s8 = inlined_call_operand.vmem [shape: f32[1,128], index: 8, kind: input, shape index: {}]
  %s9 = inlined_call_operand.vmem [shape: f32[16,128], index: 9, kind: output, shape index: {}]
  %s10 = sld [smem:[#allocation0]]
  $region69: #{nature_cnn_forward.1} parent=0
    _
  %s12 = ssub.s32 1, %s10
  %s13 = scalar_select 0, %s12, %s10
  loop: start=0, step=1, limit=4
  $region2: #{nature_cnn_forward.1} parent=0 // loop_pre_header
    _
  $region3: #{nature_cnn_forward.1} parent=0 // loop_header
    %s15 = sphi 0, %s19
    %p16 = scmp.ge.s32.totalorder %s15, 4
    %s25 = sphi 0, %s27
    %s28 = sphi 0, %s25
    %s29 = sphi 0, %s28
    %s45 = sphi 0, %s29
    %s49 = sphi 0, %s49
    %s51 = sphi 0, %s49
    %s52 = sphi 0, %s51
    %s66 = sphi 0, %s52
    %s70 = sphi 0, %s70
    %s72 = sphi 0, %s70
    %s73 = sphi 0, %s72
    %s87 = sphi 0, %s73
    %s91 = sphi 0, %s91
    %s93 = sphi 0, %s91
    %s94 = sphi 0, %s93
    %s108 = sphi 0, %s94
    %s112 = sphi 0, %s112
    %s114 = sphi 0, %s112
    %s115 = sphi 0, %s114
    %s129 = sphi 0, %s115
    %s133 = sphi 0, %s133
    %s135 = sphi 0, %s133
    %s136 = sphi 0, %s135
    %s150 = sphi 0, %s136
    %s154 = sphi 0, %s154
    %s156 = sphi 0, %s154
    %s157 = sphi 0, %s156
    %s171 = sphi 0, %s157
    %s175 = sphi 0, %s175
    %s177 = sphi 0, %s175
    %s178 = sphi 0, %s177
    %s192 = sphi 0, %s178
    %s196 = sphi 0, %s196
    %s198 = sphi 0, %s196
    %s199 = sphi 0, %s198
    %s213 = sphi 0, %s199
    %s219 = sphi 0, %s221
    %s222 = sphi 0, %s219
    %s223 = sphi 0, %s222
    %s239 = sphi 0, %s223
  $region4: #{nature_cnn_forward.1} parent=0 // loop_header_branch
    %18 = sbr.rel (%p16) target = $region8
  $region5: #{nature_cnn_forward.1} parent=0 // loop_body
    %s20 = ssub.s32 %s15, 1
    %s21 = ssub.s32 %s15, 2
    %s22 = sadd.s32 %s15, 1
    %s23 = ssub.s32 %s15, %s22
    %p24 = scmp.eq.s32.totalorder %s23, 0
    %s26 = sadd.s32 %s25, 1
    %s27 = scalar_select %p24, %s25, %s26
    %p30 = pneg %p24
    %p31 = scmp.eq.s32.totalorder %s15, 1
    %p32 = por %p30, %p31
    %p33 = scmp.ne.s32.totalorder %s25, %s28
    %p34 = scmp.eq.s32.totalorder %s15, 0
    %p35 = por %p33, %p34
    %p36 = scmp.ne.s32.totalorder %s25, %s28
    %p37 = scmp.eq.s32.totalorder %s20, 1
    %p38 = por %p36, %p37
    %p39 = scmp.ne.s32.totalorder %s28, %s29
    %p40 = scmp.eq.s32.totalorder %s20, 0
    %p41 = por %p39, %p40
    %p42 = scmp.ne.s32.totalorder %s28, %s29
    %p43 = scmp.eq.s32.totalorder %s21, 1
    %p44 = por %p42, %p43
    %p46 = scmp.ne.s32.totalorder %s29, %s45
    %p47 = scmp.eq.s32.totalorder %s21, 0
    %p48 = por %p46, %p47
    %s50 = sadd.s32 %s49, 1
    %p53 = scmp.eq.s32.totalorder %s15, 1
    %p54 = scmp.ne.s32.totalorder %s49, %s51
    %p55 = scmp.eq.s32.totalorder %s15, 0
    %p56 = por %p54, %p55
    %p57 = scmp.ne.s32.totalorder %s49, %s51
    %p58 = scmp.eq.s32.totalorder %s20, 1
    %p59 = por %p57, %p58
    %p60 = scmp.ne.s32.totalorder %s51, %s52
    %p61 = scmp.eq.s32.totalorder %s20, 0
    %p62 = por %p60, %p61
    %p63 = scmp.ne.s32.totalorder %s51, %s52
    %p64 = scmp.eq.s32.totalorder %s21, 1
    %p65 = por %p63, %p64
    %p67 = scmp.ne.s32.totalorder %s52, %s66
    %p68 = scmp.eq.s32.totalorder %s21, 0
    %p69 = por %p67, %p68
    %s71 = sadd.s32 %s70, 1
    %p74 = scmp.eq.s32.totalorder %s15, 1
    %p75 = scmp.ne.s32.totalorder %s70, %s72
    %p76 = scmp.eq.s32.totalorder %s15, 0
    %p77 = por %p75, %p76
    %p78 = scmp.ne.s32.totalorder %s70, %s72
    %p79 = scmp.eq.s32.totalorder %s20, 1
    %p80 = por %p78, %p79
    %p81 = scmp.ne.s32.totalorder %s72, %s73
    %p82 = scmp.eq.s32.totalorder %s20, 0
    %p83 = por %p81, %p82
    %p84 = scmp.ne.s32.totalorder %s72, %s73
    %p85 = scmp.eq.s32.totalorder %s21, 1
    %p86 = por %p84, %p85
    %p88 = scmp.ne.s32.totalorder %s73, %s87
    %p89 = scmp.eq.s32.totalorder %s21, 0
    %p90 = por %p88, %p89
    %s92 = sadd.s32 %s91, 1
    %p95 = scmp.eq.s32.totalorder %s15, 1
    %p96 = scmp.ne.s32.totalorder %s91, %s93
    %p97 = scmp.eq.s32.totalorder %s15, 0
    %p98 = por %p96, %p97
    %p99 = scmp.ne.s32.totalorder %s91, %s93
    %p100 = scmp.eq.s32.totalorder %s20, 1
    %p101 = por %p99, %p100
    %p102 = scmp.ne.s32.totalorder %s93, %s94
    %p103 = scmp.eq.s32.totalorder %s20, 0
    %p104 = por %p102, %p103
    %p105 = scmp.ne.s32.totalorder %s93, %s94
    %p106 = scmp.eq.s32.totalorder %s21, 1
    %p107 = por %p105, %p106
    %p109 = scmp.ne.s32.totalorder %s94, %s108
    %p110 = scmp.eq.s32.totalorder %s21, 0
    %p111 = por %p109, %p110
    %s113 = sadd.s32 %s112, 1
    %p116 = scmp.eq.s32.totalorder %s15, 1
    %p117 = scmp.ne.s32.totalorder %s112, %s114
    %p118 = scmp.eq.s32.totalorder %s15, 0
    %p119 = por %p117, %p118
    %p120 = scmp.ne.s32.totalorder %s112, %s114
    %p121 = scmp.eq.s32.totalorder %s20, 1
    %p122 = por %p120, %p121
    %p123 = scmp.ne.s32.totalorder %s114, %s115
    %p124 = scmp.eq.s32.totalorder %s20, 0
    %p125 = por %p123, %p124
    %p126 = scmp.ne.s32.totalorder %s114, %s115
    %p127 = scmp.eq.s32.totalorder %s21, 1
    %p128 = por %p126, %p127
    %p130 = scmp.ne.s32.totalorder %s115, %s129
    %p131 = scmp.eq.s32.totalorder %s21, 0
    %p132 = por %p130, %p131
    %s134 = sadd.s32 %s133, 1
    %p137 = scmp.eq.s32.totalorder %s15, 1
    %p138 = scmp.ne.s32.totalorder %s133, %s135
    %p139 = scmp.eq.s32.totalorder %s15, 0
    %p140 = por %p138, %p139
    %p141 = scmp.ne.s32.totalorder %s133, %s135
    %p142 = scmp.eq.s32.totalorder %s20, 1
    %p143 = por %p141, %p142
    %p144 = scmp.ne.s32.totalorder %s135, %s136
    %p145 = scmp.eq.s32.totalorder %s20, 0
    %p146 = por %p144, %p145
    %p147 = scmp.ne.s32.totalorder %s135, %s136
    %p148 = scmp.eq.s32.totalorder %s21, 1
    %p149 = por %p147, %p148
    %p151 = scmp.ne.s32.totalorder %s136, %s150
    %p152 = scmp.eq.s32.totalorder %s21, 0
    %p153 = por %p151, %p152
    %s155 = sadd.s32 %s154, 1
    %p158 = scmp.eq.s32.totalorder %s15, 1
    %p159 = scmp.ne.s32.totalorder %s154, %s156
    %p160 = scmp.eq.s32.totalorder %s15, 0
    %p161 = por %p159, %p160
    %p162 = scmp.ne.s32.totalorder %s154, %s156
    %p163 = scmp.eq.s32.totalorder %s20, 1
    %p164 = por %p162, %p163
    %p165 = scmp.ne.s32.totalorder %s156, %s157
    %p166 = scmp.eq.s32.totalorder %s20, 0
    %p167 = por %p165, %p166
    %p168 = scmp.ne.s32.totalorder %s156, %s157
    %p169 = scmp.eq.s32.totalorder %s21, 1
    %p170 = por %p168, %p169
    %p172 = scmp.ne.s32.totalorder %s157, %s171
    %p173 = scmp.eq.s32.totalorder %s21, 0
    %p174 = por %p172, %p173
    %s176 = sadd.s32 %s175, 1
    %p179 = scmp.eq.s32.totalorder %s15, 1
    %p180 = scmp.ne.s32.totalorder %s175, %s177
    %p181 = scmp.eq.s32.totalorder %s15, 0
    %p182 = por %p180, %p181
    %p183 = scmp.ne.s32.totalorder %s175, %s177
    %p184 = scmp.eq.s32.totalorder %s20, 1
    %p185 = por %p183, %p184
    %p186 = scmp.ne.s32.totalorder %s177, %s178
    %p187 = scmp.eq.s32.totalorder %s20, 0
    %p188 = por %p186, %p187
    %p189 = scmp.ne.s32.totalorder %s177, %s178
    %p190 = scmp.eq.s32.totalorder %s21, 1
    %p191 = por %p189, %p190
    %p193 = scmp.ne.s32.totalorder %s178, %s192
    %p194 = scmp.eq.s32.totalorder %s21, 0
    %p195 = por %p193, %p194
    %s197 = sadd.s32 %s196, 1
    %p200 = scmp.eq.s32.totalorder %s15, 1
    %p201 = scmp.ne.s32.totalorder %s196, %s198
    %p202 = scmp.eq.s32.totalorder %s15, 0
    %p203 = por %p201, %p202
    %p204 = scmp.ne.s32.totalorder %s196, %s198
    %p205 = scmp.eq.s32.totalorder %s20, 1
    %p206 = por %p204, %p205
    %p207 = scmp.ne.s32.totalorder %s198, %s199
    %p208 = scmp.eq.s32.totalorder %s20, 0
    %p209 = por %p207, %p208
    %p210 = scmp.ne.s32.totalorder %s198, %s199
    %p211 = scmp.eq.s32.totalorder %s21, 1
    %p212 = por %p210, %p211
    %p214 = scmp.ne.s32.totalorder %s199, %s213
    %p215 = scmp.eq.s32.totalorder %s21, 0
    %p216 = por %p214, %p215
    %s217 = ssub.s32 %s15, %s22
    %p218 = scmp.eq.s32.totalorder %s217, 0
    %s220 = sadd.s32 %s219, 1
    %s221 = scalar_select %p218, %s219, %s220
    %p224 = pneg %p218
    %p225 = scmp.eq.s32.totalorder %s15, 1
    %p226 = por %p224, %p225
    %p227 = scmp.ne.s32.totalorder %s219, %s222
    %p228 = scmp.eq.s32.totalorder %s15, 0
    %p229 = por %p227, %p228
    %p230 = scmp.ne.s32.totalorder %s219, %s222
    %p231 = scmp.eq.s32.totalorder %s20, 1
    %p232 = por %p230, %p231
    %p233 = scmp.ne.s32.totalorder %s222, %s223
    %p234 = scmp.eq.s32.totalorder %s20, 0
    %p235 = por %p233, %p234
    %p236 = scmp.ne.s32.totalorder %s222, %s223
    %p237 = scmp.eq.s32.totalorder %s21, 1
    %p238 = por %p236, %p237
    %p240 = scmp.ne.s32.totalorder %s223, %s239
    %p241 = scmp.eq.s32.totalorder %s21, 0
    %p242 = por %p240, %p241
    %p243 = scmp.le.s32.totalorder 1, %s15
    %p244 = scmp.lt.s32.totalorder %s15, 3
    %p245 = pnand %p243, %p244
    %p246 = pneg %p245
    // Predicated region
    $region9: #{nature_cnn_forward.1} parent=5 // pred_check
      _
    $region10: #{nature_cnn_forward.1} parent=5 // pred_check_branch
      %248 = sbr.rel (%p245) target = $region12
    $region11: #{nature_cnn_forward.1} parent=5 // pred_region
      %s249 = ssub.s32 %s15, 1
      // Predicated region
      $region13: #{nature_cnn_forward.1} parent=11 // pred_check
        %p250 = pneg %p62
      $region14: #{nature_cnn_forward.1} parent=11 // pred_check_branch
        %252 = sbr.rel (%p250) target = $region16
      $region15: #{nature_cnn_forward.1} parent=11 // pred_region
        _
      $region16: #{nature_cnn_forward.1} parent=11 // pred_fallthru
        _
      // Predicated region
      $region17: #{nature_cnn_forward.1} parent=11 // pred_check
        %p253 = pneg %p83
      $region18: #{nature_cnn_forward.1} parent=11 // pred_check_branch
        %255 = sbr.rel (%p253) target = $region20
      $region19: #{nature_cnn_forward.1} parent=11 // pred_region
        _
      $region20: #{nature_cnn_forward.1} parent=11 // pred_fallthru
        _
      // Predicated region
      $region21: #{nature_cnn_forward.1} parent=11 // pred_check
        %p256 = pneg %p104
      $region22: #{nature_cnn_forward.1} parent=11 // pred_check_branch
        %258 = sbr.rel (%p256) target = $region24
      $region23: #{nature_cnn_forward.1} parent=11 // pred_region
        _
      $region24: #{nature_cnn_forward.1} parent=11 // pred_fallthru
        _
      // Predicated region
      $region25: #{nature_cnn_forward.1} parent=11 // pred_check
        %p259 = pneg %p125
      $region26: #{nature_cnn_forward.1} parent=11 // pred_check_branch
        %261 = sbr.rel (%p259) target = $region28
      $region27: #{nature_cnn_forward.1} parent=11 // pred_region
        _
      $region28: #{nature_cnn_forward.1} parent=11 // pred_fallthru
        _
      // Predicated region
      $region29: #{nature_cnn_forward.1} parent=11 // pred_check
        %p262 = pneg %p146
      $region30: #{nature_cnn_forward.1} parent=11 // pred_check_branch
        %264 = sbr.rel (%p262) target = $region32
      $region31: #{nature_cnn_forward.1} parent=11 // pred_region
        _
      $region32: #{nature_cnn_forward.1} parent=11 // pred_fallthru
        _
      // Predicated region
      $region33: #{nature_cnn_forward.1} parent=11 // pred_check
        %p265 = pneg %p167
      $region34: #{nature_cnn_forward.1} parent=11 // pred_check_branch
        %267 = sbr.rel (%p265) target = $region36
      $region35: #{nature_cnn_forward.1} parent=11 // pred_region
        _
      $region36: #{nature_cnn_forward.1} parent=11 // pred_fallthru
        _
      // Predicated region
      $region37: #{nature_cnn_forward.1} parent=11 // pred_check
        %p268 = pneg %p188
      $region38: #{nature_cnn_forward.1} parent=11 // pred_check_branch
        %270 = sbr.rel (%p268) target = $region40
      $region39: #{nature_cnn_forward.1} parent=11 // pred_region
        _
      $region40: #{nature_cnn_forward.1} parent=11 // pred_fallthru
        _
      // Predicated region
      $region41: #{nature_cnn_forward.1} parent=11 // pred_check
        %p271 = pneg %p209
      $region42: #{nature_cnn_forward.1} parent=11 // pred_check_branch
        %273 = sbr.rel (%p271) target = $region44
      $region43: #{nature_cnn_forward.1} parent=11 // pred_region
        _
      $region44: #{nature_cnn_forward.1} parent=11 // pred_fallthru
        _
    $region12: #{nature_cnn_forward.1} parent=5 // pred_fallthru
      _
    %p274 = scmp.lt.s32.totalorder %s15, 2
    // Predicated region
    $region45: #{nature_cnn_forward.1} parent=5 // pred_check
      %p275 = pneg %p274
    $region46: #{nature_cnn_forward.1} parent=5 // pred_check_branch
      %277 = sbr.rel (%p275) target = $region48
    $region47: #{nature_cnn_forward.1} parent=5 // pred_region
      // Predicated region
      $region49: #{nature_cnn_forward.1} parent=47 // pred_check
        %p278 = pneg %p35
      $region50: #{nature_cnn_forward.1} parent=47 // pred_check_branch
        %280 = sbr.rel (%p278) target = $region52
      $region51: #{nature_cnn_forward.1} parent=47 // pred_region
        %p281 = scmp.lt.s32.totalorder %s15, 1
        %s282 = scalar_select %p281, %s15, 1
        %s283 = smul.addr %s282, 280
        %s284 = smul.addr %s283, 8
        %s285 = scalar_lea.vmem %s0, %s284
      $region52: #{nature_cnn_forward.1} parent=47 // pred_fallthru
        _
    $region48: #{nature_cnn_forward.1} parent=5 // pred_fallthru
      _
    %p286 = scmp.le.s32.totalorder 1, %s15
    %p287 = scmp.lt.s32.totalorder %s15, 3
    %p288 = pnand %p286, %p287
    %p289 = pneg %p288
    // Predicated region
    $region53: #{nature_cnn_forward.1} parent=5 // pred_check
      _
    $region54: #{nature_cnn_forward.1} parent=5 // pred_check_branch
      %291 = sbr.rel (%p288) target = $region56
    $region55: #{nature_cnn_forward.1} parent=5 // pred_region
      %s292 = ssub.s32 %s15, 1
      %p293 = scmp.lt.s32.totalorder %s20, 1
      %s294 = scalar_select %p293, %s20, 1
      %s295 = smul.addr %s294, 280
      %s296 = smul.addr %s295, 8
      %s297 = scalar_lea.vmem %s0, %s296
      %p298 = pneg %p41
      %p299 = pneg %p38
      %p300 = pneg %p62
      %p301 = pneg %p59
      %p302 = pneg %p83
      %p303 = pneg %p80
      %p304 = pneg %p104
      %p305 = pneg %p101
      %p306 = pneg %p125
      %p307 = pneg %p122
      %p308 = pneg %p146
      %p309 = pneg %p143
      %p310 = pneg %p167
      %p311 = pneg %p164
      %p312 = pneg %p188
      %p313 = pneg %p185
      %p314 = pneg %p209
      %p315 = pneg %p206
      %p316 = pneg %p235
      %p317 = pneg %p232
      %p318 = scmp.lt.s32.totalorder %s20, 1
      %s319 = scalar_select %p318, %s20, 1
      %s320 = smul.addr %s319, 8
      %s321 = scalar_lea.vmem %s9, %s320
      %p322 = scmp.lt.s32.totalorder %s20, 1
      %s323 = scalar_select %p322, %s20, 1
      %s324 = smul.addr %s323, 280
      %s325 = smul.addr %s324, 8
      %s326 = scalar_lea.vmem %s0, %s325
      %p327 = scmp.lt.s32.totalorder %s20, 1
      %s328 = scalar_select %p327, %s20, 1
      %s329 = smul.addr %s328, 8
      %s330 = scalar_lea.vmem %s9, %s329
      %v331 = vld [vmem:[%s326] sm:$0xff]
      %v332 = vld [vmem:[%s326 + $0x8] sm:$0xff]
      %v333 = vld [vmem:[%s326 + $0x10] sm:$0xff]
      %v334 = vld [vmem:[%s326 + $0x18] sm:$0xff]
      %v335 = vld [vmem:[%s326 + $0x20] sm:$0xff]
      %v336 = vld [vmem:[%s326 + $0x28] sm:$0xff]
      %v337 = vld [vmem:[%s326 + $0x30] sm:$0xff]
      %v338 = vld [vmem:[%s326 + $0x38] sm:$0xff]
      %v339 = vld [vmem:[%s326 + $0x40] sm:$0xff]
      %v340 = vld [vmem:[%s326 + $0x48] sm:$0xff]
      %v341 = vld [vmem:[%s326 + $0x50] sm:$0xff]
      %v342 = vld [vmem:[%s326 + $0x58] sm:$0xff]
      %v343 = vld [vmem:[%s326 + $0x60] sm:$0xff]
      %v344 = vld [vmem:[%s326 + $0x68] sm:$0xff]
      %v345 = vld [vmem:[%s326 + $0x70] sm:$0xff]
      %v346 = vld [vmem:[%s326 + $0x78] sm:$0xff]
      %v347 = vld [vmem:[%s326 + $0x80] sm:$0xff]
      %v348 = vld [vmem:[%s326 + $0x88] sm:$0xff]
      %v349 = vld [vmem:[%s326 + $0x90] sm:$0xff]
      %v350 = vld [vmem:[%s326 + $0x98] sm:$0xff]
      %v351 = vld [vmem:[%s326 + $0xa0] sm:$0xff]
      %v352 = vld [vmem:[%s326 + $0xa8] sm:$0xff]
      %v353 = vld [vmem:[%s326 + $0xb0] sm:$0xff]
      %v354 = vld [vmem:[%s326 + $0xb8] sm:$0xff]
      %v355 = vld [vmem:[%s326 + $0xc0] sm:$0xff]
      %v356 = vld [vmem:[%s326 + $0xc8] sm:$0xff]
      %v357 = vld [vmem:[%s326 + $0xd0] sm:$0xff]
      %v358 = vld [vmem:[%s326 + $0xd8] sm:$0xff]
      %v359 = vld [vmem:[%s326 + $0xe0] sm:$0xff]
      %v360 = vld [vmem:[%s326 + $0xe8] sm:$0xff]
      %v361 = vld [vmem:[%s326 + $0xf0] sm:$0xff]
      %v362 = vld [vmem:[%s326 + $0xf8] sm:$0xff]
      %v363 = vld [vmem:[%s326 + $0x100] sm:$0xff]
      %v364 = vld [vmem:[%s326 + $0x108] sm:$0xff]
      %v365 = vld [vmem:[%s326 + $0x110] sm:$0xff]
      %v366 = vld [vmem:[%s326 + $0x118] sm:$0xff]
      %v367 = vld [vmem:[%s326 + $0x120] sm:$0xff]
      %v368 = vld [vmem:[%s326 + $0x128] sm:$0xff]
      %v369 = vld [vmem:[%s326 + $0x130] sm:$0xff]
      %v370 = vld [vmem:[%s326 + $0x138] sm:$0xff]
      %v371 = vld [vmem:[%s326 + $0x140] sm:$0xff]
      %v372 = vld [vmem:[%s326 + $0x148] sm:$0xff]
      %v373 = vld [vmem:[%s326 + $0x150] sm:$0xff]
      %v374 = vld [vmem:[%s326 + $0x158] sm:$0xff]
      %v375 = vld [vmem:[%s326 + $0x160] sm:$0xff]
      %v376 = vld [vmem:[%s326 + $0x168] sm:$0xff]
      %v377 = vld [vmem:[%s326 + $0x170] sm:$0xff]
      %v378 = vld [vmem:[%s326 + $0x178] sm:$0xff]
      %v379 = vld [vmem:[%s326 + $0x180] sm:$0xff]
      %v380 = vld [vmem:[%s326 + $0x188] sm:$0xff]
      %v381 = vld [vmem:[%s326 + $0x190] sm:$0xff]
      %v382 = vld [vmem:[%s326 + $0x198] sm:$0xff]
      %v383 = vld [vmem:[%s326 + $0x1a0] sm:$0xff]
      %v384 = vld [vmem:[%s326 + $0x1a8] sm:$0xff]
      %v385 = vld [vmem:[%s326 + $0x1b0] sm:$0xff]
      %v386 = vld [vmem:[%s326 + $0x1b8] sm:$0xff]
      %v387 = vld [vmem:[%s326 + $0x1c0] sm:$0xff]
      %v388 = vld [vmem:[%s326 + $0x1c8] sm:$0xff]
      %v389 = vld [vmem:[%s326 + $0x1d0] sm:$0xff]
      %v390 = vld [vmem:[%s326 + $0x1d8] sm:$0xff]
      %v391 = vld [vmem:[%s326 + $0x1e0] sm:$0xff]
      %v392 = vld [vmem:[%s326 + $0x1e8] sm:$0xff]
      %v393 = vld [vmem:[%s326 + $0x1f0] sm:$0xff]
      %v394 = vld [vmem:[%s326 + $0x1f8] sm:$0xff]
      %v395 = vld [vmem:[%s326 + $0x200] sm:$0xff]
      %v396 = vld [vmem:[%s326 + $0x208] sm:$0xff]
      %v397 = vld [vmem:[%s326 + $0x210] sm:$0xff]
      %v398 = vld [vmem:[%s326 + $0x218] sm:$0xff]
      %v399 = vld [vmem:[%s326 + $0x220] sm:$0xff]
      %v400 = vld [vmem:[%s326 + $0x228] sm:$0xff]
      %v401 = vld [vmem:[%s326 + $0x230] sm:$0xff]
      %v402 = vld [vmem:[%s326 + $0x238] sm:$0xff]
      %v403 = vld [vmem:[%s326 + $0x240] sm:$0xff]
      %v404 = vld [vmem:[%s326 + $0x248] sm:$0xff]
      %v405 = vld [vmem:[%s326 + $0x250] sm:$0xff]
      %v406 = vld [vmem:[%s326 + $0x258] sm:$0xff]
      %v407 = vld [vmem:[%s326 + $0x260] sm:$0xff]
      %v408 = vld [vmem:[%s326 + $0x268] sm:$0xff]
      %v409 = vld [vmem:[%s326 + $0x270] sm:$0xff]
      %v410 = vld [vmem:[%s326 + $0x278] sm:$0xff]
      %v411 = vld [vmem:[%s326 + $0x280] sm:$0xff]
      %v412 = vld [vmem:[%s326 + $0x288] sm:$0xff]
      %v413 = vld [vmem:[%s326 + $0x290] sm:$0xff]
      %v414 = vld [vmem:[%s326 + $0x298] sm:$0xff]
      %v415 = vld [vmem:[%s326 + $0x2a0] sm:$0xff]
      %v416 = vld [vmem:[%s326 + $0x2a8] sm:$0xff]
      %v417 = vld [vmem:[%s326 + $0x2b0] sm:$0xff]
      %v418 = vld [vmem:[%s326 + $0x2b8] sm:$0xff]
      %v419 = vld [vmem:[%s326 + $0x2c0] sm:$0xff]
      %v420 = vld [vmem:[%s326 + $0x2c8] sm:$0xff]
      %v421 = vld [vmem:[%s326 + $0x2d0] sm:$0xff]
      %v422 = vld [vmem:[%s326 + $0x2d8] sm:$0xff]
      %v423 = vld [vmem:[%s326 + $0x2e0] sm:$0xff]
      %v424 = vld [vmem:[%s326 + $0x2e8] sm:$0xff]
      %v425 = vld [vmem:[%s326 + $0x2f0] sm:$0xff]
      %v426 = vld [vmem:[%s326 + $0x2f8] sm:$0xff]
      %v427 = vld [vmem:[%s326 + $0x300] sm:$0xff]
      %v428 = vld [vmem:[%s326 + $0x308] sm:$0xff]
      %v429 = vld [vmem:[%s326 + $0x310] sm:$0xff]
      %v430 = vld [vmem:[%s326 + $0x318] sm:$0xff]
      %v431 = vld [vmem:[%s326 + $0x320] sm:$0xff]
      %v432 = vld [vmem:[%s326 + $0x328] sm:$0xff]
      %v433 = vld [vmem:[%s326 + $0x330] sm:$0xff]
      %v434 = vld [vmem:[%s326 + $0x338] sm:$0xff]
      %v435 = vld [vmem:[%s326 + $0x340] sm:$0xff]
      %v436 = vld [vmem:[%s326 + $0x348] sm:$0xff]
      %v437 = vld [vmem:[%s326 + $0x350] sm:$0xff]
      %v438 = vld [vmem:[%s326 + $0x358] sm:$0xff]
      %v439 = vld [vmem:[%s326 + $0x360] sm:$0xff]
      %v440 = vld [vmem:[%s326 + $0x368] sm:$0xff]
      %v441 = vld [vmem:[%s326 + $0x370] sm:$0xff]
      %v442 = vld [vmem:[%s326 + $0x378] sm:$0xff]
      %v443 = vld [vmem:[%s326 + $0x380] sm:$0xff]
      %v444 = vld [vmem:[%s326 + $0x388] sm:$0xff]
      %v445 = vld [vmem:[%s326 + $0x390] sm:$0xff]
      %v446 = vld [vmem:[%s326 + $0x398] sm:$0xff]
      %v447 = vld [vmem:[%s326 + $0x3a0] sm:$0xff]
      %v448 = vld [vmem:[%s326 + $0x3a8] sm:$0xff]
      %v449 = vld [vmem:[%s326 + $0x3b0] sm:$0xff]
      %v450 = vld [vmem:[%s326 + $0x3b8] sm:$0xff]
      %v451 = vld [vmem:[%s326 + $0x3c0] sm:$0xff]
      %v452 = vld [vmem:[%s326 + $0x3c8] sm:$0xff]
      %v453 = vld [vmem:[%s326 + $0x3d0] sm:$0xff]
      %v454 = vld [vmem:[%s326 + $0x3d8] sm:$0xff]
      %v455 = vld [vmem:[%s326 + $0x3e0] sm:$0xff]
      %v456 = vld [vmem:[%s326 + $0x3e8] sm:$0xff]
      %v457 = vld [vmem:[%s326 + $0x3f0] sm:$0xff]
      %v458 = vld [vmem:[%s326 + $0x3f8] sm:$0xff]
      %v459 = vld [vmem:[%s326 + $0x400] sm:$0xff]
      %v460 = vld [vmem:[%s326 + $0x408] sm:$0xff]
      %v461 = vld [vmem:[%s326 + $0x410] sm:$0xff]
      %v462 = vld [vmem:[%s326 + $0x418] sm:$0xff]
      %v463 = vld [vmem:[%s326 + $0x420] sm:$0xff]
      %v464 = vld [vmem:[%s326 + $0x428] sm:$0xff]
      %v465 = vld [vmem:[%s326 + $0x430] sm:$0xff]
      %v466 = vld [vmem:[%s326 + $0x438] sm:$0xff]
      %v467 = vld [vmem:[%s326 + $0x440] sm:$0xff]
      %v468 = vld [vmem:[%s326 + $0x448] sm:$0xff]
      %v469 = vld [vmem:[%s326 + $0x450] sm:$0xff]
      %v470 = vld [vmem:[%s326 + $0x458] sm:$0xff]
      %v471 = vld [vmem:[%s326 + $0x460] sm:$0xff]
      %v472 = vld [vmem:[%s326 + $0x468] sm:$0xff]
      %v473 = vld [vmem:[%s326 + $0x470] sm:$0xff]
      %v474 = vld [vmem:[%s326 + $0x478] sm:$0xff]
      %v475 = vld [vmem:[%s326 + $0x480] sm:$0xff]
      %v476 = vld [vmem:[%s326 + $0x488] sm:$0xff]
      %v477 = vld [vmem:[%s326 + $0x490] sm:$0xff]
      %v478 = vld [vmem:[%s326 + $0x498] sm:$0xff]
      %v479 = vld [vmem:[%s326 + $0x4a0] sm:$0xff]
      %v480 = vld [vmem:[%s326 + $0x4a8] sm:$0xff]
      %v481 = vld [vmem:[%s326 + $0x4b0] sm:$0xff]
      %v482 = vld [vmem:[%s326 + $0x4b8] sm:$0xff]
      %v483 = vld [vmem:[%s326 + $0x4c0] sm:$0xff]
      %v484 = vld [vmem:[%s326 + $0x4c8] sm:$0xff]
      %v485 = vld [vmem:[%s326 + $0x4d0] sm:$0xff]
      %v486 = vld [vmem:[%s326 + $0x4d8] sm:$0xff]
      %v487 = vld [vmem:[%s326 + $0x4e0] sm:$0xff]
      %v488 = vld [vmem:[%s326 + $0x4e8] sm:$0xff]
      %v489 = vld [vmem:[%s326 + $0x4f0] sm:$0xff]
      %v490 = vld [vmem:[%s326 + $0x4f8] sm:$0xff]
      %v491 = vld [vmem:[%s326 + $0x500] sm:$0xff]
      %v492 = vld [vmem:[%s326 + $0x508] sm:$0xff]
      %v493 = vld [vmem:[%s326 + $0x510] sm:$0xff]
      %v494 = vld [vmem:[%s326 + $0x518] sm:$0xff]
      %v495 = vld [vmem:[%s326 + $0x520] sm:$0xff]
      %v496 = vld [vmem:[%s326 + $0x528] sm:$0xff]
      %v497 = vld [vmem:[%s326 + $0x530] sm:$0xff]
      %v498 = vld [vmem:[%s326 + $0x538] sm:$0xff]
      %v499 = vld [vmem:[%s326 + $0x540] sm:$0xff]
      %v500 = vld [vmem:[%s326 + $0x548] sm:$0xff]
      %v501 = vld [vmem:[%s326 + $0x550] sm:$0xff]
      %v502 = vld [vmem:[%s326 + $0x558] sm:$0xff]
      %v503 = vld [vmem:[%s326 + $0x560] sm:$0xff]
      %v504 = vld [vmem:[%s326 + $0x568] sm:$0xff]
      %v505 = vld [vmem:[%s326 + $0x570] sm:$0xff]
      %v506 = vld [vmem:[%s326 + $0x578] sm:$0xff]
      %v507 = vld [vmem:[%s326 + $0x580] sm:$0xff]
      %v508 = vld [vmem:[%s326 + $0x588] sm:$0xff]
      %v509 = vld [vmem:[%s326 + $0x590] sm:$0xff]
      %v510 = vld [vmem:[%s326 + $0x598] sm:$0xff]
      %v511 = vld [vmem:[%s326 + $0x5a0] sm:$0xff]
      %v512 = vld [vmem:[%s326 + $0x5a8] sm:$0xff]
      %v513 = vld [vmem:[%s326 + $0x5b0] sm:$0xff]
      %v514 = vld [vmem:[%s326 + $0x5b8] sm:$0xff]
      %v515 = vld [vmem:[%s326 + $0x5c0] sm:$0xff]
      %v516 = vld [vmem:[%s326 + $0x5c8] sm:$0xff]
      %v517 = vld [vmem:[%s326 + $0x5d0] sm:$0xff]
      %v518 = vld [vmem:[%s326 + $0x5d8] sm:$0xff]
      %v519 = vld [vmem:[%s326 + $0x5e0] sm:$0xff]
      %v520 = vld [vmem:[%s326 + $0x5e8] sm:$0xff]
      %v521 = vld [vmem:[%s326 + $0x5f0] sm:$0xff]
      %v522 = vld [vmem:[%s326 + $0x5f8] sm:$0xff]
      %v523 = vld [vmem:[%s326 + $0x600] sm:$0xff]
      %v524 = vld [vmem:[%s326 + $0x608] sm:$0xff]
      %v525 = vld [vmem:[%s326 + $0x610] sm:$0xff]
      %v526 = vld [vmem:[%s326 + $0x618] sm:$0xff]
      %v527 = vld [vmem:[%s326 + $0x620] sm:$0xff]
      %v528 = vld [vmem:[%s326 + $0x628] sm:$0xff]
      %v529 = vld [vmem:[%s326 + $0x630] sm:$0xff]
      %v530 = vld [vmem:[%s326 + $0x638] sm:$0xff]
      %v531 = vld [vmem:[%s326 + $0x640] sm:$0xff]
      %v532 = vld [vmem:[%s326 + $0x648] sm:$0xff]
      %v533 = vld [vmem:[%s326 + $0x650] sm:$0xff]
      %v534 = vld [vmem:[%s326 + $0x658] sm:$0xff]
      %v535 = vld [vmem:[%s326 + $0x660] sm:$0xff]
      %v536 = vld [vmem:[%s326 + $0x668] sm:$0xff]
      %v537 = vld [vmem:[%s326 + $0x670] sm:$0xff]
      %v538 = vld [vmem:[%s326 + $0x678] sm:$0xff]
      %v539 = vld [vmem:[%s326 + $0x680] sm:$0xff]
      %v540 = vld [vmem:[%s326 + $0x688] sm:$0xff]
      %v541 = vld [vmem:[%s326 + $0x690] sm:$0xff]
      %v542 = vld [vmem:[%s326 + $0x698] sm:$0xff]
      %v543 = vld [vmem:[%s326 + $0x6a0] sm:$0xff]
      %v544 = vld [vmem:[%s326 + $0x6a8] sm:$0xff]
      %v545 = vld [vmem:[%s326 + $0x6b0] sm:$0xff]
      %v546 = vld [vmem:[%s326 + $0x6b8] sm:$0xff]
      %v547 = vld [vmem:[%s326 + $0x6c0] sm:$0xff]
      %v548 = vld [vmem:[%s326 + $0x6c8] sm:$0xff]
      %v549 = vld [vmem:[%s326 + $0x6d0] sm:$0xff]
      %v550 = vld [vmem:[%s326 + $0x6d8] sm:$0xff]
      %v551 = vld [vmem:[%s326 + $0x6e0] sm:$0xff]
      %v552 = vld [vmem:[%s326 + $0x6e8] sm:$0xff]
      %v553 = vld [vmem:[%s326 + $0x6f0] sm:$0xff]
      %v554 = vld [vmem:[%s326 + $0x6f8] sm:$0xff]
      %v555 = vld [vmem:[%s326 + $0x700] sm:$0xff]
      %v556 = vld [vmem:[%s326 + $0x708] sm:$0xff]
      %v557 = vld [vmem:[%s326 + $0x710] sm:$0xff]
      %v558 = vld [vmem:[%s326 + $0x718] sm:$0xff]
      %v559 = vld [vmem:[%s326 + $0x720] sm:$0xff]
      %v560 = vld [vmem:[%s326 + $0x728] sm:$0xff]
      %v561 = vld [vmem:[%s326 + $0x730] sm:$0xff]
      %v562 = vld [vmem:[%s326 + $0x738] sm:$0xff]
      %v563 = vld [vmem:[%s326 + $0x740] sm:$0xff]
      %v564 = vld [vmem:[%s326 + $0x748] sm:$0xff]
      %v565 = vld [vmem:[%s326 + $0x750] sm:$0xff]
      %v566 = vld [vmem:[%s326 + $0x758] sm:$0xff]
      %v567 = vld [vmem:[%s326 + $0x760] sm:$0xff]
      %v568 = vld [vmem:[%s326 + $0x768] sm:$0xff]
      %v569 = vld [vmem:[%s326 + $0x770] sm:$0xff]
      %v570 = vld [vmem:[%s326 + $0x778] sm:$0xff]
      %v571 = vld [vmem:[%s326 + $0x780] sm:$0xff]
      %v572 = vld [vmem:[%s326 + $0x788] sm:$0xff]
      %v573 = vld [vmem:[%s326 + $0x790] sm:$0xff]
      %v574 = vld [vmem:[%s326 + $0x798] sm:$0xff]
      %v575 = vld [vmem:[%s326 + $0x7a0] sm:$0xff]
      %v576 = vld [vmem:[%s326 + $0x7a8] sm:$0xff]
      %v577 = vld [vmem:[%s326 + $0x7b0] sm:$0xff]
      %v578 = vld [vmem:[%s326 + $0x7b8] sm:$0xff]
      %v579 = vld [vmem:[%s326 + $0x7c0] sm:$0xff]
      %v580 = vld [vmem:[%s326 + $0x7c8] sm:$0xff]
      %v581 = vld [vmem:[%s326 + $0x7d0] sm:$0xff]
      %v582 = vld [vmem:[%s326 + $0x7d8] sm:$0xff]
      %v583 = vld [vmem:[%s326 + $0x7e0] sm:$0xff]
      %v584 = vld [vmem:[%s326 + $0x7e8] sm:$0xff]
      %v585 = vld [vmem:[%s326 + $0x7f0] sm:$0xff]
      %v586 = vld [vmem:[%s326 + $0x7f8] sm:$0xff]
      %v587 = vld [vmem:[%s326 + $0x800] sm:$0xff]
      %v588 = vld [vmem:[%s326 + $0x808] sm:$0xff]
      %v589 = vld [vmem:[%s326 + $0x810] sm:$0xff]
      %v590 = vld [vmem:[%s326 + $0x818] sm:$0xff]
      %v591 = vld [vmem:[%s326 + $0x820] sm:$0xff]
      %v592 = vld [vmem:[%s326 + $0x828] sm:$0xff]
      %v593 = vld [vmem:[%s326 + $0x830] sm:$0xff]
      %v594 = vld [vmem:[%s326 + $0x838] sm:$0xff]
      %v595 = vld [vmem:[%s326 + $0x840] sm:$0xff]
      %v596 = vld [vmem:[%s326 + $0x848] sm:$0xff]
      %v597 = vld [vmem:[%s326 + $0x850] sm:$0xff]
      %v598 = vld [vmem:[%s326 + $0x858] sm:$0xff]
      %v599 = vld [vmem:[%s326 + $0x860] sm:$0xff]
      %v600 = vld [vmem:[%s326 + $0x868] sm:$0xff]
      %v601 = vld [vmem:[%s326 + $0x870] sm:$0xff]
      %v602 = vld [vmem:[%s326 + $0x878] sm:$0xff]
      %v603 = vld [vmem:[%s326 + $0x880] sm:$0xff]
      %v604 = vld [vmem:[%s326 + $0x888] sm:$0xff]
      %v605 = vld [vmem:[%s326 + $0x890] sm:$0xff]
      %v606 = vld [vmem:[%s326 + $0x898] sm:$0xff]
      %v607 = vld [vmem:[%s326 + $0x8a0] sm:$0xff]
      %v608 = vld [vmem:[%s326 + $0x8a8] sm:$0xff]
      %v609 = vld [vmem:[%s326 + $0x8b0] sm:$0xff]
      %v610 = vld [vmem:[%s326 + $0x8b8] sm:$0xff]
      %v611 = vld [vmem:[%s1] sm:$0xff]
      %v612 = vld [vmem:[%s1 + $0x8] sm:$0xff]
      %v613 = vld [vmem:[%s1 + $0x10] sm:$0xff]
      %v614 = vld [vmem:[%s1 + $0x18] sm:$0xff]
      %v615 = vld [vmem:[%s1 + $0x20] sm:$0xff]
      %v616 = vld [vmem:[%s1 + $0x28] sm:$0xff]
      %v617 = vld [vmem:[%s1 + $0x30] sm:$0xff]
      %v618 = vld [vmem:[%s1 + $0x38] sm:$0xff]
      %v619 = vld [vmem:[%s1 + $0x40] sm:$0xff]
      %v620 = vld [vmem:[%s1 + $0x48] sm:$0xff]
      %v621 = vld [vmem:[%s1 + $0x50] sm:$0xff]
      %v622 = vld [vmem:[%s1 + $0x58] sm:$0xff]
      %v623 = vld [vmem:[%s1 + $0x60] sm:$0xff]
      %v624 = vld [vmem:[%s1 + $0x68] sm:$0xff]
      %v625 = vld [vmem:[%s1 + $0x70] sm:$0xff]
      %v626 = vld [vmem:[%s1 + $0x78] sm:$0xff]
      %v627 = vld [vmem:[%s1 + $0x80] sm:$0xff]
      %v628 = vld [vmem:[%s1 + $0x88] sm:$0xff]
      %v629 = vld [vmem:[%s1 + $0x90] sm:$0xff]
      %v630 = vld [vmem:[%s1 + $0x98] sm:$0xff]
      %v631 = vld [vmem:[%s1 + $0xa0] sm:$0xff]
      %v632 = vld [vmem:[%s1 + $0xa8] sm:$0xff]
      %v633 = vld [vmem:[%s1 + $0xb0] sm:$0xff]
      %v634 = vld [vmem:[%s1 + $0xb8] sm:$0xff]
      %v635 = vld [vmem:[%s2] sm:$0x1]
      %v637 = vlaneseq
      %v638 = vshrl.u32 %v637, 7
      %v639 = vsub.s32 0, %v638
      %v640 = vrot.slane %v635, %v639
      %vm642 = vcmask 523264
      %v644 = vsel %vm642, %v332, 0
      %v647 = vsel %vm642, %v334, 0
      %v650 = vsel %vm642, %v336, 0
      %v653 = vsel %vm642, %v338, 0
      %v656 = vsel %vm642, %v340, 0
      %v659 = vsel %vm642, %v342, 0
      %v662 = vsel %vm642, %v344, 0
      %v665 = vsel %vm642, %v346, 0
      %v668 = vsel %vm642, %v348, 0
      %v671 = vsel %vm642, %v350, 0
      %v674 = vsel %vm642, %v352, 0
      %v677 = vsel %vm642, %v354, 0
      %v680 = vsel %vm642, %v356, 0
      %v683 = vsel %vm642, %v358, 0
      %v686 = vsel %vm642, %v360, 0
      %v689 = vsel %vm642, %v362, 0
      %v692 = vsel %vm642, %v364, 0
      %v695 = vsel %vm642, %v366, 0
      %v698 = vsel %vm642, %v368, 0
      %v701 = vsel %vm642, %v370, 0
      %v704 = vsel %vm642, %v372, 0
      %v707 = vsel %vm642, %v374, 0
      %v710 = vsel %vm642, %v376, 0
      %v713 = vsel %vm642, %v378, 0
      %v716 = vsel %vm642, %v380, 0
      %v719 = vsel %vm642, %v382, 0
      %v722 = vsel %vm642, %v384, 0
      %v725 = vsel %vm642, %v386, 0
      %v728 = vsel %vm642, %v388, 0
      %v731 = vsel %vm642, %v390, 0
      %v734 = vsel %vm642, %v392, 0
      %v737 = vsel %vm642, %v394, 0
      %v740 = vsel %vm642, %v396, 0
      %v743 = vsel %vm642, %v398, 0
      %v746 = vsel %vm642, %v400, 0
      %v749 = vsel %vm642, %v402, 0
      %v752 = vsel %vm642, %v404, 0
      %v755 = vsel %vm642, %v406, 0
      %v758 = vsel %vm642, %v408, 0
      %v761 = vsel %vm642, %v410, 0
      %v764 = vsel %vm642, %v412, 0
      %v767 = vsel %vm642, %v414, 0
      %v770 = vsel %vm642, %v416, 0
      %v773 = vsel %vm642, %v418, 0
      %v776 = vsel %vm642, %v420, 0
      %v779 = vsel %vm642, %v422, 0
      %v782 = vsel %vm642, %v424, 0
      %v785 = vsel %vm642, %v426, 0
      %v788 = vsel %vm642, %v428, 0
      %v791 = vsel %vm642, %v430, 0
      %v794 = vsel %vm642, %v432, 0
      %v797 = vsel %vm642, %v434, 0
      %v800 = vsel %vm642, %v436, 0
      %v803 = vsel %vm642, %v438, 0
      %v806 = vsel %vm642, %v440, 0
      %v809 = vsel %vm642, %v442, 0
      %v812 = vsel %vm642, %v444, 0
      %v815 = vsel %vm642, %v446, 0
      %v818 = vsel %vm642, %v448, 0
      %v821 = vsel %vm642, %v450, 0
      %v824 = vsel %vm642, %v452, 0
      %v827 = vsel %vm642, %v454, 0
      %v830 = vsel %vm642, %v456, 0
      %v833 = vsel %vm642, %v458, 0
      %v836 = vsel %vm642, %v460, 0
      %v839 = vsel %vm642, %v462, 0
      %v842 = vsel %vm642, %v464, 0
      %v845 = vsel %vm642, %v466, 0
      %v848 = vsel %vm642, %v468, 0
      %v851 = vsel %vm642, %v470, 0
      %v854 = vsel %vm642, %v472, 0
      %v857 = vsel %vm642, %v474, 0
      %v860 = vsel %vm642, %v476, 0
      %v863 = vsel %vm642, %v478, 0
      %v866 = vsel %vm642, %v480, 0
      %v869 = vsel %vm642, %v482, 0
      %v872 = vsel %vm642, %v484, 0
      %v875 = vsel %vm642, %v486, 0
      %v878 = vsel %vm642, %v488, 0
      %v881 = vsel %vm642, %v490, 0
      %v884 = vsel %vm642, %v492, 0
      %v887 = vsel %vm642, %v494, 0
      %v890 = vsel %vm642, %v496, 0
      %v893 = vsel %vm642, %v498, 0
      %v896 = vsel %vm642, %v500, 0
      %v899 = vsel %vm642, %v502, 0
      %v902 = vsel %vm642, %v504, 0
      %v905 = vsel %vm642, %v506, 0
      %v908 = vsel %vm642, %v508, 0
      %v911 = vsel %vm642, %v510, 0
      %v914 = vsel %vm642, %v512, 0
      %v917 = vsel %vm642, %v514, 0
      %v920 = vsel %vm642, %v516, 0
      %v923 = vsel %vm642, %v518, 0
      %v926 = vsel %vm642, %v520, 0
      %v929 = vsel %vm642, %v522, 0
      %v932 = vsel %vm642, %v524, 0
      %v935 = vsel %vm642, %v526, 0
      %v938 = vsel %vm642, %v528, 0
      %v941 = vsel %vm642, %v530, 0
      %v944 = vsel %vm642, %v532, 0
      %v947 = vsel %vm642, %v534, 0
      %v950 = vsel %vm642, %v536, 0
      %v953 = vsel %vm642, %v538, 0
      %v956 = vsel %vm642, %v540, 0
      %v959 = vsel %vm642, %v542, 0
      %v962 = vsel %vm642, %v544, 0
      %v965 = vsel %vm642, %v546, 0
      %v968 = vsel %vm642, %v548, 0
      %v971 = vsel %vm642, %v550, 0
      %v974 = vsel %vm642, %v552, 0
      %v977 = vsel %vm642, %v554, 0
      %v980 = vsel %vm642, %v556, 0
      %v983 = vsel %vm642, %v558, 0
      %v986 = vsel %vm642, %v560, 0
      %v989 = vsel %vm642, %v562, 0
      %v992 = vsel %vm642, %v564, 0
      %v995 = vsel %vm642, %v566, 0
      %v998 = vsel %vm642, %v568, 0
      %v1001 = vsel %vm642, %v570, 0
      %v1004 = vsel %vm642, %v572, 0
      %v1007 = vsel %vm642, %v574, 0
      %v1010 = vsel %vm642, %v576, 0
      %v1013 = vsel %vm642, %v578, 0
      %v1016 = vsel %vm642, %v580, 0
      %v1019 = vsel %vm642, %v582, 0
      %v1022 = vsel %vm642, %v584, 0
      %v1025 = vsel %vm642, %v586, 0
      %v1028 = vsel %vm642, %v588, 0
      %v1031 = vsel %vm642, %v590, 0
      %v1034 = vsel %vm642, %v592, 0
      %v1037 = vsel %vm642, %v594, 0
      %v1040 = vsel %vm642, %v596, 0
      %v1043 = vsel %vm642, %v598, 0
      %v1046 = vsel %vm642, %v600, 0
      %v1049 = vsel %vm642, %v602, 0
      %v1052 = vsel %vm642, %v604, 0
      %v1055 = vsel %vm642, %v606, 0
      %v1058 = vsel %vm642, %v608, 0
      %v1061 = vsel %vm642, %v610, 0
      %1063 = vmatprep.subr.mxu0 0.0
      %1064 = vmatpush1.msra.mxu0 %v626
      %1065 = vmatprep.subr.mxu0 0.0
      %1066 = vmatpush1.msra.mxu0 %v625
      %1067 = vmatprep.subr.mxu0 0.0
      %1068 = vmatpush1.msra.mxu0 %v624
      %1069 = vmatprep.subr.mxu0 0.0
      %1070 = vmatpush1.msra.mxu0 %v623
      %1071 = vmatprep.subr.mxu0 0.0
      %1072 = vmatpush1.msra.mxu0 %v622
      %1073 = vmatprep.subr.mxu0 0.0
      %1074 = vmatpush1.msra.mxu0 %v621
      %1075 = vmatprep.subr.mxu0 0.0
      %1076 = vmatpush1.msra.mxu0 %v620
      %1077 = vmatprep.subr.mxu0 0.0
      %1078 = vmatpush1.msra.mxu0 %v619
      %1079 = vmatprep.subr.mxu0 0.0
      %1080 = vmatpush1.msra.mxu0 %v618
      %1081 = vmatprep.subr.mxu0 0.0
      %1082 = vmatpush1.msra.mxu0 %v617
      %1083 = vmatprep.subr.mxu0 0.0
      %1084 = vmatpush1.msra.mxu0 %v616
      %1085 = vmatprep.subr.mxu0 0.0
      %1086 = vmatpush1.msra.mxu0 %v615
      %1087 = vmatprep.subr.mxu0 0.0
      %1088 = vmatpush1.msra.mxu0 %v614
      %1089 = vmatprep.subr.mxu0 0.0
      %1090 = vmatpush1.msra.mxu0 %v613
      %1091 = vmatprep.subr.mxu0 0.0
      %1092 = vmatpush1.msra.mxu0 %v612
      %1093 = vmatprep.subr.mxu0 0.0
      %1094 = vmatpush1.msra.mxu0 %v611
      %1095 = vmatprep.subr.mxu0 0.0
      %1096 = vmatpush2.msra.mxu0 0.0
      %1097 = vmatprep.subr.mxu0 0.0
      %1098 = vmatpush2.msra.mxu0 0.0
      %1099 = vmatprep.subr.mxu0 0.0
      %1100 = vmatpush2.msra.mxu0 0.0
      %1101 = vmatprep.subr.mxu0 0.0
      %1102 = vmatpush2.msra.mxu0 0.0
      %1103 = vmatprep.subr.mxu0 0.0
      %1104 = vmatpush2.msra.mxu0 0.0
      %1105 = vmatprep.subr.mxu0 0.0
      %1106 = vmatpush2.msra.mxu0 0.0
      %1107 = vmatprep.subr.mxu0 0.0
      %1108 = vmatpush2.msra.mxu0 0.0
      %1109 = vmatprep.subr.mxu0 0.0
      %1110 = vmatpush2.msra.mxu0 0.0
      %1111 = vmatprep.subr.mxu0 0.0
      %1112 = vmatpush2.msra.mxu0 %v634
      %1113 = vmatprep.subr.mxu0 0.0
      %1114 = vmatpush2.msra.mxu0 %v633
      %1115 = vmatprep.subr.mxu0 0.0
      %1116 = vmatpush2.msra.mxu0 %v632
      %1117 = vmatprep.subr.mxu0 0.0
      %1118 = vmatpush2.msra.mxu0 %v631
      %1119 = vmatprep.subr.mxu0 0.0
      %1120 = vmatpush2.msra.mxu0 %v630
      %1121 = vmatprep.subr.mxu0 0.0
      %1122 = vmatpush2.msra.mxu0 %v629
      %1123 = vmatprep.subr.mxu0 0.0
      %1124 = vmatpush2.msra.mxu0 %v628
      %1125 = vmatprep.subr.mxu0 0.0
      %1126 = vmatpush2.msra.mxu0 %v627
      %1127 = vmatprep.mubr.f32.mxu0 %v644
      %1128 = vmatmul.mubr.f32.gmra.mxu0 %v331
      %v1129 = vpop.f32.mrf.mxu0
      %v1130 = vadd.f32 %v640, %v1129
      %v1131 = vpop.f32.mrf.mxu0
      %1132 = vmatprep.mubr.f32.mxu0 %v647
      %1133 = vmatmul.mubr.f32.gmra.mxu0 %v333
      %v1134 = vpop.f32.mrf.mxu0
      %v1135 = vadd.f32 %v640, %v1134
      %v1136 = vpop.f32.mrf.mxu0
      %1137 = vmatprep.mubr.f32.mxu0 %v650
      %1138 = vmatmul.mubr.f32.gmra.mxu0 %v335
      %v1139 = vpop.f32.mrf.mxu0
      %v1140 = vadd.f32 %v640, %v1139
      %v1141 = vpop.f32.mrf.mxu0
      %1142 = vmatprep.mubr.f32.mxu0 %v653
      %1143 = vmatmul.mubr.f32.gmra.mxu0 %v337
      %v1144 = vpop.f32.mrf.mxu0
      %v1145 = vadd.f32 %v640, %v1144
      %v1146 = vpop.f32.mrf.mxu0
      %1147 = vmatprep.mubr.f32.mxu0 %v656
      %1148 = vmatmul.mubr.f32.gmra.mxu0 %v339
      %v1149 = vpop.f32.mrf.mxu0
      %v1150 = vadd.f32 %v640, %v1149
      %v1151 = vpop.f32.mrf.mxu0
      %1152 = vmatprep.mubr.f32.mxu0 %v659
      %1153 = vmatmul.mubr.f32.gmra.mxu0 %v341
      %v1154 = vpop.f32.mrf.mxu0
      %v1155 = vadd.f32 %v640, %v1154
      %v1156 = vpop.f32.mrf.mxu0
      %1157 = vmatprep.mubr.f32.mxu0 %v662
      %1158 = vmatmul.mubr.f32.gmra.mxu0 %v343
      %v1159 = vpop.f32.mrf.mxu0
      %v1160 = vadd.f32 %v640, %v1159
      %v1161 = vpop.f32.mrf.mxu0
      %1162 = vmatprep.mubr.f32.mxu0 %v665
      %1163 = vmatmul.mubr.f32.gmra.mxu0 %v345
      %v1164 = vpop.f32.mrf.mxu0
      %v1165 = vadd.f32 %v640, %v1164
      %v1166 = vpop.f32.mrf.mxu0
      %1167 = vmatprep.mubr.f32.mxu0 %v668
      %1168 = vmatmul.mubr.f32.gmra.mxu0 %v347
      %v1169 = vpop.f32.mrf.mxu0
      %v1170 = vadd.f32 %v640, %v1169
      %v1171 = vpop.f32.mrf.mxu0
      %1172 = vmatprep.mubr.f32.mxu0 %v671
      %1173 = vmatmul.mubr.f32.gmra.mxu0 %v349
      %v1174 = vpop.f32.mrf.mxu0
      %v1175 = vadd.f32 %v640, %v1174
      %v1176 = vpop.f32.mrf.mxu0
      %1177 = vmatprep.mubr.f32.mxu0 %v674
      %1178 = vmatmul.mubr.f32.gmra.mxu0 %v351
      %v1179 = vpop.f32.mrf.mxu0
      %v1180 = vadd.f32 %v640, %v1179
      %v1181 = vpop.f32.mrf.mxu0
      %1182 = vmatprep.mubr.f32.mxu0 %v677
      %1183 = vmatmul.mubr.f32.gmra.mxu0 %v353
      %v1184 = vpop.f32.mrf.mxu0
      %v1185 = vadd.f32 %v640, %v1184
      %v1186 = vpop.f32.mrf.mxu0
      %1187 = vmatprep.mubr.f32.mxu0 %v680
      %1188 = vmatmul.mubr.f32.gmra.mxu0 %v355
      %v1189 = vpop.f32.mrf.mxu0
      %v1190 = vadd.f32 %v640, %v1189
      %v1191 = vpop.f32.mrf.mxu0
      %1192 = vmatprep.mubr.f32.mxu0 %v683
      %1193 = vmatmul.mubr.f32.gmra.mxu0 %v357
      %v1194 = vpop.f32.mrf.mxu0
      %v1195 = vadd.f32 %v640, %v1194
      %v1196 = vpop.f32.mrf.mxu0
      %1197 = vmatprep.mubr.f32.mxu0 %v686
      %1198 = vmatmul.mubr.f32.gmra.mxu0 %v359
      %v1199 = vpop.f32.mrf.mxu0
      %v1200 = vadd.f32 %v640, %v1199
      %v1201 = vpop.f32.mrf.mxu0
      %1202 = vmatprep.mubr.f32.mxu0 %v689
      %1203 = vmatmul.mubr.f32.gmra.mxu0 %v361
      %v1204 = vpop.f32.mrf.mxu0
      %v1205 = vadd.f32 %v640, %v1204
      %v1206 = vpop.f32.mrf.mxu0
      %1207 = vmatprep.mubr.f32.mxu0 %v692
      %1208 = vmatmul.mubr.f32.gmra.mxu0 %v363
      %v1209 = vpop.f32.mrf.mxu0
      %v1210 = vadd.f32 %v640, %v1209
      %v1211 = vpop.f32.mrf.mxu0
      %1212 = vmatprep.mubr.f32.mxu0 %v695
      %1213 = vmatmul.mubr.f32.gmra.mxu0 %v365
      %v1214 = vpop.f32.mrf.mxu0
      %v1215 = vadd.f32 %v640, %v1214
      %v1216 = vpop.f32.mrf.mxu0
      %1217 = vmatprep.mubr.f32.mxu0 %v698
      %1218 = vmatmul.mubr.f32.gmra.mxu0 %v367
      %v1219 = vpop.f32.mrf.mxu0
      %v1220 = vadd.f32 %v640, %v1219
      %v1221 = vpop.f32.mrf.mxu0
      %1222 = vmatprep.mubr.f32.mxu0 %v701
      %1223 = vmatmul.mubr.f32.gmra.mxu0 %v369
      %v1224 = vpop.f32.mrf.mxu0
      %v1225 = vadd.f32 %v640, %v1224
      %v1226 = vpop.f32.mrf.mxu0
      %1227 = vmatprep.mubr.f32.mxu0 %v704
      %1228 = vmatmul.mubr.f32.gmra.mxu0 %v371
      %v1229 = vpop.f32.mrf.mxu0
      %v1230 = vadd.f32 %v640, %v1229
      %v1231 = vpop.f32.mrf.mxu0
      %1232 = vmatprep.mubr.f32.mxu0 %v707
      %1233 = vmatmul.mubr.f32.gmra.mxu0 %v373
      %v1234 = vpop.f32.mrf.mxu0
      %v1235 = vadd.f32 %v640, %v1234
      %v1236 = vpop.f32.mrf.mxu0
      %1237 = vmatprep.mubr.f32.mxu0 %v710
      %1238 = vmatmul.mubr.f32.gmra.mxu0 %v375
      %v1239 = vpop.f32.mrf.mxu0
      %v1240 = vadd.f32 %v640, %v1239
      %v1241 = vpop.f32.mrf.mxu0
      %1242 = vmatprep.mubr.f32.mxu0 %v713
      %1243 = vmatmul.mubr.f32.gmra.mxu0 %v377
      %v1244 = vpop.f32.mrf.mxu0
      %v1245 = vadd.f32 %v640, %v1244
      %v1246 = vpop.f32.mrf.mxu0
      %1247 = vmatprep.mubr.f32.mxu0 %v716
      %1248 = vmatmul.mubr.f32.gmra.mxu0 %v379
      %v1249 = vpop.f32.mrf.mxu0
      %v1250 = vadd.f32 %v640, %v1249
      %v1251 = vpop.f32.mrf.mxu0
      %1252 = vmatprep.mubr.f32.mxu0 %v719
      %1253 = vmatmul.mubr.f32.gmra.mxu0 %v381
      %v1254 = vpop.f32.mrf.mxu0
      %v1255 = vadd.f32 %v640, %v1254
      %v1256 = vpop.f32.mrf.mxu0
      %1257 = vmatprep.mubr.f32.mxu0 %v722
      %1258 = vmatmul.mubr.f32.gmra.mxu0 %v383
      %v1259 = vpop.f32.mrf.mxu0
      %v1260 = vadd.f32 %v640, %v1259
      %v1261 = vpop.f32.mrf.mxu0
      %1262 = vmatprep.mubr.f32.mxu0 %v725
      %1263 = vmatmul.mubr.f32.gmra.mxu0 %v385
      %v1264 = vpop.f32.mrf.mxu0
      %v1265 = vadd.f32 %v640, %v1264
      %v1266 = vpop.f32.mrf.mxu0
      %1267 = vmatprep.mubr.f32.mxu0 %v728
      %1268 = vmatmul.mubr.f32.gmra.mxu0 %v387
      %v1269 = vpop.f32.mrf.mxu0
      %v1270 = vadd.f32 %v640, %v1269
      %v1271 = vpop.f32.mrf.mxu0
      %1272 = vmatprep.mubr.f32.mxu0 %v731
      %1273 = vmatmul.mubr.f32.gmra.mxu0 %v389
      %v1274 = vpop.f32.mrf.mxu0
      %v1275 = vadd.f32 %v640, %v1274
      %v1276 = vpop.f32.mrf.mxu0
      %1277 = vmatprep.mubr.f32.mxu0 %v734
      %1278 = vmatmul.mubr.f32.gmra.mxu0 %v391
      %v1279 = vpop.f32.mrf.mxu0
      %v1280 = vadd.f32 %v640, %v1279
      %v1281 = vpop.f32.mrf.mxu0
      %1282 = vmatprep.mubr.f32.mxu0 %v737
      %1283 = vmatmul.mubr.f32.gmra.mxu0 %v393
      %v1284 = vpop.f32.mrf.mxu0
      %v1285 = vadd.f32 %v640, %v1284
      %v1286 = vpop.f32.mrf.mxu0
      %1287 = vmatprep.mubr.f32.mxu0 %v740
      %1288 = vmatmul.mubr.f32.gmra.mxu0 %v395
      %v1289 = vpop.f32.mrf.mxu0
      %v1290 = vadd.f32 %v640, %v1289
      %v1291 = vpop.f32.mrf.mxu0
      %1292 = vmatprep.mubr.f32.mxu0 %v743
      %1293 = vmatmul.mubr.f32.gmra.mxu0 %v397
      %v1294 = vpop.f32.mrf.mxu0
      %v1295 = vadd.f32 %v640, %v1294
      %v1296 = vpop.f32.mrf.mxu0
      %1297 = vmatprep.mubr.f32.mxu0 %v746
      %1298 = vmatmul.mubr.f32.gmra.mxu0 %v399
      %v1299 = vpop.f32.mrf.mxu0
      %v1300 = vadd.f32 %v640, %v1299
      %v1301 = vpop.f32.mrf.mxu0
      %1302 = vmatprep.mubr.f32.mxu0 %v749
      %1303 = vmatmul.mubr.f32.gmra.mxu0 %v401
      %v1304 = vpop.f32.mrf.mxu0
      %v1305 = vadd.f32 %v640, %v1304
      %v1306 = vpop.f32.mrf.mxu0
      %1307 = vmatprep.mubr.f32.mxu0 %v752
      %1308 = vmatmul.mubr.f32.gmra.mxu0 %v403
      %v1309 = vpop.f32.mrf.mxu0
      %v1310 = vadd.f32 %v640, %v1309
      %v1311 = vpop.f32.mrf.mxu0
      %1312 = vmatprep.mubr.f32.mxu0 %v755
      %1313 = vmatmul.mubr.f32.gmra.mxu0 %v405
      %v1314 = vpop.f32.mrf.mxu0
      %v1315 = vadd.f32 %v640, %v1314
      %v1316 = vpop.f32.mrf.mxu0
      %1317 = vmatprep.mubr.f32.mxu0 %v758
      %1318 = vmatmul.mubr.f32.gmra.mxu0 %v407
      %v1319 = vpop.f32.mrf.mxu0
      %v1320 = vadd.f32 %v640, %v1319
      %v1321 = vpop.f32.mrf.mxu0
      %1322 = vmatprep.mubr.f32.mxu0 %v761
      %1323 = vmatmul.mubr.f32.gmra.mxu0 %v409
      %v1324 = vpop.f32.mrf.mxu0
      %v1325 = vadd.f32 %v640, %v1324
      %v1326 = vpop.f32.mrf.mxu0
      %1327 = vmatprep.mubr.f32.mxu0 %v764
      %1328 = vmatmul.mubr.f32.gmra.mxu0 %v411
      %v1329 = vpop.f32.mrf.mxu0
      %v1330 = vadd.f32 %v640, %v1329
      %v1331 = vpop.f32.mrf.mxu0
      %1332 = vmatprep.mubr.f32.mxu0 %v767
      %1333 = vmatmul.mubr.f32.gmra.mxu0 %v413
      %v1334 = vpop.f32.mrf.mxu0
      %v1335 = vadd.f32 %v640, %v1334
      %v1336 = vpop.f32.mrf.mxu0
      %1337 = vmatprep.mubr.f32.mxu0 %v770
      %1338 = vmatmul.mubr.f32.gmra.mxu0 %v415
      %v1339 = vpop.f32.mrf.mxu0
      %v1340 = vadd.f32 %v640, %v1339
      %v1341 = vpop.f32.mrf.mxu0
      %1342 = vmatprep.mubr.f32.mxu0 %v773
      %1343 = vmatmul.mubr.f32.gmra.mxu0 %v417
      %v1344 = vpop.f32.mrf.mxu0
      %v1345 = vadd.f32 %v640, %v1344
      %v1346 = vpop.f32.mrf.mxu0
      %1347 = vmatprep.mubr.f32.mxu0 %v776
      %1348 = vmatmul.mubr.f32.gmra.mxu0 %v419
      %v1349 = vpop.f32.mrf.mxu0
      %v1350 = vadd.f32 %v640, %v1349
      %v1351 = vpop.f32.mrf.mxu0
      %1352 = vmatprep.mubr.f32.mxu0 %v779
      %1353 = vmatmul.mubr.f32.gmra.mxu0 %v421
      %v1354 = vpop.f32.mrf.mxu0
      %v1355 = vadd.f32 %v640, %v1354
      %v1356 = vpop.f32.mrf.mxu0
      %1357 = vmatprep.mubr.f32.mxu0 %v782
      %1358 = vmatmul.mubr.f32.gmra.mxu0 %v423
      %v1359 = vpop.f32.mrf.mxu0
      %v1360 = vadd.f32 %v640, %v1359
      %v1361 = vpop.f32.mrf.mxu0
      %1362 = vmatprep.mubr.f32.mxu0 %v785
      %1363 = vmatmul.mubr.f32.gmra.mxu0 %v425
      %v1364 = vpop.f32.mrf.mxu0
      %v1365 = vadd.f32 %v640, %v1364
      %v1366 = vpop.f32.mrf.mxu0
      %1367 = vmatprep.mubr.f32.mxu0 %v788
      %1368 = vmatmul.mubr.f32.gmra.mxu0 %v427
      %v1369 = vpop.f32.mrf.mxu0
      %v1370 = vadd.f32 %v640, %v1369
      %v1371 = vpop.f32.mrf.mxu0
      %1372 = vmatprep.mubr.f32.mxu0 %v791
      %1373 = vmatmul.mubr.f32.gmra.mxu0 %v429
      %v1374 = vpop.f32.mrf.mxu0
      %v1375 = vadd.f32 %v640, %v1374
      %v1376 = vpop.f32.mrf.mxu0
      %1377 = vmatprep.mubr.f32.mxu0 %v794
      %1378 = vmatmul.mubr.f32.gmra.mxu0 %v431
      %v1379 = vpop.f32.mrf.mxu0
      %v1380 = vadd.f32 %v640, %v1379
      %v1381 = vpop.f32.mrf.mxu0
      %1382 = vmatprep.mubr.f32.mxu0 %v797
      %1383 = vmatmul.mubr.f32.gmra.mxu0 %v433
      %v1384 = vpop.f32.mrf.mxu0
      %v1385 = vadd.f32 %v640, %v1384
      %v1386 = vpop.f32.mrf.mxu0
      %1387 = vmatprep.mubr.f32.mxu0 %v800
      %1388 = vmatmul.mubr.f32.gmra.mxu0 %v435
      %v1389 = vpop.f32.mrf.mxu0
      %v1390 = vadd.f32 %v640, %v1389
      %v1391 = vpop.f32.mrf.mxu0
      %1392 = vmatprep.mubr.f32.mxu0 %v803
      %1393 = vmatmul.mubr.f32.gmra.mxu0 %v437
      %v1394 = vpop.f32.mrf.mxu0
      %v1395 = vadd.f32 %v640, %v1394
      %v1396 = vpop.f32.mrf.mxu0
      %1397 = vmatprep.mubr.f32.mxu0 %v806
      %1398 = vmatmul.mubr.f32.gmra.mxu0 %v439
      %v1399 = vpop.f32.mrf.mxu0
      %v1400 = vadd.f32 %v640, %v1399
      %v1401 = vpop.f32.mrf.mxu0
      %1402 = vmatprep.mubr.f32.mxu0 %v809
      %1403 = vmatmul.mubr.f32.gmra.mxu0 %v441
      %v1404 = vpop.f32.mrf.mxu0
      %v1405 = vadd.f32 %v640, %v1404
      %v1406 = vpop.f32.mrf.mxu0
      %1407 = vmatprep.mubr.f32.mxu0 %v812
      %1408 = vmatmul.mubr.f32.gmra.mxu0 %v443
      %v1409 = vpop.f32.mrf.mxu0
      %v1410 = vadd.f32 %v640, %v1409
      %v1411 = vpop.f32.mrf.mxu0
      %1412 = vmatprep.mubr.f32.mxu0 %v815
      %1413 = vmatmul.mubr.f32.gmra.mxu0 %v445
      %v1414 = vpop.f32.mrf.mxu0
      %v1415 = vadd.f32 %v640, %v1414
      %v1416 = vpop.f32.mrf.mxu0
      %1417 = vmatprep.mubr.f32.mxu0 %v818
      %1418 = vmatmul.mubr.f32.gmra.mxu0 %v447
      %v1419 = vpop.f32.mrf.mxu0
      %v1420 = vadd.f32 %v640, %v1419
      %v1421 = vpop.f32.mrf.mxu0
      %1422 = vmatprep.mubr.f32.mxu0 %v821
      %1423 = vmatmul.mubr.f32.gmra.mxu0 %v449
      %v1424 = vpop.f32.mrf.mxu0
      %v1425 = vadd.f32 %v640, %v1424
      %v1426 = vpop.f32.mrf.mxu0
      %1427 = vmatprep.mubr.f32.mxu0 %v824
      %1428 = vmatmul.mubr.f32.gmra.mxu0 %v451
      %v1429 = vpop.f32.mrf.mxu0
      %v1430 = vadd.f32 %v640, %v1429
      %v1431 = vpop.f32.mrf.mxu0
      %1432 = vmatprep.mubr.f32.mxu0 %v827
      %1433 = vmatmul.mubr.f32.gmra.mxu0 %v453
      %v1434 = vpop.f32.mrf.mxu0
      %v1435 = vadd.f32 %v640, %v1434
      %v1436 = vpop.f32.mrf.mxu0
      %1437 = vmatprep.mubr.f32.mxu0 %v830
      %1438 = vmatmul.mubr.f32.gmra.mxu0 %v455
      %v1439 = vpop.f32.mrf.mxu0
      %v1440 = vadd.f32 %v640, %v1439
      %v1441 = vpop.f32.mrf.mxu0
      %1442 = vmatprep.mubr.f32.mxu0 %v833
      %1443 = vmatmul.mubr.f32.gmra.mxu0 %v457
      %v1444 = vpop.f32.mrf.mxu0
      %v1445 = vadd.f32 %v640, %v1444
      %v1446 = vpop.f32.mrf.mxu0
      %1447 = vmatprep.mubr.f32.mxu0 %v836
      %1448 = vmatmul.mubr.f32.gmra.mxu0 %v459
      %v1449 = vpop.f32.mrf.mxu0
      %v1450 = vadd.f32 %v640, %v1449
      %v1451 = vpop.f32.mrf.mxu0
      %1452 = vmatprep.mubr.f32.mxu0 %v839
      %1453 = vmatmul.mubr.f32.gmra.mxu0 %v461
      %v1454 = vpop.f32.mrf.mxu0
      %v1455 = vadd.f32 %v640, %v1454
      %v1456 = vpop.f32.mrf.mxu0
      %1457 = vmatprep.mubr.f32.mxu0 %v842
      %1458 = vmatmul.mubr.f32.gmra.mxu0 %v463
      %v1459 = vpop.f32.mrf.mxu0
      %v1460 = vadd.f32 %v640, %v1459
      %v1461 = vpop.f32.mrf.mxu0
      %1462 = vmatprep.mubr.f32.mxu0 %v845
      %1463 = vmatmul.mubr.f32.gmra.mxu0 %v465
      %v1464 = vpop.f32.mrf.mxu0
      %v1465 = vadd.f32 %v640, %v1464
      %v1466 = vpop.f32.mrf.mxu0
      %1467 = vmatprep.mubr.f32.mxu0 %v848
      %1468 = vmatmul.mubr.f32.gmra.mxu0 %v467
      %v1469 = vpop.f32.mrf.mxu0
      %v1470 = vadd.f32 %v640, %v1469
      %v1471 = vpop.f32.mrf.mxu0
      %1472 = vmatprep.mubr.f32.mxu0 %v851
      %1473 = vmatmul.mubr.f32.gmra.mxu0 %v469
      %v1474 = vpop.f32.mrf.mxu0
      %v1475 = vadd.f32 %v640, %v1474
      %v1476 = vpop.f32.mrf.mxu0
      %1477 = vmatprep.mubr.f32.mxu0 %v854
      %1478 = vmatmul.mubr.f32.gmra.mxu0 %v471
      %v1479 = vpop.f32.mrf.mxu0
      %v1480 = vadd.f32 %v640, %v1479
      %v1481 = vpop.f32.mrf.mxu0
      %1482 = vmatprep.mubr.f32.mxu0 %v857
      %1483 = vmatmul.mubr.f32.gmra.mxu0 %v473
      %v1484 = vpop.f32.mrf.mxu0
      %v1485 = vadd.f32 %v640, %v1484
      %v1486 = vpop.f32.mrf.mxu0
      %1487 = vmatprep.mubr.f32.mxu0 %v860
      %1488 = vmatmul.mubr.f32.gmra.mxu0 %v475
      %v1489 = vpop.f32.mrf.mxu0
      %v1490 = vadd.f32 %v640, %v1489
      %v1491 = vpop.f32.mrf.mxu0
      %1492 = vmatprep.mubr.f32.mxu0 %v863
      %1493 = vmatmul.mubr.f32.gmra.mxu0 %v477
      %v1494 = vpop.f32.mrf.mxu0
      %v1495 = vadd.f32 %v640, %v1494
      %v1496 = vpop.f32.mrf.mxu0
      %1497 = vmatprep.mubr.f32.mxu0 %v866
      %1498 = vmatmul.mubr.f32.gmra.mxu0 %v479
      %v1499 = vpop.f32.mrf.mxu0
      %v1500 = vadd.f32 %v640, %v1499
      %v1501 = vpop.f32.mrf.mxu0
      %1502 = vmatprep.mubr.f32.mxu0 %v869
      %1503 = vmatmul.mubr.f32.gmra.mxu0 %v481
      %v1504 = vpop.f32.mrf.mxu0
      %v1505 = vadd.f32 %v640, %v1504
      %v1506 = vpop.f32.mrf.mxu0
      %1507 = vmatprep.mubr.f32.mxu0 %v872
      %1508 = vmatmul.mubr.f32.gmra.mxu0 %v483
      %v1509 = vpop.f32.mrf.mxu0
      %v1510 = vadd.f32 %v640, %v1509
      %v1511 = vpop.f32.mrf.mxu0
      %1512 = vmatprep.mubr.f32.mxu0 %v875
      %1513 = vmatmul.mubr.f32.gmra.mxu0 %v485
      %v1514 = vpop.f32.mrf.mxu0
      %v1515 = vadd.f32 %v640, %v1514
      %v1516 = vpop.f32.mrf.mxu0
      %1517 = vmatprep.mubr.f32.mxu0 %v878
      %1518 = vmatmul.mubr.f32.gmra.mxu0 %v487
      %v1519 = vpop.f32.mrf.mxu0
      %v1520 = vadd.f32 %v640, %v1519
      %v1521 = vpop.f32.mrf.mxu0
      %1522 = vmatprep.mubr.f32.mxu0 %v881
      %1523 = vmatmul.mubr.f32.gmra.mxu0 %v489
      %v1524 = vpop.f32.mrf.mxu0
      %v1525 = vadd.f32 %v640, %v1524
      %v1526 = vpop.f32.mrf.mxu0
      %1527 = vmatprep.mubr.f32.mxu0 %v884
      %1528 = vmatmul.mubr.f32.gmra.mxu0 %v491
      %v1529 = vpop.f32.mrf.mxu0
      %v1530 = vadd.f32 %v640, %v1529
      %v1531 = vpop.f32.mrf.mxu0
      %1532 = vmatprep.mubr.f32.mxu0 %v887
      %1533 = vmatmul.mubr.f32.gmra.mxu0 %v493
      %v1534 = vpop.f32.mrf.mxu0
      %v1535 = vadd.f32 %v640, %v1534
      %v1536 = vpop.f32.mrf.mxu0
      %1537 = vmatprep.mubr.f32.mxu0 %v890
      %1538 = vmatmul.mubr.f32.gmra.mxu0 %v495
      %v1539 = vpop.f32.mrf.mxu0
      %v1540 = vadd.f32 %v640, %v1539
      %v1541 = vpop.f32.mrf.mxu0
      %1542 = vmatprep.mubr.f32.mxu0 %v893
      %1543 = vmatmul.mubr.f32.gmra.mxu0 %v497
      %v1544 = vpop.f32.mrf.mxu0
      %v1545 = vadd.f32 %v640, %v1544
      %v1546 = vpop.f32.mrf.mxu0
      %1547 = vmatprep.mubr.f32.mxu0 %v896
      %1548 = vmatmul.mubr.f32.gmra.mxu0 %v499
      %v1549 = vpop.f32.mrf.mxu0
      %v1550 = vadd.f32 %v640, %v1549
      %v1551 = vpop.f32.mrf.mxu0
      %1552 = vmatprep.mubr.f32.mxu0 %v899
      %1553 = vmatmul.mubr.f32.gmra.mxu0 %v501
      %v1554 = vpop.f32.mrf.mxu0
      %v1555 = vadd.f32 %v640, %v1554
      %v1556 = vpop.f32.mrf.mxu0
      %1557 = vmatprep.mubr.f32.mxu0 %v902
      %1558 = vmatmul.mubr.f32.gmra.mxu0 %v503
      %v1559 = vpop.f32.mrf.mxu0
      %v1560 = vadd.f32 %v640, %v1559
      %v1561 = vpop.f32.mrf.mxu0
      %1562 = vmatprep.mubr.f32.mxu0 %v905
      %1563 = vmatmul.mubr.f32.gmra.mxu0 %v505
      %v1564 = vpop.f32.mrf.mxu0
      %v1565 = vadd.f32 %v640, %v1564
      %v1566 = vpop.f32.mrf.mxu0
      %1567 = vmatprep.mubr.f32.mxu0 %v908
      %1568 = vmatmul.mubr.f32.gmra.mxu0 %v507
      %v1569 = vpop.f32.mrf.mxu0
      %v1570 = vadd.f32 %v640, %v1569
      %v1571 = vpop.f32.mrf.mxu0
      %1572 = vmatprep.mubr.f32.mxu0 %v911
      %1573 = vmatmul.mubr.f32.gmra.mxu0 %v509
      %v1574 = vpop.f32.mrf.mxu0
      %v1575 = vadd.f32 %v640, %v1574
      %v1576 = vpop.f32.mrf.mxu0
      %1577 = vmatprep.mubr.f32.mxu0 %v914
      %1578 = vmatmul.mubr.f32.gmra.mxu0 %v511
      %v1579 = vpop.f32.mrf.mxu0
      %v1580 = vadd.f32 %v640, %v1579
      %v1581 = vpop.f32.mrf.mxu0
      %1582 = vmatprep.mubr.f32.mxu0 %v917
      %1583 = vmatmul.mubr.f32.gmra.mxu0 %v513
      %v1584 = vpop.f32.mrf.mxu0
      %v1585 = vadd.f32 %v640, %v1584
      %v1586 = vpop.f32.mrf.mxu0
      %1587 = vmatprep.mubr.f32.mxu0 %v920
      %1588 = vmatmul.mubr.f32.gmra.mxu0 %v515
      %v1589 = vpop.f32.mrf.mxu0
      %v1590 = vadd.f32 %v640, %v1589
      %v1591 = vpop.f32.mrf.mxu0
      %1592 = vmatprep.mubr.f32.mxu0 %v923
      %1593 = vmatmul.mubr.f32.gmra.mxu0 %v517
      %v1594 = vpop.f32.mrf.mxu0
      %v1595 = vadd.f32 %v640, %v1594
      %v1596 = vpop.f32.mrf.mxu0
      %1597 = vmatprep.mubr.f32.mxu0 %v926
      %1598 = vmatmul.mubr.f32.gmra.mxu0 %v519
      %v1599 = vpop.f32.mrf.mxu0
      %v1600 = vadd.f32 %v640, %v1599
      %v1601 = vpop.f32.mrf.mxu0
      %1602 = vmatprep.mubr.f32.mxu0 %v929
      %1603 = vmatmul.mubr.f32.gmra.mxu0 %v521
      %v1604 = vpop.f32.mrf.mxu0
      %v1605 = vadd.f32 %v640, %v1604
      %v1606 = vpop.f32.mrf.mxu0
      %1607 = vmatprep.mubr.f32.mxu0 %v932
      %1608 = vmatmul.mubr.f32.gmra.mxu0 %v523
      %v1609 = vpop.f32.mrf.mxu0
      %v1610 = vadd.f32 %v640, %v1609
      %v1611 = vpop.f32.mrf.mxu0
      %1612 = vmatprep.mubr.f32.mxu0 %v935
      %1613 = vmatmul.mubr.f32.gmra.mxu0 %v525
      %v1614 = vpop.f32.mrf.mxu0
      %v1615 = vadd.f32 %v640, %v1614
      %v1616 = vpop.f32.mrf.mxu0
      %1617 = vmatprep.mubr.f32.mxu0 %v938
      %1618 = vmatmul.mubr.f32.gmra.mxu0 %v527
      %v1619 = vpop.f32.mrf.mxu0
      %v1620 = vadd.f32 %v640, %v1619
      %v1621 = vpop.f32.mrf.mxu0
      %1622 = vmatprep.mubr.f32.mxu0 %v941
      %1623 = vmatmul.mubr.f32.gmra.mxu0 %v529
      %v1624 = vpop.f32.mrf.mxu0
      %v1625 = vadd.f32 %v640, %v1624
      %v1626 = vpop.f32.mrf.mxu0
      %1627 = vmatprep.mubr.f32.mxu0 %v944
      %1628 = vmatmul.mubr.f32.gmra.mxu0 %v531
      %v1629 = vpop.f32.mrf.mxu0
      %v1630 = vadd.f32 %v640, %v1629
      %v1631 = vpop.f32.mrf.mxu0
      %1632 = vmatprep.mubr.f32.mxu0 %v947
      %1633 = vmatmul.mubr.f32.gmra.mxu0 %v533
      %v1634 = vpop.f32.mrf.mxu0
      %v1635 = vadd.f32 %v640, %v1634
      %v1636 = vpop.f32.mrf.mxu0
      %1637 = vmatprep.mubr.f32.mxu0 %v950
      %1638 = vmatmul.mubr.f32.gmra.mxu0 %v535
      %v1639 = vpop.f32.mrf.mxu0
      %v1640 = vadd.f32 %v640, %v1639
      %v1641 = vpop.f32.mrf.mxu0
      %1642 = vmatprep.mubr.f32.mxu0 %v953
      %1643 = vmatmul.mubr.f32.gmra.mxu0 %v537
      %v1644 = vpop.f32.mrf.mxu0
      %v1645 = vadd.f32 %v640, %v1644
      %v1646 = vpop.f32.mrf.mxu0
      %1647 = vmatprep.mubr.f32.mxu0 %v956
      %1648 = vmatmul.mubr.f32.gmra.mxu0 %v539
      %v1649 = vpop.f32.mrf.mxu0
      %v1650 = vadd.f32 %v640, %v1649
      %v1651 = vpop.f32.mrf.mxu0
      %1652 = vmatprep.mubr.f32.mxu0 %v959
      %1653 = vmatmul.mubr.f32.gmra.mxu0 %v541
      %v1654 = vpop.f32.mrf.mxu0
      %v1655 = vadd.f32 %v640, %v1654
      %v1656 = vpop.f32.mrf.mxu0
      %1657 = vmatprep.mubr.f32.mxu0 %v962
      %1658 = vmatmul.mubr.f32.gmra.mxu0 %v543
      %v1659 = vpop.f32.mrf.mxu0
      %v1660 = vadd.f32 %v640, %v1659
      %v1661 = vpop.f32.mrf.mxu0
      %1662 = vmatprep.mubr.f32.mxu0 %v965
      %1663 = vmatmul.mubr.f32.gmra.mxu0 %v545
      %v1664 = vpop.f32.mrf.mxu0
      %v1665 = vadd.f32 %v640, %v1664
      %v1666 = vpop.f32.mrf.mxu0
      %1667 = vmatprep.mubr.f32.mxu0 %v968
      %1668 = vmatmul.mubr.f32.gmra.mxu0 %v547
      %v1669 = vpop.f32.mrf.mxu0
      %v1670 = vadd.f32 %v640, %v1669
      %v1671 = vpop.f32.mrf.mxu0
      %1672 = vmatprep.mubr.f32.mxu0 %v971
      %1673 = vmatmul.mubr.f32.gmra.mxu0 %v549
      %v1674 = vpop.f32.mrf.mxu0
      %v1675 = vadd.f32 %v640, %v1674
      %v1676 = vpop.f32.mrf.mxu0
      %1677 = vmatprep.mubr.f32.mxu0 %v974
      %1678 = vmatmul.mubr.f32.gmra.mxu0 %v551
      %v1679 = vpop.f32.mrf.mxu0
      %v1680 = vadd.f32 %v640, %v1679
      %v1681 = vpop.f32.mrf.mxu0
      %1682 = vmatprep.mubr.f32.mxu0 %v977
      %1683 = vmatmul.mubr.f32.gmra.mxu0 %v553
      %v1684 = vpop.f32.mrf.mxu0
      %v1685 = vadd.f32 %v640, %v1684
      %v1686 = vpop.f32.mrf.mxu0
      %1687 = vmatprep.mubr.f32.mxu0 %v980
      %1688 = vmatmul.mubr.f32.gmra.mxu0 %v555
      %v1689 = vpop.f32.mrf.mxu0
      %v1690 = vadd.f32 %v640, %v1689
      %v1691 = vpop.f32.mrf.mxu0
      %1692 = vmatprep.mubr.f32.mxu0 %v983
      %1693 = vmatmul.mubr.f32.gmra.mxu0 %v557
      %v1694 = vpop.f32.mrf.mxu0
      %v1695 = vadd.f32 %v640, %v1694
      %v1696 = vpop.f32.mrf.mxu0
      %1697 = vmatprep.mubr.f32.mxu0 %v986
      %1698 = vmatmul.mubr.f32.gmra.mxu0 %v559
      %v1699 = vpop.f32.mrf.mxu0
      %v1700 = vadd.f32 %v640, %v1699
      %v1701 = vpop.f32.mrf.mxu0
      %1702 = vmatprep.mubr.f32.mxu0 %v989
      %1703 = vmatmul.mubr.f32.gmra.mxu0 %v561
      %v1704 = vpop.f32.mrf.mxu0
      %v1705 = vadd.f32 %v640, %v1704
      %v1706 = vpop.f32.mrf.mxu0
      %1707 = vmatprep.mubr.f32.mxu0 %v992
      %1708 = vmatmul.mubr.f32.gmra.mxu0 %v563
      %v1709 = vpop.f32.mrf.mxu0
      %v1710 = vadd.f32 %v640, %v1709
      %v1711 = vpop.f32.mrf.mxu0
      %1712 = vmatprep.mubr.f32.mxu0 %v995
      %1713 = vmatmul.mubr.f32.gmra.mxu0 %v565
      %v1714 = vpop.f32.mrf.mxu0
      %v1715 = vadd.f32 %v640, %v1714
      %v1716 = vpop.f32.mrf.mxu0
      %1717 = vmatprep.mubr.f32.mxu0 %v998
      %1718 = vmatmul.mubr.f32.gmra.mxu0 %v567
      %v1719 = vpop.f32.mrf.mxu0
      %v1720 = vadd.f32 %v640, %v1719
      %v1721 = vpop.f32.mrf.mxu0
      %1722 = vmatprep.mubr.f32.mxu0 %v1001
      %1723 = vmatmul.mubr.f32.gmra.mxu0 %v569
      %v1724 = vpop.f32.mrf.mxu0
      %v1725 = vadd.f32 %v640, %v1724
      %v1726 = vpop.f32.mrf.mxu0
      %1727 = vmatprep.mubr.f32.mxu0 %v1004
      %1728 = vmatmul.mubr.f32.gmra.mxu0 %v571
      %v1729 = vpop.f32.mrf.mxu0
      %v1730 = vadd.f32 %v640, %v1729
      %v1731 = vpop.f32.mrf.mxu0
      %1732 = vmatprep.mubr.f32.mxu0 %v1007
      %1733 = vmatmul.mubr.f32.gmra.mxu0 %v573
      %v1734 = vpop.f32.mrf.mxu0
      %v1735 = vadd.f32 %v640, %v1734
      %v1736 = vpop.f32.mrf.mxu0
      %1737 = vmatprep.mubr.f32.mxu0 %v1010
      %1738 = vmatmul.mubr.f32.gmra.mxu0 %v575
      %v1739 = vpop.f32.mrf.mxu0
      %v1740 = vadd.f32 %v640, %v1739
      %v1741 = vpop.f32.mrf.mxu0
      %1742 = vmatprep.mubr.f32.mxu0 %v1013
      %1743 = vmatmul.mubr.f32.gmra.mxu0 %v577
      %v1744 = vpop.f32.mrf.mxu0
      %v1745 = vadd.f32 %v640, %v1744
      %v1746 = vpop.f32.mrf.mxu0
      %1747 = vmatprep.mubr.f32.mxu0 %v1016
      %1748 = vmatmul.mubr.f32.gmra.mxu0 %v579
      %v1749 = vpop.f32.mrf.mxu0
      %v1750 = vadd.f32 %v640, %v1749
      %v1751 = vpop.f32.mrf.mxu0
      %1752 = vmatprep.mubr.f32.mxu0 %v1019
      %1753 = vmatmul.mubr.f32.gmra.mxu0 %v581
      %v1754 = vpop.f32.mrf.mxu0
      %v1755 = vadd.f32 %v640, %v1754
      %v1756 = vpop.f32.mrf.mxu0
      %1757 = vmatprep.mubr.f32.mxu0 %v1022
      %1758 = vmatmul.mubr.f32.gmra.mxu0 %v583
      %v1759 = vpop.f32.mrf.mxu0
      %v1760 = vadd.f32 %v640, %v1759
      %v1761 = vpop.f32.mrf.mxu0
      %1762 = vmatprep.mubr.f32.mxu0 %v1025
      %1763 = vmatmul.mubr.f32.gmra.mxu0 %v585
      %v1764 = vpop.f32.mrf.mxu0
      %v1765 = vadd.f32 %v640, %v1764
      %v1766 = vpop.f32.mrf.mxu0
      %1767 = vmatprep.mubr.f32.mxu0 %v1028
      %1768 = vmatmul.mubr.f32.gmra.mxu0 %v587
      %v1769 = vpop.f32.mrf.mxu0
      %v1770 = vadd.f32 %v640, %v1769
      %v1771 = vpop.f32.mrf.mxu0
      %1772 = vmatprep.mubr.f32.mxu0 %v1031
      %1773 = vmatmul.mubr.f32.gmra.mxu0 %v589
      %v1774 = vpop.f32.mrf.mxu0
      %v1775 = vadd.f32 %v640, %v1774
      %v1776 = vpop.f32.mrf.mxu0
      %1777 = vmatprep.mubr.f32.mxu0 %v1034
      %1778 = vmatmul.mubr.f32.gmra.mxu0 %v591
      %v1779 = vpop.f32.mrf.mxu0
      %v1780 = vadd.f32 %v640, %v1779
      %v1781 = vpop.f32.mrf.mxu0
      %1782 = vmatprep.mubr.f32.mxu0 %v1037
      %1783 = vmatmul.mubr.f32.gmra.mxu0 %v593
      %v1784 = vpop.f32.mrf.mxu0
      %v1785 = vadd.f32 %v640, %v1784
      %v1786 = vpop.f32.mrf.mxu0
      %1787 = vmatprep.mubr.f32.mxu0 %v1040
      %1788 = vmatmul.mubr.f32.gmra.mxu0 %v595
      %v1789 = vpop.f32.mrf.mxu0
      %v1790 = vadd.f32 %v640, %v1789
      %v1791 = vpop.f32.mrf.mxu0
      %1792 = vmatprep.mubr.f32.mxu0 %v1043
      %1793 = vmatmul.mubr.f32.gmra.mxu0 %v597
      %v1794 = vpop.f32.mrf.mxu0
      %v1795 = vadd.f32 %v640, %v1794
      %v1796 = vpop.f32.mrf.mxu0
      %1797 = vmatprep.mubr.f32.mxu0 %v1046
      %1798 = vmatmul.mubr.f32.gmra.mxu0 %v599
      %v1799 = vpop.f32.mrf.mxu0
      %v1800 = vadd.f32 %v640, %v1799
      %v1801 = vpop.f32.mrf.mxu0
      %1802 = vmatprep.mubr.f32.mxu0 %v1049
      %1803 = vmatmul.mubr.f32.gmra.mxu0 %v601
      %v1804 = vpop.f32.mrf.mxu0
      %v1805 = vadd.f32 %v640, %v1804
      %v1806 = vpop.f32.mrf.mxu0
      %1807 = vmatprep.mubr.f32.mxu0 %v1052
      %1808 = vmatmul.mubr.f32.gmra.mxu0 %v603
      %v1809 = vpop.f32.mrf.mxu0
      %v1810 = vadd.f32 %v640, %v1809
      %v1811 = vpop.f32.mrf.mxu0
      %1812 = vmatprep.mubr.f32.mxu0 %v1055
      %1813 = vmatmul.mubr.f32.gmra.mxu0 %v605
      %v1814 = vpop.f32.mrf.mxu0
      %v1815 = vadd.f32 %v640, %v1814
      %v1816 = vpop.f32.mrf.mxu0
      %1817 = vmatprep.mubr.f32.mxu0 %v1058
      %1818 = vmatmul.mubr.f32.gmra.mxu0 %v607
      %v1819 = vpop.f32.mrf.mxu0
      %v1820 = vadd.f32 %v640, %v1819
      %v1821 = vpop.f32.mrf.mxu0
      %1822 = vmatprep.mubr.f32.mxu0 %v1061
      %1823 = vmatmul.mubr.f32.gmra.mxu0 %v609
      %v1824 = vpop.f32.mrf.mxu0
      %v1825 = vadd.f32 %v640, %v1824
      %v1826 = vpop.f32.mrf.mxu0
      %1827 = vdwg.mxu0
      %v1828 = vmax.f32 %v1130, 0.0
      %v1829 = vmax.f32 %v1135, 0.0
      %v1830 = vmax.f32 %v1140, 0.0
      %v1831 = vmax.f32 %v1145, 0.0
      %v1832 = vmax.f32 %v1150, 0.0
      %v1833 = vmax.f32 %v1155, 0.0
      %v1834 = vmax.f32 %v1160, 0.0
      %v1835 = vmax.f32 %v1165, 0.0
      %v1836 = vmax.f32 %v1170, 0.0
      %v1837 = vmax.f32 %v1175, 0.0
      %v1838 = vmax.f32 %v1180, 0.0
      %v1839 = vmax.f32 %v1185, 0.0
      %v1840 = vmax.f32 %v1190, 0.0
      %v1841 = vmax.f32 %v1195, 0.0
      %v1842 = vmax.f32 %v1200, 0.0
      %v1843 = vmax.f32 %v1205, 0.0
      %v1844 = vmax.f32 %v1210, 0.0
      %v1845 = vmax.f32 %v1215, 0.0
      %v1846 = vmax.f32 %v1220, 0.0
      %v1847 = vmax.f32 %v1225, 0.0
      %v1848 = vmax.f32 %v1230, 0.0
      %v1849 = vmax.f32 %v1235, 0.0
      %v1850 = vmax.f32 %v1240, 0.0
      %v1851 = vmax.f32 %v1245, 0.0
      %v1852 = vmax.f32 %v1250, 0.0
      %v1853 = vmax.f32 %v1255, 0.0
      %v1854 = vmax.f32 %v1260, 0.0
      %v1855 = vmax.f32 %v1265, 0.0
      %v1856 = vmax.f32 %v1270, 0.0
      %v1857 = vmax.f32 %v1275, 0.0
      %v1858 = vmax.f32 %v1280, 0.0
      %v1859 = vmax.f32 %v1285, 0.0
      %v1860 = vmax.f32 %v1290, 0.0
      %v1861 = vmax.f32 %v1295, 0.0
      %v1862 = vmax.f32 %v1300, 0.0
      %v1863 = vmax.f32 %v1305, 0.0
      %v1864 = vmax.f32 %v1310, 0.0
      %v1865 = vmax.f32 %v1315, 0.0
      %v1866 = vmax.f32 %v1320, 0.0
      %v1867 = vmax.f32 %v1325, 0.0
      %v1868 = vmax.f32 %v1330, 0.0
      %v1869 = vmax.f32 %v1335, 0.0
      %v1870 = vmax.f32 %v1340, 0.0
      %v1871 = vmax.f32 %v1345, 0.0
      %v1872 = vmax.f32 %v1350, 0.0
      %v1873 = vmax.f32 %v1355, 0.0
      %v1874 = vmax.f32 %v1360, 0.0
      %v1875 = vmax.f32 %v1365, 0.0
      %v1876 = vmax.f32 %v1370, 0.0
      %v1877 = vmax.f32 %v1375, 0.0
      %v1878 = vmax.f32 %v1380, 0.0
      %v1879 = vmax.f32 %v1385, 0.0
      %v1880 = vmax.f32 %v1390, 0.0
      %v1881 = vmax.f32 %v1395, 0.0
      %v1882 = vmax.f32 %v1400, 0.0
      %v1883 = vmax.f32 %v1405, 0.0
      %v1884 = vmax.f32 %v1410, 0.0
      %v1885 = vmax.f32 %v1415, 0.0
      %v1886 = vmax.f32 %v1420, 0.0
      %v1887 = vmax.f32 %v1425, 0.0
      %v1888 = vmax.f32 %v1430, 0.0
      %v1889 = vmax.f32 %v1435, 0.0
      %v1890 = vmax.f32 %v1440, 0.0
      %v1891 = vmax.f32 %v1445, 0.0
      %v1892 = vmax.f32 %v1450, 0.0
      %v1893 = vmax.f32 %v1455, 0.0
      %v1894 = vmax.f32 %v1460, 0.0
      %v1895 = vmax.f32 %v1465, 0.0
      %v1896 = vmax.f32 %v1470, 0.0
      %v1897 = vmax.f32 %v1475, 0.0
      %v1898 = vmax.f32 %v1480, 0.0
      %v1899 = vmax.f32 %v1485, 0.0
      %v1900 = vmax.f32 %v1490, 0.0
      %v1901 = vmax.f32 %v1495, 0.0
      %v1902 = vmax.f32 %v1500, 0.0
      %v1903 = vmax.f32 %v1505, 0.0
      %v1904 = vmax.f32 %v1510, 0.0
      %v1905 = vmax.f32 %v1515, 0.0
      %v1906 = vmax.f32 %v1520, 0.0
      %v1907 = vmax.f32 %v1525, 0.0
      %v1908 = vmax.f32 %v1530, 0.0
      %v1909 = vmax.f32 %v1535, 0.0
      %v1910 = vmax.f32 %v1540, 0.0
      %v1911 = vmax.f32 %v1545, 0.0
      %v1912 = vmax.f32 %v1550, 0.0
      %v1913 = vmax.f32 %v1555, 0.0
      %v1914 = vmax.f32 %v1560, 0.0
      %v1915 = vmax.f32 %v1565, 0.0
      %v1916 = vmax.f32 %v1570, 0.0
      %v1917 = vmax.f32 %v1575, 0.0
      %v1918 = vmax.f32 %v1580, 0.0
      %v1919 = vmax.f32 %v1585, 0.0
      %v1920 = vmax.f32 %v1590, 0.0
      %v1921 = vmax.f32 %v1595, 0.0
      %v1922 = vmax.f32 %v1600, 0.0
      %v1923 = vmax.f32 %v1605, 0.0
      %v1924 = vmax.f32 %v1610, 0.0
      %v1925 = vmax.f32 %v1615, 0.0
      %v1926 = vmax.f32 %v1620, 0.0
      %v1927 = vmax.f32 %v1625, 0.0
      %v1928 = vmax.f32 %v1630, 0.0
      %v1929 = vmax.f32 %v1635, 0.0
      %v1930 = vmax.f32 %v1640, 0.0
      %v1931 = vmax.f32 %v1645, 0.0
      %v1932 = vmax.f32 %v1650, 0.0
      %v1933 = vmax.f32 %v1655, 0.0
      %v1934 = vmax.f32 %v1660, 0.0
      %v1935 = vmax.f32 %v1665, 0.0
      %v1936 = vmax.f32 %v1670, 0.0
      %v1937 = vmax.f32 %v1675, 0.0
      %v1938 = vmax.f32 %v1680, 0.0
      %v1939 = vmax.f32 %v1685, 0.0
      %v1940 = vmax.f32 %v1690, 0.0
      %v1941 = vmax.f32 %v1695, 0.0
      %v1942 = vmax.f32 %v1700, 0.0
      %v1943 = vmax.f32 %v1705, 0.0
      %v1944 = vmax.f32 %v1710, 0.0
      %v1945 = vmax.f32 %v1715, 0.0
      %v1946 = vmax.f32 %v1720, 0.0
      %v1947 = vmax.f32 %v1725, 0.0
      %v1948 = vmax.f32 %v1730, 0.0
      %v1949 = vmax.f32 %v1735, 0.0
      %v1950 = vmax.f32 %v1740, 0.0
      %v1951 = vmax.f32 %v1745, 0.0
      %v1952 = vmax.f32 %v1750, 0.0
      %v1953 = vmax.f32 %v1755, 0.0
      %v1954 = vmax.f32 %v1760, 0.0
      %v1955 = vmax.f32 %v1765, 0.0
      %v1956 = vmax.f32 %v1770, 0.0
      %v1957 = vmax.f32 %v1775, 0.0
      %v1958 = vmax.f32 %v1780, 0.0
      %v1959 = vmax.f32 %v1785, 0.0
      %v1960 = vmax.f32 %v1790, 0.0
      %v1961 = vmax.f32 %v1795, 0.0
      %v1962 = vmax.f32 %v1800, 0.0
      %v1963 = vmax.f32 %v1805, 0.0
      %v1964 = vmax.f32 %v1810, 0.0
      %v1965 = vmax.f32 %v1815, 0.0
      %v1966 = vmax.f32 %v1820, 0.0
      %v1967 = vmax.f32 %v1825, 0.0
      %vm1968 = vcmask 261120
      %1969 = vst.msk [vmem:[#allocation2] sm:$0xff] %vm1968, %v1828
      %1970 = vst.msk [vmem:[#allocation2 + $0x8] sm:$0xff] %vm1968, %v1829
      %1971 = vst.msk [vmem:[#allocation2 + $0x10] sm:$0xff] %vm1968, %v1830
      %1972 = vst.msk [vmem:[#allocation2 + $0x18] sm:$0xff] %vm1968, %v1831
      %1973 = vst.msk [vmem:[#allocation2 + $0x20] sm:$0xff] %vm1968, %v1832
      %1974 = vst.msk [vmem:[#allocation2 + $0x28] sm:$0xff] %vm1968, %v1833
      %1975 = vst.msk [vmem:[#allocation2 + $0x30] sm:$0xff] %vm1968, %v1834
      %1976 = vst.msk [vmem:[#allocation2 + $0x38] sm:$0xff] %vm1968, %v1835
      %1977 = vst.msk [vmem:[#allocation2 + $0x40] sm:$0xff] %vm1968, %v1836
      %1978 = vst.msk [vmem:[#allocation2 + $0x48] sm:$0xff] %vm1968, %v1837
      %1979 = vst.msk [vmem:[#allocation2 + $0x50] sm:$0xff] %vm1968, %v1838
      %1980 = vst.msk [vmem:[#allocation2 + $0x58] sm:$0xff] %vm1968, %v1839
      %1981 = vst.msk [vmem:[#allocation2 + $0x60] sm:$0xff] %vm1968, %v1840
      %1982 = vst.msk [vmem:[#allocation2 + $0x68] sm:$0xff] %vm1968, %v1841
      %1983 = vst.msk [vmem:[#allocation2 + $0x70] sm:$0xff] %vm1968, %v1842
      %1984 = vst.msk [vmem:[#allocation2 + $0x78] sm:$0xff] %vm1968, %v1843
      %1985 = vst.msk [vmem:[#allocation2 + $0x80] sm:$0xff] %vm1968, %v1844
      %1986 = vst.msk [vmem:[#allocation2 + $0x88] sm:$0xff] %vm1968, %v1845
      %1987 = vst.msk [vmem:[#allocation2 + $0x90] sm:$0xff] %vm1968, %v1846
      %1988 = vst.msk [vmem:[#allocation2 + $0x98] sm:$0xff] %vm1968, %v1847
      %1989 = vst.msk [vmem:[#allocation2 + $0xa0] sm:$0xff] %vm1968, %v1848
      %1990 = vst.msk [vmem:[#allocation2 + $0xa8] sm:$0xff] %vm1968, %v1849
      %1991 = vst.msk [vmem:[#allocation2 + $0xb0] sm:$0xff] %vm1968, %v1850
      %1992 = vst.msk [vmem:[#allocation2 + $0xb8] sm:$0xff] %vm1968, %v1851
      %1993 = vst.msk [vmem:[#allocation2 + $0xc0] sm:$0xff] %vm1968, %v1852
      %1994 = vst.msk [vmem:[#allocation2 + $0xc8] sm:$0xff] %vm1968, %v1853
      %1995 = vst.msk [vmem:[#allocation2 + $0xd0] sm:$0xff] %vm1968, %v1854
      %1996 = vst.msk [vmem:[#allocation2 + $0xd8] sm:$0xff] %vm1968, %v1855
      %1997 = vst.msk [vmem:[#allocation2 + $0xe0] sm:$0xff] %vm1968, %v1856
      %1998 = vst.msk [vmem:[#allocation2 + $0xe8] sm:$0xff] %vm1968, %v1857
      %1999 = vst.msk [vmem:[#allocation2 + $0xf0] sm:$0xff] %vm1968, %v1858
      %2000 = vst.msk [vmem:[#allocation2 + $0xf8] sm:$0xff] %vm1968, %v1859
      %2001 = vst.msk [vmem:[#allocation2 + $0x100] sm:$0xff] %vm1968, %v1860
      %2002 = vst.msk [vmem:[#allocation2 + $0x108] sm:$0xff] %vm1968, %v1861
      %2003 = vst.msk [vmem:[#allocation2 + $0x110] sm:$0xff] %vm1968, %v1862
      %2004 = vst.msk [vmem:[#allocation2 + $0x118] sm:$0xff] %vm1968, %v1863
      %2005 = vst.msk [vmem:[#allocation2 + $0x120] sm:$0xff] %vm1968, %v1864
      %2006 = vst.msk [vmem:[#allocation2 + $0x128] sm:$0xff] %vm1968, %v1865
      %2007 = vst.msk [vmem:[#allocation2 + $0x130] sm:$0xff] %vm1968, %v1866
      %2008 = vst.msk [vmem:[#allocation2 + $0x138] sm:$0xff] %vm1968, %v1867
      %2009 = vst.msk [vmem:[#allocation2 + $0x140] sm:$0xff] %vm1968, %v1868
      %2010 = vst.msk [vmem:[#allocation2 + $0x148] sm:$0xff] %vm1968, %v1869
      %2011 = vst.msk [vmem:[#allocation2 + $0x150] sm:$0xff] %vm1968, %v1870
      %2012 = vst.msk [vmem:[#allocation2 + $0x158] sm:$0xff] %vm1968, %v1871
      %2013 = vst.msk [vmem:[#allocation2 + $0x160] sm:$0xff] %vm1968, %v1872
      %2014 = vst.msk [vmem:[#allocation2 + $0x168] sm:$0xff] %vm1968, %v1873
      %2015 = vst.msk [vmem:[#allocation2 + $0x170] sm:$0xff] %vm1968, %v1874
      %2016 = vst.msk [vmem:[#allocation2 + $0x178] sm:$0xff] %vm1968, %v1875
      %2017 = vst.msk [vmem:[#allocation2 + $0x180] sm:$0xff] %vm1968, %v1876
      %2018 = vst.msk [vmem:[#allocation2 + $0x188] sm:$0xff] %vm1968, %v1877
      %2019 = vst.msk [vmem:[#allocation2 + $0x190] sm:$0xff] %vm1968, %v1878
      %2020 = vst.msk [vmem:[#allocation2 + $0x198] sm:$0xff] %vm1968, %v1879
      %2021 = vst.msk [vmem:[#allocation2 + $0x1a0] sm:$0xff] %vm1968, %v1880
      %2022 = vst.msk [vmem:[#allocation2 + $0x1a8] sm:$0xff] %vm1968, %v1881
      %2023 = vst.msk [vmem:[#allocation2 + $0x1b0] sm:$0xff] %vm1968, %v1882
      %2024 = vst.msk [vmem:[#allocation2 + $0x1b8] sm:$0xff] %vm1968, %v1883
      %2025 = vst.msk [vmem:[#allocation2 + $0x1c0] sm:$0xff] %vm1968, %v1884
      %2026 = vst.msk [vmem:[#allocation2 + $0x1c8] sm:$0xff] %vm1968, %v1885
      %2027 = vst.msk [vmem:[#allocation2 + $0x1d0] sm:$0xff] %vm1968, %v1886
      %2028 = vst.msk [vmem:[#allocation2 + $0x1d8] sm:$0xff] %vm1968, %v1887
      %2029 = vst.msk [vmem:[#allocation2 + $0x1e0] sm:$0xff] %vm1968, %v1888
      %2030 = vst.msk [vmem:[#allocation2 + $0x1e8] sm:$0xff] %vm1968, %v1889
      %2031 = vst.msk [vmem:[#allocation2 + $0x1f0] sm:$0xff] %vm1968, %v1890
      %2032 = vst.msk [vmem:[#allocation2 + $0x1f8] sm:$0xff] %vm1968, %v1891
      %2033 = vst.msk [vmem:[#allocation2 + $0x200] sm:$0xff] %vm1968, %v1892
      %2034 = vst.msk [vmem:[#allocation2 + $0x208] sm:$0xff] %vm1968, %v1893
      %2035 = vst.msk [vmem:[#allocation2 + $0x210] sm:$0xff] %vm1968, %v1894
      %2036 = vst.msk [vmem:[#allocation2 + $0x218] sm:$0xff] %vm1968, %v1895
      %2037 = vst.msk [vmem:[#allocation2 + $0x220] sm:$0xff] %vm1968, %v1896
      %2038 = vst.msk [vmem:[#allocation2 + $0x228] sm:$0xff] %vm1968, %v1897
      %2039 = vst.msk [vmem:[#allocation2 + $0x230] sm:$0xff] %vm1968, %v1898
      %2040 = vst.msk [vmem:[#allocation2 + $0x238] sm:$0xff] %vm1968, %v1899
      %2041 = vst.msk [vmem:[#allocation2 + $0x240] sm:$0xff] %vm1968, %v1900
      %2042 = vst.msk [vmem:[#allocation2 + $0x248] sm:$0xff] %vm1968, %v1901
      %2043 = vst.msk [vmem:[#allocation2 + $0x250] sm:$0xff] %vm1968, %v1902
      %2044 = vst.msk [vmem:[#allocation2 + $0x258] sm:$0xff] %vm1968, %v1903
      %2045 = vst.msk [vmem:[#allocation2 + $0x260] sm:$0xff] %vm1968, %v1904
      %2046 = vst.msk [vmem:[#allocation2 + $0x268] sm:$0xff] %vm1968, %v1905
      %2047 = vst.msk [vmem:[#allocation2 + $0x270] sm:$0xff] %vm1968, %v1906
      %2048 = vst.msk [vmem:[#allocation2 + $0x278] sm:$0xff] %vm1968, %v1907
      %2049 = vst.msk [vmem:[#allocation2 + $0x280] sm:$0xff] %vm1968, %v1908
      %2050 = vst.msk [vmem:[#allocation2 + $0x288] sm:$0xff] %vm1968, %v1909
      %2051 = vst.msk [vmem:[#allocation2 + $0x290] sm:$0xff] %vm1968, %v1910
      %2052 = vst.msk [vmem:[#allocation2 + $0x298] sm:$0xff] %vm1968, %v1911
      %2053 = vst.msk [vmem:[#allocation2 + $0x2a0] sm:$0xff] %vm1968, %v1912
      %2054 = vst.msk [vmem:[#allocation2 + $0x2a8] sm:$0xff] %vm1968, %v1913
      %2055 = vst.msk [vmem:[#allocation2 + $0x2b0] sm:$0xff] %vm1968, %v1914
      %2056 = vst.msk [vmem:[#allocation2 + $0x2b8] sm:$0xff] %vm1968, %v1915
      %2057 = vst.msk [vmem:[#allocation2 + $0x2c0] sm:$0xff] %vm1968, %v1916
      %2058 = vst.msk [vmem:[#allocation2 + $0x2c8] sm:$0xff] %vm1968, %v1917
      %2059 = vst.msk [vmem:[#allocation2 + $0x2d0] sm:$0xff] %vm1968, %v1918
      %2060 = vst.msk [vmem:[#allocation2 + $0x2d8] sm:$0xff] %vm1968, %v1919
      %2061 = vst.msk [vmem:[#allocation2 + $0x2e0] sm:$0xff] %vm1968, %v1920
      %2062 = vst.msk [vmem:[#allocation2 + $0x2e8] sm:$0xff] %vm1968, %v1921
      %2063 = vst.msk [vmem:[#allocation2 + $0x2f0] sm:$0xff] %vm1968, %v1922
      %2064 = vst.msk [vmem:[#allocation2 + $0x2f8] sm:$0xff] %vm1968, %v1923
      %2065 = vst.msk [vmem:[#allocation2 + $0x300] sm:$0xff] %vm1968, %v1924
      %2066 = vst.msk [vmem:[#allocation2 + $0x308] sm:$0xff] %vm1968, %v1925
      %2067 = vst.msk [vmem:[#allocation2 + $0x310] sm:$0xff] %vm1968, %v1926
      %2068 = vst.msk [vmem:[#allocation2 + $0x318] sm:$0xff] %vm1968, %v1927
      %2069 = vst.msk [vmem:[#allocation2 + $0x320] sm:$0xff] %vm1968, %v1928
      %2070 = vst.msk [vmem:[#allocation2 + $0x328] sm:$0xff] %vm1968, %v1929
      %2071 = vst.msk [vmem:[#allocation2 + $0x330] sm:$0xff] %vm1968, %v1930
      %2072 = vst.msk [vmem:[#allocation2 + $0x338] sm:$0xff] %vm1968, %v1931
      %2073 = vst.msk [vmem:[#allocation2 + $0x340] sm:$0xff] %vm1968, %v1932
      %2074 = vst.msk [vmem:[#allocation2 + $0x348] sm:$0xff] %vm1968, %v1933
      %2075 = vst.msk [vmem:[#allocation2 + $0x350] sm:$0xff] %vm1968, %v1934
      %2076 = vst.msk [vmem:[#allocation2 + $0x358] sm:$0xff] %vm1968, %v1935
      %2077 = vst.msk [vmem:[#allocation2 + $0x360] sm:$0xff] %vm1968, %v1936
      %2078 = vst.msk [vmem:[#allocation2 + $0x368] sm:$0xff] %vm1968, %v1937
      %2079 = vst.msk [vmem:[#allocation2 + $0x370] sm:$0xff] %vm1968, %v1938
      %2080 = vst.msk [vmem:[#allocation2 + $0x378] sm:$0xff] %vm1968, %v1939
      %2081 = vst.msk [vmem:[#allocation2 + $0x380] sm:$0xff] %vm1968, %v1940
      %2082 = vst.msk [vmem:[#allocation2 + $0x388] sm:$0xff] %vm1968, %v1941
      %2083 = vst.msk [vmem:[#allocation2 + $0x390] sm:$0xff] %vm1968, %v1942
      %2084 = vst.msk [vmem:[#allocation2 + $0x398] sm:$0xff] %vm1968, %v1943
      %2085 = vst.msk [vmem:[#allocation2 + $0x3a0] sm:$0xff] %vm1968, %v1944
      %2086 = vst.msk [vmem:[#allocation2 + $0x3a8] sm:$0xff] %vm1968, %v1945
      %2087 = vst.msk [vmem:[#allocation2 + $0x3b0] sm:$0xff] %vm1968, %v1946
      %2088 = vst.msk [vmem:[#allocation2 + $0x3b8] sm:$0xff] %vm1968, %v1947
      %2089 = vst.msk [vmem:[#allocation2 + $0x3c0] sm:$0xff] %vm1968, %v1948
      %2090 = vst.msk [vmem:[#allocation2 + $0x3c8] sm:$0xff] %vm1968, %v1949
      %2091 = vst.msk [vmem:[#allocation2 + $0x3d0] sm:$0xff] %vm1968, %v1950
      %2092 = vst.msk [vmem:[#allocation2 + $0x3d8] sm:$0xff] %vm1968, %v1951
      %2093 = vst.msk [vmem:[#allocation2 + $0x3e0] sm:$0xff] %vm1968, %v1952
      %2094 = vst.msk [vmem:[#allocation2 + $0x3e8] sm:$0xff] %vm1968, %v1953
      %2095 = vst.msk [vmem:[#allocation2 + $0x3f0] sm:$0xff] %vm1968, %v1954
      %2096 = vst.msk [vmem:[#allocation2 + $0x3f8] sm:$0xff] %vm1968, %v1955
      %2097 = vst.msk [vmem:[#allocation2 + $0x400] sm:$0xff] %vm1968, %v1956
      %2098 = vst.msk [vmem:[#allocation2 + $0x408] sm:$0xff] %vm1968, %v1957
      %2099 = vst.msk [vmem:[#allocation2 + $0x410] sm:$0xff] %vm1968, %v1958
      %2100 = vst.msk [vmem:[#allocation2 + $0x418] sm:$0xff] %vm1968, %v1959
      %2101 = vst.msk [vmem:[#allocation2 + $0x420] sm:$0xff] %vm1968, %v1960
      %2102 = vst.msk [vmem:[#allocation2 + $0x428] sm:$0xff] %vm1968, %v1961
      %2103 = vst.msk [vmem:[#allocation2 + $0x430] sm:$0xff] %vm1968, %v1962
      %2104 = vst.msk [vmem:[#allocation2 + $0x438] sm:$0xff] %vm1968, %v1963
      %2105 = vst.msk [vmem:[#allocation2 + $0x440] sm:$0xff] %vm1968, %v1964
      %2106 = vst.msk [vmem:[#allocation2 + $0x448] sm:$0xff] %vm1968, %v1965
      %2107 = vst.msk [vmem:[#allocation2 + $0x450] sm:$0xff] %vm1968, %v1966
      %2108 = vst.msk [vmem:[#allocation2 + $0x458] sm:$0xff] %vm1968, %v1967
      %v2109 = vld [vmem:[#allocation2] sm:$0xff]
      %v2110 = vld [vmem:[#allocation2 + $0x8] sm:$0xff]
      %v2111 = vld [vmem:[#allocation2 + $0x10] sm:$0xff]
      %v2112 = vld [vmem:[#allocation2 + $0x18] sm:$0xff]
      %v2113 = vld [vmem:[#allocation2 + $0x20] sm:$0xff]
      %v2114 = vld [vmem:[#allocation2 + $0x28] sm:$0xff]
      %v2115 = vld [vmem:[#allocation2 + $0x30] sm:$0xff]
      %v2116 = vld [vmem:[#allocation2 + $0x38] sm:$0xff]
      %v2117 = vld [vmem:[#allocation2 + $0x40] sm:$0xff]
      %v2118 = vld [vmem:[#allocation2 + $0x48] sm:$0xff]
      %v2119 = vld [vmem:[#allocation2 + $0x50] sm:$0xff]
      %v2120 = vld [vmem:[#allocation2 + $0x58] sm:$0xff]
      %v2121 = vld [vmem:[#allocation2 + $0x60] sm:$0xff]
      %v2122 = vld [vmem:[#allocation2 + $0x68] sm:$0xff]
      %v2123 = vld [vmem:[#allocation2 + $0x70] sm:$0xff]
      %v2124 = vld [vmem:[#allocation2 + $0x78] sm:$0xff]
      %v2125 = vld [vmem:[#allocation2 + $0x80] sm:$0xff]
      %v2126 = vld [vmem:[#allocation2 + $0x88] sm:$0xff]
      %v2127 = vld [vmem:[#allocation2 + $0x90] sm:$0xff]
      %v2128 = vld [vmem:[#allocation2 + $0x98] sm:$0xff]
      %v2129 = vld [vmem:[#allocation2 + $0xa0] sm:$0xff]
      %v2130 = vld [vmem:[#allocation2 + $0xa8] sm:$0xff]
      %v2131 = vld [vmem:[#allocation2 + $0xb0] sm:$0xff]
      %v2132 = vld [vmem:[#allocation2 + $0xb8] sm:$0xff]
      %v2133 = vld [vmem:[#allocation2 + $0xc0] sm:$0xff]
      %v2134 = vld [vmem:[#allocation2 + $0xc8] sm:$0xff]
      %v2135 = vld [vmem:[#allocation2 + $0xd0] sm:$0xff]
      %v2136 = vld [vmem:[%s3] sm:$0xff]
      %v2137 = vld [vmem:[%s3 + $0x8] sm:$0xff]
      %v2138 = vld [vmem:[%s3 + $0x10] sm:$0xff]
      %v2139 = vld [vmem:[%s3 + $0x18] sm:$0xff]
      %v2141 = vsel %vm1968, %v2109, 0
      %v2144 = vsel %vm1968, %v2110, 0
      %v2147 = vsel %vm1968, %v2111, 0
      %v2150 = vsel %vm1968, %v2112, 0
      %v2153 = vsel %vm1968, %v2113, 0
      %v2156 = vsel %vm1968, %v2114, 0
      %v2159 = vsel %vm1968, %v2115, 0
      %v2162 = vsel %vm1968, %v2116, 0
      %v2165 = vsel %vm1968, %v2117, 0
      %v2168 = vsel %vm1968, %v2118, 0
      %v2171 = vsel %vm1968, %v2119, 0
      %v2174 = vsel %vm1968, %v2120, 0
      %v2177 = vsel %vm1968, %v2121, 0
      %v2180 = vsel %vm1968, %v2122, 0
      %v2183 = vsel %vm1968, %v2123, 0
      %v2186 = vsel %vm1968, %v2124, 0
      %v2189 = vsel %vm1968, %v2125, 0
      %v2192 = vsel %vm1968, %v2126, 0
      %v2195 = vsel %vm1968, %v2127, 0
      %v2198 = vsel %vm1968, %v2128, 0
      %v2201 = vsel %vm1968, %v2129, 0
      %v2204 = vsel %vm1968, %v2130, 0
      %v2207 = vsel %vm1968, %v2131, 0
      %v2210 = vsel %vm1968, %v2132, 0
      %v2213 = vsel %vm1968, %v2133, 0
      %v2216 = vsel %vm1968, %v2134, 0
      %v2219 = vsel %vm1968, %v2135, 0
      %2221 = vmatprep.subr.mxu0 0.0
      %2222 = vmatpush1.msra.mxu0 0.0
      %2223 = vmatprep.subr.mxu0 0.0
      %2224 = vmatpush1.msra.mxu0 0.0
      %2225 = vmatprep.subr.mxu0 0.0
      %2226 = vmatpush1.msra.mxu0 0.0
      %2227 = vmatprep.subr.mxu0 0.0
      %2228 = vmatpush1.msra.mxu0 0.0
      %2229 = vmatprep.subr.mxu0 0.0
      %2230 = vmatpush1.msra.mxu0 0.0
      %2231 = vmatprep.subr.mxu0 0.0
      %2232 = vmatpush1.msra.mxu0 0.0
      %2233 = vmatprep.subr.mxu0 0.0
      %2234 = vmatpush1.msra.mxu0 0.0
      %2235 = vmatprep.subr.mxu0 0.0
      %2236 = vmatpush1.msra.mxu0 0.0
      %2237 = vmatprep.subr.mxu0 0.0
      %2238 = vmatpush1.msra.mxu0 0.0
      %2239 = vmatprep.subr.mxu0 0.0
      %2240 = vmatpush1.msra.mxu0 0.0
      %2241 = vmatprep.subr.mxu0 0.0
      %2242 = vmatpush1.msra.mxu0 0.0
      %2243 = vmatprep.subr.mxu0 0.0
      %2244 = vmatpush1.msra.mxu0 0.0
      %2245 = vmatprep.subr.mxu0 0.0
      %2246 = vmatpush1.msra.mxu0 %v2139
      %2247 = vmatprep.subr.mxu0 0.0
      %2248 = vmatpush1.msra.mxu0 %v2138
      %2249 = vmatprep.subr.mxu0 0.0
      %2250 = vmatpush1.msra.mxu0 %v2137
      %2251 = vmatprep.subr.mxu0 0.0
      %2252 = vmatpush1.msra.mxu0 %v2136
      %2253 = vmatprep.subr.mxu0 0.0
      %2254 = vmatpush2.msra.mxu0 0.0
      %2255 = vmatprep.subr.mxu0 0.0
      %2256 = vmatpush2.msra.mxu0 0.0
      %2257 = vmatprep.subr.mxu0 0.0
      %2258 = vmatpush2.msra.mxu0 0.0
      %2259 = vmatprep.subr.mxu0 0.0
      %2260 = vmatpush2.msra.mxu0 0.0
      %2261 = vmatprep.subr.mxu0 0.0
      %2262 = vmatpush2.msra.mxu0 0.0
      %2263 = vmatprep.subr.mxu0 0.0
      %2264 = vmatpush2.msra.mxu0 0.0
      %2265 = vmatprep.subr.mxu0 0.0
      %2266 = vmatpush2.msra.mxu0 0.0
      %2267 = vmatprep.subr.mxu0 0.0
      %2268 = vmatpush2.msra.mxu0 0.0
      %2269 = vmatprep.subr.mxu0 0.0
      %2270 = vmatpush2.msra.mxu0 0.0
      %2271 = vmatprep.subr.mxu0 0.0
      %2272 = vmatpush2.msra.mxu0 0.0
      %2273 = vmatprep.subr.mxu0 0.0
      %2274 = vmatpush2.msra.mxu0 0.0
      %2275 = vmatprep.subr.mxu0 0.0
      %2276 = vmatpush2.msra.mxu0 0.0
      %2277 = vmatprep.subr.mxu0 0.0
      %2278 = vmatpush2.msra.mxu0 0.0
      %2279 = vmatprep.subr.mxu0 0.0
      %2280 = vmatpush2.msra.mxu0 0.0
      %2281 = vmatprep.subr.mxu0 0.0
      %2282 = vmatpush2.msra.mxu0 0.0
      %2283 = vmatprep.subr.mxu0 0.0
      %2284 = vmatpush2.msra.mxu0 0.0
      %2285 = vmatprep.mubr.f32.mxu0 0.0
      %2286 = vmatmul.mubr.f32.gmra.mxu0 %v2141
      %v2287 = vpop.f32.mrf.mxu0
      %v2288 = vadd.f32 0.0, %v2287
      %v2289 = vpop.f32.mrf.mxu0
      %2290 = vmatprep.mubr.f32.mxu0 0.0
      %2291 = vmatmul.mubr.f32.gmra.mxu0 %v2144
      %v2292 = vpop.f32.mrf.mxu0
      %v2293 = vadd.f32 0.0, %v2292
      %v2294 = vpop.f32.mrf.mxu0
      %2295 = vmatprep.mubr.f32.mxu0 0.0
      %2296 = vmatmul.mubr.f32.gmra.mxu0 %v2147
      %v2297 = vpop.f32.mrf.mxu0
      %v2298 = vadd.f32 0.0, %v2297
      %v2299 = vpop.f32.mrf.mxu0
      %2300 = vmatprep.mubr.f32.mxu0 0.0
      %2301 = vmatmul.mubr.f32.gmra.mxu0 %v2150
      %v2302 = vpop.f32.mrf.mxu0
      %v2303 = vadd.f32 0.0, %v2302
      %v2304 = vpop.f32.mrf.mxu0
      %2305 = vmatprep.mubr.f32.mxu0 0.0
      %2306 = vmatmul.mubr.f32.gmra.mxu0 %v2153
      %v2307 = vpop.f32.mrf.mxu0
      %v2308 = vadd.f32 0.0, %v2307
      %v2309 = vpop.f32.mrf.mxu0
      %2310 = vmatprep.mubr.f32.mxu0 0.0
      %2311 = vmatmul.mubr.f32.gmra.mxu0 %v2156
      %v2312 = vpop.f32.mrf.mxu0
      %v2313 = vadd.f32 0.0, %v2312
      %v2314 = vpop.f32.mrf.mxu0
      %2315 = vmatprep.mubr.f32.mxu0 0.0
      %2316 = vmatmul.mubr.f32.gmra.mxu0 %v2159
      %v2317 = vpop.f32.mrf.mxu0
      %v2318 = vadd.f32 0.0, %v2317
      %v2319 = vpop.f32.mrf.mxu0
      %2320 = vmatprep.mubr.f32.mxu0 0.0
      %2321 = vmatmul.mubr.f32.gmra.mxu0 %v2162
      %v2322 = vpop.f32.mrf.mxu0
      %v2323 = vadd.f32 0.0, %v2322
      %v2324 = vpop.f32.mrf.mxu0
      %2325 = vmatprep.mubr.f32.mxu0 0.0
      %2326 = vmatmul.mubr.f32.gmra.mxu0 %v2165
      %v2327 = vpop.f32.mrf.mxu0
      %v2328 = vadd.f32 0.0, %v2327
      %v2329 = vpop.f32.mrf.mxu0
      %2330 = vmatprep.mubr.f32.mxu0 0.0
      %2331 = vmatmul.mubr.f32.gmra.mxu0 %v2168
      %v2332 = vpop.f32.mrf.mxu0
      %v2333 = vadd.f32 0.0, %v2332
      %v2334 = vpop.f32.mrf.mxu0
      %2335 = vmatprep.mubr.f32.mxu0 0.0
      %2336 = vmatmul.mubr.f32.gmra.mxu0 %v2171
      %v2337 = vpop.f32.mrf.mxu0
      %v2338 = vadd.f32 0.0, %v2337
      %v2339 = vpop.f32.mrf.mxu0
      %2340 = vmatprep.mubr.f32.mxu0 0.0
      %2341 = vmatmul.mubr.f32.gmra.mxu0 %v2174
      %v2342 = vpop.f32.mrf.mxu0
      %v2343 = vadd.f32 0.0, %v2342
      %v2344 = vpop.f32.mrf.mxu0
      %2345 = vmatprep.mubr.f32.mxu0 0.0
      %2346 = vmatmul.mubr.f32.gmra.mxu0 %v2177
      %v2347 = vpop.f32.mrf.mxu0
      %v2348 = vadd.f32 0.0, %v2347
      %v2349 = vpop.f32.mrf.mxu0
      %2350 = vmatprep.mubr.f32.mxu0 0.0
      %2351 = vmatmul.mubr.f32.gmra.mxu0 %v2180
      %v2352 = vpop.f32.mrf.mxu0
      %v2353 = vadd.f32 0.0, %v2352
      %v2354 = vpop.f32.mrf.mxu0
      %2355 = vmatprep.mubr.f32.mxu0 0.0
      %2356 = vmatmul.mubr.f32.gmra.mxu0 %v2183
      %v2357 = vpop.f32.mrf.mxu0
      %v2358 = vadd.f32 0.0, %v2357
      %v2359 = vpop.f32.mrf.mxu0
      %2360 = vmatprep.mubr.f32.mxu0 0.0
      %2361 = vmatmul.mubr.f32.gmra.mxu0 %v2186
      %v2362 = vpop.f32.mrf.mxu0
      %v2363 = vadd.f32 0.0, %v2362
      %v2364 = vpop.f32.mrf.mxu0
      %2365 = vmatprep.mubr.f32.mxu0 0.0
      %2366 = vmatmul.mubr.f32.gmra.mxu0 %v2189
      %v2367 = vpop.f32.mrf.mxu0
      %v2368 = vadd.f32 0.0, %v2367
      %v2369 = vpop.f32.mrf.mxu0
      %2370 = vmatprep.mubr.f32.mxu0 0.0
      %2371 = vmatmul.mubr.f32.gmra.mxu0 %v2192
      %v2372 = vpop.f32.mrf.mxu0
      %v2373 = vadd.f32 0.0, %v2372
      %v2374 = vpop.f32.mrf.mxu0
      %2375 = vmatprep.mubr.f32.mxu0 0.0
      %2376 = vmatmul.mubr.f32.gmra.mxu0 %v2195
      %v2377 = vpop.f32.mrf.mxu0
      %v2378 = vadd.f32 0.0, %v2377
      %v2379 = vpop.f32.mrf.mxu0
      %2380 = vmatprep.mubr.f32.mxu0 0.0
      %2381 = vmatmul.mubr.f32.gmra.mxu0 %v2198
      %v2382 = vpop.f32.mrf.mxu0
      %v2383 = vadd.f32 0.0, %v2382
      %v2384 = vpop.f32.mrf.mxu0
      %2385 = vmatprep.mubr.f32.mxu0 0.0
      %2386 = vmatmul.mubr.f32.gmra.mxu0 %v2201
      %v2387 = vpop.f32.mrf.mxu0
      %v2388 = vadd.f32 0.0, %v2387
      %v2389 = vpop.f32.mrf.mxu0
      %2390 = vmatprep.mubr.f32.mxu0 0.0
      %2391 = vmatmul.mubr.f32.gmra.mxu0 %v2204
      %v2392 = vpop.f32.mrf.mxu0
      %v2393 = vadd.f32 0.0, %v2392
      %v2394 = vpop.f32.mrf.mxu0
      %2395 = vmatprep.mubr.f32.mxu0 0.0
      %2396 = vmatmul.mubr.f32.gmra.mxu0 %v2207
      %v2397 = vpop.f32.mrf.mxu0
      %v2398 = vadd.f32 0.0, %v2397
      %v2399 = vpop.f32.mrf.mxu0
      %2400 = vmatprep.mubr.f32.mxu0 0.0
      %2401 = vmatmul.mubr.f32.gmra.mxu0 %v2210
      %v2402 = vpop.f32.mrf.mxu0
      %v2403 = vadd.f32 0.0, %v2402
      %v2404 = vpop.f32.mrf.mxu0
      %2405 = vmatprep.mubr.f32.mxu0 0.0
      %2406 = vmatmul.mubr.f32.gmra.mxu0 %v2213
      %v2407 = vpop.f32.mrf.mxu0
      %v2408 = vadd.f32 0.0, %v2407
      %v2409 = vpop.f32.mrf.mxu0
      %2410 = vmatprep.mubr.f32.mxu0 0.0
      %2411 = vmatmul.mubr.f32.gmra.mxu0 %v2216
      %v2412 = vpop.f32.mrf.mxu0
      %v2413 = vadd.f32 0.0, %v2412
      %v2414 = vpop.f32.mrf.mxu0
      %2415 = vmatprep.mubr.f32.mxu0 0.0
      %2416 = vmatmul.mubr.f32.gmra.mxu0 %v2219
      %v2417 = vpop.f32.mrf.mxu0
      %v2418 = vadd.f32 0.0, %v2417
      %v2419 = vpop.f32.mrf.mxu0
      %2420 = vdwg.mxu0
      %2421 = vst.msk [vmem:[#allocation3] sm:$0xff] %vm642, %v2288
      %2422 = vst.msk [vmem:[#allocation3 + $0x8] sm:$0xff] %vm642, %v2293
      %2423 = vst.msk [vmem:[#allocation3 + $0x10] sm:$0xff] %vm642, %v2298
      %2424 = vst.msk [vmem:[#allocation3 + $0x18] sm:$0xff] %vm642, %v2303
      %2425 = vst.msk [vmem:[#allocation3 + $0x20] sm:$0xff] %vm642, %v2308
      %2426 = vst.msk [vmem:[#allocation3 + $0x28] sm:$0xff] %vm642, %v2313
      %2427 = vst.msk [vmem:[#allocation3 + $0x30] sm:$0xff] %vm642, %v2318
      %2428 = vst.msk [vmem:[#allocation3 + $0x38] sm:$0xff] %vm642, %v2323
      %2429 = vst.msk [vmem:[#allocation3 + $0x40] sm:$0xff] %vm642, %v2328
      %2430 = vst.msk [vmem:[#allocation3 + $0x48] sm:$0xff] %vm642, %v2333
      %2431 = vst.msk [vmem:[#allocation3 + $0x50] sm:$0xff] %vm642, %v2338
      %2432 = vst.msk [vmem:[#allocation3 + $0x58] sm:$0xff] %vm642, %v2343
      %2433 = vst.msk [vmem:[#allocation3 + $0x60] sm:$0xff] %vm642, %v2348
      %2434 = vst.msk [vmem:[#allocation3 + $0x68] sm:$0xff] %vm642, %v2353
      %2435 = vst.msk [vmem:[#allocation3 + $0x70] sm:$0xff] %vm642, %v2358
      %2436 = vst.msk [vmem:[#allocation3 + $0x78] sm:$0xff] %vm642, %v2363
      %2437 = vst.msk [vmem:[#allocation3 + $0x80] sm:$0xff] %vm642, %v2368
      %2438 = vst.msk [vmem:[#allocation3 + $0x88] sm:$0xff] %vm642, %v2373
      %2439 = vst.msk [vmem:[#allocation3 + $0x90] sm:$0xff] %vm642, %v2378
      %2440 = vst.msk [vmem:[#allocation3 + $0x98] sm:$0xff] %vm642, %v2383
      %2441 = vst.msk [vmem:[#allocation3 + $0xa0] sm:$0xff] %vm642, %v2388
      %2442 = vst.msk [vmem:[#allocation3 + $0xa8] sm:$0xff] %vm642, %v2393
      %2443 = vst.msk [vmem:[#allocation3 + $0xb0] sm:$0xff] %vm642, %v2398
      %2444 = vst.msk [vmem:[#allocation3 + $0xb8] sm:$0xff] %vm642, %v2403
      %2445 = vst.msk [vmem:[#allocation3 + $0xc0] sm:$0xff] %vm642, %v2408
      %2446 = vst.msk [vmem:[#allocation3 + $0xc8] sm:$0xff] %vm642, %v2413
      %2447 = vst.msk [vmem:[#allocation3 + $0xd0] sm:$0xff] %vm642, %v2418
      %v2448 = vld [vmem:[#allocation2 + $0x118] sm:$0xff]
      %v2449 = vld [vmem:[#allocation2 + $0x120] sm:$0xff]
      %v2450 = vld [vmem:[#allocation2 + $0x128] sm:$0xff]
      %v2451 = vld [vmem:[#allocation2 + $0x130] sm:$0xff]
      %v2452 = vld [vmem:[#allocation2 + $0x138] sm:$0xff]
      %v2453 = vld [vmem:[#allocation2 + $0x140] sm:$0xff]
      %v2454 = vld [vmem:[#allocation2 + $0x148] sm:$0xff]
      %v2455 = vld [vmem:[#allocation2 + $0x150] sm:$0xff]
      %v2456 = vld [vmem:[#allocation2 + $0x158] sm:$0xff]
      %v2457 = vld [vmem:[#allocation2 + $0x160] sm:$0xff]
      %v2458 = vld [vmem:[#allocation2 + $0x168] sm:$0xff]
      %v2459 = vld [vmem:[#allocation2 + $0x170] sm:$0xff]
      %v2460 = vld [vmem:[#allocation2 + $0x178] sm:$0xff]
      %v2461 = vld [vmem:[#allocation2 + $0x180] sm:$0xff]
      %v2462 = vld [vmem:[#allocation2 + $0x188] sm:$0xff]
      %v2463 = vld [vmem:[#allocation2 + $0x190] sm:$0xff]
      %v2464 = vld [vmem:[#allocation2 + $0x198] sm:$0xff]
      %v2465 = vld [vmem:[#allocation2 + $0x1a0] sm:$0xff]
      %v2466 = vld [vmem:[#allocation2 + $0x1a8] sm:$0xff]
      %v2467 = vld [vmem:[#allocation2 + $0x1b0] sm:$0xff]
      %v2468 = vld [vmem:[#allocation2 + $0x1b8] sm:$0xff]
      %v2469 = vld [vmem:[#allocation2 + $0x1c0] sm:$0xff]
      %v2470 = vld [vmem:[#allocation2 + $0x1c8] sm:$0xff]
      %v2471 = vld [vmem:[#allocation2 + $0x1d0] sm:$0xff]
      %v2472 = vld [vmem:[#allocation2 + $0x1d8] sm:$0xff]
      %v2473 = vld [vmem:[#allocation2 + $0x1e0] sm:$0xff]
      %v2474 = vld [vmem:[#allocation2 + $0x1e8] sm:$0xff]
      %v2475 = vld [vmem:[%s3 + $0x20] sm:$0xff]
      %v2476 = vld [vmem:[%s3 + $0x28] sm:$0xff]
      %v2477 = vld [vmem:[%s3 + $0x30] sm:$0xff]
      %v2478 = vld [vmem:[%s3 + $0x38] sm:$0xff]
      %v2480 = vsel %vm1968, %v2448, 0
      %v2483 = vsel %vm1968, %v2449, 0
      %v2486 = vsel %vm1968, %v2450, 0
      %v2489 = vsel %vm1968, %v2451, 0
      %v2492 = vsel %vm1968, %v2452, 0
      %v2495 = vsel %vm1968, %v2453, 0
      %v2498 = vsel %vm1968, %v2454, 0
      %v2501 = vsel %vm1968, %v2455, 0
      %v2504 = vsel %vm1968, %v2456, 0
      %v2507 = vsel %vm1968, %v2457, 0
      %v2510 = vsel %vm1968, %v2458, 0
      %v2513 = vsel %vm1968, %v2459, 0
      %v2516 = vsel %vm1968, %v2460, 0
      %v2519 = vsel %vm1968, %v2461, 0
      %v2522 = vsel %vm1968, %v2462, 0
      %v2525 = vsel %vm1968, %v2463, 0
      %v2528 = vsel %vm1968, %v2464, 0
      %v2531 = vsel %vm1968, %v2465, 0
      %v2534 = vsel %vm1968, %v2466, 0
      %v2537 = vsel %vm1968, %v2467, 0
      %v2540 = vsel %vm1968, %v2468, 0
      %v2543 = vsel %vm1968, %v2469, 0
      %v2546 = vsel %vm1968, %v2470, 0
      %v2549 = vsel %vm1968, %v2471, 0
      %v2552 = vsel %vm1968, %v2472, 0
      %v2555 = vsel %vm1968, %v2473, 0
      %v2558 = vsel %vm1968, %v2474, 0
      %2560 = vmatprep.subr.mxu0 0.0
      %2561 = vmatpush1.msra.mxu0 0.0
      %2562 = vmatprep.subr.mxu0 0.0
      %2563 = vmatpush1.msra.mxu0 0.0
      %2564 = vmatprep.subr.mxu0 0.0
      %2565 = vmatpush1.msra.mxu0 0.0
      %2566 = vmatprep.subr.mxu0 0.0
      %2567 = vmatpush1.msra.mxu0 0.0
      %2568 = vmatprep.subr.mxu0 0.0
      %2569 = vmatpush1.msra.mxu0 0.0
      %2570 = vmatprep.subr.mxu0 0.0
      %2571 = vmatpush1.msra.mxu0 0.0
      %2572 = vmatprep.subr.mxu0 0.0
      %2573 = vmatpush1.msra.mxu0 0.0
      %2574 = vmatprep.subr.mxu0 0.0
      %2575 = vmatpush1.msra.mxu0 0.0
      %2576 = vmatprep.subr.mxu0 0.0
      %2577 = vmatpush1.msra.mxu0 0.0
      %2578 = vmatprep.subr.mxu0 0.0
      %2579 = vmatpush1.msra.mxu0 0.0
      %2580 = vmatprep.subr.mxu0 0.0
      %2581 = vmatpush1.msra.mxu0 0.0
      %2582 = vmatprep.subr.mxu0 0.0
      %2583 = vmatpush1.msra.mxu0 0.0
      %2584 = vmatprep.subr.mxu0 0.0
      %2585 = vmatpush1.msra.mxu0 %v2478
      %2586 = vmatprep.subr.mxu0 0.0
      %2587 = vmatpush1.msra.mxu0 %v2477
      %2588 = vmatprep.subr.mxu0 0.0
      %2589 = vmatpush1.msra.mxu0 %v2476
      %2590 = vmatprep.subr.mxu0 0.0
      %2591 = vmatpush1.msra.mxu0 %v2475
      %2592 = vmatprep.subr.mxu0 0.0
      %2593 = vmatpush2.msra.mxu0 0.0
      %2594 = vmatprep.subr.mxu0 0.0
      %2595 = vmatpush2.msra.mxu0 0.0
      %2596 = vmatprep.subr.mxu0 0.0
      %2597 = vmatpush2.msra.mxu0 0.0
      %2598 = vmatprep.subr.mxu0 0.0
      %2599 = vmatpush2.msra.mxu0 0.0
      %2600 = vmatprep.subr.mxu0 0.0
      %2601 = vmatpush2.msra.mxu0 0.0
      %2602 = vmatprep.subr.mxu0 0.0
      %2603 = vmatpush2.msra.mxu0 0.0
      %2604 = vmatprep.subr.mxu0 0.0
      %2605 = vmatpush2.msra.mxu0 0.0
      %2606 = vmatprep.subr.mxu0 0.0
      %2607 = vmatpush2.msra.mxu0 0.0
      %2608 = vmatprep.subr.mxu0 0.0
      %2609 = vmatpush2.msra.mxu0 0.0
      %2610 = vmatprep.subr.mxu0 0.0
      %2611 = vmatpush2.msra.mxu0 0.0
      %2612 = vmatprep.subr.mxu0 0.0
      %2613 = vmatpush2.msra.mxu0 0.0
      %2614 = vmatprep.subr.mxu0 0.0
      %2615 = vmatpush2.msra.mxu0 0.0
      %2616 = vmatprep.subr.mxu0 0.0
      %2617 = vmatpush2.msra.mxu0 0.0
      %2618 = vmatprep.subr.mxu0 0.0
      %2619 = vmatpush2.msra.mxu0 0.0
      %2620 = vmatprep.subr.mxu0 0.0
      %2621 = vmatpush2.msra.mxu0 0.0
      %2622 = vmatprep.subr.mxu0 0.0
      %2623 = vmatpush2.msra.mxu0 0.0
      %2624 = vmatprep.mubr.f32.mxu0 0.0
      %2625 = vmatmul.mubr.f32.gmra.mxu0 %v2480
      %v2626 = vpop.f32.mrf.mxu0
      %v2627 = vadd.f32 0.0, %v2626
      %v2628 = vpop.f32.mrf.mxu0
      %2629 = vmatprep.mubr.f32.mxu0 0.0
      %2630 = vmatmul.mubr.f32.gmra.mxu0 %v2483
      %v2631 = vpop.f32.mrf.mxu0
      %v2632 = vadd.f32 0.0, %v2631
      %v2633 = vpop.f32.mrf.mxu0
      %2634 = vmatprep.mubr.f32.mxu0 0.0
      %2635 = vmatmul.mubr.f32.gmra.mxu0 %v2486
      %v2636 = vpop.f32.mrf.mxu0
      %v2637 = vadd.f32 0.0, %v2636
      %v2638 = vpop.f32.mrf.mxu0
      %2639 = vmatprep.mubr.f32.mxu0 0.0
      %2640 = vmatmul.mubr.f32.gmra.mxu0 %v2489
      %v2641 = vpop.f32.mrf.mxu0
      %v2642 = vadd.f32 0.0, %v2641
      %v2643 = vpop.f32.mrf.mxu0
      %2644 = vmatprep.mubr.f32.mxu0 0.0
      %2645 = vmatmul.mubr.f32.gmra.mxu0 %v2492
      %v2646 = vpop.f32.mrf.mxu0
      %v2647 = vadd.f32 0.0, %v2646
      %v2648 = vpop.f32.mrf.mxu0
      %2649 = vmatprep.mubr.f32.mxu0 0.0
      %2650 = vmatmul.mubr.f32.gmra.mxu0 %v2495
      %v2651 = vpop.f32.mrf.mxu0
      %v2652 = vadd.f32 0.0, %v2651
      %v2653 = vpop.f32.mrf.mxu0
      %2654 = vmatprep.mubr.f32.mxu0 0.0
      %2655 = vmatmul.mubr.f32.gmra.mxu0 %v2498
      %v2656 = vpop.f32.mrf.mxu0
      %v2657 = vadd.f32 0.0, %v2656
      %v2658 = vpop.f32.mrf.mxu0
      %2659 = vmatprep.mubr.f32.mxu0 0.0
      %2660 = vmatmul.mubr.f32.gmra.mxu0 %v2501
      %v2661 = vpop.f32.mrf.mxu0
      %v2662 = vadd.f32 0.0, %v2661
      %v2663 = vpop.f32.mrf.mxu0
      %2664 = vmatprep.mubr.f32.mxu0 0.0
      %2665 = vmatmul.mubr.f32.gmra.mxu0 %v2504
      %v2666 = vpop.f32.mrf.mxu0
      %v2667 = vadd.f32 0.0, %v2666
      %v2668 = vpop.f32.mrf.mxu0
      %2669 = vmatprep.mubr.f32.mxu0 0.0
      %2670 = vmatmul.mubr.f32.gmra.mxu0 %v2507
      %v2671 = vpop.f32.mrf.mxu0
      %v2672 = vadd.f32 0.0, %v2671
      %v2673 = vpop.f32.mrf.mxu0
      %2674 = vmatprep.mubr.f32.mxu0 0.0
      %2675 = vmatmul.mubr.f32.gmra.mxu0 %v2510
      %v2676 = vpop.f32.mrf.mxu0
      %v2677 = vadd.f32 0.0, %v2676
      %v2678 = vpop.f32.mrf.mxu0
      %2679 = vmatprep.mubr.f32.mxu0 0.0
      %2680 = vmatmul.mubr.f32.gmra.mxu0 %v2513
      %v2681 = vpop.f32.mrf.mxu0
      %v2682 = vadd.f32 0.0, %v2681
      %v2683 = vpop.f32.mrf.mxu0
      %2684 = vmatprep.mubr.f32.mxu0 0.0
      %2685 = vmatmul.mubr.f32.gmra.mxu0 %v2516
      %v2686 = vpop.f32.mrf.mxu0
      %v2687 = vadd.f32 0.0, %v2686
      %v2688 = vpop.f32.mrf.mxu0
      %2689 = vmatprep.mubr.f32.mxu0 0.0
      %2690 = vmatmul.mubr.f32.gmra.mxu0 %v2519
      %v2691 = vpop.f32.mrf.mxu0
      %v2692 = vadd.f32 0.0, %v2691
      %v2693 = vpop.f32.mrf.mxu0
      %2694 = vmatprep.mubr.f32.mxu0 0.0
      %2695 = vmatmul.mubr.f32.gmra.mxu0 %v2522
      %v2696 = vpop.f32.mrf.mxu0
      %v2697 = vadd.f32 0.0, %v2696
      %v2698 = vpop.f32.mrf.mxu0
      %2699 = vmatprep.mubr.f32.mxu0 0.0
      %2700 = vmatmul.mubr.f32.gmra.mxu0 %v2525
      %v2701 = vpop.f32.mrf.mxu0
      %v2702 = vadd.f32 0.0, %v2701
      %v2703 = vpop.f32.mrf.mxu0
      %2704 = vmatprep.mubr.f32.mxu0 0.0
      %2705 = vmatmul.mubr.f32.gmra.mxu0 %v2528
      %v2706 = vpop.f32.mrf.mxu0
      %v2707 = vadd.f32 0.0, %v2706
      %v2708 = vpop.f32.mrf.mxu0
      %2709 = vmatprep.mubr.f32.mxu0 0.0
      %2710 = vmatmul.mubr.f32.gmra.mxu0 %v2531
      %v2711 = vpop.f32.mrf.mxu0
      %v2712 = vadd.f32 0.0, %v2711
      %v2713 = vpop.f32.mrf.mxu0
      %2714 = vmatprep.mubr.f32.mxu0 0.0
      %2715 = vmatmul.mubr.f32.gmra.mxu0 %v2534
      %v2716 = vpop.f32.mrf.mxu0
      %v2717 = vadd.f32 0.0, %v2716
      %v2718 = vpop.f32.mrf.mxu0
      %2719 = vmatprep.mubr.f32.mxu0 0.0
      %2720 = vmatmul.mubr.f32.gmra.mxu0 %v2537
      %v2721 = vpop.f32.mrf.mxu0
      %v2722 = vadd.f32 0.0, %v2721
      %v2723 = vpop.f32.mrf.mxu0
      %2724 = vmatprep.mubr.f32.mxu0 0.0
      %2725 = vmatmul.mubr.f32.gmra.mxu0 %v2540
      %v2726 = vpop.f32.mrf.mxu0
      %v2727 = vadd.f32 0.0, %v2726
      %v2728 = vpop.f32.mrf.mxu0
      %2729 = vmatprep.mubr.f32.mxu0 0.0
      %2730 = vmatmul.mubr.f32.gmra.mxu0 %v2543
      %v2731 = vpop.f32.mrf.mxu0
      %v2732 = vadd.f32 0.0, %v2731
      %v2733 = vpop.f32.mrf.mxu0
      %2734 = vmatprep.mubr.f32.mxu0 0.0
      %2735 = vmatmul.mubr.f32.gmra.mxu0 %v2546
      %v2736 = vpop.f32.mrf.mxu0
      %v2737 = vadd.f32 0.0, %v2736
      %v2738 = vpop.f32.mrf.mxu0
      %2739 = vmatprep.mubr.f32.mxu0 0.0
      %2740 = vmatmul.mubr.f32.gmra.mxu0 %v2549
      %v2741 = vpop.f32.mrf.mxu0
      %v2742 = vadd.f32 0.0, %v2741
      %v2743 = vpop.f32.mrf.mxu0
      %2744 = vmatprep.mubr.f32.mxu0 0.0
      %2745 = vmatmul.mubr.f32.gmra.mxu0 %v2552
      %v2746 = vpop.f32.mrf.mxu0
      %v2747 = vadd.f32 0.0, %v2746
      %v2748 = vpop.f32.mrf.mxu0
      %2749 = vmatprep.mubr.f32.mxu0 0.0
      %2750 = vmatmul.mubr.f32.gmra.mxu0 %v2555
      %v2751 = vpop.f32.mrf.mxu0
      %v2752 = vadd.f32 0.0, %v2751
      %v2753 = vpop.f32.mrf.mxu0
      %2754 = vmatprep.mubr.f32.mxu0 0.0
      %2755 = vmatmul.mubr.f32.gmra.mxu0 %v2558
      %v2756 = vpop.f32.mrf.mxu0
      %v2757 = vadd.f32 0.0, %v2756
      %v2758 = vpop.f32.mrf.mxu0
      %2759 = vdwg.mxu0
      %v2760 = vld [vmem:[#allocation3] sm:$0xff]
      %v2761 = vld [vmem:[#allocation3 + $0x8] sm:$0xff]
      %v2762 = vld [vmem:[#allocation3 + $0x10] sm:$0xff]
      %v2763 = vld [vmem:[#allocation3 + $0x18] sm:$0xff]
      %v2764 = vld [vmem:[#allocation3 + $0x20] sm:$0xff]
      %v2765 = vld [vmem:[#allocation3 + $0x28] sm:$0xff]
      %v2766 = vld [vmem:[#allocation3 + $0x30] sm:$0xff]
      %v2767 = vld [vmem:[#allocation3 + $0x38] sm:$0xff]
      %v2768 = vld [vmem:[#allocation3 + $0x40] sm:$0xff]
      %v2769 = vld [vmem:[#allocation3 + $0x48] sm:$0xff]
      %v2770 = vld [vmem:[#allocation3 + $0x50] sm:$0xff]
      %v2771 = vld [vmem:[#allocation3 + $0x58] sm:$0xff]
      %v2772 = vld [vmem:[#allocation3 + $0x60] sm:$0xff]
      %v2773 = vld [vmem:[#allocation3 + $0x68] sm:$0xff]
      %v2774 = vld [vmem:[#allocation3 + $0x70] sm:$0xff]
      %v2775 = vld [vmem:[#allocation3 + $0x78] sm:$0xff]
      %v2776 = vld [vmem:[#allocation3 + $0x80] sm:$0xff]
      %v2777 = vld [vmem:[#allocation3 + $0x88] sm:$0xff]
      %v2778 = vld [vmem:[#allocation3 + $0x90] sm:$0xff]
      %v2779 = vld [vmem:[#allocation3 + $0x98] sm:$0xff]
      %v2780 = vld [vmem:[#allocation3 + $0xa0] sm:$0xff]
      %v2781 = vld [vmem:[#allocation3 + $0xa8] sm:$0xff]
      %v2782 = vld [vmem:[#allocation3 + $0xb0] sm:$0xff]
      %v2783 = vld [vmem:[#allocation3 + $0xb8] sm:$0xff]
      %v2784 = vld [vmem:[#allocation3 + $0xc0] sm:$0xff]
      %v2785 = vld [vmem:[#allocation3 + $0xc8] sm:$0xff]
      %v2786 = vld [vmem:[#allocation3 + $0xd0] sm:$0xff]
      %v2787 = vadd.f32 %v2760, %v2627
      %v2788 = vadd.f32 %v2761, %v2632
      %v2789 = vadd.f32 %v2762, %v2637
      %v2790 = vadd.f32 %v2763, %v2642
      %v2791 = vadd.f32 %v2764, %v2647
      %v2792 = vadd.f32 %v2765, %v2652
      %v2793 = vadd.f32 %v2766, %v2657
      %v2794 = vadd.f32 %v2767, %v2662
      %v2795 = vadd.f32 %v2768, %v2667
      %v2796 = vadd.f32 %v2769, %v2672
      %v2797 = vadd.f32 %v2770, %v2677
      %v2798 = vadd.f32 %v2771, %v2682
      %v2799 = vadd.f32 %v2772, %v2687
      %v2800 = vadd.f32 %v2773, %v2692
      %v2801 = vadd.f32 %v2774, %v2697
      %v2802 = vadd.f32 %v2775, %v2702
      %v2803 = vadd.f32 %v2776, %v2707
      %v2804 = vadd.f32 %v2777, %v2712
      %v2805 = vadd.f32 %v2778, %v2717
      %v2806 = vadd.f32 %v2779, %v2722
      %v2807 = vadd.f32 %v2780, %v2727
      %v2808 = vadd.f32 %v2781, %v2732
      %v2809 = vadd.f32 %v2782, %v2737
      %v2810 = vadd.f32 %v2783, %v2742
      %v2811 = vadd.f32 %v2784, %v2747
      %v2812 = vadd.f32 %v2785, %v2752
      %v2813 = vadd.f32 %v2786, %v2757
      %2814 = vst.msk [vmem:[#allocation3] sm:$0xff] %vm642, %v2787
      %2815 = vst.msk [vmem:[#allocation3 + $0x8] sm:$0xff] %vm642, %v2788
      %2816 = vst.msk [vmem:[#allocation3 + $0x10] sm:$0xff] %vm642, %v2789
      %2817 = vst.msk [vmem:[#allocation3 + $0x18] sm:$0xff] %vm642, %v2790
      %2818 = vst.msk [vmem:[#allocation3 + $0x20] sm:$0xff] %vm642, %v2791
      %2819 = vst.msk [vmem:[#allocation3 + $0x28] sm:$0xff] %vm642, %v2792
      %2820 = vst.msk [vmem:[#allocation3 + $0x30] sm:$0xff] %vm642, %v2793
      %2821 = vst.msk [vmem:[#allocation3 + $0x38] sm:$0xff] %vm642, %v2794
      %2822 = vst.msk [vmem:[#allocation3 + $0x40] sm:$0xff] %vm642, %v2795
      %2823 = vst.msk [vmem:[#allocation3 + $0x48] sm:$0xff] %vm642, %v2796
      %2824 = vst.msk [vmem:[#allocation3 + $0x50] sm:$0xff] %vm642, %v2797
      %2825 = vst.msk [vmem:[#allocation3 + $0x58] sm:$0xff] %vm642, %v2798
      %2826 = vst.msk [vmem:[#allocation3 + $0x60] sm:$0xff] %vm642, %v2799
      %2827 = vst.msk [vmem:[#allocation3 + $0x68] sm:$0xff] %vm642, %v2800
      %2828 = vst.msk [vmem:[#allocation3 + $0x70] sm:$0xff] %vm642, %v2801
      %2829 = vst.msk [vmem:[#allocation3 + $0x78] sm:$0xff] %vm642, %v2802
      %2830 = vst.msk [vmem:[#allocation3 + $0x80] sm:$0xff] %vm642, %v2803
      %2831 = vst.msk [vmem:[#allocation3 + $0x88] sm:$0xff] %vm642, %v2804
      %2832 = vst.msk [vmem:[#allocation3 + $0x90] sm:$0xff] %vm642, %v2805
      %2833 = vst.msk [vmem:[#allocation3 + $0x98] sm:$0xff] %vm642, %v2806
      %2834 = vst.msk [vmem:[#allocation3 + $0xa0] sm:$0xff] %vm642, %v2807
      %2835 = vst.msk [vmem:[#allocation3 + $0xa8] sm:$0xff] %vm642, %v2808
      %2836 = vst.msk [vmem:[#allocation3 + $0xb0] sm:$0xff] %vm642, %v2809
      %2837 = vst.msk [vmem:[#allocation3 + $0xb8] sm:$0xff] %vm642, %v2810
      %2838 = vst.msk [vmem:[#allocation3 + $0xc0] sm:$0xff] %vm642, %v2811
      %2839 = vst.msk [vmem:[#allocation3 + $0xc8] sm:$0xff] %vm642, %v2812
      %2840 = vst.msk [vmem:[#allocation3 + $0xd0] sm:$0xff] %vm642, %v2813
      %v2841 = vld [vmem:[#allocation2 + $0x8] sm:$0xff]
      %v2842 = vld [vmem:[#allocation2 + $0x10] sm:$0xff]
      %v2843 = vld [vmem:[#allocation2 + $0x18] sm:$0xff]
      %v2844 = vld [vmem:[#allocation2 + $0x20] sm:$0xff]
      %v2845 = vld [vmem:[#allocation2 + $0x28] sm:$0xff]
      %v2846 = vld [vmem:[#allocation2 + $0x30] sm:$0xff]
      %v2847 = vld [vmem:[#allocation2 + $0x38] sm:$0xff]
      %v2848 = vld [vmem:[#allocation2 + $0x40] sm:$0xff]
      %v2849 = vld [vmem:[#allocation2 + $0x48] sm:$0xff]
      %v2850 = vld [vmem:[#allocation2 + $0x50] sm:$0xff]
      %v2851 = vld [vmem:[#allocation2 + $0x58] sm:$0xff]
      %v2852 = vld [vmem:[#allocation2 + $0x60] sm:$0xff]
      %v2853 = vld [vmem:[#allocation2 + $0x68] sm:$0xff]
      %v2854 = vld [vmem:[#allocation2 + $0x70] sm:$0xff]
      %v2855 = vld [vmem:[#allocation2 + $0x78] sm:$0xff]
      %v2856 = vld [vmem:[#allocation2 + $0x80] sm:$0xff]
      %v2857 = vld [vmem:[#allocation2 + $0x88] sm:$0xff]
      %v2858 = vld [vmem:[#allocation2 + $0x90] sm:$0xff]
      %v2859 = vld [vmem:[#allocation2 + $0x98] sm:$0xff]
      %v2860 = vld [vmem:[#allocation2 + $0xa0] sm:$0xff]
      %v2861 = vld [vmem:[#allocation2 + $0xa8] sm:$0xff]
      %v2862 = vld [vmem:[#allocation2 + $0xb0] sm:$0xff]
      %v2863 = vld [vmem:[#allocation2 + $0xb8] sm:$0xff]
      %v2864 = vld [vmem:[#allocation2 + $0xc0] sm:$0xff]
      %v2865 = vld [vmem:[#allocation2 + $0xc8] sm:$0xff]
      %v2866 = vld [vmem:[#allocation2 + $0xd0] sm:$0xff]
      %v2867 = vld [vmem:[#allocation2 + $0xd8] sm:$0xff]
      %v2868 = vld [vmem:[%s3 + $0x40] sm:$0xff]
      %v2869 = vld [vmem:[%s3 + $0x48] sm:$0xff]
      %v2870 = vld [vmem:[%s3 + $0x50] sm:$0xff]
      %v2871 = vld [vmem:[%s3 + $0x58] sm:$0xff]
      %v2873 = vsel %vm1968, %v2841, 0
      %v2876 = vsel %vm1968, %v2842, 0
      %v2879 = vsel %vm1968, %v2843, 0
      %v2882 = vsel %vm1968, %v2844, 0
      %v2885 = vsel %vm1968, %v2845, 0
      %v2888 = vsel %vm1968, %v2846, 0
      %v2891 = vsel %vm1968, %v2847, 0
      %v2894 = vsel %vm1968, %v2848, 0
      %v2897 = vsel %vm1968, %v2849, 0
      %v2900 = vsel %vm1968, %v2850, 0
      %v2903 = vsel %vm1968, %v2851, 0
      %v2906 = vsel %vm1968, %v2852, 0
      %v2909 = vsel %vm1968, %v2853, 0
      %v2912 = vsel %vm1968, %v2854, 0
      %v2915 = vsel %vm1968, %v2855, 0
      %v2918 = vsel %vm1968, %v2856, 0
      %v2921 = vsel %vm1968, %v2857, 0
      %v2924 = vsel %vm1968, %v2858, 0
      %v2927 = vsel %vm1968, %v2859, 0
      %v2930 = vsel %vm1968, %v2860, 0
      %v2933 = vsel %vm1968, %v2861, 0
      %v2936 = vsel %vm1968, %v2862, 0
      %v2939 = vsel %vm1968, %v2863, 0
      %v2942 = vsel %vm1968, %v2864, 0
      %v2945 = vsel %vm1968, %v2865, 0
      %v2948 = vsel %vm1968, %v2866, 0
      %v2951 = vsel %vm1968, %v2867, 0
      %2953 = vmatprep.subr.mxu0 0.0
      %2954 = vmatpush1.msra.mxu0 0.0
      %2955 = vmatprep.subr.mxu0 0.0
      %2956 = vmatpush1.msra.mxu0 0.0
      %2957 = vmatprep.subr.mxu0 0.0
      %2958 = vmatpush1.msra.mxu0 0.0
      %2959 = vmatprep.subr.mxu0 0.0
      %2960 = vmatpush1.msra.mxu0 0.0
      %2961 = vmatprep.subr.mxu0 0.0
      %2962 = vmatpush1.msra.mxu0 0.0
      %2963 = vmatprep.subr.mxu0 0.0
      %2964 = vmatpush1.msra.mxu0 0.0
      %2965 = vmatprep.subr.mxu0 0.0
      %2966 = vmatpush1.msra.mxu0 0.0
      %2967 = vmatprep.subr.mxu0 0.0
      %2968 = vmatpush1.msra.mxu0 0.0
      %2969 = vmatprep.subr.mxu0 0.0
      %2970 = vmatpush1.msra.mxu0 0.0
      %2971 = vmatprep.subr.mxu0 0.0
      %2972 = vmatpush1.msra.mxu0 0.0
      %2973 = vmatprep.subr.mxu0 0.0
      %2974 = vmatpush1.msra.mxu0 0.0
      %2975 = vmatprep.subr.mxu0 0.0
      %2976 = vmatpush1.msra.mxu0 0.0
      %2977 = vmatprep.subr.mxu0 0.0
      %2978 = vmatpush1.msra.mxu0 %v2871
      %2979 = vmatprep.subr.mxu0 0.0
      %2980 = vmatpush1.msra.mxu0 %v2870
      %2981 = vmatprep.subr.mxu0 0.0
      %2982 = vmatpush1.msra.mxu0 %v2869
      %2983 = vmatprep.subr.mxu0 0.0
      %2984 = vmatpush1.msra.mxu0 %v2868
      %2985 = vmatprep.subr.mxu0 0.0
      %2986 = vmatpush2.msra.mxu0 0.0
      %2987 = vmatprep.subr.mxu0 0.0
      %2988 = vmatpush2.msra.mxu0 0.0
      %2989 = vmatprep.subr.mxu0 0.0
      %2990 = vmatpush2.msra.mxu0 0.0
      %2991 = vmatprep.subr.mxu0 0.0
      %2992 = vmatpush2.msra.mxu0 0.0
      %2993 = vmatprep.subr.mxu0 0.0
      %2994 = vmatpush2.msra.mxu0 0.0
      %2995 = vmatprep.subr.mxu0 0.0
      %2996 = vmatpush2.msra.mxu0 0.0
      %2997 = vmatprep.subr.mxu0 0.0
      %2998 = vmatpush2.msra.mxu0 0.0
      %2999 = vmatprep.subr.mxu0 0.0
      %3000 = vmatpush2.msra.mxu0 0.0
      %3001 = vmatprep.subr.mxu0 0.0
      %3002 = vmatpush2.msra.mxu0 0.0
      %3003 = vmatprep.subr.mxu0 0.0
      %3004 = vmatpush2.msra.mxu0 0.0
      %3005 = vmatprep.subr.mxu0 0.0
      %3006 = vmatpush2.msra.mxu0 0.0
      %3007 = vmatprep.subr.mxu0 0.0
      %3008 = vmatpush2.msra.mxu0 0.0
      %3009 = vmatprep.subr.mxu0 0.0
      %3010 = vmatpush2.msra.mxu0 0.0
      %3011 = vmatprep.subr.mxu0 0.0
      %3012 = vmatpush2.msra.mxu0 0.0
      %3013 = vmatprep.subr.mxu0 0.0
      %3014 = vmatpush2.msra.mxu0 0.0
      %3015 = vmatprep.subr.mxu0 0.0
      %3016 = vmatpush2.msra.mxu0 0.0
      %3017 = vmatprep.mubr.f32.mxu0 0.0
      %3018 = vmatmul.mubr.f32.gmra.mxu0 %v2873
      %v3019 = vpop.f32.mrf.mxu0
      %v3020 = vadd.f32 0.0, %v3019
      %v3021 = vpop.f32.mrf.mxu0
      %3022 = vmatprep.mubr.f32.mxu0 0.0
      %3023 = vmatmul.mubr.f32.gmra.mxu0 %v2876
      %v3024 = vpop.f32.mrf.mxu0
      %v3025 = vadd.f32 0.0, %v3024
      %v3026 = vpop.f32.mrf.mxu0
      %3027 = vmatprep.mubr.f32.mxu0 0.0
      %3028 = vmatmul.mubr.f32.gmra.mxu0 %v2879
      %v3029 = vpop.f32.mrf.mxu0
      %v3030 = vadd.f32 0.0, %v3029
      %v3031 = vpop.f32.mrf.mxu0
      %3032 = vmatprep.mubr.f32.mxu0 0.0
      %3033 = vmatmul.mubr.f32.gmra.mxu0 %v2882
      %v3034 = vpop.f32.mrf.mxu0
      %v3035 = vadd.f32 0.0, %v3034
      %v3036 = vpop.f32.mrf.mxu0
      %3037 = vmatprep.mubr.f32.mxu0 0.0
      %3038 = vmatmul.mubr.f32.gmra.mxu0 %v2885
      %v3039 = vpop.f32.mrf.mxu0
      %v3040 = vadd.f32 0.0, %v3039
      %v3041 = vpop.f32.mrf.mxu0
      %3042 = vmatprep.mubr.f32.mxu0 0.0
      %3043 = vmatmul.mubr.f32.gmra.mxu0 %v2888
      %v3044 = vpop.f32.mrf.mxu0
      %v3045 = vadd.f32 0.0, %v3044
      %v3046 = vpop.f32.mrf.mxu0
      %3047 = vmatprep.mubr.f32.mxu0 0.0
      %3048 = vmatmul.mubr.f32.gmra.mxu0 %v2891
      %v3049 = vpop.f32.mrf.mxu0
      %v3050 = vadd.f32 0.0, %v3049
      %v3051 = vpop.f32.mrf.mxu0
      %3052 = vmatprep.mubr.f32.mxu0 0.0
      %3053 = vmatmul.mubr.f32.gmra.mxu0 %v2894
      %v3054 = vpop.f32.mrf.mxu0
      %v3055 = vadd.f32 0.0, %v3054
      %v3056 = vpop.f32.mrf.mxu0
      %3057 = vmatprep.mubr.f32.mxu0 0.0
      %3058 = vmatmul.mubr.f32.gmra.mxu0 %v2897
      %v3059 = vpop.f32.mrf.mxu0
      %v3060 = vadd.f32 0.0, %v3059
      %v3061 = vpop.f32.mrf.mxu0
      %3062 = vmatprep.mubr.f32.mxu0 0.0
      %3063 = vmatmul.mubr.f32.gmra.mxu0 %v2900
      %v3064 = vpop.f32.mrf.mxu0
      %v3065 = vadd.f32 0.0, %v3064
      %v3066 = vpop.f32.mrf.mxu0
      %3067 = vmatprep.mubr.f32.mxu0 0.0
      %3068 = vmatmul.mubr.f32.gmra.mxu0 %v2903
      %v3069 = vpop.f32.mrf.mxu0
      %v3070 = vadd.f32 0.0, %v3069
      %v3071 = vpop.f32.mrf.mxu0
      %3072 = vmatprep.mubr.f32.mxu0 0.0
      %3073 = vmatmul.mubr.f32.gmra.mxu0 %v2906
      %v3074 = vpop.f32.mrf.mxu0
      %v3075 = vadd.f32 0.0, %v3074
      %v3076 = vpop.f32.mrf.mxu0
      %3077 = vmatprep.mubr.f32.mxu0 0.0
      %3078 = vmatmul.mubr.f32.gmra.mxu0 %v2909
      %v3079 = vpop.f32.mrf.mxu0
      %v3080 = vadd.f32 0.0, %v3079
      %v3081 = vpop.f32.mrf.mxu0
      %3082 = vmatprep.mubr.f32.mxu0 0.0
      %3083 = vmatmul.mubr.f32.gmra.mxu0 %v2912
      %v3084 = vpop.f32.mrf.mxu0
      %v3085 = vadd.f32 0.0, %v3084
      %v3086 = vpop.f32.mrf.mxu0
      %3087 = vmatprep.mubr.f32.mxu0 0.0
      %3088 = vmatmul.mubr.f32.gmra.mxu0 %v2915
      %v3089 = vpop.f32.mrf.mxu0
      %v3090 = vadd.f32 0.0, %v3089
      %v3091 = vpop.f32.mrf.mxu0
      %3092 = vmatprep.mubr.f32.mxu0 0.0
      %3093 = vmatmul.mubr.f32.gmra.mxu0 %v2918
      %v3094 = vpop.f32.mrf.mxu0
      %v3095 = vadd.f32 0.0, %v3094
      %v3096 = vpop.f32.mrf.mxu0
      %3097 = vmatprep.mubr.f32.mxu0 0.0
      %3098 = vmatmul.mubr.f32.gmra.mxu0 %v2921
      %v3099 = vpop.f32.mrf.mxu0
      %v3100 = vadd.f32 0.0, %v3099
      %v3101 = vpop.f32.mrf.mxu0
      %3102 = vmatprep.mubr.f32.mxu0 0.0
      %3103 = vmatmul.mubr.f32.gmra.mxu0 %v2924
      %v3104 = vpop.f32.mrf.mxu0
      %v3105 = vadd.f32 0.0, %v3104
      %v3106 = vpop.f32.mrf.mxu0
      %3107 = vmatprep.mubr.f32.mxu0 0.0
      %3108 = vmatmul.mubr.f32.gmra.mxu0 %v2927
      %v3109 = vpop.f32.mrf.mxu0
      %v3110 = vadd.f32 0.0, %v3109
      %v3111 = vpop.f32.mrf.mxu0
      %3112 = vmatprep.mubr.f32.mxu0 0.0
      %3113 = vmatmul.mubr.f32.gmra.mxu0 %v2930
      %v3114 = vpop.f32.mrf.mxu0
      %v3115 = vadd.f32 0.0, %v3114
      %v3116 = vpop.f32.mrf.mxu0
      %3117 = vmatprep.mubr.f32.mxu0 0.0
      %3118 = vmatmul.mubr.f32.gmra.mxu0 %v2933
      %v3119 = vpop.f32.mrf.mxu0
      %v3120 = vadd.f32 0.0, %v3119
      %v3121 = vpop.f32.mrf.mxu0
      %3122 = vmatprep.mubr.f32.mxu0 0.0
      %3123 = vmatmul.mubr.f32.gmra.mxu0 %v2936
      %v3124 = vpop.f32.mrf.mxu0
      %v3125 = vadd.f32 0.0, %v3124
      %v3126 = vpop.f32.mrf.mxu0
      %3127 = vmatprep.mubr.f32.mxu0 0.0
      %3128 = vmatmul.mubr.f32.gmra.mxu0 %v2939
      %v3129 = vpop.f32.mrf.mxu0
      %v3130 = vadd.f32 0.0, %v3129
      %v3131 = vpop.f32.mrf.mxu0
      %3132 = vmatprep.mubr.f32.mxu0 0.0
      %3133 = vmatmul.mubr.f32.gmra.mxu0 %v2942
      %v3134 = vpop.f32.mrf.mxu0
      %v3135 = vadd.f32 0.0, %v3134
      %v3136 = vpop.f32.mrf.mxu0
      %3137 = vmatprep.mubr.f32.mxu0 0.0
      %3138 = vmatmul.mubr.f32.gmra.mxu0 %v2945
      %v3139 = vpop.f32.mrf.mxu0
      %v3140 = vadd.f32 0.0, %v3139
      %v3141 = vpop.f32.mrf.mxu0
      %3142 = vmatprep.mubr.f32.mxu0 0.0
      %3143 = vmatmul.mubr.f32.gmra.mxu0 %v2948
      %v3144 = vpop.f32.mrf.mxu0
      %v3145 = vadd.f32 0.0, %v3144
      %v3146 = vpop.f32.mrf.mxu0
      %3147 = vmatprep.mubr.f32.mxu0 0.0
      %3148 = vmatmul.mubr.f32.gmra.mxu0 %v2951
      %v3149 = vpop.f32.mrf.mxu0
      %v3150 = vadd.f32 0.0, %v3149
      %v3151 = vpop.f32.mrf.mxu0
      %3152 = vdwg.mxu0
      %v3153 = vld [vmem:[#allocation3] sm:$0xff]
      %v3154 = vld [vmem:[#allocation3 + $0x8] sm:$0xff]
      %v3155 = vld [vmem:[#allocation3 + $0x10] sm:$0xff]
      %v3156 = vld [vmem:[#allocation3 + $0x18] sm:$0xff]
      %v3157 = vld [vmem:[#allocation3 + $0x20] sm:$0xff]
      %v3158 = vld [vmem:[#allocation3 + $0x28] sm:$0xff]
      %v3159 = vld [vmem:[#allocation3 + $0x30] sm:$0xff]
      %v3160 = vld [vmem:[#allocation3 + $0x38] sm:$0xff]
      %v3161 = vld [vmem:[#allocation3 + $0x40] sm:$0xff]
      %v3162 = vld [vmem:[#allocation3 + $0x48] sm:$0xff]
      %v3163 = vld [vmem:[#allocation3 + $0x50] sm:$0xff]
      %v3164 = vld [vmem:[#allocation3 + $0x58] sm:$0xff]
      %v3165 = vld [vmem:[#allocation3 + $0x60] sm:$0xff]
      %v3166 = vld [vmem:[#allocation3 + $0x68] sm:$0xff]
      %v3167 = vld [vmem:[#allocation3 + $0x70] sm:$0xff]
      %v3168 = vld [vmem:[#allocation3 + $0x78] sm:$0xff]
      %v3169 = vld [vmem:[#allocation3 + $0x80] sm:$0xff]
      %v3170 = vld [vmem:[#allocation3 + $0x88] sm:$0xff]
      %v3171 = vld [vmem:[#allocation3 + $0x90] sm:$0xff]
      %v3172 = vld [vmem:[#allocation3 + $0x98] sm:$0xff]
      %v3173 = vld [vmem:[#allocation3 + $0xa0] sm:$0xff]
      %v3174 = vld [vmem:[#allocation3 + $0xa8] sm:$0xff]
      %v3175 = vld [vmem:[#allocation3 + $0xb0] sm:$0xff]
      %v3176 = vld [vmem:[#allocation3 + $0xb8] sm:$0xff]
      %v3177 = vld [vmem:[#allocation3 + $0xc0] sm:$0xff]
      %v3178 = vld [vmem:[#allocation3 + $0xc8] sm:$0xff]
      %v3179 = vld [vmem:[#allocation3 + $0xd0] sm:$0xff]
      %v3180 = vadd.f32 %v3153, %v3020
      %v3181 = vadd.f32 %v3154, %v3025
      %v3182 = vadd.f32 %v3155, %v3030
      %v3183 = vadd.f32 %v3156, %v3035
      %v3184 = vadd.f32 %v3157, %v3040
      %v3185 = vadd.f32 %v3158, %v3045
      %v3186 = vadd.f32 %v3159, %v3050
      %v3187 = vadd.f32 %v3160, %v3055
      %v3188 = vadd.f32 %v3161, %v3060
      %v3189 = vadd.f32 %v3162, %v3065
      %v3190 = vadd.f32 %v3163, %v3070
      %v3191 = vadd.f32 %v3164, %v3075
      %v3192 = vadd.f32 %v3165, %v3080
      %v3193 = vadd.f32 %v3166, %v3085
      %v3194 = vadd.f32 %v3167, %v3090
      %v3195 = vadd.f32 %v3168, %v3095
      %v3196 = vadd.f32 %v3169, %v3100
      %v3197 = vadd.f32 %v3170, %v3105
      %v3198 = vadd.f32 %v3171, %v3110
      %v3199 = vadd.f32 %v3172, %v3115
      %v3200 = vadd.f32 %v3173, %v3120
      %v3201 = vadd.f32 %v3174, %v3125
      %v3202 = vadd.f32 %v3175, %v3130
      %v3203 = vadd.f32 %v3176, %v3135
      %v3204 = vadd.f32 %v3177, %v3140
      %v3205 = vadd.f32 %v3178, %v3145
      %v3206 = vadd.f32 %v3179, %v3150
      %3207 = vst.msk [vmem:[#allocation3] sm:$0xff] %vm642, %v3180
      %3208 = vst.msk [vmem:[#allocation3 + $0x8] sm:$0xff] %vm642, %v3181
      %3209 = vst.msk [vmem:[#allocation3 + $0x10] sm:$0xff] %vm642, %v3182
      %3210 = vst.msk [vmem:[#allocation3 + $0x18] sm:$0xff] %vm642, %v3183
      %3211 = vst.msk [vmem:[#allocation3 + $0x20] sm:$0xff] %vm642, %v3184
      %3212 = vst.msk [vmem:[#allocation3 + $0x28] sm:$0xff] %vm642, %v3185
      %3213 = vst.msk [vmem:[#allocation3 + $0x30] sm:$0xff] %vm642, %v3186
      %3214 = vst.msk [vmem:[#allocation3 + $0x38] sm:$0xff] %vm642, %v3187
      %3215 = vst.msk [vmem:[#allocation3 + $0x40] sm:$0xff] %vm642, %v3188
      %3216 = vst.msk [vmem:[#allocation3 + $0x48] sm:$0xff] %vm642, %v3189
      %3217 = vst.msk [vmem:[#allocation3 + $0x50] sm:$0xff] %vm642, %v3190
      %3218 = vst.msk [vmem:[#allocation3 + $0x58] sm:$0xff] %vm642, %v3191
      %3219 = vst.msk [vmem:[#allocation3 + $0x60] sm:$0xff] %vm642, %v3192
      %3220 = vst.msk [vmem:[#allocation3 + $0x68] sm:$0xff] %vm642, %v3193
      %3221 = vst.msk [vmem:[#allocation3 + $0x70] sm:$0xff] %vm642, %v3194
      %3222 = vst.msk [vmem:[#allocation3 + $0x78] sm:$0xff] %vm642, %v3195
      %3223 = vst.msk [vmem:[#allocation3 + $0x80] sm:$0xff] %vm642, %v3196
      %3224 = vst.msk [vmem:[#allocation3 + $0x88] sm:$0xff] %vm642, %v3197
      %3225 = vst.msk [vmem:[#allocation3 + $0x90] sm:$0xff] %vm642, %v3198
      %3226 = vst.msk [vmem:[#allocation3 + $0x98] sm:$0xff] %vm642, %v3199
      %3227 = vst.msk [vmem:[#allocation3 + $0xa0] sm:$0xff] %vm642, %v3200
      %3228 = vst.msk [vmem:[#allocation3 + $0xa8] sm:$0xff] %vm642, %v3201
      %3229 = vst.msk [vmem:[#allocation3 + $0xb0] sm:$0xff] %vm642, %v3202
      %3230 = vst.msk [vmem:[#allocation3 + $0xb8] sm:$0xff] %vm642, %v3203
      %3231 = vst.msk [vmem:[#allocation3 + $0xc0] sm:$0xff] %vm642, %v3204
      %3232 = vst.msk [vmem:[#allocation3 + $0xc8] sm:$0xff] %vm642, %v3205
      %3233 = vst.msk [vmem:[#allocation3 + $0xd0] sm:$0xff] %vm642, %v3206
      %v3234 = vld [vmem:[#allocation2 + $0x120] sm:$0xff]
      %v3235 = vld [vmem:[#allocation2 + $0x128] sm:$0xff]
      %v3236 = vld [vmem:[#allocation2 + $0x130] sm:$0xff]
      %v3237 = vld [vmem:[#allocation2 + $0x138] sm:$0xff]
      %v3238 = vld [vmem:[#allocation2 + $0x140] sm:$0xff]
      %v3239 = vld [vmem:[#allocation2 + $0x148] sm:$0xff]
      %v3240 = vld [vmem:[#allocation2 + $0x150] sm:$0xff]
      %v3241 = vld [vmem:[#allocation2 + $0x158] sm:$0xff]
      %v3242 = vld [vmem:[#allocation2 + $0x160] sm:$0xff]
      %v3243 = vld [vmem:[#allocation2 + $0x168] sm:$0xff]
      %v3244 = vld [vmem:[#allocation2 + $0x170] sm:$0xff]
      %v3245 = vld [vmem:[#allocation2 + $0x178] sm:$0xff]
      %v3246 = vld [vmem:[#allocation2 + $0x180] sm:$0xff]
      %v3247 = vld [vmem:[#allocation2 + $0x188] sm:$0xff]
      %v3248 = vld [vmem:[#allocation2 + $0x190] sm:$0xff]
      %v3249 = vld [vmem:[#allocation2 + $0x198] sm:$0xff]
      %v3250 = vld [vmem:[#allocation2 + $0x1a0] sm:$0xff]
      %v3251 = vld [vmem:[#allocation2 + $0x1a8] sm:$0xff]
      %v3252 = vld [vmem:[#allocation2 + $0x1b0] sm:$0xff]
      %v3253 = vld [vmem:[#allocation2 + $0x1b8] sm:$0xff]
      %v3254 = vld [vmem:[#allocation2 + $0x1c0] sm:$0xff]
      %v3255 = vld [vmem:[#allocation2 + $0x1c8] sm:$0xff]
      %v3256 = vld [vmem:[#allocation2 + $0x1d0] sm:$0xff]
      %v3257 = vld [vmem:[#allocation2 + $0x1d8] sm:$0xff]
      %v3258 = vld [vmem:[#allocation2 + $0x1e0] sm:$0xff]
      %v3259 = vld [vmem:[#allocation2 + $0x1e8] sm:$0xff]
      %v3260 = vld [vmem:[#allocation2 + $0x1f0] sm:$0xff]
      %v3261 = vld [vmem:[%s3 + $0x60] sm:$0xff]
      %v3262 = vld [vmem:[%s3 + $0x68] sm:$0xff]
      %v3263 = vld [vmem:[%s3 + $0x70] sm:$0xff]
      %v3264 = vld [vmem:[%s3 + $0x78] sm:$0xff]
      %v3266 = vsel %vm1968, %v3234, 0
      %v3269 = vsel %vm1968, %v3235, 0
      %v3272 = vsel %vm1968, %v3236, 0
      %v3275 = vsel %vm1968, %v3237, 0
      %v3278 = vsel %vm1968, %v3238, 0
      %v3281 = vsel %vm1968, %v3239, 0
      %v3284 = vsel %vm1968, %v3240, 0
      %v3287 = vsel %vm1968, %v3241, 0
      %v3290 = vsel %vm1968, %v3242, 0
      %v3293 = vsel %vm1968, %v3243, 0
      %v3296 = vsel %vm1968, %v3244, 0
      %v3299 = vsel %vm1968, %v3245, 0
      %v3302 = vsel %vm1968, %v3246, 0
      %v3305 = vsel %vm1968, %v3247, 0
      %v3308 = vsel %vm1968, %v3248, 0
      %v3311 = vsel %vm1968, %v3249, 0
      %v3314 = vsel %vm1968, %v3250, 0
      %v3317 = vsel %vm1968, %v3251, 0
      %v3320 = vsel %vm1968, %v3252, 0
      %v3323 = vsel %vm1968, %v3253, 0
      %v3326 = vsel %vm1968, %v3254, 0
      %v3329 = vsel %vm1968, %v3255, 0
      %v3332 = vsel %vm1968, %v3256, 0
      %v3335 = vsel %vm1968, %v3257, 0
      %v3338 = vsel %vm1968, %v3258, 0
      %v3341 = vsel %vm1968, %v3259, 0
      %v3344 = vsel %vm1968, %v3260, 0
      %3346 = vmatprep.subr.mxu0 0.0
      %3347 = vmatpush1.msra.mxu0 0.0
      %3348 = vmatprep.subr.mxu0 0.0
      %3349 = vmatpush1.msra.mxu0 0.0
      %3350 = vmatprep.subr.mxu0 0.0
      %3351 = vmatpush1.msra.mxu0 0.0
      %3352 = vmatprep.subr.mxu0 0.0
      %3353 = vmatpush1.msra.mxu0 0.0
      %3354 = vmatprep.subr.mxu0 0.0
      %3355 = vmatpush1.msra.mxu0 0.0
      %3356 = vmatprep.subr.mxu0 0.0
      %3357 = vmatpush1.msra.mxu0 0.0
      %3358 = vmatprep.subr.mxu0 0.0
      %3359 = vmatpush1.msra.mxu0 0.0
      %3360 = vmatprep.subr.mxu0 0.0
      %3361 = vmatpush1.msra.mxu0 0.0
      %3362 = vmatprep.subr.mxu0 0.0
      %3363 = vmatpush1.msra.mxu0 0.0
      %3364 = vmatprep.subr.mxu0 0.0
      %3365 = vmatpush1.msra.mxu0 0.0
      %3366 = vmatprep.subr.mxu0 0.0
      %3367 = vmatpush1.msra.mxu0 0.0
      %3368 = vmatprep.subr.mxu0 0.0
      %3369 = vmatpush1.msra.mxu0 0.0
      %3370 = vmatprep.subr.mxu0 0.0
      %3371 = vmatpush1.msra.mxu0 %v3264
      %3372 = vmatprep.subr.mxu0 0.0
      %3373 = vmatpush1.msra.mxu0 %v3263
      %3374 = vmatprep.subr.mxu0 0.0
      %3375 = vmatpush1.msra.mxu0 %v3262
      %3376 = vmatprep.subr.mxu0 0.0
      %3377 = vmatpush1.msra.mxu0 %v3261
      %3378 = vmatprep.subr.mxu0 0.0
      %3379 = vmatpush2.msra.mxu0 0.0
      %3380 = vmatprep.subr.mxu0 0.0
      %3381 = vmatpush2.msra.mxu0 0.0
      %3382 = vmatprep.subr.mxu0 0.0
      %3383 = vmatpush2.msra.mxu0 0.0
      %3384 = vmatprep.subr.mxu0 0.0
      %3385 = vmatpush2.msra.mxu0 0.0
      %3386 = vmatprep.subr.mxu0 0.0
      %3387 = vmatpush2.msra.mxu0 0.0
      %3388 = vmatprep.subr.mxu0 0.0
      %3389 = vmatpush2.msra.mxu0 0.0
      %3390 = vmatprep.subr.mxu0 0.0
      %3391 = vmatpush2.msra.mxu0 0.0
      %3392 = vmatprep.subr.mxu0 0.0
      %3393 = vmatpush2.msra.mxu0 0.0
      %3394 = vmatprep.subr.mxu0 0.0
      %3395 = vmatpush2.msra.mxu0 0.0
      %3396 = vmatprep.subr.mxu0 0.0
      %3397 = vmatpush2.msra.mxu0 0.0
      %3398 = vmatprep.subr.mxu0 0.0
      %3399 = vmatpush2.msra.mxu0 0.0
      %3400 = vmatprep.subr.mxu0 0.0
      %3401 = vmatpush2.msra.mxu0 0.0
      %3402 = vmatprep.subr.mxu0 0.0
      %3403 = vmatpush2.msra.mxu0 0.0
      %3404 = vmatprep.subr.mxu0 0.0
      %3405 = vmatpush2.msra.mxu0 0.0
      %3406 = vmatprep.subr.mxu0 0.0
      %3407 = vmatpush2.msra.mxu0 0.0
      %3408 = vmatprep.subr.mxu0 0.0
      %3409 = vmatpush2.msra.mxu0 0.0
      %3410 = vmatprep.mubr.f32.mxu0 0.0
      %3411 = vmatmul.mubr.f32.gmra.mxu0 %v3266
      %v3412 = vpop.f32.mrf.mxu0
      %v3413 = vadd.f32 0.0, %v3412
      %v3414 = vpop.f32.mrf.mxu0
      %3415 = vmatprep.mubr.f32.mxu0 0.0
      %3416 = vmatmul.mubr.f32.gmra.mxu0 %v3269
      %v3417 = vpop.f32.mrf.mxu0
      %v3418 = vadd.f32 0.0, %v3417
      %v3419 = vpop.f32.mrf.mxu0
      %3420 = vmatprep.mubr.f32.mxu0 0.0
      %3421 = vmatmul.mubr.f32.gmra.mxu0 %v3272
      %v3422 = vpop.f32.mrf.mxu0
      %v3423 = vadd.f32 0.0, %v3422
      %v3424 = vpop.f32.mrf.mxu0
      %3425 = vmatprep.mubr.f32.mxu0 0.0
      %3426 = vmatmul.mubr.f32.gmra.mxu0 %v3275
      %v3427 = vpop.f32.mrf.mxu0
      %v3428 = vadd.f32 0.0, %v3427
      %v3429 = vpop.f32.mrf.mxu0
      %3430 = vmatprep.mubr.f32.mxu0 0.0
      %3431 = vmatmul.mubr.f32.gmra.mxu0 %v3278
      %v3432 = vpop.f32.mrf.mxu0
      %v3433 = vadd.f32 0.0, %v3432
      %v3434 = vpop.f32.mrf.mxu0
      %3435 = vmatprep.mubr.f32.mxu0 0.0
      %3436 = vmatmul.mubr.f32.gmra.mxu0 %v3281
      %v3437 = vpop.f32.mrf.mxu0
      %v3438 = vadd.f32 0.0, %v3437
      %v3439 = vpop.f32.mrf.mxu0
      %3440 = vmatprep.mubr.f32.mxu0 0.0
      %3441 = vmatmul.mubr.f32.gmra.mxu0 %v3284
      %v3442 = vpop.f32.mrf.mxu0
      %v3443 = vadd.f32 0.0, %v3442
      %v3444 = vpop.f32.mrf.mxu0
      %3445 = vmatprep.mubr.f32.mxu0 0.0
      %3446 = vmatmul.mubr.f32.gmra.mxu0 %v3287
      %v3447 = vpop.f32.mrf.mxu0
      %v3448 = vadd.f32 0.0, %v3447
      %v3449 = vpop.f32.mrf.mxu0
      %3450 = vmatprep.mubr.f32.mxu0 0.0
      %3451 = vmatmul.mubr.f32.gmra.mxu0 %v3290
      %v3452 = vpop.f32.mrf.mxu0
      %v3453 = vadd.f32 0.0, %v3452
      %v3454 = vpop.f32.mrf.mxu0
      %3455 = vmatprep.mubr.f32.mxu0 0.0
      %3456 = vmatmul.mubr.f32.gmra.mxu0 %v3293
      %v3457 = vpop.f32.mrf.mxu0
      %v3458 = vadd.f32 0.0, %v3457
      %v3459 = vpop.f32.mrf.mxu0
      %3460 = vmatprep.mubr.f32.mxu0 0.0
      %3461 = vmatmul.mubr.f32.gmra.mxu0 %v3296
      %v3462 = vpop.f32.mrf.mxu0
      %v3463 = vadd.f32 0.0, %v3462
      %v3464 = vpop.f32.mrf.mxu0
      %3465 = vmatprep.mubr.f32.mxu0 0.0
      %3466 = vmatmul.mubr.f32.gmra.mxu0 %v3299
      %v3467 = vpop.f32.mrf.mxu0
      %v3468 = vadd.f32 0.0, %v3467
      %v3469 = vpop.f32.mrf.mxu0
      %3470 = vmatprep.mubr.f32.mxu0 0.0
      %3471 = vmatmul.mubr.f32.gmra.mxu0 %v3302
      %v3472 = vpop.f32.mrf.mxu0
      %v3473 = vadd.f32 0.0, %v3472
      %v3474 = vpop.f32.mrf.mxu0
      %3475 = vmatprep.mubr.f32.mxu0 0.0
      %3476 = vmatmul.mubr.f32.gmra.mxu0 %v3305
      %v3477 = vpop.f32.mrf.mxu0
      %v3478 = vadd.f32 0.0, %v3477
      %v3479 = vpop.f32.mrf.mxu0
      %3480 = vmatprep.mubr.f32.mxu0 0.0
      %3481 = vmatmul.mubr.f32.gmra.mxu0 %v3308
      %v3482 = vpop.f32.mrf.mxu0
      %v3483 = vadd.f32 0.0, %v3482
      %v3484 = vpop.f32.mrf.mxu0
      %3485 = vmatprep.mubr.f32.mxu0 0.0
      %3486 = vmatmul.mubr.f32.gmra.mxu0 %v3311
      %v3487 = vpop.f32.mrf.mxu0
      %v3488 = vadd.f32 0.0, %v3487
      %v3489 = vpop.f32.mrf.mxu0
      %3490 = vmatprep.mubr.f32.mxu0 0.0
      %3491 = vmatmul.mubr.f32.gmra.mxu0 %v3314
      %v3492 = vpop.f32.mrf.mxu0
      %v3493 = vadd.f32 0.0, %v3492
      %v3494 = vpop.f32.mrf.mxu0
      %3495 = vmatprep.mubr.f32.mxu0 0.0
      %3496 = vmatmul.mubr.f32.gmra.mxu0 %v3317
      %v3497 = vpop.f32.mrf.mxu0
      %v3498 = vadd.f32 0.0, %v3497
      %v3499 = vpop.f32.mrf.mxu0
      %3500 = vmatprep.mubr.f32.mxu0 0.0
      %3501 = vmatmul.mubr.f32.gmra.mxu0 %v3320
      %v3502 = vpop.f32.mrf.mxu0
      %v3503 = vadd.f32 0.0, %v3502
      %v3504 = vpop.f32.mrf.mxu0
      %3505 = vmatprep.mubr.f32.mxu0 0.0
      %3506 = vmatmul.mubr.f32.gmra.mxu0 %v3323
      %v3507 = vpop.f32.mrf.mxu0
      %v3508 = vadd.f32 0.0, %v3507
      %v3509 = vpop.f32.mrf.mxu0
      %3510 = vmatprep.mubr.f32.mxu0 0.0
      %3511 = vmatmul.mubr.f32.gmra.mxu0 %v3326
      %v3512 = vpop.f32.mrf.mxu0
      %v3513 = vadd.f32 0.0, %v3512
      %v3514 = vpop.f32.mrf.mxu0
      %3515 = vmatprep.mubr.f32.mxu0 0.0
      %3516 = vmatmul.mubr.f32.gmra.mxu0 %v3329
      %v3517 = vpop.f32.mrf.mxu0
      %v3518 = vadd.f32 0.0, %v3517
      %v3519 = vpop.f32.mrf.mxu0
      %3520 = vmatprep.mubr.f32.mxu0 0.0
      %3521 = vmatmul.mubr.f32.gmra.mxu0 %v3332
      %v3522 = vpop.f32.mrf.mxu0
      %v3523 = vadd.f32 0.0, %v3522
      %v3524 = vpop.f32.mrf.mxu0
      %3525 = vmatprep.mubr.f32.mxu0 0.0
      %3526 = vmatmul.mubr.f32.gmra.mxu0 %v3335
      %v3527 = vpop.f32.mrf.mxu0
      %v3528 = vadd.f32 0.0, %v3527
      %v3529 = vpop.f32.mrf.mxu0
      %3530 = vmatprep.mubr.f32.mxu0 0.0
      %3531 = vmatmul.mubr.f32.gmra.mxu0 %v3338
      %v3532 = vpop.f32.mrf.mxu0
      %v3533 = vadd.f32 0.0, %v3532
      %v3534 = vpop.f32.mrf.mxu0
      %3535 = vmatprep.mubr.f32.mxu0 0.0
      %3536 = vmatmul.mubr.f32.gmra.mxu0 %v3341
      %v3537 = vpop.f32.mrf.mxu0
      %v3538 = vadd.f32 0.0, %v3537
      %v3539 = vpop.f32.mrf.mxu0
      %3540 = vmatprep.mubr.f32.mxu0 0.0
      %3541 = vmatmul.mubr.f32.gmra.mxu0 %v3344
      %v3542 = vpop.f32.mrf.mxu0
      %v3543 = vadd.f32 0.0, %v3542
      %v3544 = vpop.f32.mrf.mxu0
      %3545 = vdwg.mxu0
      %v3546 = vld [vmem:[#allocation3] sm:$0xff]
      %v3547 = vld [vmem:[#allocation3 + $0x8] sm:$0xff]
      %v3548 = vld [vmem:[#allocation3 + $0x10] sm:$0xff]
      %v3549 = vld [vmem:[#allocation3 + $0x18] sm:$0xff]
      %v3550 = vld [vmem:[#allocation3 + $0x20] sm:$0xff]
      %v3551 = vld [vmem:[#allocation3 + $0x28] sm:$0xff]
      %v3552 = vld [vmem:[#allocation3 + $0x30] sm:$0xff]
      %v3553 = vld [vmem:[#allocation3 + $0x38] sm:$0xff]
      %v3554 = vld [vmem:[#allocation3 + $0x40] sm:$0xff]
      %v3555 = vld [vmem:[#allocation3 + $0x48] sm:$0xff]
      %v3556 = vld [vmem:[#allocation3 + $0x50] sm:$0xff]
      %v3557 = vld [vmem:[#allocation3 + $0x58] sm:$0xff]
      %v3558 = vld [vmem:[#allocation3 + $0x60] sm:$0xff]
      %v3559 = vld [vmem:[#allocation3 + $0x68] sm:$0xff]
      %v3560 = vld [vmem:[#allocation3 + $0x70] sm:$0xff]
      %v3561 = vld [vmem:[#allocation3 + $0x78] sm:$0xff]
      %v3562 = vld [vmem:[#allocation3 + $0x80] sm:$0xff]
      %v3563 = vld [vmem:[#allocation3 + $0x88] sm:$0xff]
      %v3564 = vld [vmem:[#allocation3 + $0x90] sm:$0xff]
      %v3565 = vld [vmem:[#allocation3 + $0x98] sm:$0xff]
      %v3566 = vld [vmem:[#allocation3 + $0xa0] sm:$0xff]
      %v3567 = vld [vmem:[#allocation3 + $0xa8] sm:$0xff]
      %v3568 = vld [vmem:[#allocation3 + $0xb0] sm:$0xff]
      %v3569 = vld [vmem:[#allocation3 + $0xb8] sm:$0xff]
      %v3570 = vld [vmem:[#allocation3 + $0xc0] sm:$0xff]
      %v3571 = vld [vmem:[#allocation3 + $0xc8] sm:$0xff]
      %v3572 = vld [vmem:[#allocation3 + $0xd0] sm:$0xff]
      %v3573 = vadd.f32 %v3546, %v3413
      %v3574 = vadd.f32 %v3547, %v3418
      %v3575 = vadd.f32 %v3548, %v3423
      %v3576 = vadd.f32 %v3549, %v3428
      %v3577 = vadd.f32 %v3550, %v3433
      %v3578 = vadd.f32 %v3551, %v3438
      %v3579 = vadd.f32 %v3552, %v3443
      %v3580 = vadd.f32 %v3553, %v3448
      %v3581 = vadd.f32 %v3554, %v3453
      %v3582 = vadd.f32 %v3555, %v3458
      %v3583 = vadd.f32 %v3556, %v3463
      %v3584 = vadd.f32 %v3557, %v3468
      %v3585 = vadd.f32 %v3558, %v3473
      %v3586 = vadd.f32 %v3559, %v3478
      %v3587 = vadd.f32 %v3560, %v3483
      %v3588 = vadd.f32 %v3561, %v3488
      %v3589 = vadd.f32 %v3562, %v3493
      %v3590 = vadd.f32 %v3563, %v3498
      %v3591 = vadd.f32 %v3564, %v3503
      %v3592 = vadd.f32 %v3565, %v3508
      %v3593 = vadd.f32 %v3566, %v3513
      %v3594 = vadd.f32 %v3567, %v3518
      %v3595 = vadd.f32 %v3568, %v3523
      %v3596 = vadd.f32 %v3569, %v3528
      %v3597 = vadd.f32 %v3570, %v3533
      %v3598 = vadd.f32 %v3571, %v3538
      %v3599 = vadd.f32 %v3572, %v3543
      %3600 = vst.msk [vmem:[#allocation3] sm:$0xff] %vm642, %v3573
      %3601 = vst.msk [vmem:[#allocation3 + $0x8] sm:$0xff] %vm642, %v3574
      %3602 = vst.msk [vmem:[#allocation3 + $0x10] sm:$0xff] %vm642, %v3575
      %3603 = vst.msk [vmem:[#allocation3 + $0x18] sm:$0xff] %vm642, %v3576
      %3604 = vst.msk [vmem:[#allocation3 + $0x20] sm:$0xff] %vm642, %v3577
      %3605 = vst.msk [vmem:[#allocation3 + $0x28] sm:$0xff] %vm642, %v3578
      %3606 = vst.msk [vmem:[#allocation3 + $0x30] sm:$0xff] %vm642, %v3579
      %3607 = vst.msk [vmem:[#allocation3 + $0x38] sm:$0xff] %vm642, %v3580
      %3608 = vst.msk [vmem:[#allocation3 + $0x40] sm:$0xff] %vm642, %v3581
      %3609 = vst.msk [vmem:[#allocation3 + $0x48] sm:$0xff] %vm642, %v3582
      %3610 = vst.msk [vmem:[#allocation3 + $0x50] sm:$0xff] %vm642, %v3583
      %3611 = vst.msk [vmem:[#allocation3 + $0x58] sm:$0xff] %vm642, %v3584
      %3612 = vst.msk [vmem:[#allocation3 + $0x60] sm:$0xff] %vm642, %v3585
      %3613 = vst.msk [vmem:[#allocation3 + $0x68] sm:$0xff] %vm642, %v3586
      %3614 = vst.msk [vmem:[#allocation3 + $0x70] sm:$0xff] %vm642, %v3587
      %3615 = vst.msk [vmem:[#allocation3 + $0x78] sm:$0xff] %vm642, %v3588
      %3616 = vst.msk [vmem:[#allocation3 + $0x80] sm:$0xff] %vm642, %v3589
      %3617 = vst.msk [vmem:[#allocation3 + $0x88] sm:$0xff] %vm642, %v3590
      %3618 = vst.msk [vmem:[#allocation3 + $0x90] sm:$0xff] %vm642, %v3591
      %3619 = vst.msk [vmem:[#allocation3 + $0x98] sm:$0xff] %vm642, %v3592
      %3620 = vst.msk [vmem:[#allocation3 + $0xa0] sm:$0xff] %vm642, %v3593
      %3621 = vst.msk [vmem:[#allocation3 + $0xa8] sm:$0xff] %vm642, %v3594
      %3622 = vst.msk [vmem:[#allocation3 + $0xb0] sm:$0xff] %vm642, %v3595
      %3623 = vst.msk [vmem:[#allocation3 + $0xb8] sm:$0xff] %vm642, %v3596
      %3624 = vst.msk [vmem:[#allocation3 + $0xc0] sm:$0xff] %vm642, %v3597
      %3625 = vst.msk [vmem:[#allocation3 + $0xc8] sm:$0xff] %vm642, %v3598
      %3626 = vst.msk [vmem:[#allocation3 + $0xd0] sm:$0xff] %vm642, %v3599
      %v3627 = vld [vmem:[#allocation2 + $0x230] sm:$0xff]
      %v3628 = vld [vmem:[#allocation2 + $0x238] sm:$0xff]
      %v3629 = vld [vmem:[#allocation2 + $0x240] sm:$0xff]
      %v3630 = vld [vmem:[#allocation2 + $0x248] sm:$0xff]
      %v3631 = vld [vmem:[#allocation2 + $0x250] sm:$0xff]
      %v3632 = vld [vmem:[#allocation2 + $0x258] sm:$0xff]
      %v3633 = vld [vmem:[#allocation2 + $0x260] sm:$0xff]
      %v3634 = vld [vmem:[#allocation2 + $0x268] sm:$0xff]
      %v3635 = vld [vmem:[#allocation2 + $0x270] sm:$0xff]
      %v3636 = vld [vmem:[#allocation2 + $0x278] sm:$0xff]
      %v3637 = vld [vmem:[#allocation2 + $0x280] sm:$0xff]
      %v3638 = vld [vmem:[#allocation2 + $0x288] sm:$0xff]
      %v3639 = vld [vmem:[#allocation2 + $0x290] sm:$0xff]
      %v3640 = vld [vmem:[#allocation2 + $0x298] sm:$0xff]
      %v3641 = vld [vmem:[#allocation2 + $0x2a0] sm:$0xff]
      %v3642 = vld [vmem:[#allocation2 + $0x2a8] sm:$0xff]
      %v3643 = vld [vmem:[#allocation2 + $0x2b0] sm:$0xff]
      %v3644 = vld [vmem:[#allocation2 + $0x2b8] sm:$0xff]
      %v3645 = vld [vmem:[#allocation2 + $0x2c0] sm:$0xff]
      %v3646 = vld [vmem:[#allocation2 + $0x2c8] sm:$0xff]
      %v3647 = vld [vmem:[#allocation2 + $0x2d0] sm:$0xff]
      %v3648 = vld [vmem:[#allocation2 + $0x2d8] sm:$0xff]
      %v3649 = vld [vmem:[#allocation2 + $0x2e0] sm:$0xff]
      %v3650 = vld [vmem:[#allocation2 + $0x2e8] sm:$0xff]
      %v3651 = vld [vmem:[#allocation2 + $0x2f0] sm:$0xff]
      %v3652 = vld [vmem:[#allocation2 + $0x2f8] sm:$0xff]
      %v3653 = vld [vmem:[#allocation2 + $0x300] sm:$0xff]
      %v3654 = vld [vmem:[%s3 + $0x80] sm:$0xff]
      %v3655 = vld [vmem:[%s3 + $0x88] sm:$0xff]
      %v3656 = vld [vmem:[%s3 + $0x90] sm:$0xff]
      %v3657 = vld [vmem:[%s3 + $0x98] sm:$0xff]
      %v3659 = vsel %vm1968, %v3627, 0
      %v3662 = vsel %vm1968, %v3628, 0
      %v3665 = vsel %vm1968, %v3629, 0
      %v3668 = vsel %vm1968, %v3630, 0
      %v3671 = vsel %vm1968, %v3631, 0
      %v3674 = vsel %vm1968, %v3632, 0
      %v3677 = vsel %vm1968, %v3633, 0
      %v3680 = vsel %vm1968, %v3634, 0
      %v3683 = vsel %vm1968, %v3635, 0
      %v3686 = vsel %vm1968, %v3636, 0
      %v3689 = vsel %vm1968, %v3637, 0
      %v3692 = vsel %vm1968, %v3638, 0
      %v3695 = vsel %vm1968, %v3639, 0
      %v3698 = vsel %vm1968, %v3640, 0
      %v3701 = vsel %vm1968, %v3641, 0
      %v3704 = vsel %vm1968, %v3642, 0
      %v3707 = vsel %vm1968, %v3643, 0
      %v3710 = vsel %vm1968, %v3644, 0
      %v3713 = vsel %vm1968, %v3645, 0
      %v3716 = vsel %vm1968, %v3646, 0
      %v3719 = vsel %vm1968, %v3647, 0
      %v3722 = vsel %vm1968, %v3648, 0
      %v3725 = vsel %vm1968, %v3649, 0
      %v3728 = vsel %vm1968, %v3650, 0
      %v3731 = vsel %vm1968, %v3651, 0
      %v3734 = vsel %vm1968, %v3652, 0
      %v3737 = vsel %vm1968, %v3653, 0
      %3739 = vmatprep.subr.mxu0 0.0
      %3740 = vmatpush1.msra.mxu0 0.0
      %3741 = vmatprep.subr.mxu0 0.0
      %3742 = vmatpush1.msra.mxu0 0.0
      %3743 = vmatprep.subr.mxu0 0.0
      %3744 = vmatpush1.msra.mxu0 0.0
      %3745 = vmatprep.subr.mxu0 0.0
      %3746 = vmatpush1.msra.mxu0 0.0
      %3747 = vmatprep.subr.mxu0 0.0
      %3748 = vmatpush1.msra.mxu0 0.0
      %3749 = vmatprep.subr.mxu0 0.0
      %3750 = vmatpush1.msra.mxu0 0.0
      %3751 = vmatprep.subr.mxu0 0.0
      %3752 = vmatpush1.msra.mxu0 0.0
      %3753 = vmatprep.subr.mxu0 0.0
      %3754 = vmatpush1.msra.mxu0 0.0
      %3755 = vmatprep.subr.mxu0 0.0
      %3756 = vmatpush1.msra.mxu0 0.0
      %3757 = vmatprep.subr.mxu0 0.0
      %3758 = vmatpush1.msra.mxu0 0.0
      %3759 = vmatprep.subr.mxu0 0.0
      %3760 = vmatpush1.msra.mxu0 0.0
      %3761 = vmatprep.subr.mxu0 0.0
      %3762 = vmatpush1.msra.mxu0 0.0
      %3763 = vmatprep.subr.mxu0 0.0
      %3764 = vmatpush1.msra.mxu0 %v3657
      %3765 = vmatprep.subr.mxu0 0.0
      %3766 = vmatpush1.msra.mxu0 %v3656
      %3767 = vmatprep.subr.mxu0 0.0
      %3768 = vmatpush1.msra.mxu0 %v3655
      %3769 = vmatprep.subr.mxu0 0.0
      %3770 = vmatpush1.msra.mxu0 %v3654
      %3771 = vmatprep.subr.mxu0 0.0
      %3772 = vmatpush2.msra.mxu0 0.0
      %3773 = vmatprep.subr.mxu0 0.0
      %3774 = vmatpush2.msra.mxu0 0.0
      %3775 = vmatprep.subr.mxu0 0.0
      %3776 = vmatpush2.msra.mxu0 0.0
      %3777 = vmatprep.subr.mxu0 0.0
      %3778 = vmatpush2.msra.mxu0 0.0
      %3779 = vmatprep.subr.mxu0 0.0
      %3780 = vmatpush2.msra.mxu0 0.0
      %3781 = vmatprep.subr.mxu0 0.0
      %3782 = vmatpush2.msra.mxu0 0.0
      %3783 = vmatprep.subr.mxu0 0.0
      %3784 = vmatpush2.msra.mxu0 0.0
      %3785 = vmatprep.subr.mxu0 0.0
      %3786 = vmatpush2.msra.mxu0 0.0
      %3787 = vmatprep.subr.mxu0 0.0
      %3788 = vmatpush2.msra.mxu0 0.0
      %3789 = vmatprep.subr.mxu0 0.0
      %3790 = vmatpush2.msra.mxu0 0.0
      %3791 = vmatprep.subr.mxu0 0.0
      %3792 = vmatpush2.msra.mxu0 0.0
      %3793 = vmatprep.subr.mxu0 0.0
      %3794 = vmatpush2.msra.mxu0 0.0
      %3795 = vmatprep.subr.mxu0 0.0
      %3796 = vmatpush2.msra.mxu0 0.0
      %3797 = vmatprep.subr.mxu0 0.0
      %3798 = vmatpush2.msra.mxu0 0.0
      %3799 = vmatprep.subr.mxu0 0.0
      %3800 = vmatpush2.msra.mxu0 0.0
      %3801 = vmatprep.subr.mxu0 0.0
      %3802 = vmatpush2.msra.mxu0 0.0
      %3803 = vmatprep.mubr.f32.mxu0 0.0
      %3804 = vmatmul.mubr.f32.gmra.mxu0 %v3659
      %v3805 = vpop.f32.mrf.mxu0
      %v3806 = vadd.f32 0.0, %v3805
      %v3807 = vpop.f32.mrf.mxu0
      %3808 = vmatprep.mubr.f32.mxu0 0.0
      %3809 = vmatmul.mubr.f32.gmra.mxu0 %v3662
      %v3810 = vpop.f32.mrf.mxu0
      %v3811 = vadd.f32 0.0, %v3810
      %v3812 = vpop.f32.mrf.mxu0
      %3813 = vmatprep.mubr.f32.mxu0 0.0
      %3814 = vmatmul.mubr.f32.gmra.mxu0 %v3665
      %v3815 = vpop.f32.mrf.mxu0
      %v3816 = vadd.f32 0.0, %v3815
      %v3817 = vpop.f32.mrf.mxu0
      %3818 = vmatprep.mubr.f32.mxu0 0.0
      %3819 = vmatmul.mubr.f32.gmra.mxu0 %v3668
      %v3820 = vpop.f32.mrf.mxu0
      %v3821 = vadd.f32 0.0, %v3820
      %v3822 = vpop.f32.mrf.mxu0
      %3823 = vmatprep.mubr.f32.mxu0 0.0
      %3824 = vmatmul.mubr.f32.gmra.mxu0 %v3671
      %v3825 = vpop.f32.mrf.mxu0
      %v3826 = vadd.f32 0.0, %v3825
      %v3827 = vpop.f32.mrf.mxu0
      %3828 = vmatprep.mubr.f32.mxu0 0.0
      %3829 = vmatmul.mubr.f32.gmra.mxu0 %v3674
      %v3830 = vpop.f32.mrf.mxu0
      %v3831 = vadd.f32 0.0, %v3830
      %v3832 = vpop.f32.mrf.mxu0
      %3833 = vmatprep.mubr.f32.mxu0 0.0
      %3834 = vmatmul.mubr.f32.gmra.mxu0 %v3677
      %v3835 = vpop.f32.mrf.mxu0
      %v3836 = vadd.f32 0.0, %v3835
      %v3837 = vpop.f32.mrf.mxu0
      %3838 = vmatprep.mubr.f32.mxu0 0.0
      %3839 = vmatmul.mubr.f32.gmra.mxu0 %v3680
      %v3840 = vpop.f32.mrf.mxu0
      %v3841 = vadd.f32 0.0, %v3840
      %v3842 = vpop.f32.mrf.mxu0
      %3843 = vmatprep.mubr.f32.mxu0 0.0
      %3844 = vmatmul.mubr.f32.gmra.mxu0 %v3683
      %v3845 = vpop.f32.mrf.mxu0
      %v3846 = vadd.f32 0.0, %v3845
      %v3847 = vpop.f32.mrf.mxu0
      %3848 = vmatprep.mubr.f32.mxu0 0.0
      %3849 = vmatmul.mubr.f32.gmra.mxu0 %v3686
      %v3850 = vpop.f32.mrf.mxu0
      %v3851 = vadd.f32 0.0, %v3850
      %v3852 = vpop.f32.mrf.mxu0
      %3853 = vmatprep.mubr.f32.mxu0 0.0
      %3854 = vmatmul.mubr.f32.gmra.mxu0 %v3689
      %v3855 = vpop.f32.mrf.mxu0
      %v3856 = vadd.f32 0.0, %v3855
      %v3857 = vpop.f32.mrf.mxu0
      %3858 = vmatprep.mubr.f32.mxu0 0.0
      %3859 = vmatmul.mubr.f32.gmra.mxu0 %v3692
      %v3860 = vpop.f32.mrf.mxu0
      %v3861 = vadd.f32 0.0, %v3860
      %v3862 = vpop.f32.mrf.mxu0
      %3863 = vmatprep.mubr.f32.mxu0 0.0
      %3864 = vmatmul.mubr.f32.gmra.mxu0 %v3695
      %v3865 = vpop.f32.mrf.mxu0
      %v3866 = vadd.f32 0.0, %v3865
      %v3867 = vpop.f32.mrf.mxu0
      %3868 = vmatprep.mubr.f32.mxu0 0.0
      %3869 = vmatmul.mubr.f32.gmra.mxu0 %v3698
      %v3870 = vpop.f32.mrf.mxu0
      %v3871 = vadd.f32 0.0, %v3870
      %v3872 = vpop.f32.mrf.mxu0
      %3873 = vmatprep.mubr.f32.mxu0 0.0
      %3874 = vmatmul.mubr.f32.gmra.mxu0 %v3701
      %v3875 = vpop.f32.mrf.mxu0
      %v3876 = vadd.f32 0.0, %v3875
      %v3877 = vpop.f32.mrf.mxu0
      %3878 = vmatprep.mubr.f32.mxu0 0.0
      %3879 = vmatmul.mubr.f32.gmra.mxu0 %v3704
      %v3880 = vpop.f32.mrf.mxu0
      %v3881 = vadd.f32 0.0, %v3880
      %v3882 = vpop.f32.mrf.mxu0
      %3883 = vmatprep.mubr.f32.mxu0 0.0
      %3884 = vmatmul.mubr.f32.gmra.mxu0 %v3707
      %v3885 = vpop.f32.mrf.mxu0
      %v3886 = vadd.f32 0.0, %v3885
      %v3887 = vpop.f32.mrf.mxu0
      %3888 = vmatprep.mubr.f32.mxu0 0.0
      %3889 = vmatmul.mubr.f32.gmra.mxu0 %v3710
      %v3890 = vpop.f32.mrf.mxu0
      %v3891 = vadd.f32 0.0, %v3890
      %v3892 = vpop.f32.mrf.mxu0
      %3893 = vmatprep.mubr.f32.mxu0 0.0
      %3894 = vmatmul.mubr.f32.gmra.mxu0 %v3713
      %v3895 = vpop.f32.mrf.mxu0
      %v3896 = vadd.f32 0.0, %v3895
      %v3897 = vpop.f32.mrf.mxu0
      %3898 = vmatprep.mubr.f32.mxu0 0.0
      %3899 = vmatmul.mubr.f32.gmra.mxu0 %v3716
      %v3900 = vpop.f32.mrf.mxu0
      %v3901 = vadd.f32 0.0, %v3900
      %v3902 = vpop.f32.mrf.mxu0
      %3903 = vmatprep.mubr.f32.mxu0 0.0
      %3904 = vmatmul.mubr.f32.gmra.mxu0 %v3719
      %v3905 = vpop.f32.mrf.mxu0
      %v3906 = vadd.f32 0.0, %v3905
      %v3907 = vpop.f32.mrf.mxu0
      %3908 = vmatprep.mubr.f32.mxu0 0.0
      %3909 = vmatmul.mubr.f32.gmra.mxu0 %v3722
      %v3910 = vpop.f32.mrf.mxu0
      %v3911 = vadd.f32 0.0, %v3910
      %v3912 = vpop.f32.mrf.mxu0
      %3913 = vmatprep.mubr.f32.mxu0 0.0
      %3914 = vmatmul.mubr.f32.gmra.mxu0 %v3725
      %v3915 = vpop.f32.mrf.mxu0
      %v3916 = vadd.f32 0.0, %v3915
      %v3917 = vpop.f32.mrf.mxu0
      %3918 = vmatprep.mubr.f32.mxu0 0.0
      %3919 = vmatmul.mubr.f32.gmra.mxu0 %v3728
      %v3920 = vpop.f32.mrf.mxu0
      %v3921 = vadd.f32 0.0, %v3920
      %v3922 = vpop.f32.mrf.mxu0
      %3923 = vmatprep.mubr.f32.mxu0 0.0
      %3924 = vmatmul.mubr.f32.gmra.mxu0 %v3731
      %v3925 = vpop.f32.mrf.mxu0
      %v3926 = vadd.f32 0.0, %v3925
      %v3927 = vpop.f32.mrf.mxu0
      %3928 = vmatprep.mubr.f32.mxu0 0.0
      %3929 = vmatmul.mubr.f32.gmra.mxu0 %v3734
      %v3930 = vpop.f32.mrf.mxu0
      %v3931 = vadd.f32 0.0, %v3930
      %v3932 = vpop.f32.mrf.mxu0
      %3933 = vmatprep.mubr.f32.mxu0 0.0
      %3934 = vmatmul.mubr.f32.gmra.mxu0 %v3737
      %v3935 = vpop.f32.mrf.mxu0
      %v3936 = vadd.f32 0.0, %v3935
      %v3937 = vpop.f32.mrf.mxu0
      %3938 = vdwg.mxu0
      %v3939 = vld [vmem:[#allocation3] sm:$0xff]
      %v3940 = vld [vmem:[#allocation3 + $0x8] sm:$0xff]
      %v3941 = vld [vmem:[#allocation3 + $0x10] sm:$0xff]
      %v3942 = vld [vmem:[#allocation3 + $0x18] sm:$0xff]
      %v3943 = vld [vmem:[#allocation3 + $0x20] sm:$0xff]
      %v3944 = vld [vmem:[#allocation3 + $0x28] sm:$0xff]
      %v3945 = vld [vmem:[#allocation3 + $0x30] sm:$0xff]
      %v3946 = vld [vmem:[#allocation3 + $0x38] sm:$0xff]
      %v3947 = vld [vmem:[#allocation3 + $0x40] sm:$0xff]
      %v3948 = vld [vmem:[#allocation3 + $0x48] sm:$0xff]
      %v3949 = vld [vmem:[#allocation3 + $0x50] sm:$0xff]
      %v3950 = vld [vmem:[#allocation3 + $0x58] sm:$0xff]
      %v3951 = vld [vmem:[#allocation3 + $0x60] sm:$0xff]
      %v3952 = vld [vmem:[#allocation3 + $0x68] sm:$0xff]
      %v3953 = vld [vmem:[#allocation3 + $0x70] sm:$0xff]
      %v3954 = vld [vmem:[#allocation3 + $0x78] sm:$0xff]
      %v3955 = vld [vmem:[#allocation3 + $0x80] sm:$0xff]
      %v3956 = vld [vmem:[#allocation3 + $0x88] sm:$0xff]
      %v3957 = vld [vmem:[#allocation3 + $0x90] sm:$0xff]
      %v3958 = vld [vmem:[#allocation3 + $0x98] sm:$0xff]
      %v3959 = vld [vmem:[#allocation3 + $0xa0] sm:$0xff]
      %v3960 = vld [vmem:[#allocation3 + $0xa8] sm:$0xff]
      %v3961 = vld [vmem:[#allocation3 + $0xb0] sm:$0xff]
      %v3962 = vld [vmem:[#allocation3 + $0xb8] sm:$0xff]
      %v3963 = vld [vmem:[#allocation3 + $0xc0] sm:$0xff]
      %v3964 = vld [vmem:[#allocation3 + $0xc8] sm:$0xff]
      %v3965 = vld [vmem:[#allocation3 + $0xd0] sm:$0xff]
      %v3966 = vadd.f32 %v3939, %v3806
      %v3967 = vadd.f32 %v3940, %v3811
      %v3968 = vadd.f32 %v3941, %v3816
      %v3969 = vadd.f32 %v3942, %v3821
      %v3970 = vadd.f32 %v3943, %v3826
      %v3971 = vadd.f32 %v3944, %v3831
      %v3972 = vadd.f32 %v3945, %v3836
      %v3973 = vadd.f32 %v3946, %v3841
      %v3974 = vadd.f32 %v3947, %v3846
      %v3975 = vadd.f32 %v3948, %v3851
      %v3976 = vadd.f32 %v3949, %v3856
      %v3977 = vadd.f32 %v3950, %v3861
      %v3978 = vadd.f32 %v3951, %v3866
      %v3979 = vadd.f32 %v3952, %v3871
      %v3980 = vadd.f32 %v3953, %v3876
      %v3981 = vadd.f32 %v3954, %v3881
      %v3982 = vadd.f32 %v3955, %v3886
      %v3983 = vadd.f32 %v3956, %v3891
      %v3984 = vadd.f32 %v3957, %v3896
      %v3985 = vadd.f32 %v3958, %v3901
      %v3986 = vadd.f32 %v3959, %v3906
      %v3987 = vadd.f32 %v3960, %v3911
      %v3988 = vadd.f32 %v3961, %v3916
      %v3989 = vadd.f32 %v3962, %v3921
      %v3990 = vadd.f32 %v3963, %v3926
      %v3991 = vadd.f32 %v3964, %v3931
      %v3992 = vadd.f32 %v3965, %v3936
      %3993 = vst.msk [vmem:[#allocation3] sm:$0xff] %vm642, %v3966
      %3994 = vst.msk [vmem:[#allocation3 + $0x8] sm:$0xff] %vm642, %v3967
      %3995 = vst.msk [vmem:[#allocation3 + $0x10] sm:$0xff] %vm642, %v3968
      %3996 = vst.msk [vmem:[#allocation3 + $0x18] sm:$0xff] %vm642, %v3969
      %3997 = vst.msk [vmem:[#allocation3 + $0x20] sm:$0xff] %vm642, %v3970
      %3998 = vst.msk [vmem:[#allocation3 + $0x28] sm:$0xff] %vm642, %v3971
      %3999 = vst.msk [vmem:[#allocation3 + $0x30] sm:$0xff] %vm642, %v3972
      %4000 = vst.msk [vmem:[#allocation3 + $0x38] sm:$0xff] %vm642, %v3973
      %4001 = vst.msk [vmem:[#allocation3 + $0x40] sm:$0xff] %vm642, %v3974
      %4002 = vst.msk [vmem:[#allocation3 + $0x48] sm:$0xff] %vm642, %v3975
      %4003 = vst.msk [vmem:[#allocation3 + $0x50] sm:$0xff] %vm642, %v3976
      %4004 = vst.msk [vmem:[#allocation3 + $0x58] sm:$0xff] %vm642, %v3977
      %4005 = vst.msk [vmem:[#allocation3 + $0x60] sm:$0xff] %vm642, %v3978
      %4006 = vst.msk [vmem:[#allocation3 + $0x68] sm:$0xff] %vm642, %v3979
      %4007 = vst.msk [vmem:[#allocation3 + $0x70] sm:$0xff] %vm642, %v3980
      %4008 = vst.msk [vmem:[#allocation3 + $0x78] sm:$0xff] %vm642, %v3981
      %4009 = vst.msk [vmem:[#allocation3 + $0x80] sm:$0xff] %vm642, %v3982
      %4010 = vst.msk [vmem:[#allocation3 + $0x88] sm:$0xff] %vm642, %v3983
      %4011 = vst.msk [vmem:[#allocation3 + $0x90] sm:$0xff] %vm642, %v3984
      %4012 = vst.msk [vmem:[#allocation3 + $0x98] sm:$0xff] %vm642, %v3985
      %4013 = vst.msk [vmem:[#allocation3 + $0xa0] sm:$0xff] %vm642, %v3986
      %4014 = vst.msk [vmem:[#allocation3 + $0xa8] sm:$0xff] %vm642, %v3987
      %4015 = vst.msk [vmem:[#allocation3 + $0xb0] sm:$0xff] %vm642, %v3988
      %4016 = vst.msk [vmem:[#allocation3 + $0xb8] sm:$0xff] %vm642, %v3989
      %4017 = vst.msk [vmem:[#allocation3 + $0xc0] sm:$0xff] %vm642, %v3990
      %4018 = vst.msk [vmem:[#allocation3 + $0xc8] sm:$0xff] %vm642, %v3991
      %4019 = vst.msk [vmem:[#allocation3 + $0xd0] sm:$0xff] %vm642, %v3992
      %v4020 = vld [vmem:[#allocation2 + $0x348] sm:$0xff]
      %v4021 = vld [vmem:[#allocation2 + $0x350] sm:$0xff]
      %v4022 = vld [vmem:[#allocation2 + $0x358] sm:$0xff]
      %v4023 = vld [vmem:[#allocation2 + $0x360] sm:$0xff]
      %v4024 = vld [vmem:[#allocation2 + $0x368] sm:$0xff]
      %v4025 = vld [vmem:[#allocation2 + $0x370] sm:$0xff]
      %v4026 = vld [vmem:[#allocation2 + $0x378] sm:$0xff]
      %v4027 = vld [vmem:[#allocation2 + $0x380] sm:$0xff]
      %v4028 = vld [vmem:[#allocation2 + $0x388] sm:$0xff]
      %v4029 = vld [vmem:[#allocation2 + $0x390] sm:$0xff]
      %v4030 = vld [vmem:[#allocation2 + $0x398] sm:$0xff]
      %v4031 = vld [vmem:[#allocation2 + $0x3a0] sm:$0xff]
      %v4032 = vld [vmem:[#allocation2 + $0x3a8] sm:$0xff]
      %v4033 = vld [vmem:[#allocation2 + $0x3b0] sm:$0xff]
      %v4034 = vld [vmem:[#allocation2 + $0x3b8] sm:$0xff]
      %v4035 = vld [vmem:[#allocation2 + $0x3c0] sm:$0xff]
      %v4036 = vld [vmem:[#allocation2 + $0x3c8] sm:$0xff]
      %v4037 = vld [vmem:[#allocation2 + $0x3d0] sm:$0xff]
      %v4038 = vld [vmem:[#allocation2 + $0x3d8] sm:$0xff]
      %v4039 = vld [vmem:[#allocation2 + $0x3e0] sm:$0xff]
      %v4040 = vld [vmem:[#allocation2 + $0x3e8] sm:$0xff]
      %v4041 = vld [vmem:[#allocation2 + $0x3f0] sm:$0xff]
      %v4042 = vld [vmem:[#allocation2 + $0x3f8] sm:$0xff]
      %v4043 = vld [vmem:[#allocation2 + $0x400] sm:$0xff]
      %v4044 = vld [vmem:[#allocation2 + $0x408] sm:$0xff]
      %v4045 = vld [vmem:[#allocation2 + $0x410] sm:$0xff]
      %v4046 = vld [vmem:[#allocation2 + $0x418] sm:$0xff]
      %v4047 = vld [vmem:[%s3 + $0xa0] sm:$0xff]
      %v4048 = vld [vmem:[%s3 + $0xa8] sm:$0xff]
      %v4049 = vld [vmem:[%s3 + $0xb0] sm:$0xff]
      %v4050 = vld [vmem:[%s3 + $0xb8] sm:$0xff]
      %v4052 = vsel %vm1968, %v4020, 0
      %v4055 = vsel %vm1968, %v4021, 0
      %v4058 = vsel %vm1968, %v4022, 0
      %v4061 = vsel %vm1968, %v4023, 0
      %v4064 = vsel %vm1968, %v4024, 0
      %v4067 = vsel %vm1968, %v4025, 0
      %v4070 = vsel %vm1968, %v4026, 0
      %v4073 = vsel %vm1968, %v4027, 0
      %v4076 = vsel %vm1968, %v4028, 0
      %v4079 = vsel %vm1968, %v4029, 0
      %v4082 = vsel %vm1968, %v4030, 0
      %v4085 = vsel %vm1968, %v4031, 0
      %v4088 = vsel %vm1968, %v4032, 0
      %v4091 = vsel %vm1968, %v4033, 0
      %v4094 = vsel %vm1968, %v4034, 0
      %v4097 = vsel %vm1968, %v4035, 0
      %v4100 = vsel %vm1968, %v4036, 0
      %v4103 = vsel %vm1968, %v4037, 0
      %v4106 = vsel %vm1968, %v4038, 0
      %v4109 = vsel %vm1968, %v4039, 0
      %v4112 = vsel %vm1968, %v4040, 0
      %v4115 = vsel %vm1968, %v4041, 0
      %v4118 = vsel %vm1968, %v4042, 0
      %v4121 = vsel %vm1968, %v4043, 0
      %v4124 = vsel %vm1968, %v4044, 0
      %v4127 = vsel %vm1968, %v4045, 0
      %v4130 = vsel %vm1968, %v4046, 0
      %4132 = vmatprep.subr.mxu0 0.0
      %4133 = vmatpush1.msra.mxu0 0.0
      %4134 = vmatprep.subr.mxu0 0.0
      %4135 = vmatpush1.msra.mxu0 0.0
      %4136 = vmatprep.subr.mxu0 0.0
      %4137 = vmatpush1.msra.mxu0 0.0
      %4138 = vmatprep.subr.mxu0 0.0
      %4139 = vmatpush1.msra.mxu0 0.0
      %4140 = vmatprep.subr.mxu0 0.0
      %4141 = vmatpush1.msra.mxu0 0.0
      %4142 = vmatprep.subr.mxu0 0.0
      %4143 = vmatpush1.msra.mxu0 0.0
      %4144 = vmatprep.subr.mxu0 0.0
      %4145 = vmatpush1.msra.mxu0 0.0
      %4146 = vmatprep.subr.mxu0 0.0
      %4147 = vmatpush1.msra.mxu0 0.0
      %4148 = vmatprep.subr.mxu0 0.0
      %4149 = vmatpush1.msra.mxu0 0.0
      %4150 = vmatprep.subr.mxu0 0.0
      %4151 = vmatpush1.msra.mxu0 0.0
      %4152 = vmatprep.subr.mxu0 0.0
      %4153 = vmatpush1.msra.mxu0 0.0
      %4154 = vmatprep.subr.mxu0 0.0
      %4155 = vmatpush1.msra.mxu0 0.0
      %4156 = vmatprep.subr.mxu0 0.0
      %4157 = vmatpush1.msra.mxu0 %v4050
      %4158 = vmatprep.subr.mxu0 0.0
      %4159 = vmatpush1.msra.mxu0 %v4049
      %4160 = vmatprep.subr.mxu0 0.0
      %4161 = vmatpush1.msra.mxu0 %v4048
      %4162 = vmatprep.subr.mxu0 0.0
      %4163 = vmatpush1.msra.mxu0 %v4047
      %4164 = vmatprep.subr.mxu0 0.0
      %4165 = vmatpush2.msra.mxu0 0.0
      %4166 = vmatprep.subr.mxu0 0.0
      %4167 = vmatpush2.msra.mxu0 0.0
      %4168 = vmatprep.subr.mxu0 0.0
      %4169 = vmatpush2.msra.mxu0 0.0
      %4170 = vmatprep.subr.mxu0 0.0
      %4171 = vmatpush2.msra.mxu0 0.0
      %4172 = vmatprep.subr.mxu0 0.0
      %4173 = vmatpush2.msra.mxu0 0.0
      %4174 = vmatprep.subr.mxu0 0.0
      %4175 = vmatpush2.msra.mxu0 0.0
      %4176 = vmatprep.subr.mxu0 0.0
      %4177 = vmatpush2.msra.mxu0 0.0
      %4178 = vmatprep.subr.mxu0 0.0
      %4179 = vmatpush2.msra.mxu0 0.0
      %4180 = vmatprep.subr.mxu0 0.0
      %4181 = vmatpush2.msra.mxu0 0.0
      %4182 = vmatprep.subr.mxu0 0.0
      %4183 = vmatpush2.msra.mxu0 0.0
      %4184 = vmatprep.subr.mxu0 0.0
      %4185 = vmatpush2.msra.mxu0 0.0
      %4186 = vmatprep.subr.mxu0 0.0
      %4187 = vmatpush2.msra.mxu0 0.0
      %4188 = vmatprep.subr.mxu0 0.0
      %4189 = vmatpush2.msra.mxu0 0.0
      %4190 = vmatprep.subr.mxu0 0.0
      %4191 = vmatpush2.msra.mxu0 0.0
      %4192 = vmatprep.subr.mxu0 0.0
      %4193 = vmatpush2.msra.mxu0 0.0
      %4194 = vmatprep.subr.mxu0 0.0
      %4195 = vmatpush2.msra.mxu0 0.0
      %4196 = vmatprep.mubr.f32.mxu0 0.0
      %4197 = vmatmul.mubr.f32.gmra.mxu0 %v4052
      %v4198 = vpop.f32.mrf.mxu0
      %v4199 = vadd.f32 0.0, %v4198
      %v4200 = vpop.f32.mrf.mxu0
      %4201 = vmatprep.mubr.f32.mxu0 0.0
      %4202 = vmatmul.mubr.f32.gmra.mxu0 %v4055
      %v4203 = vpop.f32.mrf.mxu0
      %v4204 = vadd.f32 0.0, %v4203
      %v4205 = vpop.f32.mrf.mxu0
      %4206 = vmatprep.mubr.f32.mxu0 0.0
      %4207 = vmatmul.mubr.f32.gmra.mxu0 %v4058
      %v4208 = vpop.f32.mrf.mxu0
      %v4209 = vadd.f32 0.0, %v4208
      %v4210 = vpop.f32.mrf.mxu0
      %4211 = vmatprep.mubr.f32.mxu0 0.0
      %4212 = vmatmul.mubr.f32.gmra.mxu0 %v4061
      %v4213 = vpop.f32.mrf.mxu0
      %v4214 = vadd.f32 0.0, %v4213
      %v4215 = vpop.f32.mrf.mxu0
      %4216 = vmatprep.mubr.f32.mxu0 0.0
      %4217 = vmatmul.mubr.f32.gmra.mxu0 %v4064
      %v4218 = vpop.f32.mrf.mxu0
      %v4219 = vadd.f32 0.0, %v4218
      %v4220 = vpop.f32.mrf.mxu0
      %4221 = vmatprep.mubr.f32.mxu0 0.0
      %4222 = vmatmul.mubr.f32.gmra.mxu0 %v4067
      %v4223 = vpop.f32.mrf.mxu0
      %v4224 = vadd.f32 0.0, %v4223
      %v4225 = vpop.f32.mrf.mxu0
      %4226 = vmatprep.mubr.f32.mxu0 0.0
      %4227 = vmatmul.mubr.f32.gmra.mxu0 %v4070
      %v4228 = vpop.f32.mrf.mxu0
      %v4229 = vadd.f32 0.0, %v4228
      %v4230 = vpop.f32.mrf.mxu0
      %4231 = vmatprep.mubr.f32.mxu0 0.0
      %4232 = vmatmul.mubr.f32.gmra.mxu0 %v4073
      %v4233 = vpop.f32.mrf.mxu0
      %v4234 = vadd.f32 0.0, %v4233
      %v4235 = vpop.f32.mrf.mxu0
      %4236 = vmatprep.mubr.f32.mxu0 0.0
      %4237 = vmatmul.mubr.f32.gmra.mxu0 %v4076
      %v4238 = vpop.f32.mrf.mxu0
      %v4239 = vadd.f32 0.0, %v4238
      %v4240 = vpop.f32.mrf.mxu0
      %4241 = vmatprep.mubr.f32.mxu0 0.0
      %4242 = vmatmul.mubr.f32.gmra.mxu0 %v4079
      %v4243 = vpop.f32.mrf.mxu0
      %v4244 = vadd.f32 0.0, %v4243
      %v4245 = vpop.f32.mrf.mxu0
      %4246 = vmatprep.mubr.f32.mxu0 0.0
      %4247 = vmatmul.mubr.f32.gmra.mxu0 %v4082
      %v4248 = vpop.f32.mrf.mxu0
      %v4249 = vadd.f32 0.0, %v4248
      %v4250 = vpop.f32.mrf.mxu0
      %4251 = vmatprep.mubr.f32.mxu0 0.0
      %4252 = vmatmul.mubr.f32.gmra.mxu0 %v4085
      %v4253 = vpop.f32.mrf.mxu0
      %v4254 = vadd.f32 0.0, %v4253
      %v4255 = vpop.f32.mrf.mxu0
      %4256 = vmatprep.mubr.f32.mxu0 0.0
      %4257 = vmatmul.mubr.f32.gmra.mxu0 %v4088
      %v4258 = vpop.f32.mrf.mxu0
      %v4259 = vadd.f32 0.0, %v4258
      %v4260 = vpop.f32.mrf.mxu0
      %4261 = vmatprep.mubr.f32.mxu0 0.0
      %4262 = vmatmul.mubr.f32.gmra.mxu0 %v4091
      %v4263 = vpop.f32.mrf.mxu0
      %v4264 = vadd.f32 0.0, %v4263
      %v4265 = vpop.f32.mrf.mxu0
      %4266 = vmatprep.mubr.f32.mxu0 0.0
      %4267 = vmatmul.mubr.f32.gmra.mxu0 %v4094
      %v4268 = vpop.f32.mrf.mxu0
      %v4269 = vadd.f32 0.0, %v4268
      %v4270 = vpop.f32.mrf.mxu0
      %4271 = vmatprep.mubr.f32.mxu0 0.0
      %4272 = vmatmul.mubr.f32.gmra.mxu0 %v4097
      %v4273 = vpop.f32.mrf.mxu0
      %v4274 = vadd.f32 0.0, %v4273
      %v4275 = vpop.f32.mrf.mxu0
      %4276 = vmatprep.mubr.f32.mxu0 0.0
      %4277 = vmatmul.mubr.f32.gmra.mxu0 %v4100
      %v4278 = vpop.f32.mrf.mxu0
      %v4279 = vadd.f32 0.0, %v4278
      %v4280 = vpop.f32.mrf.mxu0
      %4281 = vmatprep.mubr.f32.mxu0 0.0
      %4282 = vmatmul.mubr.f32.gmra.mxu0 %v4103
      %v4283 = vpop.f32.mrf.mxu0
      %v4284 = vadd.f32 0.0, %v4283
      %v4285 = vpop.f32.mrf.mxu0
      %4286 = vmatprep.mubr.f32.mxu0 0.0
      %4287 = vmatmul.mubr.f32.gmra.mxu0 %v4106
      %v4288 = vpop.f32.mrf.mxu0
      %v4289 = vadd.f32 0.0, %v4288
      %v4290 = vpop.f32.mrf.mxu0
      %4291 = vmatprep.mubr.f32.mxu0 0.0
      %4292 = vmatmul.mubr.f32.gmra.mxu0 %v4109
      %v4293 = vpop.f32.mrf.mxu0
      %v4294 = vadd.f32 0.0, %v4293
      %v4295 = vpop.f32.mrf.mxu0
      %4296 = vmatprep.mubr.f32.mxu0 0.0
      %4297 = vmatmul.mubr.f32.gmra.mxu0 %v4112
      %v4298 = vpop.f32.mrf.mxu0
      %v4299 = vadd.f32 0.0, %v4298
      %v4300 = vpop.f32.mrf.mxu0
      %4301 = vmatprep.mubr.f32.mxu0 0.0
      %4302 = vmatmul.mubr.f32.gmra.mxu0 %v4115
      %v4303 = vpop.f32.mrf.mxu0
      %v4304 = vadd.f32 0.0, %v4303
      %v4305 = vpop.f32.mrf.mxu0
      %4306 = vmatprep.mubr.f32.mxu0 0.0
      %4307 = vmatmul.mubr.f32.gmra.mxu0 %v4118
      %v4308 = vpop.f32.mrf.mxu0
      %v4309 = vadd.f32 0.0, %v4308
      %v4310 = vpop.f32.mrf.mxu0
      %4311 = vmatprep.mubr.f32.mxu0 0.0
      %4312 = vmatmul.mubr.f32.gmra.mxu0 %v4121
      %v4313 = vpop.f32.mrf.mxu0
      %v4314 = vadd.f32 0.0, %v4313
      %v4315 = vpop.f32.mrf.mxu0
      %4316 = vmatprep.mubr.f32.mxu0 0.0
      %4317 = vmatmul.mubr.f32.gmra.mxu0 %v4124
      %v4318 = vpop.f32.mrf.mxu0
      %v4319 = vadd.f32 0.0, %v4318
      %v4320 = vpop.f32.mrf.mxu0
      %4321 = vmatprep.mubr.f32.mxu0 0.0
      %4322 = vmatmul.mubr.f32.gmra.mxu0 %v4127
      %v4323 = vpop.f32.mrf.mxu0
      %v4324 = vadd.f32 0.0, %v4323
      %v4325 = vpop.f32.mrf.mxu0
      %4326 = vmatprep.mubr.f32.mxu0 0.0
      %4327 = vmatmul.mubr.f32.gmra.mxu0 %v4130
      %v4328 = vpop.f32.mrf.mxu0
      %v4329 = vadd.f32 0.0, %v4328
      %v4330 = vpop.f32.mrf.mxu0
      %4331 = vdwg.mxu0
      %v4332 = vld [vmem:[#allocation3] sm:$0xff]
      %v4333 = vld [vmem:[#allocation3 + $0x8] sm:$0xff]
      %v4334 = vld [vmem:[#allocation3 + $0x10] sm:$0xff]
      %v4335 = vld [vmem:[#allocation3 + $0x18] sm:$0xff]
      %v4336 = vld [vmem:[#allocation3 + $0x20] sm:$0xff]
      %v4337 = vld [vmem:[#allocation3 + $0x28] sm:$0xff]
      %v4338 = vld [vmem:[#allocation3 + $0x30] sm:$0xff]
      %v4339 = vld [vmem:[#allocation3 + $0x38] sm:$0xff]
      %v4340 = vld [vmem:[#allocation3 + $0x40] sm:$0xff]
      %v4341 = vld [vmem:[#allocation3 + $0x48] sm:$0xff]
      %v4342 = vld [vmem:[#allocation3 + $0x50] sm:$0xff]
      %v4343 = vld [vmem:[#allocation3 + $0x58] sm:$0xff]
      %v4344 = vld [vmem:[#allocation3 + $0x60] sm:$0xff]
      %v4345 = vld [vmem:[#allocation3 + $0x68] sm:$0xff]
      %v4346 = vld [vmem:[#allocation3 + $0x70] sm:$0xff]
      %v4347 = vld [vmem:[#allocation3 + $0x78] sm:$0xff]
      %v4348 = vld [vmem:[#allocation3 + $0x80] sm:$0xff]
      %v4349 = vld [vmem:[#allocation3 + $0x88] sm:$0xff]
      %v4350 = vld [vmem:[#allocation3 + $0x90] sm:$0xff]
      %v4351 = vld [vmem:[#allocation3 + $0x98] sm:$0xff]
      %v4352 = vld [vmem:[#allocation3 + $0xa0] sm:$0xff]
      %v4353 = vld [vmem:[#allocation3 + $0xa8] sm:$0xff]
      %v4354 = vld [vmem:[#allocation3 + $0xb0] sm:$0xff]
      %v4355 = vld [vmem:[#allocation3 + $0xb8] sm:$0xff]
      %v4356 = vld [vmem:[#allocation3 + $0xc0] sm:$0xff]
      %v4357 = vld [vmem:[#allocation3 + $0xc8] sm:$0xff]
      %v4358 = vld [vmem:[#allocation3 + $0xd0] sm:$0xff]
      %v4359 = vadd.f32 %v4332, %v4199
      %v4360 = vadd.f32 %v4333, %v4204
      %v4361 = vadd.f32 %v4334, %v4209
      %v4362 = vadd.f32 %v4335, %v4214
      %v4363 = vadd.f32 %v4336, %v4219
      %v4364 = vadd.f32 %v4337, %v4224
      %v4365 = vadd.f32 %v4338, %v4229
      %v4366 = vadd.f32 %v4339, %v4234
      %v4367 = vadd.f32 %v4340, %v4239
      %v4368 = vadd.f32 %v4341, %v4244
      %v4369 = vadd.f32 %v4342, %v4249
      %v4370 = vadd.f32 %v4343, %v4254
      %v4371 = vadd.f32 %v4344, %v4259
      %v4372 = vadd.f32 %v4345, %v4264
      %v4373 = vadd.f32 %v4346, %v4269
      %v4374 = vadd.f32 %v4347, %v4274
      %v4375 = vadd.f32 %v4348, %v4279
      %v4376 = vadd.f32 %v4349, %v4284
      %v4377 = vadd.f32 %v4350, %v4289
      %v4378 = vadd.f32 %v4351, %v4294
      %v4379 = vadd.f32 %v4352, %v4299
      %v4380 = vadd.f32 %v4353, %v4304
      %v4381 = vadd.f32 %v4354, %v4309
      %v4382 = vadd.f32 %v4355, %v4314
      %v4383 = vadd.f32 %v4356, %v4319
      %v4384 = vadd.f32 %v4357, %v4324
      %v4385 = vadd.f32 %v4358, %v4329
      %4386 = vst.msk [vmem:[#allocation3] sm:$0xff] %vm642, %v4359
      %4387 = vst.msk [vmem:[#allocation3 + $0x8] sm:$0xff] %vm642, %v4360
      %4388 = vst.msk [vmem:[#allocation3 + $0x10] sm:$0xff] %vm642, %v4361
      %4389 = vst.msk [vmem:[#allocation3 + $0x18] sm:$0xff] %vm642, %v4362
      %4390 = vst.msk [vmem:[#allocation3 + $0x20] sm:$0xff] %vm642, %v4363
      %4391 = vst.msk [vmem:[#allocation3 + $0x28] sm:$0xff] %vm642, %v4364
      %4392 = vst.msk [vmem:[#allocation3 + $0x30] sm:$0xff] %vm642, %v4365
      %4393 = vst.msk [vmem:[#allocation3 + $0x38] sm:$0xff] %vm642, %v4366
      %4394 = vst.msk [vmem:[#allocation3 + $0x40] sm:$0xff] %vm642, %v4367
      %4395 = vst.msk [vmem:[#allocation3 + $0x48] sm:$0xff] %vm642, %v4368
      %4396 = vst.msk [vmem:[#allocation3 + $0x50] sm:$0xff] %vm642, %v4369
      %4397 = vst.msk [vmem:[#allocation3 + $0x58] sm:$0xff] %vm642, %v4370
      %4398 = vst.msk [vmem:[#allocation3 + $0x60] sm:$0xff] %vm642, %v4371
      %4399 = vst.msk [vmem:[#allocation3 + $0x68] sm:$0xff] %vm642, %v4372
      %4400 = vst.msk [vmem:[#allocation3 + $0x70] sm:$0xff] %vm642, %v4373
      %4401 = vst.msk [vmem:[#allocation3 + $0x78] sm:$0xff] %vm642, %v4374
      %4402 = vst.msk [vmem:[#allocation3 + $0x80] sm:$0xff] %vm642, %v4375
      %4403 = vst.msk [vmem:[#allocation3 + $0x88] sm:$0xff] %vm642, %v4376
      %4404 = vst.msk [vmem:[#allocation3 + $0x90] sm:$0xff] %vm642, %v4377
      %4405 = vst.msk [vmem:[#allocation3 + $0x98] sm:$0xff] %vm642, %v4378
      %4406 = vst.msk [vmem:[#allocation3 + $0xa0] sm:$0xff] %vm642, %v4379
      %4407 = vst.msk [vmem:[#allocation3 + $0xa8] sm:$0xff] %vm642, %v4380
      %4408 = vst.msk [vmem:[#allocation3 + $0xb0] sm:$0xff] %vm642, %v4381
      %4409 = vst.msk [vmem:[#allocation3 + $0xb8] sm:$0xff] %vm642, %v4382
      %4410 = vst.msk [vmem:[#allocation3 + $0xc0] sm:$0xff] %vm642, %v4383
      %4411 = vst.msk [vmem:[#allocation3 + $0xc8] sm:$0xff] %vm642, %v4384
      %4412 = vst.msk [vmem:[#allocation3 + $0xd0] sm:$0xff] %vm642, %v4385
      %v4413 = vld [vmem:[#allocation2 + $0x238] sm:$0xff]
      %v4414 = vld [vmem:[#allocation2 + $0x240] sm:$0xff]
      %v4415 = vld [vmem:[#allocation2 + $0x248] sm:$0xff]
      %v4416 = vld [vmem:[#allocation2 + $0x250] sm:$0xff]
      %v4417 = vld [vmem:[#allocation2 + $0x258] sm:$0xff]
      %v4418 = vld [vmem:[#allocation2 + $0x260] sm:$0xff]
      %v4419 = vld [vmem:[#allocation2 + $0x268] sm:$0xff]
      %v4420 = vld [vmem:[#allocation2 + $0x270] sm:$0xff]
      %v4421 = vld [vmem:[#allocation2 + $0x278] sm:$0xff]
      %v4422 = vld [vmem:[#allocation2 + $0x280] sm:$0xff]
      %v4423 = vld [vmem:[#allocation2 + $0x288] sm:$0xff]
      %v4424 = vld [vmem:[#allocation2 + $0x290] sm:$0xff]
      %v4425 = vld [vmem:[#allocation2 + $0x298] sm:$0xff]
      %v4426 = vld [vmem:[#allocation2 + $0x2a0] sm:$0xff]
      %v4427 = vld [vmem:[#allocation2 + $0x2a8] sm:$0xff]
      %v4428 = vld [vmem:[#allocation2 + $0x2b0] sm:$0xff]
      %v4429 = vld [vmem:[#allocation2 + $0x2b8] sm:$0xff]
      %v4430 = vld [vmem:[#allocation2 + $0x2c0] sm:$0xff]
      %v4431 = vld [vmem:[#allocation2 + $0x2c8] sm:$0xff]
      %v4432 = vld [vmem:[#allocation2 + $0x2d0] sm:$0xff]
      %v4433 = vld [vmem:[#allocation2 + $0x2d8] sm:$0xff]
      %v4434 = vld [vmem:[#allocation2 + $0x2e0] sm:$0xff]
      %v4435 = vld [vmem:[#allocation2 + $0x2e8] sm:$0xff]
      %v4436 = vld [vmem:[#allocation2 + $0x2f0] sm:$0xff]
      %v4437 = vld [vmem:[#allocation2 + $0x2f8] sm:$0xff]
      %v4438 = vld [vmem:[#allocation2 + $0x300] sm:$0xff]
      %v4439 = vld [vmem:[#allocation2 + $0x308] sm:$0xff]
      %v4440 = vld [vmem:[%s3 + $0xc0] sm:$0xff]
      %v4441 = vld [vmem:[%s3 + $0xc8] sm:$0xff]
      %v4442 = vld [vmem:[%s3 + $0xd0] sm:$0xff]
      %v4443 = vld [vmem:[%s3 + $0xd8] sm:$0xff]
      %v4445 = vsel %vm1968, %v4413, 0
      %v4448 = vsel %vm1968, %v4414, 0
      %v4451 = vsel %vm1968, %v4415, 0
      %v4454 = vsel %vm1968, %v4416, 0
      %v4457 = vsel %vm1968, %v4417, 0
      %v4460 = vsel %vm1968, %v4418, 0
      %v4463 = vsel %vm1968, %v4419, 0
      %v4466 = vsel %vm1968, %v4420, 0
      %v4469 = vsel %vm1968, %v4421, 0
      %v4472 = vsel %vm1968, %v4422, 0
      %v4475 = vsel %vm1968, %v4423, 0
      %v4478 = vsel %vm1968, %v4424, 0
      %v4481 = vsel %vm1968, %v4425, 0
      %v4484 = vsel %vm1968, %v4426, 0
      %v4487 = vsel %vm1968, %v4427, 0
      %v4490 = vsel %vm1968, %v4428, 0
      %v4493 = vsel %vm1968, %v4429, 0
      %v4496 = vsel %vm1968, %v4430, 0
      %v4499 = vsel %vm1968, %v4431, 0
      %v4502 = vsel %vm1968, %v4432, 0
      %v4505 = vsel %vm1968, %v4433, 0
      %v4508 = vsel %vm1968, %v4434, 0
      %v4511 = vsel %vm1968, %v4435, 0
      %v4514 = vsel %vm1968, %v4436, 0
      %v4517 = vsel %vm1968, %v4437, 0
      %v4520 = vsel %vm1968, %v4438, 0
      %v4523 = vsel %vm1968, %v4439, 0
      %4525 = vmatprep.subr.mxu0 0.0
      %4526 = vmatpush1.msra.mxu0 0.0
      %4527 = vmatprep.subr.mxu0 0.0
      %4528 = vmatpush1.msra.mxu0 0.0
      %4529 = vmatprep.subr.mxu0 0.0
      %4530 = vmatpush1.msra.mxu0 0.0
      %4531 = vmatprep.subr.mxu0 0.0
      %4532 = vmatpush1.msra.mxu0 0.0
      %4533 = vmatprep.subr.mxu0 0.0
      %4534 = vmatpush1.msra.mxu0 0.0
      %4535 = vmatprep.subr.mxu0 0.0
      %4536 = vmatpush1.msra.mxu0 0.0
      %4537 = vmatprep.subr.mxu0 0.0
      %4538 = vmatpush1.msra.mxu0 0.0
      %4539 = vmatprep.subr.mxu0 0.0
      %4540 = vmatpush1.msra.mxu0 0.0
      %4541 = vmatprep.subr.mxu0 0.0
      %4542 = vmatpush1.msra.mxu0 0.0
      %4543 = vmatprep.subr.mxu0 0.0
      %4544 = vmatpush1.msra.mxu0 0.0
      %4545 = vmatprep.subr.mxu0 0.0
      %4546 = vmatpush1.msra.mxu0 0.0
      %4547 = vmatprep.subr.mxu0 0.0
      %4548 = vmatpush1.msra.mxu0 0.0
      %4549 = vmatprep.subr.mxu0 0.0
      %4550 = vmatpush1.msra.mxu0 %v4443
      %4551 = vmatprep.subr.mxu0 0.0
      %4552 = vmatpush1.msra.mxu0 %v4442
      %4553 = vmatprep.subr.mxu0 0.0
      %4554 = vmatpush1.msra.mxu0 %v4441
      %4555 = vmatprep.subr.mxu0 0.0
      %4556 = vmatpush1.msra.mxu0 %v4440
      %4557 = vmatprep.subr.mxu0 0.0
      %4558 = vmatpush2.msra.mxu0 0.0
      %4559 = vmatprep.subr.mxu0 0.0
      %4560 = vmatpush2.msra.mxu0 0.0
      %4561 = vmatprep.subr.mxu0 0.0
      %4562 = vmatpush2.msra.mxu0 0.0
      %4563 = vmatprep.subr.mxu0 0.0
      %4564 = vmatpush2.msra.mxu0 0.0
      %4565 = vmatprep.subr.mxu0 0.0
      %4566 = vmatpush2.msra.mxu0 0.0
      %4567 = vmatprep.subr.mxu0 0.0
      %4568 = vmatpush2.msra.mxu0 0.0
      %4569 = vmatprep.subr.mxu0 0.0
      %4570 = vmatpush2.msra.mxu0 0.0
      %4571 = vmatprep.subr.mxu0 0.0
      %4572 = vmatpush2.msra.mxu0 0.0
      %4573 = vmatprep.subr.mxu0 0.0
      %4574 = vmatpush2.msra.mxu0 0.0
      %4575 = vmatprep.subr.mxu0 0.0
      %4576 = vmatpush2.msra.mxu0 0.0
      %4577 = vmatprep.subr.mxu0 0.0
      %4578 = vmatpush2.msra.mxu0 0.0
      %4579 = vmatprep.subr.mxu0 0.0
      %4580 = vmatpush2.msra.mxu0 0.0
      %4581 = vmatprep.subr.mxu0 0.0
      %4582 = vmatpush2.msra.mxu0 0.0
      %4583 = vmatprep.subr.mxu0 0.0
      %4584 = vmatpush2.msra.mxu0 0.0
      %4585 = vmatprep.subr.mxu0 0.0
      %4586 = vmatpush2.msra.mxu0 0.0
      %4587 = vmatprep.subr.mxu0 0.0
      %4588 = vmatpush2.msra.mxu0 0.0
      %4589 = vmatprep.mubr.f32.mxu0 0.0
      %4590 = vmatmul.mubr.f32.gmra.mxu0 %v4445
      %v4591 = vpop.f32.mrf.mxu0
      %v4592 = vadd.f32 0.0, %v4591
      %v4593 = vpop.f32.mrf.mxu0
      %4594 = vmatprep.mubr.f32.mxu0 0.0
      %4595 = vmatmul.mubr.f32.gmra.mxu0 %v4448
      %v4596 = vpop.f32.mrf.mxu0
      %v4597 = vadd.f32 0.0, %v4596
      %v4598 = vpop.f32.mrf.mxu0
      %4599 = vmatprep.mubr.f32.mxu0 0.0
      %4600 = vmatmul.mubr.f32.gmra.mxu0 %v4451
      %v4601 = vpop.f32.mrf.mxu0
      %v4602 = vadd.f32 0.0, %v4601
      %v4603 = vpop.f32.mrf.mxu0
      %4604 = vmatprep.mubr.f32.mxu0 0.0
      %4605 = vmatmul.mubr.f32.gmra.mxu0 %v4454
      %v4606 = vpop.f32.mrf.mxu0
      %v4607 = vadd.f32 0.0, %v4606
      %v4608 = vpop.f32.mrf.mxu0
      %4609 = vmatprep.mubr.f32.mxu0 0.0
      %4610 = vmatmul.mubr.f32.gmra.mxu0 %v4457
      %v4611 = vpop.f32.mrf.mxu0
      %v4612 = vadd.f32 0.0, %v4611
      %v4613 = vpop.f32.mrf.mxu0
      %4614 = vmatprep.mubr.f32.mxu0 0.0
      %4615 = vmatmul.mubr.f32.gmra.mxu0 %v4460
      %v4616 = vpop.f32.mrf.mxu0
      %v4617 = vadd.f32 0.0, %v4616
      %v4618 = vpop.f32.mrf.mxu0
      %4619 = vmatprep.mubr.f32.mxu0 0.0
      %4620 = vmatmul.mubr.f32.gmra.mxu0 %v4463
      %v4621 = vpop.f32.mrf.mxu0
      %v4622 = vadd.f32 0.0, %v4621
      %v4623 = vpop.f32.mrf.mxu0
      %4624 = vmatprep.mubr.f32.mxu0 0.0
      %4625 = vmatmul.mubr.f32.gmra.mxu0 %v4466
      %v4626 = vpop.f32.mrf.mxu0
      %v4627 = vadd.f32 0.0, %v4626
      %v4628 = vpop.f32.mrf.mxu0
      %4629 = vmatprep.mubr.f32.mxu0 0.0
      %4630 = vmatmul.mubr.f32.gmra.mxu0 %v4469
      %v4631 = vpop.f32.mrf.mxu0
      %v4632 = vadd.f32 0.0, %v4631
      %v4633 = vpop.f32.mrf.mxu0
      %4634 = vmatprep.mubr.f32.mxu0 0.0
      %4635 = vmatmul.mubr.f32.gmra.mxu0 %v4472
      %v4636 = vpop.f32.mrf.mxu0
      %v4637 = vadd.f32 0.0, %v4636
      %v4638 = vpop.f32.mrf.mxu0
      %4639 = vmatprep.mubr.f32.mxu0 0.0
      %4640 = vmatmul.mubr.f32.gmra.mxu0 %v4475
      %v4641 = vpop.f32.mrf.mxu0
      %v4642 = vadd.f32 0.0, %v4641
      %v4643 = vpop.f32.mrf.mxu0
      %4644 = vmatprep.mubr.f32.mxu0 0.0
      %4645 = vmatmul.mubr.f32.gmra.mxu0 %v4478
      %v4646 = vpop.f32.mrf.mxu0
      %v4647 = vadd.f32 0.0, %v4646
      %v4648 = vpop.f32.mrf.mxu0
      %4649 = vmatprep.mubr.f32.mxu0 0.0
      %4650 = vmatmul.mubr.f32.gmra.mxu0 %v4481
      %v4651 = vpop.f32.mrf.mxu0
      %v4652 = vadd.f32 0.0, %v4651
      %v4653 = vpop.f32.mrf.mxu0
      %4654 = vmatprep.mubr.f32.mxu0 0.0
      %4655 = vmatmul.mubr.f32.gmra.mxu0 %v4484
      %v4656 = vpop.f32.mrf.mxu0
      %v4657 = vadd.f32 0.0, %v4656
      %v4658 = vpop.f32.mrf.mxu0
      %4659 = vmatprep.mubr.f32.mxu0 0.0
      %4660 = vmatmul.mubr.f32.gmra.mxu0 %v4487
      %v4661 = vpop.f32.mrf.mxu0
      %v4662 = vadd.f32 0.0, %v4661
      %v4663 = vpop.f32.mrf.mxu0
      %4664 = vmatprep.mubr.f32.mxu0 0.0
      %4665 = vmatmul.mubr.f32.gmra.mxu0 %v4490
      %v4666 = vpop.f32.mrf.mxu0
      %v4667 = vadd.f32 0.0, %v4666
      %v4668 = vpop.f32.mrf.mxu0
      %4669 = vmatprep.mubr.f32.mxu0 0.0
      %4670 = vmatmul.mubr.f32.gmra.mxu0 %v4493
      %v4671 = vpop.f32.mrf.mxu0
      %v4672 = vadd.f32 0.0, %v4671
      %v4673 = vpop.f32.mrf.mxu0
      %4674 = vmatprep.mubr.f32.mxu0 0.0
      %4675 = vmatmul.mubr.f32.gmra.mxu0 %v4496
      %v4676 = vpop.f32.mrf.mxu0
      %v4677 = vadd.f32 0.0, %v4676
      %v4678 = vpop.f32.mrf.mxu0
      %4679 = vmatprep.mubr.f32.mxu0 0.0
      %4680 = vmatmul.mubr.f32.gmra.mxu0 %v4499
      %v4681 = vpop.f32.mrf.mxu0
      %v4682 = vadd.f32 0.0, %v4681
      %v4683 = vpop.f32.mrf.mxu0
      %4684 = vmatprep.mubr.f32.mxu0 0.0
      %4685 = vmatmul.mubr.f32.gmra.mxu0 %v4502
      %v4686 = vpop.f32.mrf.mxu0
      %v4687 = vadd.f32 0.0, %v4686
      %v4688 = vpop.f32.mrf.mxu0
      %4689 = vmatprep.mubr.f32.mxu0 0.0
      %4690 = vmatmul.mubr.f32.gmra.mxu0 %v4505
      %v4691 = vpop.f32.mrf.mxu0
      %v4692 = vadd.f32 0.0, %v4691
      %v4693 = vpop.f32.mrf.mxu0
      %4694 = vmatprep.mubr.f32.mxu0 0.0
      %4695 = vmatmul.mubr.f32.gmra.mxu0 %v4508
      %v4696 = vpop.f32.mrf.mxu0
      %v4697 = vadd.f32 0.0, %v4696
      %v4698 = vpop.f32.mrf.mxu0
      %4699 = vmatprep.mubr.f32.mxu0 0.0
      %4700 = vmatmul.mubr.f32.gmra.mxu0 %v4511
      %v4701 = vpop.f32.mrf.mxu0
      %v4702 = vadd.f32 0.0, %v4701
      %v4703 = vpop.f32.mrf.mxu0
      %4704 = vmatprep.mubr.f32.mxu0 0.0
      %4705 = vmatmul.mubr.f32.gmra.mxu0 %v4514
      %v4706 = vpop.f32.mrf.mxu0
      %v4707 = vadd.f32 0.0, %v4706
      %v4708 = vpop.f32.mrf.mxu0
      %4709 = vmatprep.mubr.f32.mxu0 0.0
      %4710 = vmatmul.mubr.f32.gmra.mxu0 %v4517
      %v4711 = vpop.f32.mrf.mxu0
      %v4712 = vadd.f32 0.0, %v4711
      %v4713 = vpop.f32.mrf.mxu0
      %4714 = vmatprep.mubr.f32.mxu0 0.0
      %4715 = vmatmul.mubr.f32.gmra.mxu0 %v4520
      %v4716 = vpop.f32.mrf.mxu0
      %v4717 = vadd.f32 0.0, %v4716
      %v4718 = vpop.f32.mrf.mxu0
      %4719 = vmatprep.mubr.f32.mxu0 0.0
      %4720 = vmatmul.mubr.f32.gmra.mxu0 %v4523
      %v4721 = vpop.f32.mrf.mxu0
      %v4722 = vadd.f32 0.0, %v4721
      %v4723 = vpop.f32.mrf.mxu0
      %4724 = vdwg.mxu0
      %v4725 = vld [vmem:[#allocation3] sm:$0xff]
      %v4726 = vld [vmem:[#allocation3 + $0x8] sm:$0xff]
      %v4727 = vld [vmem:[#allocation3 + $0x10] sm:$0xff]
      %v4728 = vld [vmem:[#allocation3 + $0x18] sm:$0xff]
      %v4729 = vld [vmem:[#allocation3 + $0x20] sm:$0xff]
      %v4730 = vld [vmem:[#allocation3 + $0x28] sm:$0xff]
      %v4731 = vld [vmem:[#allocation3 + $0x30] sm:$0xff]
      %v4732 = vld [vmem:[#allocation3 + $0x38] sm:$0xff]
      %v4733 = vld [vmem:[#allocation3 + $0x40] sm:$0xff]
      %v4734 = vld [vmem:[#allocation3 + $0x48] sm:$0xff]
      %v4735 = vld [vmem:[#allocation3 + $0x50] sm:$0xff]
      %v4736 = vld [vmem:[#allocation3 + $0x58] sm:$0xff]
      %v4737 = vld [vmem:[#allocation3 + $0x60] sm:$0xff]
      %v4738 = vld [vmem:[#allocation3 + $0x68] sm:$0xff]
      %v4739 = vld [vmem:[#allocation3 + $0x70] sm:$0xff]
      %v4740 = vld [vmem:[#allocation3 + $0x78] sm:$0xff]
      %v4741 = vld [vmem:[#allocation3 + $0x80] sm:$0xff]
      %v4742 = vld [vmem:[#allocation3 + $0x88] sm:$0xff]
      %v4743 = vld [vmem:[#allocation3 + $0x90] sm:$0xff]
      %v4744 = vld [vmem:[#allocation3 + $0x98] sm:$0xff]
      %v4745 = vld [vmem:[#allocation3 + $0xa0] sm:$0xff]
      %v4746 = vld [vmem:[#allocation3 + $0xa8] sm:$0xff]
      %v4747 = vld [vmem:[#allocation3 + $0xb0] sm:$0xff]
      %v4748 = vld [vmem:[#allocation3 + $0xb8] sm:$0xff]
      %v4749 = vld [vmem:[#allocation3 + $0xc0] sm:$0xff]
      %v4750 = vld [vmem:[#allocation3 + $0xc8] sm:$0xff]
      %v4751 = vld [vmem:[#allocation3 + $0xd0] sm:$0xff]
      %v4752 = vadd.f32 %v4725, %v4592
      %v4753 = vadd.f32 %v4726, %v4597
      %v4754 = vadd.f32 %v4727, %v4602
      %v4755 = vadd.f32 %v4728, %v4607
      %v4756 = vadd.f32 %v4729, %v4612
      %v4757 = vadd.f32 %v4730, %v4617
      %v4758 = vadd.f32 %v4731, %v4622
      %v4759 = vadd.f32 %v4732, %v4627
      %v4760 = vadd.f32 %v4733, %v4632
      %v4761 = vadd.f32 %v4734, %v4637
      %v4762 = vadd.f32 %v4735, %v4642
      %v4763 = vadd.f32 %v4736, %v4647
      %v4764 = vadd.f32 %v4737, %v4652
      %v4765 = vadd.f32 %v4738, %v4657
      %v4766 = vadd.f32 %v4739, %v4662
      %v4767 = vadd.f32 %v4740, %v4667
      %v4768 = vadd.f32 %v4741, %v4672
      %v4769 = vadd.f32 %v4742, %v4677
      %v4770 = vadd.f32 %v4743, %v4682
      %v4771 = vadd.f32 %v4744, %v4687
      %v4772 = vadd.f32 %v4745, %v4692
      %v4773 = vadd.f32 %v4746, %v4697
      %v4774 = vadd.f32 %v4747, %v4702
      %v4775 = vadd.f32 %v4748, %v4707
      %v4776 = vadd.f32 %v4749, %v4712
      %v4777 = vadd.f32 %v4750, %v4717
      %v4778 = vadd.f32 %v4751, %v4722
      %4779 = vst.msk [vmem:[#allocation3] sm:$0xff] %vm642, %v4752
      %4780 = vst.msk [vmem:[#allocation3 + $0x8] sm:$0xff] %vm642, %v4753
      %4781 = vst.msk [vmem:[#allocation3 + $0x10] sm:$0xff] %vm642, %v4754
      %4782 = vst.msk [vmem:[#allocation3 + $0x18] sm:$0xff] %vm642, %v4755
      %4783 = vst.msk [vmem:[#allocation3 + $0x20] sm:$0xff] %vm642, %v4756
      %4784 = vst.msk [vmem:[#allocation3 + $0x28] sm:$0xff] %vm642, %v4757
      %4785 = vst.msk [vmem:[#allocation3 + $0x30] sm:$0xff] %vm642, %v4758
      %4786 = vst.msk [vmem:[#allocation3 + $0x38] sm:$0xff] %vm642, %v4759
      %4787 = vst.msk [vmem:[#allocation3 + $0x40] sm:$0xff] %vm642, %v4760
      %4788 = vst.msk [vmem:[#allocation3 + $0x48] sm:$0xff] %vm642, %v4761
      %4789 = vst.msk [vmem:[#allocation3 + $0x50] sm:$0xff] %vm642, %v4762
      %4790 = vst.msk [vmem:[#allocation3 + $0x58] sm:$0xff] %vm642, %v4763
      %4791 = vst.msk [vmem:[#allocation3 + $0x60] sm:$0xff] %vm642, %v4764
      %4792 = vst.msk [vmem:[#allocation3 + $0x68] sm:$0xff] %vm642, %v4765
      %4793 = vst.msk [vmem:[#allocation3 + $0x70] sm:$0xff] %vm642, %v4766
      %4794 = vst.msk [vmem:[#allocation3 + $0x78] sm:$0xff] %vm642, %v4767
      %4795 = vst.msk [vmem:[#allocation3 + $0x80] sm:$0xff] %vm642, %v4768
      %4796 = vst.msk [vmem:[#allocation3 + $0x88] sm:$0xff] %vm642, %v4769
      %4797 = vst.msk [vmem:[#allocation3 + $0x90] sm:$0xff] %vm642, %v4770
      %4798 = vst.msk [vmem:[#allocation3 + $0x98] sm:$0xff] %vm642, %v4771
      %4799 = vst.msk [vmem:[#allocation3 + $0xa0] sm:$0xff] %vm642, %v4772
      %4800 = vst.msk [vmem:[#allocation3 + $0xa8] sm:$0xff] %vm642, %v4773
      %4801 = vst.msk [vmem:[#allocation3 + $0xb0] sm:$0xff] %vm642, %v4774
      %4802 = vst.msk [vmem:[#allocation3 + $0xb8] sm:$0xff] %vm642, %v4775
      %4803 = vst.msk [vmem:[#allocation3 + $0xc0] sm:$0xff] %vm642, %v4776
      %4804 = vst.msk [vmem:[#allocation3 + $0xc8] sm:$0xff] %vm642, %v4777
      %4805 = vst.msk [vmem:[#allocation3 + $0xd0] sm:$0xff] %vm642, %v4778
      %v4806 = vld [vmem:[#allocation2 + $0x350] sm:$0xff]
      %v4807 = vld [vmem:[#allocation2 + $0x358] sm:$0xff]
      %v4808 = vld [vmem:[#allocation2 + $0x360] sm:$0xff]
      %v4809 = vld [vmem:[#allocation2 + $0x368] sm:$0xff]
      %v4810 = vld [vmem:[#allocation2 + $0x370] sm:$0xff]
      %v4811 = vld [vmem:[#allocation2 + $0x378] sm:$0xff]
      %v4812 = vld [vmem:[#allocation2 + $0x380] sm:$0xff]
      %v4813 = vld [vmem:[#allocation2 + $0x388] sm:$0xff]
      %v4814 = vld [vmem:[#allocation2 + $0x390] sm:$0xff]
      %v4815 = vld [vmem:[#allocation2 + $0x398] sm:$0xff]
      %v4816 = vld [vmem:[#allocation2 + $0x3a0] sm:$0xff]
      %v4817 = vld [vmem:[#allocation2 + $0x3a8] sm:$0xff]
      %v4818 = vld [vmem:[#allocation2 + $0x3b0] sm:$0xff]
      %v4819 = vld [vmem:[#allocation2 + $0x3b8] sm:$0xff]
      %v4820 = vld [vmem:[#allocation2 + $0x3c0] sm:$0xff]
      %v4821 = vld [vmem:[#allocation2 + $0x3c8] sm:$0xff]
      %v4822 = vld [vmem:[#allocation2 + $0x3d0] sm:$0xff]
      %v4823 = vld [vmem:[#allocation2 + $0x3d8] sm:$0xff]
      %v4824 = vld [vmem:[#allocation2 + $0x3e0] sm:$0xff]
      %v4825 = vld [vmem:[#allocation2 + $0x3e8] sm:$0xff]
      %v4826 = vld [vmem:[#allocation2 + $0x3f0] sm:$0xff]
      %v4827 = vld [vmem:[#allocation2 + $0x3f8] sm:$0xff]
      %v4828 = vld [vmem:[#allocation2 + $0x400] sm:$0xff]
      %v4829 = vld [vmem:[#allocation2 + $0x408] sm:$0xff]
      %v4830 = vld [vmem:[#allocation2 + $0x410] sm:$0xff]
      %v4831 = vld [vmem:[#allocation2 + $0x418] sm:$0xff]
      %v4832 = vld [vmem:[#allocation2 + $0x420] sm:$0xff]
      %v4833 = vld [vmem:[%s3 + $0xe0] sm:$0xff]
      %v4834 = vld [vmem:[%s3 + $0xe8] sm:$0xff]
      %v4835 = vld [vmem:[%s3 + $0xf0] sm:$0xff]
      %v4836 = vld [vmem:[%s3 + $0xf8] sm:$0xff]
      %v4838 = vsel %vm1968, %v4806, 0
      %v4841 = vsel %vm1968, %v4807, 0
      %v4844 = vsel %vm1968, %v4808, 0
      %v4847 = vsel %vm1968, %v4809, 0
      %v4850 = vsel %vm1968, %v4810, 0
      %v4853 = vsel %vm1968, %v4811, 0
      %v4856 = vsel %vm1968, %v4812, 0
      %v4859 = vsel %vm1968, %v4813, 0
      %v4862 = vsel %vm1968, %v4814, 0
      %v4865 = vsel %vm1968, %v4815, 0
      %v4868 = vsel %vm1968, %v4816, 0
      %v4871 = vsel %vm1968, %v4817, 0
      %v4874 = vsel %vm1968, %v4818, 0
      %v4877 = vsel %vm1968, %v4819, 0
      %v4880 = vsel %vm1968, %v4820, 0
      %v4883 = vsel %vm1968, %v4821, 0
      %v4886 = vsel %vm1968, %v4822, 0
      %v4889 = vsel %vm1968, %v4823, 0
      %v4892 = vsel %vm1968, %v4824, 0
      %v4895 = vsel %vm1968, %v4825, 0
      %v4898 = vsel %vm1968, %v4826, 0
      %v4901 = vsel %vm1968, %v4827, 0
      %v4904 = vsel %vm1968, %v4828, 0
      %v4907 = vsel %vm1968, %v4829, 0
      %v4910 = vsel %vm1968, %v4830, 0
      %v4913 = vsel %vm1968, %v4831, 0
      %v4916 = vsel %vm1968, %v4832, 0
      %4918 = vmatprep.subr.mxu0 0.0
      %4919 = vmatpush1.msra.mxu0 0.0
      %4920 = vmatprep.subr.mxu0 0.0
      %4921 = vmatpush1.msra.mxu0 0.0
      %4922 = vmatprep.subr.mxu0 0.0
      %4923 = vmatpush1.msra.mxu0 0.0
      %4924 = vmatprep.subr.mxu0 0.0
      %4925 = vmatpush1.msra.mxu0 0.0
      %4926 = vmatprep.subr.mxu0 0.0
      %4927 = vmatpush1.msra.mxu0 0.0
      %4928 = vmatprep.subr.mxu0 0.0
      %4929 = vmatpush1.msra.mxu0 0.0
      %4930 = vmatprep.subr.mxu0 0.0
      %4931 = vmatpush1.msra.mxu0 0.0
      %4932 = vmatprep.subr.mxu0 0.0
      %4933 = vmatpush1.msra.mxu0 0.0
      %4934 = vmatprep.subr.mxu0 0.0
      %4935 = vmatpush1.msra.mxu0 0.0
      %4936 = vmatprep.subr.mxu0 0.0
      %4937 = vmatpush1.msra.mxu0 0.0
      %4938 = vmatprep.subr.mxu0 0.0
      %4939 = vmatpush1.msra.mxu0 0.0
      %4940 = vmatprep.subr.mxu0 0.0
      %4941 = vmatpush1.msra.mxu0 0.0
      %4942 = vmatprep.subr.mxu0 0.0
      %4943 = vmatpush1.msra.mxu0 %v4836
      %4944 = vmatprep.subr.mxu0 0.0
      %4945 = vmatpush1.msra.mxu0 %v4835
      %4946 = vmatprep.subr.mxu0 0.0
      %4947 = vmatpush1.msra.mxu0 %v4834
      %4948 = vmatprep.subr.mxu0 0.0
      %4949 = vmatpush1.msra.mxu0 %v4833
      %4950 = vmatprep.subr.mxu0 0.0
      %4951 = vmatpush2.msra.mxu0 0.0
      %4952 = vmatprep.subr.mxu0 0.0
      %4953 = vmatpush2.msra.mxu0 0.0
      %4954 = vmatprep.subr.mxu0 0.0
      %4955 = vmatpush2.msra.mxu0 0.0
      %4956 = vmatprep.subr.mxu0 0.0
      %4957 = vmatpush2.msra.mxu0 0.0
      %4958 = vmatprep.subr.mxu0 0.0
      %4959 = vmatpush2.msra.mxu0 0.0
      %4960 = vmatprep.subr.mxu0 0.0
      %4961 = vmatpush2.msra.mxu0 0.0
      %4962 = vmatprep.subr.mxu0 0.0
      %4963 = vmatpush2.msra.mxu0 0.0
      %4964 = vmatprep.subr.mxu0 0.0
      %4965 = vmatpush2.msra.mxu0 0.0
      %4966 = vmatprep.subr.mxu0 0.0
      %4967 = vmatpush2.msra.mxu0 0.0
      %4968 = vmatprep.subr.mxu0 0.0
      %4969 = vmatpush2.msra.mxu0 0.0
      %4970 = vmatprep.subr.mxu0 0.0
      %4971 = vmatpush2.msra.mxu0 0.0
      %4972 = vmatprep.subr.mxu0 0.0
      %4973 = vmatpush2.msra.mxu0 0.0
      %4974 = vmatprep.subr.mxu0 0.0
      %4975 = vmatpush2.msra.mxu0 0.0
      %4976 = vmatprep.subr.mxu0 0.0
      %4977 = vmatpush2.msra.mxu0 0.0
      %4978 = vmatprep.subr.mxu0 0.0
      %4979 = vmatpush2.msra.mxu0 0.0
      %4980 = vmatprep.subr.mxu0 0.0
      %4981 = vmatpush2.msra.mxu0 0.0
      %4982 = vmatprep.mubr.f32.mxu0 0.0
      %4983 = vmatmul.mubr.f32.gmra.mxu0 %v4838
      %v4984 = vpop.f32.mrf.mxu0
      %v4985 = vadd.f32 0.0, %v4984
      %v4986 = vpop.f32.mrf.mxu0
      %4987 = vmatprep.mubr.f32.mxu0 0.0
      %4988 = vmatmul.mubr.f32.gmra.mxu0 %v4841
      %v4989 = vpop.f32.mrf.mxu0
      %v4990 = vadd.f32 0.0, %v4989
      %v4991 = vpop.f32.mrf.mxu0
      %4992 = vmatprep.mubr.f32.mxu0 0.0
      %4993 = vmatmul.mubr.f32.gmra.mxu0 %v4844
      %v4994 = vpop.f32.mrf.mxu0
      %v4995 = vadd.f32 0.0, %v4994
      %v4996 = vpop.f32.mrf.mxu0
      %4997 = vmatprep.mubr.f32.mxu0 0.0
      %4998 = vmatmul.mubr.f32.gmra.mxu0 %v4847
      %v4999 = vpop.f32.mrf.mxu0
      %v5000 = vadd.f32 0.0, %v4999
      %v5001 = vpop.f32.mrf.mxu0
      %5002 = vmatprep.mubr.f32.mxu0 0.0
      %5003 = vmatmul.mubr.f32.gmra.mxu0 %v4850
      %v5004 = vpop.f32.mrf.mxu0
      %v5005 = vadd.f32 0.0, %v5004
      %v5006 = vpop.f32.mrf.mxu0
      %5007 = vmatprep.mubr.f32.mxu0 0.0
      %5008 = vmatmul.mubr.f32.gmra.mxu0 %v4853
      %v5009 = vpop.f32.mrf.mxu0
      %v5010 = vadd.f32 0.0, %v5009
      %v5011 = vpop.f32.mrf.mxu0
      %5012 = vmatprep.mubr.f32.mxu0 0.0
      %5013 = vmatmul.mubr.f32.gmra.mxu0 %v4856
      %v5014 = vpop.f32.mrf.mxu0
      %v5015 = vadd.f32 0.0, %v5014
      %v5016 = vpop.f32.mrf.mxu0
      %5017 = vmatprep.mubr.f32.mxu0 0.0
      %5018 = vmatmul.mubr.f32.gmra.mxu0 %v4859
      %v5019 = vpop.f32.mrf.mxu0
      %v5020 = vadd.f32 0.0, %v5019
      %v5021 = vpop.f32.mrf.mxu0
      %5022 = vmatprep.mubr.f32.mxu0 0.0
      %5023 = vmatmul.mubr.f32.gmra.mxu0 %v4862
      %v5024 = vpop.f32.mrf.mxu0
      %v5025 = vadd.f32 0.0, %v5024
      %v5026 = vpop.f32.mrf.mxu0
      %5027 = vmatprep.mubr.f32.mxu0 0.0
      %5028 = vmatmul.mubr.f32.gmra.mxu0 %v4865
      %v5029 = vpop.f32.mrf.mxu0
      %v5030 = vadd.f32 0.0, %v5029
      %v5031 = vpop.f32.mrf.mxu0
      %5032 = vmatprep.mubr.f32.mxu0 0.0
      %5033 = vmatmul.mubr.f32.gmra.mxu0 %v4868
      %v5034 = vpop.f32.mrf.mxu0
      %v5035 = vadd.f32 0.0, %v5034
      %v5036 = vpop.f32.mrf.mxu0
      %5037 = vmatprep.mubr.f32.mxu0 0.0
      %5038 = vmatmul.mubr.f32.gmra.mxu0 %v4871
      %v5039 = vpop.f32.mrf.mxu0
      %v5040 = vadd.f32 0.0, %v5039
      %v5041 = vpop.f32.mrf.mxu0
      %5042 = vmatprep.mubr.f32.mxu0 0.0
      %5043 = vmatmul.mubr.f32.gmra.mxu0 %v4874
      %v5044 = vpop.f32.mrf.mxu0
      %v5045 = vadd.f32 0.0, %v5044
      %v5046 = vpop.f32.mrf.mxu0
      %5047 = vmatprep.mubr.f32.mxu0 0.0
      %5048 = vmatmul.mubr.f32.gmra.mxu0 %v4877
      %v5049 = vpop.f32.mrf.mxu0
      %v5050 = vadd.f32 0.0, %v5049
      %v5051 = vpop.f32.mrf.mxu0
      %5052 = vmatprep.mubr.f32.mxu0 0.0
      %5053 = vmatmul.mubr.f32.gmra.mxu0 %v4880
      %v5054 = vpop.f32.mrf.mxu0
      %v5055 = vadd.f32 0.0, %v5054
      %v5056 = vpop.f32.mrf.mxu0
      %5057 = vmatprep.mubr.f32.mxu0 0.0
      %5058 = vmatmul.mubr.f32.gmra.mxu0 %v4883
      %v5059 = vpop.f32.mrf.mxu0
      %v5060 = vadd.f32 0.0, %v5059
      %v5061 = vpop.f32.mrf.mxu0
      %5062 = vmatprep.mubr.f32.mxu0 0.0
      %5063 = vmatmul.mubr.f32.gmra.mxu0 %v4886
      %v5064 = vpop.f32.mrf.mxu0
      %v5065 = vadd.f32 0.0, %v5064
      %v5066 = vpop.f32.mrf.mxu0
      %5067 = vmatprep.mubr.f32.mxu0 0.0
      %5068 = vmatmul.mubr.f32.gmra.mxu0 %v4889
      %v5069 = vpop.f32.mrf.mxu0
      %v5070 = vadd.f32 0.0, %v5069
      %v5071 = vpop.f32.mrf.mxu0
      %5072 = vmatprep.mubr.f32.mxu0 0.0
      %5073 = vmatmul.mubr.f32.gmra.mxu0 %v4892
      %v5074 = vpop.f32.mrf.mxu0
      %v5075 = vadd.f32 0.0, %v5074
      %v5076 = vpop.f32.mrf.mxu0
      %5077 = vmatprep.mubr.f32.mxu0 0.0
      %5078 = vmatmul.mubr.f32.gmra.mxu0 %v4895
      %v5079 = vpop.f32.mrf.mxu0
      %v5080 = vadd.f32 0.0, %v5079
      %v5081 = vpop.f32.mrf.mxu0
      %5082 = vmatprep.mubr.f32.mxu0 0.0
      %5083 = vmatmul.mubr.f32.gmra.mxu0 %v4898
      %v5084 = vpop.f32.mrf.mxu0
      %v5085 = vadd.f32 0.0, %v5084
      %v5086 = vpop.f32.mrf.mxu0
      %5087 = vmatprep.mubr.f32.mxu0 0.0
      %5088 = vmatmul.mubr.f32.gmra.mxu0 %v4901
      %v5089 = vpop.f32.mrf.mxu0
      %v5090 = vadd.f32 0.0, %v5089
      %v5091 = vpop.f32.mrf.mxu0
      %5092 = vmatprep.mubr.f32.mxu0 0.0
      %5093 = vmatmul.mubr.f32.gmra.mxu0 %v4904
      %v5094 = vpop.f32.mrf.mxu0
      %v5095 = vadd.f32 0.0, %v5094
      %v5096 = vpop.f32.mrf.mxu0
      %5097 = vmatprep.mubr.f32.mxu0 0.0
      %5098 = vmatmul.mubr.f32.gmra.mxu0 %v4907
      %v5099 = vpop.f32.mrf.mxu0
      %v5100 = vadd.f32 0.0, %v5099
      %v5101 = vpop.f32.mrf.mxu0
      %5102 = vmatprep.mubr.f32.mxu0 0.0
      %5103 = vmatmul.mubr.f32.gmra.mxu0 %v4910
      %v5104 = vpop.f32.mrf.mxu0
      %v5105 = vadd.f32 0.0, %v5104
      %v5106 = vpop.f32.mrf.mxu0
      %5107 = vmatprep.mubr.f32.mxu0 0.0
      %5108 = vmatmul.mubr.f32.gmra.mxu0 %v4913
      %v5109 = vpop.f32.mrf.mxu0
      %v5110 = vadd.f32 0.0, %v5109
      %v5111 = vpop.f32.mrf.mxu0
      %5112 = vmatprep.mubr.f32.mxu0 0.0
      %5113 = vmatmul.mubr.f32.gmra.mxu0 %v4916
      %v5114 = vpop.f32.mrf.mxu0
      %v5115 = vadd.f32 0.0, %v5114
      %v5116 = vpop.f32.mrf.mxu0
      %5117 = vdwg.mxu0
      %v5118 = vld [vmem:[#allocation3] sm:$0xff]
      %v5119 = vld [vmem:[#allocation3 + $0x8] sm:$0xff]
      %v5120 = vld [vmem:[#allocation3 + $0x10] sm:$0xff]
      %v5121 = vld [vmem:[#allocation3 + $0x18] sm:$0xff]
      %v5122 = vld [vmem:[#allocation3 + $0x20] sm:$0xff]
      %v5123 = vld [vmem:[#allocation3 + $0x28] sm:$0xff]
      %v5124 = vld [vmem:[#allocation3 + $0x30] sm:$0xff]
      %v5125 = vld [vmem:[#allocation3 + $0x38] sm:$0xff]
      %v5126 = vld [vmem:[#allocation3 + $0x40] sm:$0xff]
      %v5127 = vld [vmem:[#allocation3 + $0x48] sm:$0xff]
      %v5128 = vld [vmem:[#allocation3 + $0x50] sm:$0xff]
      %v5129 = vld [vmem:[#allocation3 + $0x58] sm:$0xff]
      %v5130 = vld [vmem:[#allocation3 + $0x60] sm:$0xff]
      %v5131 = vld [vmem:[#allocation3 + $0x68] sm:$0xff]
      %v5132 = vld [vmem:[#allocation3 + $0x70] sm:$0xff]
      %v5133 = vld [vmem:[#allocation3 + $0x78] sm:$0xff]
      %v5134 = vld [vmem:[#allocation3 + $0x80] sm:$0xff]
      %v5135 = vld [vmem:[#allocation3 + $0x88] sm:$0xff]
      %v5136 = vld [vmem:[#allocation3 + $0x90] sm:$0xff]
      %v5137 = vld [vmem:[#allocation3 + $0x98] sm:$0xff]
      %v5138 = vld [vmem:[#allocation3 + $0xa0] sm:$0xff]
      %v5139 = vld [vmem:[#allocation3 + $0xa8] sm:$0xff]
      %v5140 = vld [vmem:[#allocation3 + $0xb0] sm:$0xff]
      %v5141 = vld [vmem:[#allocation3 + $0xb8] sm:$0xff]
      %v5142 = vld [vmem:[#allocation3 + $0xc0] sm:$0xff]
      %v5143 = vld [vmem:[#allocation3 + $0xc8] sm:$0xff]
      %v5144 = vld [vmem:[#allocation3 + $0xd0] sm:$0xff]
      %v5145 = vadd.f32 %v5118, %v4985
      %v5146 = vadd.f32 %v5119, %v4990
      %v5147 = vadd.f32 %v5120, %v4995
      %v5148 = vadd.f32 %v5121, %v5000
      %v5149 = vadd.f32 %v5122, %v5005
      %v5150 = vadd.f32 %v5123, %v5010
      %v5151 = vadd.f32 %v5124, %v5015
      %v5152 = vadd.f32 %v5125, %v5020
      %v5153 = vadd.f32 %v5126, %v5025
      %v5154 = vadd.f32 %v5127, %v5030
      %v5155 = vadd.f32 %v5128, %v5035
      %v5156 = vadd.f32 %v5129, %v5040
      %v5157 = vadd.f32 %v5130, %v5045
      %v5158 = vadd.f32 %v5131, %v5050
      %v5159 = vadd.f32 %v5132, %v5055
      %v5160 = vadd.f32 %v5133, %v5060
      %v5161 = vadd.f32 %v5134, %v5065
      %v5162 = vadd.f32 %v5135, %v5070
      %v5163 = vadd.f32 %v5136, %v5075
      %v5164 = vadd.f32 %v5137, %v5080
      %v5165 = vadd.f32 %v5138, %v5085
      %v5166 = vadd.f32 %v5139, %v5090
      %v5167 = vadd.f32 %v5140, %v5095
      %v5168 = vadd.f32 %v5141, %v5100
      %v5169 = vadd.f32 %v5142, %v5105
      %v5170 = vadd.f32 %v5143, %v5110
      %v5171 = vadd.f32 %v5144, %v5115
      %5172 = vst.msk [vmem:[#allocation3] sm:$0xff] %vm642, %v5145
      %5173 = vst.msk [vmem:[#allocation3 + $0x8] sm:$0xff] %vm642, %v5146
      %5174 = vst.msk [vmem:[#allocation3 + $0x10] sm:$0xff] %vm642, %v5147
      %5175 = vst.msk [vmem:[#allocation3 + $0x18] sm:$0xff] %vm642, %v5148
      %5176 = vst.msk [vmem:[#allocation3 + $0x20] sm:$0xff] %vm642, %v5149
      %5177 = vst.msk [vmem:[#allocation3 + $0x28] sm:$0xff] %vm642, %v5150
      %5178 = vst.msk [vmem:[#allocation3 + $0x30] sm:$0xff] %vm642, %v5151
      %5179 = vst.msk [vmem:[#allocation3 + $0x38] sm:$0xff] %vm642, %v5152
      %5180 = vst.msk [vmem:[#allocation3 + $0x40] sm:$0xff] %vm642, %v5153
      %5181 = vst.msk [vmem:[#allocation3 + $0x48] sm:$0xff] %vm642, %v5154
      %5182 = vst.msk [vmem:[#allocation3 + $0x50] sm:$0xff] %vm642, %v5155
      %5183 = vst.msk [vmem:[#allocation3 + $0x58] sm:$0xff] %vm642, %v5156
      %5184 = vst.msk [vmem:[#allocation3 + $0x60] sm:$0xff] %vm642, %v5157
      %5185 = vst.msk [vmem:[#allocation3 + $0x68] sm:$0xff] %vm642, %v5158
      %5186 = vst.msk [vmem:[#allocation3 + $0x70] sm:$0xff] %vm642, %v5159
      %5187 = vst.msk [vmem:[#allocation3 + $0x78] sm:$0xff] %vm642, %v5160
      %5188 = vst.msk [vmem:[#allocation3 + $0x80] sm:$0xff] %vm642, %v5161
      %5189 = vst.msk [vmem:[#allocation3 + $0x88] sm:$0xff] %vm642, %v5162
      %5190 = vst.msk [vmem:[#allocation3 + $0x90] sm:$0xff] %vm642, %v5163
      %5191 = vst.msk [vmem:[#allocation3 + $0x98] sm:$0xff] %vm642, %v5164
      %5192 = vst.msk [vmem:[#allocation3 + $0xa0] sm:$0xff] %vm642, %v5165
      %5193 = vst.msk [vmem:[#allocation3 + $0xa8] sm:$0xff] %vm642, %v5166
      %5194 = vst.msk [vmem:[#allocation3 + $0xb0] sm:$0xff] %vm642, %v5167
      %5195 = vst.msk [vmem:[#allocation3 + $0xb8] sm:$0xff] %vm642, %v5168
      %5196 = vst.msk [vmem:[#allocation3 + $0xc0] sm:$0xff] %vm642, %v5169
      %5197 = vst.msk [vmem:[#allocation3 + $0xc8] sm:$0xff] %vm642, %v5170
      %5198 = vst.msk [vmem:[#allocation3 + $0xd0] sm:$0xff] %vm642, %v5171
      %v5199 = vld [vmem:[#allocation2 + $0x38] sm:$0xff]
      %v5200 = vld [vmem:[#allocation2 + $0x40] sm:$0xff]
      %v5201 = vld [vmem:[#allocation2 + $0x48] sm:$0xff]
      %v5202 = vld [vmem:[#allocation2 + $0x50] sm:$0xff]
      %v5203 = vld [vmem:[#allocation2 + $0x58] sm:$0xff]
      %v5204 = vld [vmem:[#allocation2 + $0x60] sm:$0xff]
      %v5205 = vld [vmem:[#allocation2 + $0x68] sm:$0xff]
      %v5206 = vld [vmem:[#allocation2 + $0x70] sm:$0xff]
      %v5207 = vld [vmem:[#allocation2 + $0x78] sm:$0xff]
      %v5208 = vld [vmem:[#allocation2 + $0x80] sm:$0xff]
      %v5209 = vld [vmem:[#allocation2 + $0x88] sm:$0xff]
      %v5210 = vld [vmem:[#allocation2 + $0x90] sm:$0xff]
      %v5211 = vld [vmem:[#allocation2 + $0x98] sm:$0xff]
      %v5212 = vld [vmem:[#allocation2 + $0xa0] sm:$0xff]
      %v5213 = vld [vmem:[#allocation2 + $0xa8] sm:$0xff]
      %v5214 = vld [vmem:[#allocation2 + $0xb0] sm:$0xff]
      %v5215 = vld [vmem:[#allocation2 + $0xb8] sm:$0xff]
      %v5216 = vld [vmem:[#allocation2 + $0xc0] sm:$0xff]
      %v5217 = vld [vmem:[#allocation2 + $0xc8] sm:$0xff]
      %v5218 = vld [vmem:[#allocation2 + $0xd0] sm:$0xff]
      %v5219 = vld [vmem:[#allocation2 + $0xd8] sm:$0xff]
      %v5220 = vld [vmem:[#allocation2 + $0xe0] sm:$0xff]
      %v5221 = vld [vmem:[#allocation2 + $0xe8] sm:$0xff]
      %v5222 = vld [vmem:[#allocation2 + $0xf0] sm:$0xff]
      %v5223 = vld [vmem:[#allocation2 + $0xf8] sm:$0xff]
      %v5224 = vld [vmem:[#allocation2 + $0x100] sm:$0xff]
      %v5225 = vld [vmem:[#allocation2 + $0x108] sm:$0xff]
      %v5226 = vld [vmem:[%s3 + $0x100] sm:$0xff]
      %v5227 = vld [vmem:[%s3 + $0x108] sm:$0xff]
      %v5228 = vld [vmem:[%s3 + $0x110] sm:$0xff]
      %v5229 = vld [vmem:[%s3 + $0x118] sm:$0xff]
      %v5231 = vsel %vm1968, %v5199, 0
      %v5234 = vsel %vm1968, %v5200, 0
      %v5237 = vsel %vm1968, %v5201, 0
      %v5240 = vsel %vm1968, %v5202, 0
      %v5243 = vsel %vm1968, %v5203, 0
      %v5246 = vsel %vm1968, %v5204, 0
      %v5249 = vsel %vm1968, %v5205, 0
      %v5252 = vsel %vm1968, %v5206, 0
      %v5255 = vsel %vm1968, %v5207, 0
      %v5258 = vsel %vm1968, %v5208, 0
      %v5261 = vsel %vm1968, %v5209, 0
      %v5264 = vsel %vm1968, %v5210, 0
      %v5267 = vsel %vm1968, %v5211, 0
      %v5270 = vsel %vm1968, %v5212, 0
      %v5273 = vsel %vm1968, %v5213, 0
      %v5276 = vsel %vm1968, %v5214, 0
      %v5279 = vsel %vm1968, %v5215, 0
      %v5282 = vsel %vm1968, %v5216, 0
      %v5285 = vsel %vm1968, %v5217, 0
      %v5288 = vsel %vm1968, %v5218, 0
      %v5291 = vsel %vm1968, %v5219, 0
      %v5294 = vsel %vm1968, %v5220, 0
      %v5297 = vsel %vm1968, %v5221, 0
      %v5300 = vsel %vm1968, %v5222, 0
      %v5303 = vsel %vm1968, %v5223, 0
      %v5306 = vsel %vm1968, %v5224, 0
      %v5309 = vsel %vm1968, %v5225, 0
      %5311 = vmatprep.subr.mxu0 0.0
      %5312 = vmatpush1.msra.mxu0 0.0
      %5313 = vmatprep.subr.mxu0 0.0
      %5314 = vmatpush1.msra.mxu0 0.0
      %5315 = vmatprep.subr.mxu0 0.0
      %5316 = vmatpush1.msra.mxu0 0.0
      %5317 = vmatprep.subr.mxu0 0.0
      %5318 = vmatpush1.msra.mxu0 0.0
      %5319 = vmatprep.subr.mxu0 0.0
      %5320 = vmatpush1.msra.mxu0 0.0
      %5321 = vmatprep.subr.mxu0 0.0
      %5322 = vmatpush1.msra.mxu0 0.0
      %5323 = vmatprep.subr.mxu0 0.0
      %5324 = vmatpush1.msra.mxu0 0.0
      %5325 = vmatprep.subr.mxu0 0.0
      %5326 = vmatpush1.msra.mxu0 0.0
      %5327 = vmatprep.subr.mxu0 0.0
      %5328 = vmatpush1.msra.mxu0 0.0
      %5329 = vmatprep.subr.mxu0 0.0
      %5330 = vmatpush1.msra.mxu0 0.0
      %5331 = vmatprep.subr.mxu0 0.0
      %5332 = vmatpush1.msra.mxu0 0.0
      %5333 = vmatprep.subr.mxu0 0.0
      %5334 = vmatpush1.msra.mxu0 0.0
      %5335 = vmatprep.subr.mxu0 0.0
      %5336 = vmatpush1.msra.mxu0 %v5229
      %5337 = vmatprep.subr.mxu0 0.0
      %5338 = vmatpush1.msra.mxu0 %v5228
      %5339 = vmatprep.subr.mxu0 0.0
      %5340 = vmatpush1.msra.mxu0 %v5227
      %5341 = vmatprep.subr.mxu0 0.0
      %5342 = vmatpush1.msra.mxu0 %v5226
      %5343 = vmatprep.subr.mxu0 0.0
      %5344 = vmatpush2.msra.mxu0 0.0
      %5345 = vmatprep.subr.mxu0 0.0
      %5346 = vmatpush2.msra.mxu0 0.0
      %5347 = vmatprep.subr.mxu0 0.0
      %5348 = vmatpush2.msra.mxu0 0.0
      %5349 = vmatprep.subr.mxu0 0.0
      %5350 = vmatpush2.msra.mxu0 0.0
      %5351 = vmatprep.subr.mxu0 0.0
      %5352 = vmatpush2.msra.mxu0 0.0
      %5353 = vmatprep.subr.mxu0 0.0
      %5354 = vmatpush2.msra.mxu0 0.0
      %5355 = vmatprep.subr.mxu0 0.0
      %5356 = vmatpush2.msra.mxu0 0.0
      %5357 = vmatprep.subr.mxu0 0.0
      %5358 = vmatpush2.msra.mxu0 0.0
      %5359 = vmatprep.subr.mxu0 0.0
      %5360 = vmatpush2.msra.mxu0 0.0
      %5361 = vmatprep.subr.mxu0 0.0
      %5362 = vmatpush2.msra.mxu0 0.0
      %5363 = vmatprep.subr.mxu0 0.0
      %5364 = vmatpush2.msra.mxu0 0.0
      %5365 = vmatprep.subr.mxu0 0.0
      %5366 = vmatpush2.msra.mxu0 0.0
      %5367 = vmatprep.subr.mxu0 0.0
      %5368 = vmatpush2.msra.mxu0 0.0
      %5369 = vmatprep.subr.mxu0 0.0
      %5370 = vmatpush2.msra.mxu0 0.0
      %5371 = vmatprep.subr.mxu0 0.0
      %5372 = vmatpush2.msra.mxu0 0.0
      %5373 = vmatprep.subr.mxu0 0.0
      %5374 = vmatpush2.msra.mxu0 0.0
      %5375 = vmatprep.mubr.f32.mxu0 0.0
      %5376 = vmatmul.mubr.f32.gmra.mxu0 %v5231
      %v5377 = vpop.f32.mrf.mxu0
      %v5378 = vadd.f32 0.0, %v5377
      %v5379 = vpop.f32.mrf.mxu0
      %5380 = vmatprep.mubr.f32.mxu0 0.0
      %5381 = vmatmul.mubr.f32.gmra.mxu0 %v5234
      %v5382 = vpop.f32.mrf.mxu0
      %v5383 = vadd.f32 0.0, %v5382
      %v5384 = vpop.f32.mrf.mxu0
      %5385 = vmatprep.mubr.f32.mxu0 0.0
      %5386 = vmatmul.mubr.f32.gmra.mxu0 %v5237
      %v5387 = vpop.f32.mrf.mxu0
      %v5388 = vadd.f32 0.0, %v5387
      %v5389 = vpop.f32.mrf.mxu0
      %5390 = vmatprep.mubr.f32.mxu0 0.0
      %5391 = vmatmul.mubr.f32.gmra.mxu0 %v5240
      %v5392 = vpop.f32.mrf.mxu0
      %v5393 = vadd.f32 0.0, %v5392
      %v5394 = vpop.f32.mrf.mxu0
      %5395 = vmatprep.mubr.f32.mxu0 0.0
      %5396 = vmatmul.mubr.f32.gmra.mxu0 %v5243
      %v5397 = vpop.f32.mrf.mxu0
      %v5398 = vadd.f32 0.0, %v5397
      %v5399 = vpop.f32.mrf.mxu0
      %5400 = vmatprep.mubr.f32.mxu0 0.0
      %5401 = vmatmul.mubr.f32.gmra.mxu0 %v5246
      %v5402 = vpop.f32.mrf.mxu0
      %v5403 = vadd.f32 0.0, %v5402
      %v5404 = vpop.f32.mrf.mxu0
      %5405 = vmatprep.mubr.f32.mxu0 0.0
      %5406 = vmatmul.mubr.f32.gmra.mxu0 %v5249
      %v5407 = vpop.f32.mrf.mxu0
      %v5408 = vadd.f32 0.0, %v5407
      %v5409 = vpop.f32.mrf.mxu0
      %5410 = vmatprep.mubr.f32.mxu0 0.0
      %5411 = vmatmul.mubr.f32.gmra.mxu0 %v5252
      %v5412 = vpop.f32.mrf.mxu0
      %v5413 = vadd.f32 0.0, %v5412
      %v5414 = vpop.f32.mrf.mxu0
      %5415 = vmatprep.mubr.f32.mxu0 0.0
      %5416 = vmatmul.mubr.f32.gmra.mxu0 %v5255
      %v5417 = vpop.f32.mrf.mxu0
      %v5418 = vadd.f32 0.0, %v5417
      %v5419 = vpop.f32.mrf.mxu0
      %5420 = vmatprep.mubr.f32.mxu0 0.0
      %5421 = vmatmul.mubr.f32.gmra.mxu0 %v5258
      %v5422 = vpop.f32.mrf.mxu0
      %v5423 = vadd.f32 0.0, %v5422
      %v5424 = vpop.f32.mrf.mxu0
      %5425 = vmatprep.mubr.f32.mxu0 0.0
      %5426 = vmatmul.mubr.f32.gmra.mxu0 %v5261
      %v5427 = vpop.f32.mrf.mxu0
      %v5428 = vadd.f32 0.0, %v5427
      %v5429 = vpop.f32.mrf.mxu0
      %5430 = vmatprep.mubr.f32.mxu0 0.0
      %5431 = vmatmul.mubr.f32.gmra.mxu0 %v5264
      %v5432 = vpop.f32.mrf.mxu0
      %v5433 = vadd.f32 0.0, %v5432
      %v5434 = vpop.f32.mrf.mxu0
      %5435 = vmatprep.mubr.f32.mxu0 0.0
      %5436 = vmatmul.mubr.f32.gmra.mxu0 %v5267
      %v5437 = vpop.f32.mrf.mxu0
      %v5438 = vadd.f32 0.0, %v5437
      %v5439 = vpop.f32.mrf.mxu0
      %5440 = vmatprep.mubr.f32.mxu0 0.0
      %5441 = vmatmul.mubr.f32.gmra.mxu0 %v5270
      %v5442 = vpop.f32.mrf.mxu0
      %v5443 = vadd.f32 0.0, %v5442
      %v5444 = vpop.f32.mrf.mxu0
      %5445 = vmatprep.mubr.f32.mxu0 0.0
      %5446 = vmatmul.mubr.f32.gmra.mxu0 %v5273
      %v5447 = vpop.f32.mrf.mxu0
      %v5448 = vadd.f32 0.0, %v5447
      %v5449 = vpop.f32.mrf.mxu0
      %5450 = vmatprep.mubr.f32.mxu0 0.0
      %5451 = vmatmul.mubr.f32.gmra.mxu0 %v5276
      %v5452 = vpop.f32.mrf.mxu0
      %v5453 = vadd.f32 0.0, %v5452
      %v5454 = vpop.f32.mrf.mxu0
      %5455 = vmatprep.mubr.f32.mxu0 0.0
      %5456 = vmatmul.mubr.f32.gmra.mxu0 %v5279
      %v5457 = vpop.f32.mrf.mxu0
      %v5458 = vadd.f32 0.0, %v5457
      %v5459 = vpop.f32.mrf.mxu0
      %5460 = vmatprep.mubr.f32.mxu0 0.0
      %5461 = vmatmul.mubr.f32.gmra.mxu0 %v5282
      %v5462 = vpop.f32.mrf.mxu0
      %v5463 = vadd.f32 0.0, %v5462
      %v5464 = vpop.f32.mrf.mxu0
      %5465 = vmatprep.mubr.f32.mxu0 0.0
      %5466 = vmatmul.mubr.f32.gmra.mxu0 %v5285
      %v5467 = vpop.f32.mrf.mxu0
      %v5468 = vadd.f32 0.0, %v5467
      %v5469 = vpop.f32.mrf.mxu0
      %5470 = vmatprep.mubr.f32.mxu0 0.0
      %5471 = vmatmul.mubr.f32.gmra.mxu0 %v5288
      %v5472 = vpop.f32.mrf.mxu0
      %v5473 = vadd.f32 0.0, %v5472
      %v5474 = vpop.f32.mrf.mxu0
      %5475 = vmatprep.mubr.f32.mxu0 0.0
      %5476 = vmatmul.mubr.f32.gmra.mxu0 %v5291
      %v5477 = vpop.f32.mrf.mxu0
      %v5478 = vadd.f32 0.0, %v5477
      %v5479 = vpop.f32.mrf.mxu0
      %5480 = vmatprep.mubr.f32.mxu0 0.0
      %5481 = vmatmul.mubr.f32.gmra.mxu0 %v5294
      %v5482 = vpop.f32.mrf.mxu0
      %v5483 = vadd.f32 0.0, %v5482
      %v5484 = vpop.f32.mrf.mxu0
      %5485 = vmatprep.mubr.f32.mxu0 0.0
      %5486 = vmatmul.mubr.f32.gmra.mxu0 %v5297
      %v5487 = vpop.f32.mrf.mxu0
      %v5488 = vadd.f32 0.0, %v5487
      %v5489 = vpop.f32.mrf.mxu0
      %5490 = vmatprep.mubr.f32.mxu0 0.0
      %5491 = vmatmul.mubr.f32.gmra.mxu0 %v5300
      %v5492 = vpop.f32.mrf.mxu0
      %v5493 = vadd.f32 0.0, %v5492
      %v5494 = vpop.f32.mrf.mxu0
      %5495 = vmatprep.mubr.f32.mxu0 0.0
      %5496 = vmatmul.mubr.f32.gmra.mxu0 %v5303
      %v5497 = vpop.f32.mrf.mxu0
      %v5498 = vadd.f32 0.0, %v5497
      %v5499 = vpop.f32.mrf.mxu0
      %5500 = vmatprep.mubr.f32.mxu0 0.0
      %5501 = vmatmul.mubr.f32.gmra.mxu0 %v5306
      %v5502 = vpop.f32.mrf.mxu0
      %v5503 = vadd.f32 0.0, %v5502
      %v5504 = vpop.f32.mrf.mxu0
      %5505 = vmatprep.mubr.f32.mxu0 0.0
      %5506 = vmatmul.mubr.f32.gmra.mxu0 %v5309
      %v5507 = vpop.f32.mrf.mxu0
      %v5508 = vadd.f32 0.0, %v5507
      %v5509 = vpop.f32.mrf.mxu0
      %5510 = vdwg.mxu0
      %v5511 = vld [vmem:[#allocation3] sm:$0xff]
      %v5512 = vld [vmem:[#allocation3 + $0x8] sm:$0xff]
      %v5513 = vld [vmem:[#allocation3 + $0x10] sm:$0xff]
      %v5514 = vld [vmem:[#allocation3 + $0x18] sm:$0xff]
      %v5515 = vld [vmem:[#allocation3 + $0x20] sm:$0xff]
      %v5516 = vld [vmem:[#allocation3 + $0x28] sm:$0xff]
      %v5517 = vld [vmem:[#allocation3 + $0x30] sm:$0xff]
      %v5518 = vld [vmem:[#allocation3 + $0x38] sm:$0xff]
      %v5519 = vld [vmem:[#allocation3 + $0x40] sm:$0xff]
      %v5520 = vld [vmem:[#allocation3 + $0x48] sm:$0xff]
      %v5521 = vld [vmem:[#allocation3 + $0x50] sm:$0xff]
      %v5522 = vld [vmem:[#allocation3 + $0x58] sm:$0xff]
      %v5523 = vld [vmem:[#allocation3 + $0x60] sm:$0xff]
      %v5524 = vld [vmem:[#allocation3 + $0x68] sm:$0xff]
      %v5525 = vld [vmem:[#allocation3 + $0x70] sm:$0xff]
      %v5526 = vld [vmem:[#allocation3 + $0x78] sm:$0xff]
      %v5527 = vld [vmem:[#allocation3 + $0x80] sm:$0xff]
      %v5528 = vld [vmem:[#allocation3 + $0x88] sm:$0xff]
      %v5529 = vld [vmem:[#allocation3 + $0x90] sm:$0xff]
      %v5530 = vld [vmem:[#allocation3 + $0x98] sm:$0xff]
      %v5531 = vld [vmem:[#allocation3 + $0xa0] sm:$0xff]
      %v5532 = vld [vmem:[#allocation3 + $0xa8] sm:$0xff]
      %v5533 = vld [vmem:[#allocation3 + $0xb0] sm:$0xff]
      %v5534 = vld [vmem:[#allocation3 + $0xb8] sm:$0xff]
      %v5535 = vld [vmem:[#allocation3 + $0xc0] sm:$0xff]
      %v5536 = vld [vmem:[#allocation3 + $0xc8] sm:$0xff]
      %v5537 = vld [vmem:[#allocation3 + $0xd0] sm:$0xff]
      %v5538 = vadd.f32 %v5511, %v5378
      %v5539 = vadd.f32 %v5512, %v5383
      %v5540 = vadd.f32 %v5513, %v5388
      %v5541 = vadd.f32 %v5514, %v5393
      %v5542 = vadd.f32 %v5515, %v5398
      %v5543 = vadd.f32 %v5516, %v5403
      %v5544 = vadd.f32 %v5517, %v5408
      %v5545 = vadd.f32 %v5518, %v5413
      %v5546 = vadd.f32 %v5519, %v5418
      %v5547 = vadd.f32 %v5520, %v5423
      %v5548 = vadd.f32 %v5521, %v5428
      %v5549 = vadd.f32 %v5522, %v5433
      %v5550 = vadd.f32 %v5523, %v5438
      %v5551 = vadd.f32 %v5524, %v5443
      %v5552 = vadd.f32 %v5525, %v5448
      %v5553 = vadd.f32 %v5526, %v5453
      %v5554 = vadd.f32 %v5527, %v5458
      %v5555 = vadd.f32 %v5528, %v5463
      %v5556 = vadd.f32 %v5529, %v5468
      %v5557 = vadd.f32 %v5530, %v5473
      %v5558 = vadd.f32 %v5531, %v5478
      %v5559 = vadd.f32 %v5532, %v5483
      %v5560 = vadd.f32 %v5533, %v5488
      %v5561 = vadd.f32 %v5534, %v5493
      %v5562 = vadd.f32 %v5535, %v5498
      %v5563 = vadd.f32 %v5536, %v5503
      %v5564 = vadd.f32 %v5537, %v5508
      %5565 = vst.msk [vmem:[#allocation3] sm:$0xff] %vm642, %v5538
      %5566 = vst.msk [vmem:[#allocation3 + $0x8] sm:$0xff] %vm642, %v5539
      %5567 = vst.msk [vmem:[#allocation3 + $0x10] sm:$0xff] %vm642, %v5540
      %5568 = vst.msk [vmem:[#allocation3 + $0x18] sm:$0xff] %vm642, %v5541
      %5569 = vst.msk [vmem:[#allocation3 + $0x20] sm:$0xff] %vm642, %v5542
      %5570 = vst.msk [vmem:[#allocation3 + $0x28] sm:$0xff] %vm642, %v5543
      %5571 = vst.msk [vmem:[#allocation3 + $0x30] sm:$0xff] %vm642, %v5544
      %5572 = vst.msk [vmem:[#allocation3 + $0x38] sm:$0xff] %vm642, %v5545
      %5573 = vst.msk [vmem:[#allocation3 + $0x40] sm:$0xff] %vm642, %v5546
      %5574 = vst.msk [vmem:[#allocation3 + $0x48] sm:$0xff] %vm642, %v5547
      %5575 = vst.msk [vmem:[#allocation3 + $0x50] sm:$0xff] %vm642, %v5548
      %5576 = vst.msk [vmem:[#allocation3 + $0x58] sm:$0xff] %vm642, %v5549
      %5577 = vst.msk [vmem:[#allocation3 + $0x60] sm:$0xff] %vm642, %v5550
      %5578 = vst.msk [vmem:[#allocation3 + $0x68] sm:$0xff] %vm642, %v5551
      %5579 = vst.msk [vmem:[#allocation3 + $0x70] sm:$0xff] %vm642, %v5552
      %5580 = vst.msk [vmem:[#allocation3 + $0x78] sm:$0xff] %vm642, %v5553
      %5581 = vst.msk [vmem:[#allocation3 + $0x80] sm:$0xff] %vm642, %v5554
      %5582 = vst.msk [vmem:[#allocation3 + $0x88] sm:$0xff] %vm642, %v5555
      %5583 = vst.msk [vmem:[#allocation3 + $0x90] sm:$0xff] %vm642, %v5556
      %5584 = vst.msk [vmem:[#allocation3 + $0x98] sm:$0xff] %vm642, %v5557
      %5585 = vst.msk [vmem:[#allocation3 + $0xa0] sm:$0xff] %vm642, %v5558
      %5586 = vst.msk [vmem:[#allocation3 + $0xa8] sm:$0xff] %vm642, %v5559
      %5587 = vst.msk [vmem:[#allocation3 + $0xb0] sm:$0xff] %vm642, %v5560
      %5588 = vst.msk [vmem:[#allocation3 + $0xb8] sm:$0xff] %vm642, %v5561
      %5589 = vst.msk [vmem:[#allocation3 + $0xc0] sm:$0xff] %vm642, %v5562
      %5590 = vst.msk [vmem:[#allocation3 + $0xc8] sm:$0xff] %vm642, %v5563
      %5591 = vst.msk [vmem:[#allocation3 + $0xd0] sm:$0xff] %vm642, %v5564
      %v5592 = vld [vmem:[#allocation2 + $0x150] sm:$0xff]
      %v5593 = vld [vmem:[#allocation2 + $0x158] sm:$0xff]
      %v5594 = vld [vmem:[#allocation2 + $0x160] sm:$0xff]
      %v5595 = vld [vmem:[#allocation2 + $0x168] sm:$0xff]
      %v5596 = vld [vmem:[#allocation2 + $0x170] sm:$0xff]
      %v5597 = vld [vmem:[#allocation2 + $0x178] sm:$0xff]
      %v5598 = vld [vmem:[#allocation2 + $0x180] sm:$0xff]
      %v5599 = vld [vmem:[#allocation2 + $0x188] sm:$0xff]
      %v5600 = vld [vmem:[#allocation2 + $0x190] sm:$0xff]
      %v5601 = vld [vmem:[#allocation2 + $0x198] sm:$0xff]
      %v5602 = vld [vmem:[#allocation2 + $0x1a0] sm:$0xff]
      %v5603 = vld [vmem:[#allocation2 + $0x1a8] sm:$0xff]
      %v5604 = vld [vmem:[#allocation2 + $0x1b0] sm:$0xff]
      %v5605 = vld [vmem:[#allocation2 + $0x1b8] sm:$0xff]
      %v5606 = vld [vmem:[#allocation2 + $0x1c0] sm:$0xff]
      %v5607 = vld [vmem:[#allocation2 + $0x1c8] sm:$0xff]
      %v5608 = vld [vmem:[#allocation2 + $0x1d0] sm:$0xff]
      %v5609 = vld [vmem:[#allocation2 + $0x1d8] sm:$0xff]
      %v5610 = vld [vmem:[#allocation2 + $0x1e0] sm:$0xff]
      %v5611 = vld [vmem:[#allocation2 + $0x1e8] sm:$0xff]
      %v5612 = vld [vmem:[#allocation2 + $0x1f0] sm:$0xff]
      %v5613 = vld [vmem:[#allocation2 + $0x1f8] sm:$0xff]
      %v5614 = vld [vmem:[#allocation2 + $0x200] sm:$0xff]
      %v5615 = vld [vmem:[#allocation2 + $0x208] sm:$0xff]
      %v5616 = vld [vmem:[#allocation2 + $0x210] sm:$0xff]
      %v5617 = vld [vmem:[#allocation2 + $0x218] sm:$0xff]
      %v5618 = vld [vmem:[#allocation2 + $0x220] sm:$0xff]
      %v5619 = vld [vmem:[%s3 + $0x120] sm:$0xff]
      %v5620 = vld [vmem:[%s3 + $0x128] sm:$0xff]
      %v5621 = vld [vmem:[%s3 + $0x130] sm:$0xff]
      %v5622 = vld [vmem:[%s3 + $0x138] sm:$0xff]
      %v5624 = vsel %vm1968, %v5592, 0
      %v5627 = vsel %vm1968, %v5593, 0
      %v5630 = vsel %vm1968, %v5594, 0
      %v5633 = vsel %vm1968, %v5595, 0
      %v5636 = vsel %vm1968, %v5596, 0
      %v5639 = vsel %vm1968, %v5597, 0
      %v5642 = vsel %vm1968, %v5598, 0
      %v5645 = vsel %vm1968, %v5599, 0
      %v5648 = vsel %vm1968, %v5600, 0
      %v5651 = vsel %vm1968, %v5601, 0
      %v5654 = vsel %vm1968, %v5602, 0
      %v5657 = vsel %vm1968, %v5603, 0
      %v5660 = vsel %vm1968, %v5604, 0
      %v5663 = vsel %vm1968, %v5605, 0
      %v5666 = vsel %vm1968, %v5606, 0
      %v5669 = vsel %vm1968, %v5607, 0
      %v5672 = vsel %vm1968, %v5608, 0
      %v5675 = vsel %vm1968, %v5609, 0
      %v5678 = vsel %vm1968, %v5610, 0
      %v5681 = vsel %vm1968, %v5611, 0
      %v5684 = vsel %vm1968, %v5612, 0
      %v5687 = vsel %vm1968, %v5613, 0
      %v5690 = vsel %vm1968, %v5614, 0
      %v5693 = vsel %vm1968, %v5615, 0
      %v5696 = vsel %vm1968, %v5616, 0
      %v5699 = vsel %vm1968, %v5617, 0
      %v5702 = vsel %vm1968, %v5618, 0
      %5704 = vmatprep.subr.mxu0 0.0
      %5705 = vmatpush1.msra.mxu0 0.0
      %5706 = vmatprep.subr.mxu0 0.0
      %5707 = vmatpush1.msra.mxu0 0.0
      %5708 = vmatprep.subr.mxu0 0.0
      %5709 = vmatpush1.msra.mxu0 0.0
      %5710 = vmatprep.subr.mxu0 0.0
      %5711 = vmatpush1.msra.mxu0 0.0
      %5712 = vmatprep.subr.mxu0 0.0
      %5713 = vmatpush1.msra.mxu0 0.0
      %5714 = vmatprep.subr.mxu0 0.0
      %5715 = vmatpush1.msra.mxu0 0.0
      %5716 = vmatprep.subr.mxu0 0.0
      %5717 = vmatpush1.msra.mxu0 0.0
      %5718 = vmatprep.subr.mxu0 0.0
      %5719 = vmatpush1.msra.mxu0 0.0
      %5720 = vmatprep.subr.mxu0 0.0
      %5721 = vmatpush1.msra.mxu0 0.0
      %5722 = vmatprep.subr.mxu0 0.0
      %5723 = vmatpush1.msra.mxu0 0.0
      %5724 = vmatprep.subr.mxu0 0.0
      %5725 = vmatpush1.msra.mxu0 0.0
      %5726 = vmatprep.subr.mxu0 0.0
      %5727 = vmatpush1.msra.mxu0 0.0
      %5728 = vmatprep.subr.mxu0 0.0
      %5729 = vmatpush1.msra.mxu0 %v5622
      %5730 = vmatprep.subr.mxu0 0.0
      %5731 = vmatpush1.msra.mxu0 %v5621
      %5732 = vmatprep.subr.mxu0 0.0
      %5733 = vmatpush1.msra.mxu0 %v5620
      %5734 = vmatprep.subr.mxu0 0.0
      %5735 = vmatpush1.msra.mxu0 %v5619
      %5736 = vmatprep.subr.mxu0 0.0
      %5737 = vmatpush2.msra.mxu0 0.0
      %5738 = vmatprep.subr.mxu0 0.0
      %5739 = vmatpush2.msra.mxu0 0.0
      %5740 = vmatprep.subr.mxu0 0.0
      %5741 = vmatpush2.msra.mxu0 0.0
      %5742 = vmatprep.subr.mxu0 0.0
      %5743 = vmatpush2.msra.mxu0 0.0
      %5744 = vmatprep.subr.mxu0 0.0
      %5745 = vmatpush2.msra.mxu0 0.0
      %5746 = vmatprep.subr.mxu0 0.0
      %5747 = vmatpush2.msra.mxu0 0.0
      %5748 = vmatprep.subr.mxu0 0.0
      %5749 = vmatpush2.msra.mxu0 0.0
      %5750 = vmatprep.subr.mxu0 0.0
      %5751 = vmatpush2.msra.mxu0 0.0
      %5752 = vmatprep.subr.mxu0 0.0
      %5753 = vmatpush2.msra.mxu0 0.0
      %5754 = vmatprep.subr.mxu0 0.0
      %5755 = vmatpush2.msra.mxu0 0.0
      %5756 = vmatprep.subr.mxu0 0.0
      %5757 = vmatpush2.msra.mxu0 0.0
      %5758 = vmatprep.subr.mxu0 0.0
      %5759 = vmatpush2.msra.mxu0 0.0
      %5760 = vmatprep.subr.mxu0 0.0
      %5761 = vmatpush2.msra.mxu0 0.0
      %5762 = vmatprep.subr.mxu0 0.0
      %5763 = vmatpush2.msra.mxu0 0.0
      %5764 = vmatprep.subr.mxu0 0.0
      %5765 = vmatpush2.msra.mxu0 0.0
      %5766 = vmatprep.subr.mxu0 0.0
      %5767 = vmatpush2.msra.mxu0 0.0
      %5768 = vmatprep.mubr.f32.mxu0 0.0
      %5769 = vmatmul.mubr.f32.gmra.mxu0 %v5624
      %v5770 = vpop.f32.mrf.mxu0
      %v5771 = vadd.f32 0.0, %v5770
      %v5772 = vpop.f32.mrf.mxu0
      %5773 = vmatprep.mubr.f32.mxu0 0.0
      %5774 = vmatmul.mubr.f32.gmra.mxu0 %v5627
      %v5775 = vpop.f32.mrf.mxu0
      %v5776 = vadd.f32 0.0, %v5775
      %v5777 = vpop.f32.mrf.mxu0
      %5778 = vmatprep.mubr.f32.mxu0 0.0
      %5779 = vmatmul.mubr.f32.gmra.mxu0 %v5630
      %v5780 = vpop.f32.mrf.mxu0
      %v5781 = vadd.f32 0.0, %v5780
      %v5782 = vpop.f32.mrf.mxu0
      %5783 = vmatprep.mubr.f32.mxu0 0.0
      %5784 = vmatmul.mubr.f32.gmra.mxu0 %v5633
      %v5785 = vpop.f32.mrf.mxu0
      %v5786 = vadd.f32 0.0, %v5785
      %v5787 = vpop.f32.mrf.mxu0
      %5788 = vmatprep.mubr.f32.mxu0 0.0
      %5789 = vmatmul.mubr.f32.gmra.mxu0 %v5636
      %v5790 = vpop.f32.mrf.mxu0
      %v5791 = vadd.f32 0.0, %v5790
      %v5792 = vpop.f32.mrf.mxu0
      %5793 = vmatprep.mubr.f32.mxu0 0.0
      %5794 = vmatmul.mubr.f32.gmra.mxu0 %v5639
      %v5795 = vpop.f32.mrf.mxu0
      %v5796 = vadd.f32 0.0, %v5795
      %v5797 = vpop.f32.mrf.mxu0
      %5798 = vmatprep.mubr.f32.mxu0 0.0
      %5799 = vmatmul.mubr.f32.gmra.mxu0 %v5642
      %v5800 = vpop.f32.mrf.mxu0
      %v5801 = vadd.f32 0.0, %v5800
      %v5802 = vpop.f32.mrf.mxu0
      %5803 = vmatprep.mubr.f32.mxu0 0.0
      %5804 = vmatmul.mubr.f32.gmra.mxu0 %v5645
      %v5805 = vpop.f32.mrf.mxu0
      %v5806 = vadd.f32 0.0, %v5805
      %v5807 = vpop.f32.mrf.mxu0
      %5808 = vmatprep.mubr.f32.mxu0 0.0
      %5809 = vmatmul.mubr.f32.gmra.mxu0 %v5648
      %v5810 = vpop.f32.mrf.mxu0
      %v5811 = vadd.f32 0.0, %v5810
      %v5812 = vpop.f32.mrf.mxu0
      %5813 = vmatprep.mubr.f32.mxu0 0.0
      %5814 = vmatmul.mubr.f32.gmra.mxu0 %v5651
      %v5815 = vpop.f32.mrf.mxu0
      %v5816 = vadd.f32 0.0, %v5815
      %v5817 = vpop.f32.mrf.mxu0
      %5818 = vmatprep.mubr.f32.mxu0 0.0
      %5819 = vmatmul.mubr.f32.gmra.mxu0 %v5654
      %v5820 = vpop.f32.mrf.mxu0
      %v5821 = vadd.f32 0.0, %v5820
      %v5822 = vpop.f32.mrf.mxu0
      %5823 = vmatprep.mubr.f32.mxu0 0.0
      %5824 = vmatmul.mubr.f32.gmra.mxu0 %v5657
      %v5825 = vpop.f32.mrf.mxu0
      %v5826 = vadd.f32 0.0, %v5825
      %v5827 = vpop.f32.mrf.mxu0
      %5828 = vmatprep.mubr.f32.mxu0 0.0
      %5829 = vmatmul.mubr.f32.gmra.mxu0 %v5660
      %v5830 = vpop.f32.mrf.mxu0
      %v5831 = vadd.f32 0.0, %v5830
      %v5832 = vpop.f32.mrf.mxu0
      %5833 = vmatprep.mubr.f32.mxu0 0.0
      %5834 = vmatmul.mubr.f32.gmra.mxu0 %v5663
      %v5835 = vpop.f32.mrf.mxu0
      %v5836 = vadd.f32 0.0, %v5835
      %v5837 = vpop.f32.mrf.mxu0
      %5838 = vmatprep.mubr.f32.mxu0 0.0
      %5839 = vmatmul.mubr.f32.gmra.mxu0 %v5666
      %v5840 = vpop.f32.mrf.mxu0
      %v5841 = vadd.f32 0.0, %v5840
      %v5842 = vpop.f32.mrf.mxu0
      %5843 = vmatprep.mubr.f32.mxu0 0.0
      %5844 = vmatmul.mubr.f32.gmra.mxu0 %v5669
      %v5845 = vpop.f32.mrf.mxu0
      %v5846 = vadd.f32 0.0, %v5845
      %v5847 = vpop.f32.mrf.mxu0
      %5848 = vmatprep.mubr.f32.mxu0 0.0
      %5849 = vmatmul.mubr.f32.gmra.mxu0 %v5672
      %v5850 = vpop.f32.mrf.mxu0
      %v5851 = vadd.f32 0.0, %v5850
      %v5852 = vpop.f32.mrf.mxu0
      %5853 = vmatprep.mubr.f32.mxu0 0.0
      %5854 = vmatmul.mubr.f32.gmra.mxu0 %v5675
      %v5855 = vpop.f32.mrf.mxu0
      %v5856 = vadd.f32 0.0, %v5855
      %v5857 = vpop.f32.mrf.mxu0
      %5858 = vmatprep.mubr.f32.mxu0 0.0
      %5859 = vmatmul.mubr.f32.gmra.mxu0 %v5678
      %v5860 = vpop.f32.mrf.mxu0
      %v5861 = vadd.f32 0.0, %v5860
      %v5862 = vpop.f32.mrf.mxu0
      %5863 = vmatprep.mubr.f32.mxu0 0.0
      %5864 = vmatmul.mubr.f32.gmra.mxu0 %v5681
      %v5865 = vpop.f32.mrf.mxu0
      %v5866 = vadd.f32 0.0, %v5865
      %v5867 = vpop.f32.mrf.mxu0
      %5868 = vmatprep.mubr.f32.mxu0 0.0
      %5869 = vmatmul.mubr.f32.gmra.mxu0 %v5684
      %v5870 = vpop.f32.mrf.mxu0
      %v5871 = vadd.f32 0.0, %v5870
      %v5872 = vpop.f32.mrf.mxu0
      %5873 = vmatprep.mubr.f32.mxu0 0.0
      %5874 = vmatmul.mubr.f32.gmra.mxu0 %v5687
      %v5875 = vpop.f32.mrf.mxu0
      %v5876 = vadd.f32 0.0, %v5875
      %v5877 = vpop.f32.mrf.mxu0
      %5878 = vmatprep.mubr.f32.mxu0 0.0
      %5879 = vmatmul.mubr.f32.gmra.mxu0 %v5690
      %v5880 = vpop.f32.mrf.mxu0
      %v5881 = vadd.f32 0.0, %v5880
      %v5882 = vpop.f32.mrf.mxu0
      %5883 = vmatprep.mubr.f32.mxu0 0.0
      %5884 = vmatmul.mubr.f32.gmra.mxu0 %v5693
      %v5885 = vpop.f32.mrf.mxu0
      %v5886 = vadd.f32 0.0, %v5885
      %v5887 = vpop.f32.mrf.mxu0
      %5888 = vmatprep.mubr.f32.mxu0 0.0
      %5889 = vmatmul.mubr.f32.gmra.mxu0 %v5696
      %v5890 = vpop.f32.mrf.mxu0
      %v5891 = vadd.f32 0.0, %v5890
      %v5892 = vpop.f32.mrf.mxu0
      %5893 = vmatprep.mubr.f32.mxu0 0.0
      %5894 = vmatmul.mubr.f32.gmra.mxu0 %v5699
      %v5895 = vpop.f32.mrf.mxu0
      %v5896 = vadd.f32 0.0, %v5895
      %v5897 = vpop.f32.mrf.mxu0
      %5898 = vmatprep.mubr.f32.mxu0 0.0
      %5899 = vmatmul.mubr.f32.gmra.mxu0 %v5702
      %v5900 = vpop.f32.mrf.mxu0
      %v5901 = vadd.f32 0.0, %v5900
      %v5902 = vpop.f32.mrf.mxu0
      %5903 = vdwg.mxu0
      %v5904 = vld [vmem:[#allocation3] sm:$0xff]
      %v5905 = vld [vmem:[#allocation3 + $0x8] sm:$0xff]
      %v5906 = vld [vmem:[#allocation3 + $0x10] sm:$0xff]
      %v5907 = vld [vmem:[#allocation3 + $0x18] sm:$0xff]
      %v5908 = vld [vmem:[#allocation3 + $0x20] sm:$0xff]
      %v5909 = vld [vmem:[#allocation3 + $0x28] sm:$0xff]
      %v5910 = vld [vmem:[#allocation3 + $0x30] sm:$0xff]
      %v5911 = vld [vmem:[#allocation3 + $0x38] sm:$0xff]
      %v5912 = vld [vmem:[#allocation3 + $0x40] sm:$0xff]
      %v5913 = vld [vmem:[#allocation3 + $0x48] sm:$0xff]
      %v5914 = vld [vmem:[#allocation3 + $0x50] sm:$0xff]
      %v5915 = vld [vmem:[#allocation3 + $0x58] sm:$0xff]
      %v5916 = vld [vmem:[#allocation3 + $0x60] sm:$0xff]
      %v5917 = vld [vmem:[#allocation3 + $0x68] sm:$0xff]
      %v5918 = vld [vmem:[#allocation3 + $0x70] sm:$0xff]
      %v5919 = vld [vmem:[#allocation3 + $0x78] sm:$0xff]
      %v5920 = vld [vmem:[#allocation3 + $0x80] sm:$0xff]
      %v5921 = vld [vmem:[#allocation3 + $0x88] sm:$0xff]
      %v5922 = vld [vmem:[#allocation3 + $0x90] sm:$0xff]
      %v5923 = vld [vmem:[#allocation3 + $0x98] sm:$0xff]
      %v5924 = vld [vmem:[#allocation3 + $0xa0] sm:$0xff]
      %v5925 = vld [vmem:[#allocation3 + $0xa8] sm:$0xff]
      %v5926 = vld [vmem:[#allocation3 + $0xb0] sm:$0xff]
      %v5927 = vld [vmem:[#allocation3 + $0xb8] sm:$0xff]
      %v5928 = vld [vmem:[#allocation3 + $0xc0] sm:$0xff]
      %v5929 = vld [vmem:[#allocation3 + $0xc8] sm:$0xff]
      %v5930 = vld [vmem:[#allocation3 + $0xd0] sm:$0xff]
      %v5931 = vadd.f32 %v5904, %v5771
      %v5932 = vadd.f32 %v5905, %v5776
      %v5933 = vadd.f32 %v5906, %v5781
      %v5934 = vadd.f32 %v5907, %v5786
      %v5935 = vadd.f32 %v5908, %v5791
      %v5936 = vadd.f32 %v5909, %v5796
      %v5937 = vadd.f32 %v5910, %v5801
      %v5938 = vadd.f32 %v5911, %v5806
      %v5939 = vadd.f32 %v5912, %v5811
      %v5940 = vadd.f32 %v5913, %v5816
      %v5941 = vadd.f32 %v5914, %v5821
      %v5942 = vadd.f32 %v5915, %v5826
      %v5943 = vadd.f32 %v5916, %v5831
      %v5944 = vadd.f32 %v5917, %v5836
      %v5945 = vadd.f32 %v5918, %v5841
      %v5946 = vadd.f32 %v5919, %v5846
      %v5947 = vadd.f32 %v5920, %v5851
      %v5948 = vadd.f32 %v5921, %v5856
      %v5949 = vadd.f32 %v5922, %v5861
      %v5950 = vadd.f32 %v5923, %v5866
      %v5951 = vadd.f32 %v5924, %v5871
      %v5952 = vadd.f32 %v5925, %v5876
      %v5953 = vadd.f32 %v5926, %v5881
      %v5954 = vadd.f32 %v5927, %v5886
      %v5955 = vadd.f32 %v5928, %v5891
      %v5956 = vadd.f32 %v5929, %v5896
      %v5957 = vadd.f32 %v5930, %v5901
      %5958 = vst.msk [vmem:[#allocation3] sm:$0xff] %vm642, %v5931
      %5959 = vst.msk [vmem:[#allocation3 + $0x8] sm:$0xff] %vm642, %v5932
      %5960 = vst.msk [vmem:[#allocation3 + $0x10] sm:$0xff] %vm642, %v5933
      %5961 = vst.msk [vmem:[#allocation3 + $0x18] sm:$0xff] %vm642, %v5934
      %5962 = vst.msk [vmem:[#allocation3 + $0x20] sm:$0xff] %vm642, %v5935
      %5963 = vst.msk [vmem:[#allocation3 + $0x28] sm:$0xff] %vm642, %v5936
      %5964 = vst.msk [vmem:[#allocation3 + $0x30] sm:$0xff] %vm642, %v5937
      %5965 = vst.msk [vmem:[#allocation3 + $0x38] sm:$0xff] %vm642, %v5938
      %5966 = vst.msk [vmem:[#allocation3 + $0x40] sm:$0xff] %vm642, %v5939
      %5967 = vst.msk [vmem:[#allocation3 + $0x48] sm:$0xff] %vm642, %v5940
      %5968 = vst.msk [vmem:[#allocation3 + $0x50] sm:$0xff] %vm642, %v5941
      %5969 = vst.msk [vmem:[#allocation3 + $0x58] sm:$0xff] %vm642, %v5942
      %5970 = vst.msk [vmem:[#allocation3 + $0x60] sm:$0xff] %vm642, %v5943
      %5971 = vst.msk [vmem:[#allocation3 + $0x68] sm:$0xff] %vm642, %v5944
      %5972 = vst.msk [vmem:[#allocation3 + $0x70] sm:$0xff] %vm642, %v5945
      %5973 = vst.msk [vmem:[#allocation3 + $0x78] sm:$0xff] %vm642, %v5946
      %5974 = vst.msk [vmem:[#allocation3 + $0x80] sm:$0xff] %vm642, %v5947
      %5975 = vst.msk [vmem:[#allocation3 + $0x88] sm:$0xff] %vm642, %v5948
      %5976 = vst.msk [vmem:[#allocation3 + $0x90] sm:$0xff] %vm642, %v5949
      %5977 = vst.msk [vmem:[#allocation3 + $0x98] sm:$0xff] %vm642, %v5950
      %5978 = vst.msk [vmem:[#allocation3 + $0xa0] sm:$0xff] %vm642, %v5951
      %5979 = vst.msk [vmem:[#allocation3 + $0xa8] sm:$0xff] %vm642, %v5952
      %5980 = vst.msk [vmem:[#allocation3 + $0xb0] sm:$0xff] %vm642, %v5953
      %5981 = vst.msk [vmem:[#allocation3 + $0xb8] sm:$0xff] %vm642, %v5954
      %5982 = vst.msk [vmem:[#allocation3 + $0xc0] sm:$0xff] %vm642, %v5955
      %5983 = vst.msk [vmem:[#allocation3 + $0xc8] sm:$0xff] %vm642, %v5956
      %5984 = vst.msk [vmem:[#allocation3 + $0xd0] sm:$0xff] %vm642, %v5957
      %v5985 = vld [vmem:[#allocation2 + $0x40] sm:$0xff]
      %v5986 = vld [vmem:[#allocation2 + $0x48] sm:$0xff]
      %v5987 = vld [vmem:[#allocation2 + $0x50] sm:$0xff]
      %v5988 = vld [vmem:[#allocation2 + $0x58] sm:$0xff]
      %v5989 = vld [vmem:[#allocation2 + $0x60] sm:$0xff]
      %v5990 = vld [vmem:[#allocation2 + $0x68] sm:$0xff]
      %v5991 = vld [vmem:[#allocation2 + $0x70] sm:$0xff]
      %v5992 = vld [vmem:[#allocation2 + $0x78] sm:$0xff]
      %v5993 = vld [vmem:[#allocation2 + $0x80] sm:$0xff]
      %v5994 = vld [vmem:[#allocation2 + $0x88] sm:$0xff]
      %v5995 = vld [vmem:[#allocation2 + $0x90] sm:$0xff]
      %v5996 = vld [vmem:[#allocation2 + $0x98] sm:$0xff]
      %v5997 = vld [vmem:[#allocation2 + $0xa0] sm:$0xff]
      %v5998 = vld [vmem:[#allocation2 + $0xa8] sm:$0xff]
      %v5999 = vld [vmem:[#allocation2 + $0xb0] sm:$0xff]
      %v6000 = vld [vmem:[#allocation2 + $0xb8] sm:$0xff]
      %v6001 = vld [vmem:[#allocation2 + $0xc0] sm:$0xff]
      %v6002 = vld [vmem:[#allocation2 + $0xc8] sm:$0xff]
      %v6003 = vld [vmem:[#allocation2 + $0xd0] sm:$0xff]
      %v6004 = vld [vmem:[#allocation2 + $0xd8] sm:$0xff]
      %v6005 = vld [vmem:[#allocation2 + $0xe0] sm:$0xff]
      %v6006 = vld [vmem:[#allocation2 + $0xe8] sm:$0xff]
      %v6007 = vld [vmem:[#allocation2 + $0xf0] sm:$0xff]
      %v6008 = vld [vmem:[#allocation2 + $0xf8] sm:$0xff]
      %v6009 = vld [vmem:[#allocation2 + $0x100] sm:$0xff]
      %v6010 = vld [vmem:[#allocation2 + $0x108] sm:$0xff]
      %v6011 = vld [vmem:[#allocation2 + $0x110] sm:$0xff]
      %v6012 = vld [vmem:[%s3 + $0x140] sm:$0xff]
      %v6013 = vld [vmem:[%s3 + $0x148] sm:$0xff]
      %v6014 = vld [vmem:[%s3 + $0x150] sm:$0xff]
      %v6015 = vld [vmem:[%s3 + $0x158] sm:$0xff]
      %v6017 = vsel %vm1968, %v5985, 0
      %v6020 = vsel %vm1968, %v5986, 0
      %v6023 = vsel %vm1968, %v5987, 0
      %v6026 = vsel %vm1968, %v5988, 0
      %v6029 = vsel %vm1968, %v5989, 0
      %v6032 = vsel %vm1968, %v5990, 0
      %v6035 = vsel %vm1968, %v5991, 0
      %v6038 = vsel %vm1968, %v5992, 0
      %v6041 = vsel %vm1968, %v5993, 0
      %v6044 = vsel %vm1968, %v5994, 0
      %v6047 = vsel %vm1968, %v5995, 0
      %v6050 = vsel %vm1968, %v5996, 0
      %v6053 = vsel %vm1968, %v5997, 0
      %v6056 = vsel %vm1968, %v5998, 0
      %v6059 = vsel %vm1968, %v5999, 0
      %v6062 = vsel %vm1968, %v6000, 0
      %v6065 = vsel %vm1968, %v6001, 0
      %v6068 = vsel %vm1968, %v6002, 0
      %v6071 = vsel %vm1968, %v6003, 0
      %v6074 = vsel %vm1968, %v6004, 0
      %v6077 = vsel %vm1968, %v6005, 0
      %v6080 = vsel %vm1968, %v6006, 0
      %v6083 = vsel %vm1968, %v6007, 0
      %v6086 = vsel %vm1968, %v6008, 0
      %v6089 = vsel %vm1968, %v6009, 0
      %v6092 = vsel %vm1968, %v6010, 0
      %v6095 = vsel %vm1968, %v6011, 0
      %6097 = vmatprep.subr.mxu0 0.0
      %6098 = vmatpush1.msra.mxu0 0.0
      %6099 = vmatprep.subr.mxu0 0.0
      %6100 = vmatpush1.msra.mxu0 0.0
      %6101 = vmatprep.subr.mxu0 0.0
      %6102 = vmatpush1.msra.mxu0 0.0
      %6103 = vmatprep.subr.mxu0 0.0
      %6104 = vmatpush1.msra.mxu0 0.0
      %6105 = vmatprep.subr.mxu0 0.0
      %6106 = vmatpush1.msra.mxu0 0.0
      %6107 = vmatprep.subr.mxu0 0.0
      %6108 = vmatpush1.msra.mxu0 0.0
      %6109 = vmatprep.subr.mxu0 0.0
      %6110 = vmatpush1.msra.mxu0 0.0
      %6111 = vmatprep.subr.mxu0 0.0
      %6112 = vmatpush1.msra.mxu0 0.0
      %6113 = vmatprep.subr.mxu0 0.0
      %6114 = vmatpush1.msra.mxu0 0.0
      %6115 = vmatprep.subr.mxu0 0.0
      %6116 = vmatpush1.msra.mxu0 0.0
      %6117 = vmatprep.subr.mxu0 0.0
      %6118 = vmatpush1.msra.mxu0 0.0
      %6119 = vmatprep.subr.mxu0 0.0
      %6120 = vmatpush1.msra.mxu0 0.0
      %6121 = vmatprep.subr.mxu0 0.0
      %6122 = vmatpush1.msra.mxu0 %v6015
      %6123 = vmatprep.subr.mxu0 0.0
      %6124 = vmatpush1.msra.mxu0 %v6014
      %6125 = vmatprep.subr.mxu0 0.0
      %6126 = vmatpush1.msra.mxu0 %v6013
      %6127 = vmatprep.subr.mxu0 0.0
      %6128 = vmatpush1.msra.mxu0 %v6012
      %6129 = vmatprep.subr.mxu0 0.0
      %6130 = vmatpush2.msra.mxu0 0.0
      %6131 = vmatprep.subr.mxu0 0.0
      %6132 = vmatpush2.msra.mxu0 0.0
      %6133 = vmatprep.subr.mxu0 0.0
      %6134 = vmatpush2.msra.mxu0 0.0
      %6135 = vmatprep.subr.mxu0 0.0
      %6136 = vmatpush2.msra.mxu0 0.0
      %6137 = vmatprep.subr.mxu0 0.0
      %6138 = vmatpush2.msra.mxu0 0.0
      %6139 = vmatprep.subr.mxu0 0.0
      %6140 = vmatpush2.msra.mxu0 0.0
      %6141 = vmatprep.subr.mxu0 0.0
      %6142 = vmatpush2.msra.mxu0 0.0
      %6143 = vmatprep.subr.mxu0 0.0
      %6144 = vmatpush2.msra.mxu0 0.0
      %6145 = vmatprep.subr.mxu0 0.0
      %6146 = vmatpush2.msra.mxu0 0.0
      %6147 = vmatprep.subr.mxu0 0.0
      %6148 = vmatpush2.msra.mxu0 0.0
      %6149 = vmatprep.subr.mxu0 0.0
      %6150 = vmatpush2.msra.mxu0 0.0
      %6151 = vmatprep.subr.mxu0 0.0
      %6152 = vmatpush2.msra.mxu0 0.0
      %6153 = vmatprep.subr.mxu0 0.0
      %6154 = vmatpush2.msra.mxu0 0.0
      %6155 = vmatprep.subr.mxu0 0.0
      %6156 = vmatpush2.msra.mxu0 0.0
      %6157 = vmatprep.subr.mxu0 0.0
      %6158 = vmatpush2.msra.mxu0 0.0
      %6159 = vmatprep.subr.mxu0 0.0
      %6160 = vmatpush2.msra.mxu0 0.0
      %6161 = vmatprep.mubr.f32.mxu0 0.0
      %6162 = vmatmul.mubr.f32.gmra.mxu0 %v6017
      %v6163 = vpop.f32.mrf.mxu0
      %v6164 = vadd.f32 0.0, %v6163
      %v6165 = vpop.f32.mrf.mxu0
      %6166 = vmatprep.mubr.f32.mxu0 0.0
      %6167 = vmatmul.mubr.f32.gmra.mxu0 %v6020
      %v6168 = vpop.f32.mrf.mxu0
      %v6169 = vadd.f32 0.0, %v6168
      %v6170 = vpop.f32.mrf.mxu0
      %6171 = vmatprep.mubr.f32.mxu0 0.0
      %6172 = vmatmul.mubr.f32.gmra.mxu0 %v6023
      %v6173 = vpop.f32.mrf.mxu0
      %v6174 = vadd.f32 0.0, %v6173
      %v6175 = vpop.f32.mrf.mxu0
      %6176 = vmatprep.mubr.f32.mxu0 0.0
      %6177 = vmatmul.mubr.f32.gmra.mxu0 %v6026
      %v6178 = vpop.f32.mrf.mxu0
      %v6179 = vadd.f32 0.0, %v6178
      %v6180 = vpop.f32.mrf.mxu0
      %6181 = vmatprep.mubr.f32.mxu0 0.0
      %6182 = vmatmul.mubr.f32.gmra.mxu0 %v6029
      %v6183 = vpop.f32.mrf.mxu0
      %v6184 = vadd.f32 0.0, %v6183
      %v6185 = vpop.f32.mrf.mxu0
      %6186 = vmatprep.mubr.f32.mxu0 0.0
      %6187 = vmatmul.mubr.f32.gmra.mxu0 %v6032
      %v6188 = vpop.f32.mrf.mxu0
      %v6189 = vadd.f32 0.0, %v6188
      %v6190 = vpop.f32.mrf.mxu0
      %6191 = vmatprep.mubr.f32.mxu0 0.0
      %6192 = vmatmul.mubr.f32.gmra.mxu0 %v6035
      %v6193 = vpop.f32.mrf.mxu0
      %v6194 = vadd.f32 0.0, %v6193
      %v6195 = vpop.f32.mrf.mxu0
      %6196 = vmatprep.mubr.f32.mxu0 0.0
      %6197 = vmatmul.mubr.f32.gmra.mxu0 %v6038
      %v6198 = vpop.f32.mrf.mxu0
      %v6199 = vadd.f32 0.0, %v6198
      %v6200 = vpop.f32.mrf.mxu0
      %6201 = vmatprep.mubr.f32.mxu0 0.0
      %6202 = vmatmul.mubr.f32.gmra.mxu0 %v6041
      %v6203 = vpop.f32.mrf.mxu0
      %v6204 = vadd.f32 0.0, %v6203
      %v6205 = vpop.f32.mrf.mxu0
      %6206 = vmatprep.mubr.f32.mxu0 0.0
      %6207 = vmatmul.mubr.f32.gmra.mxu0 %v6044
      %v6208 = vpop.f32.mrf.mxu0
      %v6209 = vadd.f32 0.0, %v6208
      %v6210 = vpop.f32.mrf.mxu0
      %6211 = vmatprep.mubr.f32.mxu0 0.0
      %6212 = vmatmul.mubr.f32.gmra.mxu0 %v6047
      %v6213 = vpop.f32.mrf.mxu0
      %v6214 = vadd.f32 0.0, %v6213
      %v6215 = vpop.f32.mrf.mxu0
      %6216 = vmatprep.mubr.f32.mxu0 0.0
      %6217 = vmatmul.mubr.f32.gmra.mxu0 %v6050
      %v6218 = vpop.f32.mrf.mxu0
      %v6219 = vadd.f32 0.0, %v6218
      %v6220 = vpop.f32.mrf.mxu0
      %6221 = vmatprep.mubr.f32.mxu0 0.0
      %6222 = vmatmul.mubr.f32.gmra.mxu0 %v6053
      %v6223 = vpop.f32.mrf.mxu0
      %v6224 = vadd.f32 0.0, %v6223
      %v6225 = vpop.f32.mrf.mxu0
      %6226 = vmatprep.mubr.f32.mxu0 0.0
      %6227 = vmatmul.mubr.f32.gmra.mxu0 %v6056
      %v6228 = vpop.f32.mrf.mxu0
      %v6229 = vadd.f32 0.0, %v6228
      %v6230 = vpop.f32.mrf.mxu0
      %6231 = vmatprep.mubr.f32.mxu0 0.0
      %6232 = vmatmul.mubr.f32.gmra.mxu0 %v6059
      %v6233 = vpop.f32.mrf.mxu0
      %v6234 = vadd.f32 0.0, %v6233
      %v6235 = vpop.f32.mrf.mxu0
      %6236 = vmatprep.mubr.f32.mxu0 0.0
      %6237 = vmatmul.mubr.f32.gmra.mxu0 %v6062
      %v6238 = vpop.f32.mrf.mxu0
      %v6239 = vadd.f32 0.0, %v6238
      %v6240 = vpop.f32.mrf.mxu0
      %6241 = vmatprep.mubr.f32.mxu0 0.0
      %6242 = vmatmul.mubr.f32.gmra.mxu0 %v6065
      %v6243 = vpop.f32.mrf.mxu0
      %v6244 = vadd.f32 0.0, %v6243
      %v6245 = vpop.f32.mrf.mxu0
      %6246 = vmatprep.mubr.f32.mxu0 0.0
      %6247 = vmatmul.mubr.f32.gmra.mxu0 %v6068
      %v6248 = vpop.f32.mrf.mxu0
      %v6249 = vadd.f32 0.0, %v6248
      %v6250 = vpop.f32.mrf.mxu0
      %6251 = vmatprep.mubr.f32.mxu0 0.0
      %6252 = vmatmul.mubr.f32.gmra.mxu0 %v6071
      %v6253 = vpop.f32.mrf.mxu0
      %v6254 = vadd.f32 0.0, %v6253
      %v6255 = vpop.f32.mrf.mxu0
      %6256 = vmatprep.mubr.f32.mxu0 0.0
      %6257 = vmatmul.mubr.f32.gmra.mxu0 %v6074
      %v6258 = vpop.f32.mrf.mxu0
      %v6259 = vadd.f32 0.0, %v6258
      %v6260 = vpop.f32.mrf.mxu0
      %6261 = vmatprep.mubr.f32.mxu0 0.0
      %6262 = vmatmul.mubr.f32.gmra.mxu0 %v6077
      %v6263 = vpop.f32.mrf.mxu0
      %v6264 = vadd.f32 0.0, %v6263
      %v6265 = vpop.f32.mrf.mxu0
      %6266 = vmatprep.mubr.f32.mxu0 0.0
      %6267 = vmatmul.mubr.f32.gmra.mxu0 %v6080
      %v6268 = vpop.f32.mrf.mxu0
      %v6269 = vadd.f32 0.0, %v6268
      %v6270 = vpop.f32.mrf.mxu0
      %6271 = vmatprep.mubr.f32.mxu0 0.0
      %6272 = vmatmul.mubr.f32.gmra.mxu0 %v6083
      %v6273 = vpop.f32.mrf.mxu0
      %v6274 = vadd.f32 0.0, %v6273
      %v6275 = vpop.f32.mrf.mxu0
      %6276 = vmatprep.mubr.f32.mxu0 0.0
      %6277 = vmatmul.mubr.f32.gmra.mxu0 %v6086
      %v6278 = vpop.f32.mrf.mxu0
      %v6279 = vadd.f32 0.0, %v6278
      %v6280 = vpop.f32.mrf.mxu0
      %6281 = vmatprep.mubr.f32.mxu0 0.0
      %6282 = vmatmul.mubr.f32.gmra.mxu0 %v6089
      %v6283 = vpop.f32.mrf.mxu0
      %v6284 = vadd.f32 0.0, %v6283
      %v6285 = vpop.f32.mrf.mxu0
      %6286 = vmatprep.mubr.f32.mxu0 0.0
      %6287 = vmatmul.mubr.f32.gmra.mxu0 %v6092
      %v6288 = vpop.f32.mrf.mxu0
      %v6289 = vadd.f32 0.0, %v6288
      %v6290 = vpop.f32.mrf.mxu0
      %6291 = vmatprep.mubr.f32.mxu0 0.0
      %6292 = vmatmul.mubr.f32.gmra.mxu0 %v6095
      %v6293 = vpop.f32.mrf.mxu0
      %v6294 = vadd.f32 0.0, %v6293
      %v6295 = vpop.f32.mrf.mxu0
      %6296 = vdwg.mxu0
      %v6297 = vld [vmem:[#allocation3] sm:$0xff]
      %v6298 = vld [vmem:[#allocation3 + $0x8] sm:$0xff]
      %v6299 = vld [vmem:[#allocation3 + $0x10] sm:$0xff]
      %v6300 = vld [vmem:[#allocation3 + $0x18] sm:$0xff]
      %v6301 = vld [vmem:[#allocation3 + $0x20] sm:$0xff]
      %v6302 = vld [vmem:[#allocation3 + $0x28] sm:$0xff]
      %v6303 = vld [vmem:[#allocation3 + $0x30] sm:$0xff]
      %v6304 = vld [vmem:[#allocation3 + $0x38] sm:$0xff]
      %v6305 = vld [vmem:[#allocation3 + $0x40] sm:$0xff]
      %v6306 = vld [vmem:[#allocation3 + $0x48] sm:$0xff]
      %v6307 = vld [vmem:[#allocation3 + $0x50] sm:$0xff]
      %v6308 = vld [vmem:[#allocation3 + $0x58] sm:$0xff]
      %v6309 = vld [vmem:[#allocation3 + $0x60] sm:$0xff]
      %v6310 = vld [vmem:[#allocation3 + $0x68] sm:$0xff]
      %v6311 = vld [vmem:[#allocation3 + $0x70] sm:$0xff]
      %v6312 = vld [vmem:[#allocation3 + $0x78] sm:$0xff]
      %v6313 = vld [vmem:[#allocation3 + $0x80] sm:$0xff]
      %v6314 = vld [vmem:[#allocation3 + $0x88] sm:$0xff]
      %v6315 = vld [vmem:[#allocation3 + $0x90] sm:$0xff]
      %v6316 = vld [vmem:[#allocation3 + $0x98] sm:$0xff]
      %v6317 = vld [vmem:[#allocation3 + $0xa0] sm:$0xff]
      %v6318 = vld [vmem:[#allocation3 + $0xa8] sm:$0xff]
      %v6319 = vld [vmem:[#allocation3 + $0xb0] sm:$0xff]
      %v6320 = vld [vmem:[#allocation3 + $0xb8] sm:$0xff]
      %v6321 = vld [vmem:[#allocation3 + $0xc0] sm:$0xff]
      %v6322 = vld [vmem:[#allocation3 + $0xc8] sm:$0xff]
      %v6323 = vld [vmem:[#allocation3 + $0xd0] sm:$0xff]
      %v6324 = vadd.f32 %v6297, %v6164
      %v6325 = vadd.f32 %v6298, %v6169
      %v6326 = vadd.f32 %v6299, %v6174
      %v6327 = vadd.f32 %v6300, %v6179
      %v6328 = vadd.f32 %v6301, %v6184
      %v6329 = vadd.f32 %v6302, %v6189
      %v6330 = vadd.f32 %v6303, %v6194
      %v6331 = vadd.f32 %v6304, %v6199
      %v6332 = vadd.f32 %v6305, %v6204
      %v6333 = vadd.f32 %v6306, %v6209
      %v6334 = vadd.f32 %v6307, %v6214
      %v6335 = vadd.f32 %v6308, %v6219
      %v6336 = vadd.f32 %v6309, %v6224
      %v6337 = vadd.f32 %v6310, %v6229
      %v6338 = vadd.f32 %v6311, %v6234
      %v6339 = vadd.f32 %v6312, %v6239
      %v6340 = vadd.f32 %v6313, %v6244
      %v6341 = vadd.f32 %v6314, %v6249
      %v6342 = vadd.f32 %v6315, %v6254
      %v6343 = vadd.f32 %v6316, %v6259
      %v6344 = vadd.f32 %v6317, %v6264
      %v6345 = vadd.f32 %v6318, %v6269
      %v6346 = vadd.f32 %v6319, %v6274
      %v6347 = vadd.f32 %v6320, %v6279
      %v6348 = vadd.f32 %v6321, %v6284
      %v6349 = vadd.f32 %v6322, %v6289
      %v6350 = vadd.f32 %v6323, %v6294
      %6351 = vst.msk [vmem:[#allocation3] sm:$0xff] %vm642, %v6324
      %6352 = vst.msk [vmem:[#allocation3 + $0x8] sm:$0xff] %vm642, %v6325
      %6353 = vst.msk [vmem:[#allocation3 + $0x10] sm:$0xff] %vm642, %v6326
      %6354 = vst.msk [vmem:[#allocation3 + $0x18] sm:$0xff] %vm642, %v6327
      %6355 = vst.msk [vmem:[#allocation3 + $0x20] sm:$0xff] %vm642, %v6328
      %6356 = vst.msk [vmem:[#allocation3 + $0x28] sm:$0xff] %vm642, %v6329
      %6357 = vst.msk [vmem:[#allocation3 + $0x30] sm:$0xff] %vm642, %v6330
      %6358 = vst.msk [vmem:[#allocation3 + $0x38] sm:$0xff] %vm642, %v6331
      %6359 = vst.msk [vmem:[#allocation3 + $0x40] sm:$0xff] %vm642, %v6332
      %6360 = vst.msk [vmem:[#allocation3 + $0x48] sm:$0xff] %vm642, %v6333
      %6361 = vst.msk [vmem:[#allocation3 + $0x50] sm:$0xff] %vm642, %v6334
      %6362 = vst.msk [vmem:[#allocation3 + $0x58] sm:$0xff] %vm642, %v6335
      %6363 = vst.msk [vmem:[#allocation3 + $0x60] sm:$0xff] %vm642, %v6336
      %6364 = vst.msk [vmem:[#allocation3 + $0x68] sm:$0xff] %vm642, %v6337
      %6365 = vst.msk [vmem:[#allocation3 + $0x70] sm:$0xff] %vm642, %v6338
      %6366 = vst.msk [vmem:[#allocation3 + $0x78] sm:$0xff] %vm642, %v6339
      %6367 = vst.msk [vmem:[#allocation3 + $0x80] sm:$0xff] %vm642, %v6340
      %6368 = vst.msk [vmem:[#allocation3 + $0x88] sm:$0xff] %vm642, %v6341
      %6369 = vst.msk [vmem:[#allocation3 + $0x90] sm:$0xff] %vm642, %v6342
      %6370 = vst.msk [vmem:[#allocation3 + $0x98] sm:$0xff] %vm642, %v6343
      %6371 = vst.msk [vmem:[#allocation3 + $0xa0] sm:$0xff] %vm642, %v6344
      %6372 = vst.msk [vmem:[#allocation3 + $0xa8] sm:$0xff] %vm642, %v6345
      %6373 = vst.msk [vmem:[#allocation3 + $0xb0] sm:$0xff] %vm642, %v6346
      %6374 = vst.msk [vmem:[#allocation3 + $0xb8] sm:$0xff] %vm642, %v6347
      %6375 = vst.msk [vmem:[#allocation3 + $0xc0] sm:$0xff] %vm642, %v6348
      %6376 = vst.msk [vmem:[#allocation3 + $0xc8] sm:$0xff] %vm642, %v6349
      %6377 = vst.msk [vmem:[#allocation3 + $0xd0] sm:$0xff] %vm642, %v6350
      %v6378 = vld [vmem:[#allocation2 + $0x158] sm:$0xff]
      %v6379 = vld [vmem:[#allocation2 + $0x160] sm:$0xff]
      %v6380 = vld [vmem:[#allocation2 + $0x168] sm:$0xff]
      %v6381 = vld [vmem:[#allocation2 + $0x170] sm:$0xff]
      %v6382 = vld [vmem:[#allocation2 + $0x178] sm:$0xff]
      %v6383 = vld [vmem:[#allocation2 + $0x180] sm:$0xff]
      %v6384 = vld [vmem:[#allocation2 + $0x188] sm:$0xff]
      %v6385 = vld [vmem:[#allocation2 + $0x190] sm:$0xff]
      %v6386 = vld [vmem:[#allocation2 + $0x198] sm:$0xff]
      %v6387 = vld [vmem:[#allocation2 + $0x1a0] sm:$0xff]
      %v6388 = vld [vmem:[#allocation2 + $0x1a8] sm:$0xff]
      %v6389 = vld [vmem:[#allocation2 + $0x1b0] sm:$0xff]
      %v6390 = vld [vmem:[#allocation2 + $0x1b8] sm:$0xff]
      %v6391 = vld [vmem:[#allocation2 + $0x1c0] sm:$0xff]
      %v6392 = vld [vmem:[#allocation2 + $0x1c8] sm:$0xff]
      %v6393 = vld [vmem:[#allocation2 + $0x1d0] sm:$0xff]
      %v6394 = vld [vmem:[#allocation2 + $0x1d8] sm:$0xff]
      %v6395 = vld [vmem:[#allocation2 + $0x1e0] sm:$0xff]
      %v6396 = vld [vmem:[#allocation2 + $0x1e8] sm:$0xff]
      %v6397 = vld [vmem:[#allocation2 + $0x1f0] sm:$0xff]
      %v6398 = vld [vmem:[#allocation2 + $0x1f8] sm:$0xff]
      %v6399 = vld [vmem:[#allocation2 + $0x200] sm:$0xff]
      %v6400 = vld [vmem:[#allocation2 + $0x208] sm:$0xff]
      %v6401 = vld [vmem:[#allocation2 + $0x210] sm:$0xff]
      %v6402 = vld [vmem:[#allocation2 + $0x218] sm:$0xff]
      %v6403 = vld [vmem:[#allocation2 + $0x220] sm:$0xff]
      %v6404 = vld [vmem:[#allocation2 + $0x228] sm:$0xff]
      %v6405 = vld [vmem:[%s3 + $0x160] sm:$0xff]
      %v6406 = vld [vmem:[%s3 + $0x168] sm:$0xff]
      %v6407 = vld [vmem:[%s3 + $0x170] sm:$0xff]
      %v6408 = vld [vmem:[%s3 + $0x178] sm:$0xff]
      %v6410 = vsel %vm1968, %v6378, 0
      %v6413 = vsel %vm1968, %v6379, 0
      %v6416 = vsel %vm1968, %v6380, 0
      %v6419 = vsel %vm1968, %v6381, 0
      %v6422 = vsel %vm1968, %v6382, 0
      %v6425 = vsel %vm1968, %v6383, 0
      %v6428 = vsel %vm1968, %v6384, 0
      %v6431 = vsel %vm1968, %v6385, 0
      %v6434 = vsel %vm1968, %v6386, 0
      %v6437 = vsel %vm1968, %v6387, 0
      %v6440 = vsel %vm1968, %v6388, 0
      %v6443 = vsel %vm1968, %v6389, 0
      %v6446 = vsel %vm1968, %v6390, 0
      %v6449 = vsel %vm1968, %v6391, 0
      %v6452 = vsel %vm1968, %v6392, 0
      %v6455 = vsel %vm1968, %v6393, 0
      %v6458 = vsel %vm1968, %v6394, 0
      %v6461 = vsel %vm1968, %v6395, 0
      %v6464 = vsel %vm1968, %v6396, 0
      %v6467 = vsel %vm1968, %v6397, 0
      %v6470 = vsel %vm1968, %v6398, 0
      %v6473 = vsel %vm1968, %v6399, 0
      %v6476 = vsel %vm1968, %v6400, 0
      %v6479 = vsel %vm1968, %v6401, 0
      %v6482 = vsel %vm1968, %v6402, 0
      %v6485 = vsel %vm1968, %v6403, 0
      %v6488 = vsel %vm1968, %v6404, 0
      %6490 = vmatprep.subr.mxu0 0.0
      %6491 = vmatpush1.msra.mxu0 0.0
      %6492 = vmatprep.subr.mxu0 0.0
      %6493 = vmatpush1.msra.mxu0 0.0
      %6494 = vmatprep.subr.mxu0 0.0
      %6495 = vmatpush1.msra.mxu0 0.0
      %6496 = vmatprep.subr.mxu0 0.0
      %6497 = vmatpush1.msra.mxu0 0.0
      %6498 = vmatprep.subr.mxu0 0.0
      %6499 = vmatpush1.msra.mxu0 0.0
      %6500 = vmatprep.subr.mxu0 0.0
      %6501 = vmatpush1.msra.mxu0 0.0
      %6502 = vmatprep.subr.mxu0 0.0
      %6503 = vmatpush1.msra.mxu0 0.0
      %6504 = vmatprep.subr.mxu0 0.0
      %6505 = vmatpush1.msra.mxu0 0.0
      %6506 = vmatprep.subr.mxu0 0.0
      %6507 = vmatpush1.msra.mxu0 0.0
      %6508 = vmatprep.subr.mxu0 0.0
      %6509 = vmatpush1.msra.mxu0 0.0
      %6510 = vmatprep.subr.mxu0 0.0
      %6511 = vmatpush1.msra.mxu0 0.0
      %6512 = vmatprep.subr.mxu0 0.0
      %6513 = vmatpush1.msra.mxu0 0.0
      %6514 = vmatprep.subr.mxu0 0.0
      %6515 = vmatpush1.msra.mxu0 %v6408
      %6516 = vmatprep.subr.mxu0 0.0
      %6517 = vmatpush1.msra.mxu0 %v6407
      %6518 = vmatprep.subr.mxu0 0.0
      %6519 = vmatpush1.msra.mxu0 %v6406
      %6520 = vmatprep.subr.mxu0 0.0
      %6521 = vmatpush1.msra.mxu0 %v6405
      %6522 = vmatprep.subr.mxu0 0.0
      %6523 = vmatpush2.msra.mxu0 0.0
      %6524 = vmatprep.subr.mxu0 0.0
      %6525 = vmatpush2.msra.mxu0 0.0
      %6526 = vmatprep.subr.mxu0 0.0
      %6527 = vmatpush2.msra.mxu0 0.0
      %6528 = vmatprep.subr.mxu0 0.0
      %6529 = vmatpush2.msra.mxu0 0.0
      %6530 = vmatprep.subr.mxu0 0.0
      %6531 = vmatpush2.msra.mxu0 0.0
      %6532 = vmatprep.subr.mxu0 0.0
      %6533 = vmatpush2.msra.mxu0 0.0
      %6534 = vmatprep.subr.mxu0 0.0
      %6535 = vmatpush2.msra.mxu0 0.0
      %6536 = vmatprep.subr.mxu0 0.0
      %6537 = vmatpush2.msra.mxu0 0.0
      %6538 = vmatprep.subr.mxu0 0.0
      %6539 = vmatpush2.msra.mxu0 0.0
      %6540 = vmatprep.subr.mxu0 0.0
      %6541 = vmatpush2.msra.mxu0 0.0
      %6542 = vmatprep.subr.mxu0 0.0
      %6543 = vmatpush2.msra.mxu0 0.0
      %6544 = vmatprep.subr.mxu0 0.0
      %6545 = vmatpush2.msra.mxu0 0.0
      %6546 = vmatprep.subr.mxu0 0.0
      %6547 = vmatpush2.msra.mxu0 0.0
      %6548 = vmatprep.subr.mxu0 0.0
      %6549 = vmatpush2.msra.mxu0 0.0
      %6550 = vmatprep.subr.mxu0 0.0
      %6551 = vmatpush2.msra.mxu0 0.0
      %6552 = vmatprep.subr.mxu0 0.0
      %6553 = vmatpush2.msra.mxu0 0.0
      %6554 = vmatprep.mubr.f32.mxu0 0.0
      %6555 = vmatmul.mubr.f32.gmra.mxu0 %v6410
      %v6556 = vpop.f32.mrf.mxu0
      %v6557 = vadd.f32 0.0, %v6556
      %v6558 = vpop.f32.mrf.mxu0
      %6559 = vmatprep.mubr.f32.mxu0 0.0
      %6560 = vmatmul.mubr.f32.gmra.mxu0 %v6413
      %v6561 = vpop.f32.mrf.mxu0
      %v6562 = vadd.f32 0.0, %v6561
      %v6563 = vpop.f32.mrf.mxu0
      %6564 = vmatprep.mubr.f32.mxu0 0.0
      %6565 = vmatmul.mubr.f32.gmra.mxu0 %v6416
      %v6566 = vpop.f32.mrf.mxu0
      %v6567 = vadd.f32 0.0, %v6566
      %v6568 = vpop.f32.mrf.mxu0
      %6569 = vmatprep.mubr.f32.mxu0 0.0
      %6570 = vmatmul.mubr.f32.gmra.mxu0 %v6419
      %v6571 = vpop.f32.mrf.mxu0
      %v6572 = vadd.f32 0.0, %v6571
      %v6573 = vpop.f32.mrf.mxu0
      %6574 = vmatprep.mubr.f32.mxu0 0.0
      %6575 = vmatmul.mubr.f32.gmra.mxu0 %v6422
      %v6576 = vpop.f32.mrf.mxu0
      %v6577 = vadd.f32 0.0, %v6576
      %v6578 = vpop.f32.mrf.mxu0
      %6579 = vmatprep.mubr.f32.mxu0 0.0
      %6580 = vmatmul.mubr.f32.gmra.mxu0 %v6425
      %v6581 = vpop.f32.mrf.mxu0
      %v6582 = vadd.f32 0.0, %v6581
      %v6583 = vpop.f32.mrf.mxu0
      %6584 = vmatprep.mubr.f32.mxu0 0.0
      %6585 = vmatmul.mubr.f32.gmra.mxu0 %v6428
      %v6586 = vpop.f32.mrf.mxu0
      %v6587 = vadd.f32 0.0, %v6586
      %v6588 = vpop.f32.mrf.mxu0
      %6589 = vmatprep.mubr.f32.mxu0 0.0
      %6590 = vmatmul.mubr.f32.gmra.mxu0 %v6431
      %v6591 = vpop.f32.mrf.mxu0
      %v6592 = vadd.f32 0.0, %v6591
      %v6593 = vpop.f32.mrf.mxu0
      %6594 = vmatprep.mubr.f32.mxu0 0.0
      %6595 = vmatmul.mubr.f32.gmra.mxu0 %v6434
      %v6596 = vpop.f32.mrf.mxu0
      %v6597 = vadd.f32 0.0, %v6596
      %v6598 = vpop.f32.mrf.mxu0
      %6599 = vmatprep.mubr.f32.mxu0 0.0
      %6600 = vmatmul.mubr.f32.gmra.mxu0 %v6437
      %v6601 = vpop.f32.mrf.mxu0
      %v6602 = vadd.f32 0.0, %v6601
      %v6603 = vpop.f32.mrf.mxu0
      %6604 = vmatprep.mubr.f32.mxu0 0.0
      %6605 = vmatmul.mubr.f32.gmra.mxu0 %v6440
      %v6606 = vpop.f32.mrf.mxu0
      %v6607 = vadd.f32 0.0, %v6606
      %v6608 = vpop.f32.mrf.mxu0
      %6609 = vmatprep.mubr.f32.mxu0 0.0
      %6610 = vmatmul.mubr.f32.gmra.mxu0 %v6443
      %v6611 = vpop.f32.mrf.mxu0
      %v6612 = vadd.f32 0.0, %v6611
      %v6613 = vpop.f32.mrf.mxu0
      %6614 = vmatprep.mubr.f32.mxu0 0.0
      %6615 = vmatmul.mubr.f32.gmra.mxu0 %v6446
      %v6616 = vpop.f32.mrf.mxu0
      %v6617 = vadd.f32 0.0, %v6616
      %v6618 = vpop.f32.mrf.mxu0
      %6619 = vmatprep.mubr.f32.mxu0 0.0
      %6620 = vmatmul.mubr.f32.gmra.mxu0 %v6449
      %v6621 = vpop.f32.mrf.mxu0
      %v6622 = vadd.f32 0.0, %v6621
      %v6623 = vpop.f32.mrf.mxu0
      %6624 = vmatprep.mubr.f32.mxu0 0.0
      %6625 = vmatmul.mubr.f32.gmra.mxu0 %v6452
      %v6626 = vpop.f32.mrf.mxu0
      %v6627 = vadd.f32 0.0, %v6626
      %v6628 = vpop.f32.mrf.mxu0
      %6629 = vmatprep.mubr.f32.mxu0 0.0
      %6630 = vmatmul.mubr.f32.gmra.mxu0 %v6455
      %v6631 = vpop.f32.mrf.mxu0
      %v6632 = vadd.f32 0.0, %v6631
      %v6633 = vpop.f32.mrf.mxu0
      %6634 = vmatprep.mubr.f32.mxu0 0.0
      %6635 = vmatmul.mubr.f32.gmra.mxu0 %v6458
      %v6636 = vpop.f32.mrf.mxu0
      %v6637 = vadd.f32 0.0, %v6636
      %v6638 = vpop.f32.mrf.mxu0
      %6639 = vmatprep.mubr.f32.mxu0 0.0
      %6640 = vmatmul.mubr.f32.gmra.mxu0 %v6461
      %v6641 = vpop.f32.mrf.mxu0
      %v6642 = vadd.f32 0.0, %v6641
      %v6643 = vpop.f32.mrf.mxu0
      %6644 = vmatprep.mubr.f32.mxu0 0.0
      %6645 = vmatmul.mubr.f32.gmra.mxu0 %v6464
      %v6646 = vpop.f32.mrf.mxu0
      %v6647 = vadd.f32 0.0, %v6646
      %v6648 = vpop.f32.mrf.mxu0
      %6649 = vmatprep.mubr.f32.mxu0 0.0
      %6650 = vmatmul.mubr.f32.gmra.mxu0 %v6467
      %v6651 = vpop.f32.mrf.mxu0
      %v6652 = vadd.f32 0.0, %v6651
      %v6653 = vpop.f32.mrf.mxu0
      %6654 = vmatprep.mubr.f32.mxu0 0.0
      %6655 = vmatmul.mubr.f32.gmra.mxu0 %v6470
      %v6656 = vpop.f32.mrf.mxu0
      %v6657 = vadd.f32 0.0, %v6656
      %v6658 = vpop.f32.mrf.mxu0
      %6659 = vmatprep.mubr.f32.mxu0 0.0
      %6660 = vmatmul.mubr.f32.gmra.mxu0 %v6473
      %v6661 = vpop.f32.mrf.mxu0
      %v6662 = vadd.f32 0.0, %v6661
      %v6663 = vpop.f32.mrf.mxu0
      %6664 = vmatprep.mubr.f32.mxu0 0.0
      %6665 = vmatmul.mubr.f32.gmra.mxu0 %v6476
      %v6666 = vpop.f32.mrf.mxu0
      %v6667 = vadd.f32 0.0, %v6666
      %v6668 = vpop.f32.mrf.mxu0
      %6669 = vmatprep.mubr.f32.mxu0 0.0
      %6670 = vmatmul.mubr.f32.gmra.mxu0 %v6479
      %v6671 = vpop.f32.mrf.mxu0
      %v6672 = vadd.f32 0.0, %v6671
      %v6673 = vpop.f32.mrf.mxu0
      %6674 = vmatprep.mubr.f32.mxu0 0.0
      %6675 = vmatmul.mubr.f32.gmra.mxu0 %v6482
      %v6676 = vpop.f32.mrf.mxu0
      %v6677 = vadd.f32 0.0, %v6676
      %v6678 = vpop.f32.mrf.mxu0
      %6679 = vmatprep.mubr.f32.mxu0 0.0
      %6680 = vmatmul.mubr.f32.gmra.mxu0 %v6485
      %v6681 = vpop.f32.mrf.mxu0
      %v6682 = vadd.f32 0.0, %v6681
      %v6683 = vpop.f32.mrf.mxu0
      %6684 = vmatprep.mubr.f32.mxu0 0.0
      %6685 = vmatmul.mubr.f32.gmra.mxu0 %v6488
      %v6686 = vpop.f32.mrf.mxu0
      %v6687 = vadd.f32 0.0, %v6686
      %v6688 = vpop.f32.mrf.mxu0
      %6689 = vdwg.mxu0
      %v6690 = vld [vmem:[#allocation3] sm:$0xff]
      %v6691 = vld [vmem:[#allocation3 + $0x8] sm:$0xff]
      %v6692 = vld [vmem:[#allocation3 + $0x10] sm:$0xff]
      %v6693 = vld [vmem:[#allocation3 + $0x18] sm:$0xff]
      %v6694 = vld [vmem:[#allocation3 + $0x20] sm:$0xff]
      %v6695 = vld [vmem:[#allocation3 + $0x28] sm:$0xff]
      %v6696 = vld [vmem:[#allocation3 + $0x30] sm:$0xff]
      %v6697 = vld [vmem:[#allocation3 + $0x38] sm:$0xff]
      %v6698 = vld [vmem:[#allocation3 + $0x40] sm:$0xff]
      %v6699 = vld [vmem:[#allocation3 + $0x48] sm:$0xff]
      %v6700 = vld [vmem:[#allocation3 + $0x50] sm:$0xff]
      %v6701 = vld [vmem:[#allocation3 + $0x58] sm:$0xff]
      %v6702 = vld [vmem:[#allocation3 + $0x60] sm:$0xff]
      %v6703 = vld [vmem:[#allocation3 + $0x68] sm:$0xff]
      %v6704 = vld [vmem:[#allocation3 + $0x70] sm:$0xff]
      %v6705 = vld [vmem:[#allocation3 + $0x78] sm:$0xff]
      %v6706 = vld [vmem:[#allocation3 + $0x80] sm:$0xff]
      %v6707 = vld [vmem:[#allocation3 + $0x88] sm:$0xff]
      %v6708 = vld [vmem:[#allocation3 + $0x90] sm:$0xff]
      %v6709 = vld [vmem:[#allocation3 + $0x98] sm:$0xff]
      %v6710 = vld [vmem:[#allocation3 + $0xa0] sm:$0xff]
      %v6711 = vld [vmem:[#allocation3 + $0xa8] sm:$0xff]
      %v6712 = vld [vmem:[#allocation3 + $0xb0] sm:$0xff]
      %v6713 = vld [vmem:[#allocation3 + $0xb8] sm:$0xff]
      %v6714 = vld [vmem:[#allocation3 + $0xc0] sm:$0xff]
      %v6715 = vld [vmem:[#allocation3 + $0xc8] sm:$0xff]
      %v6716 = vld [vmem:[#allocation3 + $0xd0] sm:$0xff]
      %v6717 = vadd.f32 %v6690, %v6557
      %v6718 = vadd.f32 %v6691, %v6562
      %v6719 = vadd.f32 %v6692, %v6567
      %v6720 = vadd.f32 %v6693, %v6572
      %v6721 = vadd.f32 %v6694, %v6577
      %v6722 = vadd.f32 %v6695, %v6582
      %v6723 = vadd.f32 %v6696, %v6587
      %v6724 = vadd.f32 %v6697, %v6592
      %v6725 = vadd.f32 %v6698, %v6597
      %v6726 = vadd.f32 %v6699, %v6602
      %v6727 = vadd.f32 %v6700, %v6607
      %v6728 = vadd.f32 %v6701, %v6612
      %v6729 = vadd.f32 %v6702, %v6617
      %v6730 = vadd.f32 %v6703, %v6622
      %v6731 = vadd.f32 %v6704, %v6627
      %v6732 = vadd.f32 %v6705, %v6632
      %v6733 = vadd.f32 %v6706, %v6637
      %v6734 = vadd.f32 %v6707, %v6642
      %v6735 = vadd.f32 %v6708, %v6647
      %v6736 = vadd.f32 %v6709, %v6652
      %v6737 = vadd.f32 %v6710, %v6657
      %v6738 = vadd.f32 %v6711, %v6662
      %v6739 = vadd.f32 %v6712, %v6667
      %v6740 = vadd.f32 %v6713, %v6672
      %v6741 = vadd.f32 %v6714, %v6677
      %v6742 = vadd.f32 %v6715, %v6682
      %v6743 = vadd.f32 %v6716, %v6687
      %6744 = vst.msk [vmem:[#allocation3] sm:$0xff] %vm642, %v6717
      %6745 = vst.msk [vmem:[#allocation3 + $0x8] sm:$0xff] %vm642, %v6718
      %6746 = vst.msk [vmem:[#allocation3 + $0x10] sm:$0xff] %vm642, %v6719
      %6747 = vst.msk [vmem:[#allocation3 + $0x18] sm:$0xff] %vm642, %v6720
      %6748 = vst.msk [vmem:[#allocation3 + $0x20] sm:$0xff] %vm642, %v6721
      %6749 = vst.msk [vmem:[#allocation3 + $0x28] sm:$0xff] %vm642, %v6722
      %6750 = vst.msk [vmem:[#allocation3 + $0x30] sm:$0xff] %vm642, %v6723
      %6751 = vst.msk [vmem:[#allocation3 + $0x38] sm:$0xff] %vm642, %v6724
      %6752 = vst.msk [vmem:[#allocation3 + $0x40] sm:$0xff] %vm642, %v6725
      %6753 = vst.msk [vmem:[#allocation3 + $0x48] sm:$0xff] %vm642, %v6726
      %6754 = vst.msk [vmem:[#allocation3 + $0x50] sm:$0xff] %vm642, %v6727
      %6755 = vst.msk [vmem:[#allocation3 + $0x58] sm:$0xff] %vm642, %v6728
      %6756 = vst.msk [vmem:[#allocation3 + $0x60] sm:$0xff] %vm642, %v6729
      %6757 = vst.msk [vmem:[#allocation3 + $0x68] sm:$0xff] %vm642, %v6730
      %6758 = vst.msk [vmem:[#allocation3 + $0x70] sm:$0xff] %vm642, %v6731
      %6759 = vst.msk [vmem:[#allocation3 + $0x78] sm:$0xff] %vm642, %v6732
      %6760 = vst.msk [vmem:[#allocation3 + $0x80] sm:$0xff] %vm642, %v6733
      %6761 = vst.msk [vmem:[#allocation3 + $0x88] sm:$0xff] %vm642, %v6734
      %6762 = vst.msk [vmem:[#allocation3 + $0x90] sm:$0xff] %vm642, %v6735
      %6763 = vst.msk [vmem:[#allocation3 + $0x98] sm:$0xff] %vm642, %v6736
      %6764 = vst.msk [vmem:[#allocation3 + $0xa0] sm:$0xff] %vm642, %v6737
      %6765 = vst.msk [vmem:[#allocation3 + $0xa8] sm:$0xff] %vm642, %v6738
      %6766 = vst.msk [vmem:[#allocation3 + $0xb0] sm:$0xff] %vm642, %v6739
      %6767 = vst.msk [vmem:[#allocation3 + $0xb8] sm:$0xff] %vm642, %v6740
      %6768 = vst.msk [vmem:[#allocation3 + $0xc0] sm:$0xff] %vm642, %v6741
      %6769 = vst.msk [vmem:[#allocation3 + $0xc8] sm:$0xff] %vm642, %v6742
      %6770 = vst.msk [vmem:[#allocation3 + $0xd0] sm:$0xff] %vm642, %v6743
      %v6771 = vld [vmem:[#allocation2 + $0x268] sm:$0xff]
      %v6772 = vld [vmem:[#allocation2 + $0x270] sm:$0xff]
      %v6773 = vld [vmem:[#allocation2 + $0x278] sm:$0xff]
      %v6774 = vld [vmem:[#allocation2 + $0x280] sm:$0xff]
      %v6775 = vld [vmem:[#allocation2 + $0x288] sm:$0xff]
      %v6776 = vld [vmem:[#allocation2 + $0x290] sm:$0xff]
      %v6777 = vld [vmem:[#allocation2 + $0x298] sm:$0xff]
      %v6778 = vld [vmem:[#allocation2 + $0x2a0] sm:$0xff]
      %v6779 = vld [vmem:[#allocation2 + $0x2a8] sm:$0xff]
      %v6780 = vld [vmem:[#allocation2 + $0x2b0] sm:$0xff]
      %v6781 = vld [vmem:[#allocation2 + $0x2b8] sm:$0xff]
      %v6782 = vld [vmem:[#allocation2 + $0x2c0] sm:$0xff]
      %v6783 = vld [vmem:[#allocation2 + $0x2c8] sm:$0xff]
      %v6784 = vld [vmem:[#allocation2 + $0x2d0] sm:$0xff]
      %v6785 = vld [vmem:[#allocation2 + $0x2d8] sm:$0xff]
      %v6786 = vld [vmem:[#allocation2 + $0x2e0] sm:$0xff]
      %v6787 = vld [vmem:[#allocation2 + $0x2e8] sm:$0xff]
      %v6788 = vld [vmem:[#allocation2 + $0x2f0] sm:$0xff]
      %v6789 = vld [vmem:[#allocation2 + $0x2f8] sm:$0xff]
      %v6790 = vld [vmem:[#allocation2 + $0x300] sm:$0xff]
      %v6791 = vld [vmem:[#allocation2 + $0x308] sm:$0xff]
      %v6792 = vld [vmem:[#allocation2 + $0x310] sm:$0xff]
      %v6793 = vld [vmem:[#allocation2 + $0x318] sm:$0xff]
      %v6794 = vld [vmem:[#allocation2 + $0x320] sm:$0xff]
      %v6795 = vld [vmem:[#allocation2 + $0x328] sm:$0xff]
      %v6796 = vld [vmem:[#allocation2 + $0x330] sm:$0xff]
      %v6797 = vld [vmem:[#allocation2 + $0x338] sm:$0xff]
      %v6798 = vld [vmem:[%s3 + $0x180] sm:$0xff]
      %v6799 = vld [vmem:[%s3 + $0x188] sm:$0xff]
      %v6800 = vld [vmem:[%s3 + $0x190] sm:$0xff]
      %v6801 = vld [vmem:[%s3 + $0x198] sm:$0xff]
      %v6803 = vsel %vm1968, %v6771, 0
      %v6806 = vsel %vm1968, %v6772, 0
      %v6809 = vsel %vm1968, %v6773, 0
      %v6812 = vsel %vm1968, %v6774, 0
      %v6815 = vsel %vm1968, %v6775, 0
      %v6818 = vsel %vm1968, %v6776, 0
      %v6821 = vsel %vm1968, %v6777, 0
      %v6824 = vsel %vm1968, %v6778, 0
      %v6827 = vsel %vm1968, %v6779, 0
      %v6830 = vsel %vm1968, %v6780, 0
      %v6833 = vsel %vm1968, %v6781, 0
      %v6836 = vsel %vm1968, %v6782, 0
      %v6839 = vsel %vm1968, %v6783, 0
      %v6842 = vsel %vm1968, %v6784, 0
      %v6845 = vsel %vm1968, %v6785, 0
      %v6848 = vsel %vm1968, %v6786, 0
      %v6851 = vsel %vm1968, %v6787, 0
      %v6854 = vsel %vm1968, %v6788, 0
      %v6857 = vsel %vm1968, %v6789, 0
      %v6860 = vsel %vm1968, %v6790, 0
      %v6863 = vsel %vm1968, %v6791, 0
      %v6866 = vsel %vm1968, %v6792, 0
      %v6869 = vsel %vm1968, %v6793, 0
      %v6872 = vsel %vm1968, %v6794, 0
      %v6875 = vsel %vm1968, %v6795, 0
      %v6878 = vsel %vm1968, %v6796, 0
      %v6881 = vsel %vm1968, %v6797, 0
      %6883 = vmatprep.subr.mxu0 0.0
      %6884 = vmatpush1.msra.mxu0 0.0
      %6885 = vmatprep.subr.mxu0 0.0
      %6886 = vmatpush1.msra.mxu0 0.0
      %6887 = vmatprep.subr.mxu0 0.0
      %6888 = vmatpush1.msra.mxu0 0.0
      %6889 = vmatprep.subr.mxu0 0.0
      %6890 = vmatpush1.msra.mxu0 0.0
      %6891 = vmatprep.subr.mxu0 0.0
      %6892 = vmatpush1.msra.mxu0 0.0
      %6893 = vmatprep.subr.mxu0 0.0
      %6894 = vmatpush1.msra.mxu0 0.0
      %6895 = vmatprep.subr.mxu0 0.0
      %6896 = vmatpush1.msra.mxu0 0.0
      %6897 = vmatprep.subr.mxu0 0.0
      %6898 = vmatpush1.msra.mxu0 0.0
      %6899 = vmatprep.subr.mxu0 0.0
      %6900 = vmatpush1.msra.mxu0 0.0
      %6901 = vmatprep.subr.mxu0 0.0
      %6902 = vmatpush1.msra.mxu0 0.0
      %6903 = vmatprep.subr.mxu0 0.0
      %6904 = vmatpush1.msra.mxu0 0.0
      %6905 = vmatprep.subr.mxu0 0.0
      %6906 = vmatpush1.msra.mxu0 0.0
      %6907 = vmatprep.subr.mxu0 0.0
      %6908 = vmatpush1.msra.mxu0 %v6801
      %6909 = vmatprep.subr.mxu0 0.0
      %6910 = vmatpush1.msra.mxu0 %v6800
      %6911 = vmatprep.subr.mxu0 0.0
      %6912 = vmatpush1.msra.mxu0 %v6799
      %6913 = vmatprep.subr.mxu0 0.0
      %6914 = vmatpush1.msra.mxu0 %v6798
      %6915 = vmatprep.subr.mxu0 0.0
      %6916 = vmatpush2.msra.mxu0 0.0
      %6917 = vmatprep.subr.mxu0 0.0
      %6918 = vmatpush2.msra.mxu0 0.0
      %6919 = vmatprep.subr.mxu0 0.0
      %6920 = vmatpush2.msra.mxu0 0.0
      %6921 = vmatprep.subr.mxu0 0.0
      %6922 = vmatpush2.msra.mxu0 0.0
      %6923 = vmatprep.subr.mxu0 0.0
      %6924 = vmatpush2.msra.mxu0 0.0
      %6925 = vmatprep.subr.mxu0 0.0
      %6926 = vmatpush2.msra.mxu0 0.0
      %6927 = vmatprep.subr.mxu0 0.0
      %6928 = vmatpush2.msra.mxu0 0.0
      %6929 = vmatprep.subr.mxu0 0.0
      %6930 = vmatpush2.msra.mxu0 0.0
      %6931 = vmatprep.subr.mxu0 0.0
      %6932 = vmatpush2.msra.mxu0 0.0
      %6933 = vmatprep.subr.mxu0 0.0
      %6934 = vmatpush2.msra.mxu0 0.0
      %6935 = vmatprep.subr.mxu0 0.0
      %6936 = vmatpush2.msra.mxu0 0.0
      %6937 = vmatprep.subr.mxu0 0.0
      %6938 = vmatpush2.msra.mxu0 0.0
      %6939 = vmatprep.subr.mxu0 0.0
      %6940 = vmatpush2.msra.mxu0 0.0
      %6941 = vmatprep.subr.mxu0 0.0
      %6942 = vmatpush2.msra.mxu0 0.0
      %6943 = vmatprep.subr.mxu0 0.0
      %6944 = vmatpush2.msra.mxu0 0.0
      %6945 = vmatprep.subr.mxu0 0.0
      %6946 = vmatpush2.msra.mxu0 0.0
      %6947 = vmatprep.mubr.f32.mxu0 0.0
      %6948 = vmatmul.mubr.f32.gmra.mxu0 %v6803
      %v6949 = vpop.f32.mrf.mxu0
      %v6950 = vadd.f32 0.0, %v6949
      %v6951 = vpop.f32.mrf.mxu0
      %6952 = vmatprep.mubr.f32.mxu0 0.0
      %6953 = vmatmul.mubr.f32.gmra.mxu0 %v6806
      %v6954 = vpop.f32.mrf.mxu0
      %v6955 = vadd.f32 0.0, %v6954
      %v6956 = vpop.f32.mrf.mxu0
      %6957 = vmatprep.mubr.f32.mxu0 0.0
      %6958 = vmatmul.mubr.f32.gmra.mxu0 %v6809
      %v6959 = vpop.f32.mrf.mxu0
      %v6960 = vadd.f32 0.0, %v6959
      %v6961 = vpop.f32.mrf.mxu0
      %6962 = vmatprep.mubr.f32.mxu0 0.0
      %6963 = vmatmul.mubr.f32.gmra.mxu0 %v6812
      %v6964 = vpop.f32.mrf.mxu0
      %v6965 = vadd.f32 0.0, %v6964
      %v6966 = vpop.f32.mrf.mxu0
      %6967 = vmatprep.mubr.f32.mxu0 0.0
      %6968 = vmatmul.mubr.f32.gmra.mxu0 %v6815
      %v6969 = vpop.f32.mrf.mxu0
      %v6970 = vadd.f32 0.0, %v6969
      %v6971 = vpop.f32.mrf.mxu0
      %6972 = vmatprep.mubr.f32.mxu0 0.0
      %6973 = vmatmul.mubr.f32.gmra.mxu0 %v6818
      %v6974 = vpop.f32.mrf.mxu0
      %v6975 = vadd.f32 0.0, %v6974
      %v6976 = vpop.f32.mrf.mxu0
      %6977 = vmatprep.mubr.f32.mxu0 0.0
      %6978 = vmatmul.mubr.f32.gmra.mxu0 %v6821
      %v6979 = vpop.f32.mrf.mxu0
      %v6980 = vadd.f32 0.0, %v6979
      %v6981 = vpop.f32.mrf.mxu0
      %6982 = vmatprep.mubr.f32.mxu0 0.0
      %6983 = vmatmul.mubr.f32.gmra.mxu0 %v6824
      %v6984 = vpop.f32.mrf.mxu0
      %v6985 = vadd.f32 0.0, %v6984
      %v6986 = vpop.f32.mrf.mxu0
      %6987 = vmatprep.mubr.f32.mxu0 0.0
      %6988 = vmatmul.mubr.f32.gmra.mxu0 %v6827
      %v6989 = vpop.f32.mrf.mxu0
      %v6990 = vadd.f32 0.0, %v6989
      %v6991 = vpop.f32.mrf.mxu0
      %6992 = vmatprep.mubr.f32.mxu0 0.0
      %6993 = vmatmul.mubr.f32.gmra.mxu0 %v6830
      %v6994 = vpop.f32.mrf.mxu0
      %v6995 = vadd.f32 0.0, %v6994
      %v6996 = vpop.f32.mrf.mxu0
      %6997 = vmatprep.mubr.f32.mxu0 0.0
      %6998 = vmatmul.mubr.f32.gmra.mxu0 %v6833
      %v6999 = vpop.f32.mrf.mxu0
      %v7000 = vadd.f32 0.0, %v6999
      %v7001 = vpop.f32.mrf.mxu0
      %7002 = vmatprep.mubr.f32.mxu0 0.0
      %7003 = vmatmul.mubr.f32.gmra.mxu0 %v6836
      %v7004 = vpop.f32.mrf.mxu0
      %v7005 = vadd.f32 0.0, %v7004
      %v7006 = vpop.f32.mrf.mxu0
      %7007 = vmatprep.mubr.f32.mxu0 0.0
      %7008 = vmatmul.mubr.f32.gmra.mxu0 %v6839
      %v7009 = vpop.f32.mrf.mxu0
      %v7010 = vadd.f32 0.0, %v7009
      %v7011 = vpop.f32.mrf.mxu0
      %7012 = vmatprep.mubr.f32.mxu0 0.0
      %7013 = vmatmul.mubr.f32.gmra.mxu0 %v6842
      %v7014 = vpop.f32.mrf.mxu0
      %v7015 = vadd.f32 0.0, %v7014
      %v7016 = vpop.f32.mrf.mxu0
      %7017 = vmatprep.mubr.f32.mxu0 0.0
      %7018 = vmatmul.mubr.f32.gmra.mxu0 %v6845
      %v7019 = vpop.f32.mrf.mxu0
      %v7020 = vadd.f32 0.0, %v7019
      %v7021 = vpop.f32.mrf.mxu0
      %7022 = vmatprep.mubr.f32.mxu0 0.0
      %7023 = vmatmul.mubr.f32.gmra.mxu0 %v6848
      %v7024 = vpop.f32.mrf.mxu0
      %v7025 = vadd.f32 0.0, %v7024
      %v7026 = vpop.f32.mrf.mxu0
      %7027 = vmatprep.mubr.f32.mxu0 0.0
      %7028 = vmatmul.mubr.f32.gmra.mxu0 %v6851
      %v7029 = vpop.f32.mrf.mxu0
      %v7030 = vadd.f32 0.0, %v7029
      %v7031 = vpop.f32.mrf.mxu0
      %7032 = vmatprep.mubr.f32.mxu0 0.0
      %7033 = vmatmul.mubr.f32.gmra.mxu0 %v6854
      %v7034 = vpop.f32.mrf.mxu0
      %v7035 = vadd.f32 0.0, %v7034
      %v7036 = vpop.f32.mrf.mxu0
      %7037 = vmatprep.mubr.f32.mxu0 0.0
      %7038 = vmatmul.mubr.f32.gmra.mxu0 %v6857
      %v7039 = vpop.f32.mrf.mxu0
      %v7040 = vadd.f32 0.0, %v7039
      %v7041 = vpop.f32.mrf.mxu0
      %7042 = vmatprep.mubr.f32.mxu0 0.0
      %7043 = vmatmul.mubr.f32.gmra.mxu0 %v6860
      %v7044 = vpop.f32.mrf.mxu0
      %v7045 = vadd.f32 0.0, %v7044
      %v7046 = vpop.f32.mrf.mxu0
      %7047 = vmatprep.mubr.f32.mxu0 0.0
      %7048 = vmatmul.mubr.f32.gmra.mxu0 %v6863
      %v7049 = vpop.f32.mrf.mxu0
      %v7050 = vadd.f32 0.0, %v7049
      %v7051 = vpop.f32.mrf.mxu0
      %7052 = vmatprep.mubr.f32.mxu0 0.0
      %7053 = vmatmul.mubr.f32.gmra.mxu0 %v6866
      %v7054 = vpop.f32.mrf.mxu0
      %v7055 = vadd.f32 0.0, %v7054
      %v7056 = vpop.f32.mrf.mxu0
      %7057 = vmatprep.mubr.f32.mxu0 0.0
      %7058 = vmatmul.mubr.f32.gmra.mxu0 %v6869
      %v7059 = vpop.f32.mrf.mxu0
      %v7060 = vadd.f32 0.0, %v7059
      %v7061 = vpop.f32.mrf.mxu0
      %7062 = vmatprep.mubr.f32.mxu0 0.0
      %7063 = vmatmul.mubr.f32.gmra.mxu0 %v6872
      %v7064 = vpop.f32.mrf.mxu0
      %v7065 = vadd.f32 0.0, %v7064
      %v7066 = vpop.f32.mrf.mxu0
      %7067 = vmatprep.mubr.f32.mxu0 0.0
      %7068 = vmatmul.mubr.f32.gmra.mxu0 %v6875
      %v7069 = vpop.f32.mrf.mxu0
      %v7070 = vadd.f32 0.0, %v7069
      %v7071 = vpop.f32.mrf.mxu0
      %7072 = vmatprep.mubr.f32.mxu0 0.0
      %7073 = vmatmul.mubr.f32.gmra.mxu0 %v6878
      %v7074 = vpop.f32.mrf.mxu0
      %v7075 = vadd.f32 0.0, %v7074
      %v7076 = vpop.f32.mrf.mxu0
      %7077 = vmatprep.mubr.f32.mxu0 0.0
      %7078 = vmatmul.mubr.f32.gmra.mxu0 %v6881
      %v7079 = vpop.f32.mrf.mxu0
      %v7080 = vadd.f32 0.0, %v7079
      %v7081 = vpop.f32.mrf.mxu0
      %7082 = vdwg.mxu0
      %v7083 = vld [vmem:[#allocation3] sm:$0xff]
      %v7084 = vld [vmem:[#allocation3 + $0x8] sm:$0xff]
      %v7085 = vld [vmem:[#allocation3 + $0x10] sm:$0xff]
      %v7086 = vld [vmem:[#allocation3 + $0x18] sm:$0xff]
      %v7087 = vld [vmem:[#allocation3 + $0x20] sm:$0xff]
      %v7088 = vld [vmem:[#allocation3 + $0x28] sm:$0xff]
      %v7089 = vld [vmem:[#allocation3 + $0x30] sm:$0xff]
      %v7090 = vld [vmem:[#allocation3 + $0x38] sm:$0xff]
      %v7091 = vld [vmem:[#allocation3 + $0x40] sm:$0xff]
      %v7092 = vld [vmem:[#allocation3 + $0x48] sm:$0xff]
      %v7093 = vld [vmem:[#allocation3 + $0x50] sm:$0xff]
      %v7094 = vld [vmem:[#allocation3 + $0x58] sm:$0xff]
      %v7095 = vld [vmem:[#allocation3 + $0x60] sm:$0xff]
      %v7096 = vld [vmem:[#allocation3 + $0x68] sm:$0xff]
      %v7097 = vld [vmem:[#allocation3 + $0x70] sm:$0xff]
      %v7098 = vld [vmem:[#allocation3 + $0x78] sm:$0xff]
      %v7099 = vld [vmem:[#allocation3 + $0x80] sm:$0xff]
      %v7100 = vld [vmem:[#allocation3 + $0x88] sm:$0xff]
      %v7101 = vld [vmem:[#allocation3 + $0x90] sm:$0xff]
      %v7102 = vld [vmem:[#allocation3 + $0x98] sm:$0xff]
      %v7103 = vld [vmem:[#allocation3 + $0xa0] sm:$0xff]
      %v7104 = vld [vmem:[#allocation3 + $0xa8] sm:$0xff]
      %v7105 = vld [vmem:[#allocation3 + $0xb0] sm:$0xff]
      %v7106 = vld [vmem:[#allocation3 + $0xb8] sm:$0xff]
      %v7107 = vld [vmem:[#allocation3 + $0xc0] sm:$0xff]
      %v7108 = vld [vmem:[#allocation3 + $0xc8] sm:$0xff]
      %v7109 = vld [vmem:[#allocation3 + $0xd0] sm:$0xff]
      %v7110 = vadd.f32 %v7083, %v6950
      %v7111 = vadd.f32 %v7084, %v6955
      %v7112 = vadd.f32 %v7085, %v6960
      %v7113 = vadd.f32 %v7086, %v6965
      %v7114 = vadd.f32 %v7087, %v6970
      %v7115 = vadd.f32 %v7088, %v6975
      %v7116 = vadd.f32 %v7089, %v6980
      %v7117 = vadd.f32 %v7090, %v6985
      %v7118 = vadd.f32 %v7091, %v6990
      %v7119 = vadd.f32 %v7092, %v6995
      %v7120 = vadd.f32 %v7093, %v7000
      %v7121 = vadd.f32 %v7094, %v7005
      %v7122 = vadd.f32 %v7095, %v7010
      %v7123 = vadd.f32 %v7096, %v7015
      %v7124 = vadd.f32 %v7097, %v7020
      %v7125 = vadd.f32 %v7098, %v7025
      %v7126 = vadd.f32 %v7099, %v7030
      %v7127 = vadd.f32 %v7100, %v7035
      %v7128 = vadd.f32 %v7101, %v7040
      %v7129 = vadd.f32 %v7102, %v7045
      %v7130 = vadd.f32 %v7103, %v7050
      %v7131 = vadd.f32 %v7104, %v7055
      %v7132 = vadd.f32 %v7105, %v7060
      %v7133 = vadd.f32 %v7106, %v7065
      %v7134 = vadd.f32 %v7107, %v7070
      %v7135 = vadd.f32 %v7108, %v7075
      %v7136 = vadd.f32 %v7109, %v7080
      %7137 = vst.msk [vmem:[#allocation3] sm:$0xff] %vm642, %v7110
      %7138 = vst.msk [vmem:[#allocation3 + $0x8] sm:$0xff] %vm642, %v7111
      %7139 = vst.msk [vmem:[#allocation3 + $0x10] sm:$0xff] %vm642, %v7112
      %7140 = vst.msk [vmem:[#allocation3 + $0x18] sm:$0xff] %vm642, %v7113
      %7141 = vst.msk [vmem:[#allocation3 + $0x20] sm:$0xff] %vm642, %v7114
      %7142 = vst.msk [vmem:[#allocation3 + $0x28] sm:$0xff] %vm642, %v7115
      %7143 = vst.msk [vmem:[#allocation3 + $0x30] sm:$0xff] %vm642, %v7116
      %7144 = vst.msk [vmem:[#allocation3 + $0x38] sm:$0xff] %vm642, %v7117
      %7145 = vst.msk [vmem:[#allocation3 + $0x40] sm:$0xff] %vm642, %v7118
      %7146 = vst.msk [vmem:[#allocation3 + $0x48] sm:$0xff] %vm642, %v7119
      %7147 = vst.msk [vmem:[#allocation3 + $0x50] sm:$0xff] %vm642, %v7120
      %7148 = vst.msk [vmem:[#allocation3 + $0x58] sm:$0xff] %vm642, %v7121
      %7149 = vst.msk [vmem:[#allocation3 + $0x60] sm:$0xff] %vm642, %v7122
      %7150 = vst.msk [vmem:[#allocation3 + $0x68] sm:$0xff] %vm642, %v7123
      %7151 = vst.msk [vmem:[#allocation3 + $0x70] sm:$0xff] %vm642, %v7124
      %7152 = vst.msk [vmem:[#allocation3 + $0x78] sm:$0xff] %vm642, %v7125
      %7153 = vst.msk [vmem:[#allocation3 + $0x80] sm:$0xff] %vm642, %v7126
      %7154 = vst.msk [vmem:[#allocation3 + $0x88] sm:$0xff] %vm642, %v7127
      %7155 = vst.msk [vmem:[#allocation3 + $0x90] sm:$0xff] %vm642, %v7128
      %7156 = vst.msk [vmem:[#allocation3 + $0x98] sm:$0xff] %vm642, %v7129
      %7157 = vst.msk [vmem:[#allocation3 + $0xa0] sm:$0xff] %vm642, %v7130
      %7158 = vst.msk [vmem:[#allocation3 + $0xa8] sm:$0xff] %vm642, %v7131
      %7159 = vst.msk [vmem:[#allocation3 + $0xb0] sm:$0xff] %vm642, %v7132
      %7160 = vst.msk [vmem:[#allocation3 + $0xb8] sm:$0xff] %vm642, %v7133
      %7161 = vst.msk [vmem:[#allocation3 + $0xc0] sm:$0xff] %vm642, %v7134
      %7162 = vst.msk [vmem:[#allocation3 + $0xc8] sm:$0xff] %vm642, %v7135
      %7163 = vst.msk [vmem:[#allocation3 + $0xd0] sm:$0xff] %vm642, %v7136
      %v7164 = vld [vmem:[#allocation2 + $0x380] sm:$0xff]
      %v7165 = vld [vmem:[#allocation2 + $0x388] sm:$0xff]
      %v7166 = vld [vmem:[#allocation2 + $0x390] sm:$0xff]
      %v7167 = vld [vmem:[#allocation2 + $0x398] sm:$0xff]
      %v7168 = vld [vmem:[#allocation2 + $0x3a0] sm:$0xff]
      %v7169 = vld [vmem:[#allocation2 + $0x3a8] sm:$0xff]
      %v7170 = vld [vmem:[#allocation2 + $0x3b0] sm:$0xff]
      %v7171 = vld [vmem:[#allocation2 + $0x3b8] sm:$0xff]
      %v7172 = vld [vmem:[#allocation2 + $0x3c0] sm:$0xff]
      %v7173 = vld [vmem:[#allocation2 + $0x3c8] sm:$0xff]
      %v7174 = vld [vmem:[#allocation2 + $0x3d0] sm:$0xff]
      %v7175 = vld [vmem:[#allocation2 + $0x3d8] sm:$0xff]
      %v7176 = vld [vmem:[#allocation2 + $0x3e0] sm:$0xff]
      %v7177 = vld [vmem:[#allocation2 + $0x3e8] sm:$0xff]
      %v7178 = vld [vmem:[#allocation2 + $0x3f0] sm:$0xff]
      %v7179 = vld [vmem:[#allocation2 + $0x3f8] sm:$0xff]
      %v7180 = vld [vmem:[#allocation2 + $0x400] sm:$0xff]
      %v7181 = vld [vmem:[#allocation2 + $0x408] sm:$0xff]
      %v7182 = vld [vmem:[#allocation2 + $0x410] sm:$0xff]
      %v7183 = vld [vmem:[#allocation2 + $0x418] sm:$0xff]
      %v7184 = vld [vmem:[#allocation2 + $0x420] sm:$0xff]
      %v7185 = vld [vmem:[#allocation2 + $0x428] sm:$0xff]
      %v7186 = vld [vmem:[#allocation2 + $0x430] sm:$0xff]
      %v7187 = vld [vmem:[#allocation2 + $0x438] sm:$0xff]
      %v7188 = vld [vmem:[#allocation2 + $0x440] sm:$0xff]
      %v7189 = vld [vmem:[#allocation2 + $0x448] sm:$0xff]
      %v7190 = vld [vmem:[#allocation2 + $0x450] sm:$0xff]
      %v7191 = vld [vmem:[%s3 + $0x1a0] sm:$0xff]
      %v7192 = vld [vmem:[%s3 + $0x1a8] sm:$0xff]
      %v7193 = vld [vmem:[%s3 + $0x1b0] sm:$0xff]
      %v7194 = vld [vmem:[%s3 + $0x1b8] sm:$0xff]
      %v7196 = vsel %vm1968, %v7164, 0
      %v7199 = vsel %vm1968, %v7165, 0
      %v7202 = vsel %vm1968, %v7166, 0
      %v7205 = vsel %vm1968, %v7167, 0
      %v7208 = vsel %vm1968, %v7168, 0
      %v7211 = vsel %vm1968, %v7169, 0
      %v7214 = vsel %vm1968, %v7170, 0
      %v7217 = vsel %vm1968, %v7171, 0
      %v7220 = vsel %vm1968, %v7172, 0
      %v7223 = vsel %vm1968, %v7173, 0
      %v7226 = vsel %vm1968, %v7174, 0
      %v7229 = vsel %vm1968, %v7175, 0
      %v7232 = vsel %vm1968, %v7176, 0
      %v7235 = vsel %vm1968, %v7177, 0
      %v7238 = vsel %vm1968, %v7178, 0
      %v7241 = vsel %vm1968, %v7179, 0
      %v7244 = vsel %vm1968, %v7180, 0
      %v7247 = vsel %vm1968, %v7181, 0
      %v7250 = vsel %vm1968, %v7182, 0
      %v7253 = vsel %vm1968, %v7183, 0
      %v7256 = vsel %vm1968, %v7184, 0
      %v7259 = vsel %vm1968, %v7185, 0
      %v7262 = vsel %vm1968, %v7186, 0
      %v7265 = vsel %vm1968, %v7187, 0
      %v7268 = vsel %vm1968, %v7188, 0
      %v7271 = vsel %vm1968, %v7189, 0
      %v7274 = vsel %vm1968, %v7190, 0
      %7276 = vmatprep.subr.mxu0 0.0
      %7277 = vmatpush1.msra.mxu0 0.0
      %7278 = vmatprep.subr.mxu0 0.0
      %7279 = vmatpush1.msra.mxu0 0.0
      %7280 = vmatprep.subr.mxu0 0.0
      %7281 = vmatpush1.msra.mxu0 0.0
      %7282 = vmatprep.subr.mxu0 0.0
      %7283 = vmatpush1.msra.mxu0 0.0
      %7284 = vmatprep.subr.mxu0 0.0
      %7285 = vmatpush1.msra.mxu0 0.0
      %7286 = vmatprep.subr.mxu0 0.0
      %7287 = vmatpush1.msra.mxu0 0.0
      %7288 = vmatprep.subr.mxu0 0.0
      %7289 = vmatpush1.msra.mxu0 0.0
      %7290 = vmatprep.subr.mxu0 0.0
      %7291 = vmatpush1.msra.mxu0 0.0
      %7292 = vmatprep.subr.mxu0 0.0
      %7293 = vmatpush1.msra.mxu0 0.0
      %7294 = vmatprep.subr.mxu0 0.0
      %7295 = vmatpush1.msra.mxu0 0.0
      %7296 = vmatprep.subr.mxu0 0.0
      %7297 = vmatpush1.msra.mxu0 0.0
      %7298 = vmatprep.subr.mxu0 0.0
      %7299 = vmatpush1.msra.mxu0 0.0
      %7300 = vmatprep.subr.mxu0 0.0
      %7301 = vmatpush1.msra.mxu0 %v7194
      %7302 = vmatprep.subr.mxu0 0.0
      %7303 = vmatpush1.msra.mxu0 %v7193
      %7304 = vmatprep.subr.mxu0 0.0
      %7305 = vmatpush1.msra.mxu0 %v7192
      %7306 = vmatprep.subr.mxu0 0.0
      %7307 = vmatpush1.msra.mxu0 %v7191
      %7308 = vmatprep.subr.mxu0 0.0
      %7309 = vmatpush2.msra.mxu0 0.0
      %7310 = vmatprep.subr.mxu0 0.0
      %7311 = vmatpush2.msra.mxu0 0.0
      %7312 = vmatprep.subr.mxu0 0.0
      %7313 = vmatpush2.msra.mxu0 0.0
      %7314 = vmatprep.subr.mxu0 0.0
      %7315 = vmatpush2.msra.mxu0 0.0
      %7316 = vmatprep.subr.mxu0 0.0
      %7317 = vmatpush2.msra.mxu0 0.0
      %7318 = vmatprep.subr.mxu0 0.0
      %7319 = vmatpush2.msra.mxu0 0.0
      %7320 = vmatprep.subr.mxu0 0.0
      %7321 = vmatpush2.msra.mxu0 0.0
      %7322 = vmatprep.subr.mxu0 0.0
      %7323 = vmatpush2.msra.mxu0 0.0
      %7324 = vmatprep.subr.mxu0 0.0
      %7325 = vmatpush2.msra.mxu0 0.0
      %7326 = vmatprep.subr.mxu0 0.0
      %7327 = vmatpush2.msra.mxu0 0.0
      %7328 = vmatprep.subr.mxu0 0.0
      %7329 = vmatpush2.msra.mxu0 0.0
      %7330 = vmatprep.subr.mxu0 0.0
      %7331 = vmatpush2.msra.mxu0 0.0
      %7332 = vmatprep.subr.mxu0 0.0
      %7333 = vmatpush2.msra.mxu0 0.0
      %7334 = vmatprep.subr.mxu0 0.0
      %7335 = vmatpush2.msra.mxu0 0.0
      %7336 = vmatprep.subr.mxu0 0.0
      %7337 = vmatpush2.msra.mxu0 0.0
      %7338 = vmatprep.subr.mxu0 0.0
      %7339 = vmatpush2.msra.mxu0 0.0
      %7340 = vmatprep.mubr.f32.mxu0 0.0
      %7341 = vmatmul.mubr.f32.gmra.mxu0 %v7196
      %v7342 = vpop.f32.mrf.mxu0
      %v7343 = vadd.f32 0.0, %v7342
      %v7344 = vpop.f32.mrf.mxu0
      %7345 = vmatprep.mubr.f32.mxu0 0.0
      %7346 = vmatmul.mubr.f32.gmra.mxu0 %v7199
      %v7347 = vpop.f32.mrf.mxu0
      %v7348 = vadd.f32 0.0, %v7347
      %v7349 = vpop.f32.mrf.mxu0
      %7350 = vmatprep.mubr.f32.mxu0 0.0
      %7351 = vmatmul.mubr.f32.gmra.mxu0 %v7202
      %v7352 = vpop.f32.mrf.mxu0
      %v7353 = vadd.f32 0.0, %v7352
      %v7354 = vpop.f32.mrf.mxu0
      %7355 = vmatprep.mubr.f32.mxu0 0.0
      %7356 = vmatmul.mubr.f32.gmra.mxu0 %v7205
      %v7357 = vpop.f32.mrf.mxu0
      %v7358 = vadd.f32 0.0, %v7357
      %v7359 = vpop.f32.mrf.mxu0
      %7360 = vmatprep.mubr.f32.mxu0 0.0
      %7361 = vmatmul.mubr.f32.gmra.mxu0 %v7208
      %v7362 = vpop.f32.mrf.mxu0
      %v7363 = vadd.f32 0.0, %v7362
      %v7364 = vpop.f32.mrf.mxu0
      %7365 = vmatprep.mubr.f32.mxu0 0.0
      %7366 = vmatmul.mubr.f32.gmra.mxu0 %v7211
      %v7367 = vpop.f32.mrf.mxu0
      %v7368 = vadd.f32 0.0, %v7367
      %v7369 = vpop.f32.mrf.mxu0
      %7370 = vmatprep.mubr.f32.mxu0 0.0
      %7371 = vmatmul.mubr.f32.gmra.mxu0 %v7214
      %v7372 = vpop.f32.mrf.mxu0
      %v7373 = vadd.f32 0.0, %v7372
      %v7374 = vpop.f32.mrf.mxu0
      %7375 = vmatprep.mubr.f32.mxu0 0.0
      %7376 = vmatmul.mubr.f32.gmra.mxu0 %v7217
      %v7377 = vpop.f32.mrf.mxu0
      %v7378 = vadd.f32 0.0, %v7377
      %v7379 = vpop.f32.mrf.mxu0
      %7380 = vmatprep.mubr.f32.mxu0 0.0
      %7381 = vmatmul.mubr.f32.gmra.mxu0 %v7220
      %v7382 = vpop.f32.mrf.mxu0
      %v7383 = vadd.f32 0.0, %v7382
      %v7384 = vpop.f32.mrf.mxu0
      %7385 = vmatprep.mubr.f32.mxu0 0.0
      %7386 = vmatmul.mubr.f32.gmra.mxu0 %v7223
      %v7387 = vpop.f32.mrf.mxu0
      %v7388 = vadd.f32 0.0, %v7387
      %v7389 = vpop.f32.mrf.mxu0
      %7390 = vmatprep.mubr.f32.mxu0 0.0
      %7391 = vmatmul.mubr.f32.gmra.mxu0 %v7226
      %v7392 = vpop.f32.mrf.mxu0
      %v7393 = vadd.f32 0.0, %v7392
      %v7394 = vpop.f32.mrf.mxu0
      %7395 = vmatprep.mubr.f32.mxu0 0.0
      %7396 = vmatmul.mubr.f32.gmra.mxu0 %v7229
      %v7397 = vpop.f32.mrf.mxu0
      %v7398 = vadd.f32 0.0, %v7397
      %v7399 = vpop.f32.mrf.mxu0
      %7400 = vmatprep.mubr.f32.mxu0 0.0
      %7401 = vmatmul.mubr.f32.gmra.mxu0 %v7232
      %v7402 = vpop.f32.mrf.mxu0
      %v7403 = vadd.f32 0.0, %v7402
      %v7404 = vpop.f32.mrf.mxu0
      %7405 = vmatprep.mubr.f32.mxu0 0.0
      %7406 = vmatmul.mubr.f32.gmra.mxu0 %v7235
      %v7407 = vpop.f32.mrf.mxu0
      %v7408 = vadd.f32 0.0, %v7407
      %v7409 = vpop.f32.mrf.mxu0
      %7410 = vmatprep.mubr.f32.mxu0 0.0
      %7411 = vmatmul.mubr.f32.gmra.mxu0 %v7238
      %v7412 = vpop.f32.mrf.mxu0
      %v7413 = vadd.f32 0.0, %v7412
      %v7414 = vpop.f32.mrf.mxu0
      %7415 = vmatprep.mubr.f32.mxu0 0.0
      %7416 = vmatmul.mubr.f32.gmra.mxu0 %v7241
      %v7417 = vpop.f32.mrf.mxu0
      %v7418 = vadd.f32 0.0, %v7417
      %v7419 = vpop.f32.mrf.mxu0
      %7420 = vmatprep.mubr.f32.mxu0 0.0
      %7421 = vmatmul.mubr.f32.gmra.mxu0 %v7244
      %v7422 = vpop.f32.mrf.mxu0
      %v7423 = vadd.f32 0.0, %v7422
      %v7424 = vpop.f32.mrf.mxu0
      %7425 = vmatprep.mubr.f32.mxu0 0.0
      %7426 = vmatmul.mubr.f32.gmra.mxu0 %v7247
      %v7427 = vpop.f32.mrf.mxu0
      %v7428 = vadd.f32 0.0, %v7427
      %v7429 = vpop.f32.mrf.mxu0
      %7430 = vmatprep.mubr.f32.mxu0 0.0
      %7431 = vmatmul.mubr.f32.gmra.mxu0 %v7250
      %v7432 = vpop.f32.mrf.mxu0
      %v7433 = vadd.f32 0.0, %v7432
      %v7434 = vpop.f32.mrf.mxu0
      %7435 = vmatprep.mubr.f32.mxu0 0.0
      %7436 = vmatmul.mubr.f32.gmra.mxu0 %v7253
      %v7437 = vpop.f32.mrf.mxu0
      %v7438 = vadd.f32 0.0, %v7437
      %v7439 = vpop.f32.mrf.mxu0
      %7440 = vmatprep.mubr.f32.mxu0 0.0
      %7441 = vmatmul.mubr.f32.gmra.mxu0 %v7256
      %v7442 = vpop.f32.mrf.mxu0
      %v7443 = vadd.f32 0.0, %v7442
      %v7444 = vpop.f32.mrf.mxu0
      %7445 = vmatprep.mubr.f32.mxu0 0.0
      %7446 = vmatmul.mubr.f32.gmra.mxu0 %v7259
      %v7447 = vpop.f32.mrf.mxu0
      %v7448 = vadd.f32 0.0, %v7447
      %v7449 = vpop.f32.mrf.mxu0
      %7450 = vmatprep.mubr.f32.mxu0 0.0
      %7451 = vmatmul.mubr.f32.gmra.mxu0 %v7262
      %v7452 = vpop.f32.mrf.mxu0
      %v7453 = vadd.f32 0.0, %v7452
      %v7454 = vpop.f32.mrf.mxu0
      %7455 = vmatprep.mubr.f32.mxu0 0.0
      %7456 = vmatmul.mubr.f32.gmra.mxu0 %v7265
      %v7457 = vpop.f32.mrf.mxu0
      %v7458 = vadd.f32 0.0, %v7457
      %v7459 = vpop.f32.mrf.mxu0
      %7460 = vmatprep.mubr.f32.mxu0 0.0
      %7461 = vmatmul.mubr.f32.gmra.mxu0 %v7268
      %v7462 = vpop.f32.mrf.mxu0
      %v7463 = vadd.f32 0.0, %v7462
      %v7464 = vpop.f32.mrf.mxu0
      %7465 = vmatprep.mubr.f32.mxu0 0.0
      %7466 = vmatmul.mubr.f32.gmra.mxu0 %v7271
      %v7467 = vpop.f32.mrf.mxu0
      %v7468 = vadd.f32 0.0, %v7467
      %v7469 = vpop.f32.mrf.mxu0
      %7470 = vmatprep.mubr.f32.mxu0 0.0
      %7471 = vmatmul.mubr.f32.gmra.mxu0 %v7274
      %v7472 = vpop.f32.mrf.mxu0
      %v7473 = vadd.f32 0.0, %v7472
      %v7474 = vpop.f32.mrf.mxu0
      %7475 = vdwg.mxu0
      %v7476 = vld [vmem:[#allocation3] sm:$0xff]
      %v7477 = vld [vmem:[#allocation3 + $0x8] sm:$0xff]
      %v7478 = vld [vmem:[#allocation3 + $0x10] sm:$0xff]
      %v7479 = vld [vmem:[#allocation3 + $0x18] sm:$0xff]
      %v7480 = vld [vmem:[#allocation3 + $0x20] sm:$0xff]
      %v7481 = vld [vmem:[#allocation3 + $0x28] sm:$0xff]
      %v7482 = vld [vmem:[#allocation3 + $0x30] sm:$0xff]
      %v7483 = vld [vmem:[#allocation3 + $0x38] sm:$0xff]
      %v7484 = vld [vmem:[#allocation3 + $0x40] sm:$0xff]
      %v7485 = vld [vmem:[#allocation3 + $0x48] sm:$0xff]
      %v7486 = vld [vmem:[#allocation3 + $0x50] sm:$0xff]
      %v7487 = vld [vmem:[#allocation3 + $0x58] sm:$0xff]
      %v7488 = vld [vmem:[#allocation3 + $0x60] sm:$0xff]
      %v7489 = vld [vmem:[#allocation3 + $0x68] sm:$0xff]
      %v7490 = vld [vmem:[#allocation3 + $0x70] sm:$0xff]
      %v7491 = vld [vmem:[#allocation3 + $0x78] sm:$0xff]
      %v7492 = vld [vmem:[#allocation3 + $0x80] sm:$0xff]
      %v7493 = vld [vmem:[#allocation3 + $0x88] sm:$0xff]
      %v7494 = vld [vmem:[#allocation3 + $0x90] sm:$0xff]
      %v7495 = vld [vmem:[#allocation3 + $0x98] sm:$0xff]
      %v7496 = vld [vmem:[#allocation3 + $0xa0] sm:$0xff]
      %v7497 = vld [vmem:[#allocation3 + $0xa8] sm:$0xff]
      %v7498 = vld [vmem:[#allocation3 + $0xb0] sm:$0xff]
      %v7499 = vld [vmem:[#allocation3 + $0xb8] sm:$0xff]
      %v7500 = vld [vmem:[#allocation3 + $0xc0] sm:$0xff]
      %v7501 = vld [vmem:[#allocation3 + $0xc8] sm:$0xff]
      %v7502 = vld [vmem:[#allocation3 + $0xd0] sm:$0xff]
      %v7503 = vadd.f32 %v7476, %v7343
      %v7504 = vadd.f32 %v7477, %v7348
      %v7505 = vadd.f32 %v7478, %v7353
      %v7506 = vadd.f32 %v7479, %v7358
      %v7507 = vadd.f32 %v7480, %v7363
      %v7508 = vadd.f32 %v7481, %v7368
      %v7509 = vadd.f32 %v7482, %v7373
      %v7510 = vadd.f32 %v7483, %v7378
      %v7511 = vadd.f32 %v7484, %v7383
      %v7512 = vadd.f32 %v7485, %v7388
      %v7513 = vadd.f32 %v7486, %v7393
      %v7514 = vadd.f32 %v7487, %v7398
      %v7515 = vadd.f32 %v7488, %v7403
      %v7516 = vadd.f32 %v7489, %v7408
      %v7517 = vadd.f32 %v7490, %v7413
      %v7518 = vadd.f32 %v7491, %v7418
      %v7519 = vadd.f32 %v7492, %v7423
      %v7520 = vadd.f32 %v7493, %v7428
      %v7521 = vadd.f32 %v7494, %v7433
      %v7522 = vadd.f32 %v7495, %v7438
      %v7523 = vadd.f32 %v7496, %v7443
      %v7524 = vadd.f32 %v7497, %v7448
      %v7525 = vadd.f32 %v7498, %v7453
      %v7526 = vadd.f32 %v7499, %v7458
      %v7527 = vadd.f32 %v7500, %v7463
      %v7528 = vadd.f32 %v7501, %v7468
      %v7529 = vadd.f32 %v7502, %v7473
      %7530 = vst.msk [vmem:[#allocation3] sm:$0xff] %vm642, %v7503
      %7531 = vst.msk [vmem:[#allocation3 + $0x8] sm:$0xff] %vm642, %v7504
      %7532 = vst.msk [vmem:[#allocation3 + $0x10] sm:$0xff] %vm642, %v7505
      %7533 = vst.msk [vmem:[#allocation3 + $0x18] sm:$0xff] %vm642, %v7506
      %7534 = vst.msk [vmem:[#allocation3 + $0x20] sm:$0xff] %vm642, %v7507
      %7535 = vst.msk [vmem:[#allocation3 + $0x28] sm:$0xff] %vm642, %v7508
      %7536 = vst.msk [vmem:[#allocation3 + $0x30] sm:$0xff] %vm642, %v7509
      %7537 = vst.msk [vmem:[#allocation3 + $0x38] sm:$0xff] %vm642, %v7510
      %7538 = vst.msk [vmem:[#allocation3 + $0x40] sm:$0xff] %vm642, %v7511
      %7539 = vst.msk [vmem:[#allocation3 + $0x48] sm:$0xff] %vm642, %v7512
      %7540 = vst.msk [vmem:[#allocation3 + $0x50] sm:$0xff] %vm642, %v7513
      %7541 = vst.msk [vmem:[#allocation3 + $0x58] sm:$0xff] %vm642, %v7514
      %7542 = vst.msk [vmem:[#allocation3 + $0x60] sm:$0xff] %vm642, %v7515
      %7543 = vst.msk [vmem:[#allocation3 + $0x68] sm:$0xff] %vm642, %v7516
      %7544 = vst.msk [vmem:[#allocation3 + $0x70] sm:$0xff] %vm642, %v7517
      %7545 = vst.msk [vmem:[#allocation3 + $0x78] sm:$0xff] %vm642, %v7518
      %7546 = vst.msk [vmem:[#allocation3 + $0x80] sm:$0xff] %vm642, %v7519
      %7547 = vst.msk [vmem:[#allocation3 + $0x88] sm:$0xff] %vm642, %v7520
      %7548 = vst.msk [vmem:[#allocation3 + $0x90] sm:$0xff] %vm642, %v7521
      %7549 = vst.msk [vmem:[#allocation3 + $0x98] sm:$0xff] %vm642, %v7522
      %7550 = vst.msk [vmem:[#allocation3 + $0xa0] sm:$0xff] %vm642, %v7523
      %7551 = vst.msk [vmem:[#allocation3 + $0xa8] sm:$0xff] %vm642, %v7524
      %7552 = vst.msk [vmem:[#allocation3 + $0xb0] sm:$0xff] %vm642, %v7525
      %7553 = vst.msk [vmem:[#allocation3 + $0xb8] sm:$0xff] %vm642, %v7526
      %7554 = vst.msk [vmem:[#allocation3 + $0xc0] sm:$0xff] %vm642, %v7527
      %7555 = vst.msk [vmem:[#allocation3 + $0xc8] sm:$0xff] %vm642, %v7528
      %7556 = vst.msk [vmem:[#allocation3 + $0xd0] sm:$0xff] %vm642, %v7529
      %v7557 = vld [vmem:[#allocation2 + $0x270] sm:$0xff]
      %v7558 = vld [vmem:[#allocation2 + $0x278] sm:$0xff]
      %v7559 = vld [vmem:[#allocation2 + $0x280] sm:$0xff]
      %v7560 = vld [vmem:[#allocation2 + $0x288] sm:$0xff]
      %v7561 = vld [vmem:[#allocation2 + $0x290] sm:$0xff]
      %v7562 = vld [vmem:[#allocation2 + $0x298] sm:$0xff]
      %v7563 = vld [vmem:[#allocation2 + $0x2a0] sm:$0xff]
      %v7564 = vld [vmem:[#allocation2 + $0x2a8] sm:$0xff]
      %v7565 = vld [vmem:[#allocation2 + $0x2b0] sm:$0xff]
      %v7566 = vld [vmem:[#allocation2 + $0x2b8] sm:$0xff]
      %v7567 = vld [vmem:[#allocation2 + $0x2c0] sm:$0xff]
      %v7568 = vld [vmem:[#allocation2 + $0x2c8] sm:$0xff]
      %v7569 = vld [vmem:[#allocation2 + $0x2d0] sm:$0xff]
      %v7570 = vld [vmem:[#allocation2 + $0x2d8] sm:$0xff]
      %v7571 = vld [vmem:[#allocation2 + $0x2e0] sm:$0xff]
      %v7572 = vld [vmem:[#allocation2 + $0x2e8] sm:$0xff]
      %v7573 = vld [vmem:[#allocation2 + $0x2f0] sm:$0xff]
      %v7574 = vld [vmem:[#allocation2 + $0x2f8] sm:$0xff]
      %v7575 = vld [vmem:[#allocation2 + $0x300] sm:$0xff]
      %v7576 = vld [vmem:[#allocation2 + $0x308] sm:$0xff]
      %v7577 = vld [vmem:[#allocation2 + $0x310] sm:$0xff]
      %v7578 = vld [vmem:[#allocation2 + $0x318] sm:$0xff]
      %v7579 = vld [vmem:[#allocation2 + $0x320] sm:$0xff]
      %v7580 = vld [vmem:[#allocation2 + $0x328] sm:$0xff]
      %v7581 = vld [vmem:[#allocation2 + $0x330] sm:$0xff]
      %v7582 = vld [vmem:[#allocation2 + $0x338] sm:$0xff]
      %v7583 = vld [vmem:[#allocation2 + $0x340] sm:$0xff]
      %v7584 = vld [vmem:[%s3 + $0x1c0] sm:$0xff]
      %v7585 = vld [vmem:[%s3 + $0x1c8] sm:$0xff]
      %v7586 = vld [vmem:[%s3 + $0x1d0] sm:$0xff]
      %v7587 = vld [vmem:[%s3 + $0x1d8] sm:$0xff]
      %v7589 = vsel %vm1968, %v7557, 0
      %v7592 = vsel %vm1968, %v7558, 0
      %v7595 = vsel %vm1968, %v7559, 0
      %v7598 = vsel %vm1968, %v7560, 0
      %v7601 = vsel %vm1968, %v7561, 0
      %v7604 = vsel %vm1968, %v7562, 0
      %v7607 = vsel %vm1968, %v7563, 0
      %v7610 = vsel %vm1968, %v7564, 0
      %v7613 = vsel %vm1968, %v7565, 0
      %v7616 = vsel %vm1968, %v7566, 0
      %v7619 = vsel %vm1968, %v7567, 0
      %v7622 = vsel %vm1968, %v7568, 0
      %v7625 = vsel %vm1968, %v7569, 0
      %v7628 = vsel %vm1968, %v7570, 0
      %v7631 = vsel %vm1968, %v7571, 0
      %v7634 = vsel %vm1968, %v7572, 0
      %v7637 = vsel %vm1968, %v7573, 0
      %v7640 = vsel %vm1968, %v7574, 0
      %v7643 = vsel %vm1968, %v7575, 0
      %v7646 = vsel %vm1968, %v7576, 0
      %v7649 = vsel %vm1968, %v7577, 0
      %v7652 = vsel %vm1968, %v7578, 0
      %v7655 = vsel %vm1968, %v7579, 0
      %v7658 = vsel %vm1968, %v7580, 0
      %v7661 = vsel %vm1968, %v7581, 0
      %v7664 = vsel %vm1968, %v7582, 0
      %v7667 = vsel %vm1968, %v7583, 0
      %7669 = vmatprep.subr.mxu0 0.0
      %7670 = vmatpush1.msra.mxu0 0.0
      %7671 = vmatprep.subr.mxu0 0.0
      %7672 = vmatpush1.msra.mxu0 0.0
      %7673 = vmatprep.subr.mxu0 0.0
      %7674 = vmatpush1.msra.mxu0 0.0
      %7675 = vmatprep.subr.mxu0 0.0
      %7676 = vmatpush1.msra.mxu0 0.0
      %7677 = vmatprep.subr.mxu0 0.0
      %7678 = vmatpush1.msra.mxu0 0.0
      %7679 = vmatprep.subr.mxu0 0.0
      %7680 = vmatpush1.msra.mxu0 0.0
      %7681 = vmatprep.subr.mxu0 0.0
      %7682 = vmatpush1.msra.mxu0 0.0
      %7683 = vmatprep.subr.mxu0 0.0
      %7684 = vmatpush1.msra.mxu0 0.0
      %7685 = vmatprep.subr.mxu0 0.0
      %7686 = vmatpush1.msra.mxu0 0.0
      %7687 = vmatprep.subr.mxu0 0.0
      %7688 = vmatpush1.msra.mxu0 0.0
      %7689 = vmatprep.subr.mxu0 0.0
      %7690 = vmatpush1.msra.mxu0 0.0
      %7691 = vmatprep.subr.mxu0 0.0
      %7692 = vmatpush1.msra.mxu0 0.0
      %7693 = vmatprep.subr.mxu0 0.0
      %7694 = vmatpush1.msra.mxu0 %v7587
      %7695 = vmatprep.subr.mxu0 0.0
      %7696 = vmatpush1.msra.mxu0 %v7586
      %7697 = vmatprep.subr.mxu0 0.0
      %7698 = vmatpush1.msra.mxu0 %v7585
      %7699 = vmatprep.subr.mxu0 0.0
      %7700 = vmatpush1.msra.mxu0 %v7584
      %7701 = vmatprep.subr.mxu0 0.0
      %7702 = vmatpush2.msra.mxu0 0.0
      %7703 = vmatprep.subr.mxu0 0.0
      %7704 = vmatpush2.msra.mxu0 0.0
      %7705 = vmatprep.subr.mxu0 0.0
      %7706 = vmatpush2.msra.mxu0 0.0
      %7707 = vmatprep.subr.mxu0 0.0
      %7708 = vmatpush2.msra.mxu0 0.0
      %7709 = vmatprep.subr.mxu0 0.0
      %7710 = vmatpush2.msra.mxu0 0.0
      %7711 = vmatprep.subr.mxu0 0.0
      %7712 = vmatpush2.msra.mxu0 0.0
      %7713 = vmatprep.subr.mxu0 0.0
      %7714 = vmatpush2.msra.mxu0 0.0
      %7715 = vmatprep.subr.mxu0 0.0
      %7716 = vmatpush2.msra.mxu0 0.0
      %7717 = vmatprep.subr.mxu0 0.0
      %7718 = vmatpush2.msra.mxu0 0.0
      %7719 = vmatprep.subr.mxu0 0.0
      %7720 = vmatpush2.msra.mxu0 0.0
      %7721 = vmatprep.subr.mxu0 0.0
      %7722 = vmatpush2.msra.mxu0 0.0
      %7723 = vmatprep.subr.mxu0 0.0
      %7724 = vmatpush2.msra.mxu0 0.0
      %7725 = vmatprep.subr.mxu0 0.0
      %7726 = vmatpush2.msra.mxu0 0.0
      %7727 = vmatprep.subr.mxu0 0.0
      %7728 = vmatpush2.msra.mxu0 0.0
      %7729 = vmatprep.subr.mxu0 0.0
      %7730 = vmatpush2.msra.mxu0 0.0
      %7731 = vmatprep.subr.mxu0 0.0
      %7732 = vmatpush2.msra.mxu0 0.0
      %7733 = vmatprep.mubr.f32.mxu0 0.0
      %7734 = vmatmul.mubr.f32.gmra.mxu0 %v7589
      %v7735 = vpop.f32.mrf.mxu0
      %v7736 = vadd.f32 0.0, %v7735
      %v7737 = vpop.f32.mrf.mxu0
      %7738 = vmatprep.mubr.f32.mxu0 0.0
      %7739 = vmatmul.mubr.f32.gmra.mxu0 %v7592
      %v7740 = vpop.f32.mrf.mxu0
      %v7741 = vadd.f32 0.0, %v7740
      %v7742 = vpop.f32.mrf.mxu0
      %7743 = vmatprep.mubr.f32.mxu0 0.0
      %7744 = vmatmul.mubr.f32.gmra.mxu0 %v7595
      %v7745 = vpop.f32.mrf.mxu0
      %v7746 = vadd.f32 0.0, %v7745
      %v7747 = vpop.f32.mrf.mxu0
      %7748 = vmatprep.mubr.f32.mxu0 0.0
      %7749 = vmatmul.mubr.f32.gmra.mxu0 %v7598
      %v7750 = vpop.f32.mrf.mxu0
      %v7751 = vadd.f32 0.0, %v7750
      %v7752 = vpop.f32.mrf.mxu0
      %7753 = vmatprep.mubr.f32.mxu0 0.0
      %7754 = vmatmul.mubr.f32.gmra.mxu0 %v7601
      %v7755 = vpop.f32.mrf.mxu0
      %v7756 = vadd.f32 0.0, %v7755
      %v7757 = vpop.f32.mrf.mxu0
      %7758 = vmatprep.mubr.f32.mxu0 0.0
      %7759 = vmatmul.mubr.f32.gmra.mxu0 %v7604
      %v7760 = vpop.f32.mrf.mxu0
      %v7761 = vadd.f32 0.0, %v7760
      %v7762 = vpop.f32.mrf.mxu0
      %7763 = vmatprep.mubr.f32.mxu0 0.0
      %7764 = vmatmul.mubr.f32.gmra.mxu0 %v7607
      %v7765 = vpop.f32.mrf.mxu0
      %v7766 = vadd.f32 0.0, %v7765
      %v7767 = vpop.f32.mrf.mxu0
      %7768 = vmatprep.mubr.f32.mxu0 0.0
      %7769 = vmatmul.mubr.f32.gmra.mxu0 %v7610
      %v7770 = vpop.f32.mrf.mxu0
      %v7771 = vadd.f32 0.0, %v7770
      %v7772 = vpop.f32.mrf.mxu0
      %7773 = vmatprep.mubr.f32.mxu0 0.0
      %7774 = vmatmul.mubr.f32.gmra.mxu0 %v7613
      %v7775 = vpop.f32.mrf.mxu0
      %v7776 = vadd.f32 0.0, %v7775
      %v7777 = vpop.f32.mrf.mxu0
      %7778 = vmatprep.mubr.f32.mxu0 0.0
      %7779 = vmatmul.mubr.f32.gmra.mxu0 %v7616
      %v7780 = vpop.f32.mrf.mxu0
      %v7781 = vadd.f32 0.0, %v7780
      %v7782 = vpop.f32.mrf.mxu0
      %7783 = vmatprep.mubr.f32.mxu0 0.0
      %7784 = vmatmul.mubr.f32.gmra.mxu0 %v7619
      %v7785 = vpop.f32.mrf.mxu0
      %v7786 = vadd.f32 0.0, %v7785
      %v7787 = vpop.f32.mrf.mxu0
      %7788 = vmatprep.mubr.f32.mxu0 0.0
      %7789 = vmatmul.mubr.f32.gmra.mxu0 %v7622
      %v7790 = vpop.f32.mrf.mxu0
      %v7791 = vadd.f32 0.0, %v7790
      %v7792 = vpop.f32.mrf.mxu0
      %7793 = vmatprep.mubr.f32.mxu0 0.0
      %7794 = vmatmul.mubr.f32.gmra.mxu0 %v7625
      %v7795 = vpop.f32.mrf.mxu0
      %v7796 = vadd.f32 0.0, %v7795
      %v7797 = vpop.f32.mrf.mxu0
      %7798 = vmatprep.mubr.f32.mxu0 0.0
      %7799 = vmatmul.mubr.f32.gmra.mxu0 %v7628
      %v7800 = vpop.f32.mrf.mxu0
      %v7801 = vadd.f32 0.0, %v7800
      %v7802 = vpop.f32.mrf.mxu0
      %7803 = vmatprep.mubr.f32.mxu0 0.0
      %7804 = vmatmul.mubr.f32.gmra.mxu0 %v7631
      %v7805 = vpop.f32.mrf.mxu0
      %v7806 = vadd.f32 0.0, %v7805
      %v7807 = vpop.f32.mrf.mxu0
      %7808 = vmatprep.mubr.f32.mxu0 0.0
      %7809 = vmatmul.mubr.f32.gmra.mxu0 %v7634
      %v7810 = vpop.f32.mrf.mxu0
      %v7811 = vadd.f32 0.0, %v7810
      %v7812 = vpop.f32.mrf.mxu0
      %7813 = vmatprep.mubr.f32.mxu0 0.0
      %7814 = vmatmul.mubr.f32.gmra.mxu0 %v7637
      %v7815 = vpop.f32.mrf.mxu0
      %v7816 = vadd.f32 0.0, %v7815
      %v7817 = vpop.f32.mrf.mxu0
      %7818 = vmatprep.mubr.f32.mxu0 0.0
      %7819 = vmatmul.mubr.f32.gmra.mxu0 %v7640
      %v7820 = vpop.f32.mrf.mxu0
      %v7821 = vadd.f32 0.0, %v7820
      %v7822 = vpop.f32.mrf.mxu0
      %7823 = vmatprep.mubr.f32.mxu0 0.0
      %7824 = vmatmul.mubr.f32.gmra.mxu0 %v7643
      %v7825 = vpop.f32.mrf.mxu0
      %v7826 = vadd.f32 0.0, %v7825
      %v7827 = vpop.f32.mrf.mxu0
      %7828 = vmatprep.mubr.f32.mxu0 0.0
      %7829 = vmatmul.mubr.f32.gmra.mxu0 %v7646
      %v7830 = vpop.f32.mrf.mxu0
      %v7831 = vadd.f32 0.0, %v7830
      %v7832 = vpop.f32.mrf.mxu0
      %7833 = vmatprep.mubr.f32.mxu0 0.0
      %7834 = vmatmul.mubr.f32.gmra.mxu0 %v7649
      %v7835 = vpop.f32.mrf.mxu0
      %v7836 = vadd.f32 0.0, %v7835
      %v7837 = vpop.f32.mrf.mxu0
      %7838 = vmatprep.mubr.f32.mxu0 0.0
      %7839 = vmatmul.mubr.f32.gmra.mxu0 %v7652
      %v7840 = vpop.f32.mrf.mxu0
      %v7841 = vadd.f32 0.0, %v7840
      %v7842 = vpop.f32.mrf.mxu0
      %7843 = vmatprep.mubr.f32.mxu0 0.0
      %7844 = vmatmul.mubr.f32.gmra.mxu0 %v7655
      %v7845 = vpop.f32.mrf.mxu0
      %v7846 = vadd.f32 0.0, %v7845
      %v7847 = vpop.f32.mrf.mxu0
      %7848 = vmatprep.mubr.f32.mxu0 0.0
      %7849 = vmatmul.mubr.f32.gmra.mxu0 %v7658
      %v7850 = vpop.f32.mrf.mxu0
      %v7851 = vadd.f32 0.0, %v7850
      %v7852 = vpop.f32.mrf.mxu0
      %7853 = vmatprep.mubr.f32.mxu0 0.0
      %7854 = vmatmul.mubr.f32.gmra.mxu0 %v7661
      %v7855 = vpop.f32.mrf.mxu0
      %v7856 = vadd.f32 0.0, %v7855
      %v7857 = vpop.f32.mrf.mxu0
      %7858 = vmatprep.mubr.f32.mxu0 0.0
      %7859 = vmatmul.mubr.f32.gmra.mxu0 %v7664
      %v7860 = vpop.f32.mrf.mxu0
      %v7861 = vadd.f32 0.0, %v7860
      %v7862 = vpop.f32.mrf.mxu0
      %7863 = vmatprep.mubr.f32.mxu0 0.0
      %7864 = vmatmul.mubr.f32.gmra.mxu0 %v7667
      %v7865 = vpop.f32.mrf.mxu0
      %v7866 = vadd.f32 0.0, %v7865
      %v7867 = vpop.f32.mrf.mxu0
      %7868 = vdwg.mxu0
      %v7869 = vld [vmem:[#allocation3] sm:$0xff]
      %v7870 = vld [vmem:[#allocation3 + $0x8] sm:$0xff]
      %v7871 = vld [vmem:[#allocation3 + $0x10] sm:$0xff]
      %v7872 = vld [vmem:[#allocation3 + $0x18] sm:$0xff]
      %v7873 = vld [vmem:[#allocation3 + $0x20] sm:$0xff]
      %v7874 = vld [vmem:[#allocation3 + $0x28] sm:$0xff]
      %v7875 = vld [vmem:[#allocation3 + $0x30] sm:$0xff]
      %v7876 = vld [vmem:[#allocation3 + $0x38] sm:$0xff]
      %v7877 = vld [vmem:[#allocation3 + $0x40] sm:$0xff]
      %v7878 = vld [vmem:[#allocation3 + $0x48] sm:$0xff]
      %v7879 = vld [vmem:[#allocation3 + $0x50] sm:$0xff]
      %v7880 = vld [vmem:[#allocation3 + $0x58] sm:$0xff]
      %v7881 = vld [vmem:[#allocation3 + $0x60] sm:$0xff]
      %v7882 = vld [vmem:[#allocation3 + $0x68] sm:$0xff]
      %v7883 = vld [vmem:[#allocation3 + $0x70] sm:$0xff]
      %v7884 = vld [vmem:[#allocation3 + $0x78] sm:$0xff]
      %v7885 = vld [vmem:[#allocation3 + $0x80] sm:$0xff]
      %v7886 = vld [vmem:[#allocation3 + $0x88] sm:$0xff]
      %v7887 = vld [vmem:[#allocation3 + $0x90] sm:$0xff]
      %v7888 = vld [vmem:[#allocation3 + $0x98] sm:$0xff]
      %v7889 = vld [vmem:[#allocation3 + $0xa0] sm:$0xff]
      %v7890 = vld [vmem:[#allocation3 + $0xa8] sm:$0xff]
      %v7891 = vld [vmem:[#allocation3 + $0xb0] sm:$0xff]
      %v7892 = vld [vmem:[#allocation3 + $0xb8] sm:$0xff]
      %v7893 = vld [vmem:[#allocation3 + $0xc0] sm:$0xff]
      %v7894 = vld [vmem:[#allocation3 + $0xc8] sm:$0xff]
      %v7895 = vld [vmem:[#allocation3 + $0xd0] sm:$0xff]
      %v7896 = vadd.f32 %v7869, %v7736
      %v7897 = vadd.f32 %v7870, %v7741
      %v7898 = vadd.f32 %v7871, %v7746
      %v7899 = vadd.f32 %v7872, %v7751
      %v7900 = vadd.f32 %v7873, %v7756
      %v7901 = vadd.f32 %v7874, %v7761
      %v7902 = vadd.f32 %v7875, %v7766
      %v7903 = vadd.f32 %v7876, %v7771
      %v7904 = vadd.f32 %v7877, %v7776
      %v7905 = vadd.f32 %v7878, %v7781
      %v7906 = vadd.f32 %v7879, %v7786
      %v7907 = vadd.f32 %v7880, %v7791
      %v7908 = vadd.f32 %v7881, %v7796
      %v7909 = vadd.f32 %v7882, %v7801
      %v7910 = vadd.f32 %v7883, %v7806
      %v7911 = vadd.f32 %v7884, %v7811
      %v7912 = vadd.f32 %v7885, %v7816
      %v7913 = vadd.f32 %v7886, %v7821
      %v7914 = vadd.f32 %v7887, %v7826
      %v7915 = vadd.f32 %v7888, %v7831
      %v7916 = vadd.f32 %v7889, %v7836
      %v7917 = vadd.f32 %v7890, %v7841
      %v7918 = vadd.f32 %v7891, %v7846
      %v7919 = vadd.f32 %v7892, %v7851
      %v7920 = vadd.f32 %v7893, %v7856
      %v7921 = vadd.f32 %v7894, %v7861
      %v7922 = vadd.f32 %v7895, %v7866
      %7923 = vst.msk [vmem:[#allocation3] sm:$0xff] %vm642, %v7896
      %7924 = vst.msk [vmem:[#allocation3 + $0x8] sm:$0xff] %vm642, %v7897
      %7925 = vst.msk [vmem:[#allocation3 + $0x10] sm:$0xff] %vm642, %v7898
      %7926 = vst.msk [vmem:[#allocation3 + $0x18] sm:$0xff] %vm642, %v7899
      %7927 = vst.msk [vmem:[#allocation3 + $0x20] sm:$0xff] %vm642, %v7900
      %7928 = vst.msk [vmem:[#allocation3 + $0x28] sm:$0xff] %vm642, %v7901
      %7929 = vst.msk [vmem:[#allocation3 + $0x30] sm:$0xff] %vm642, %v7902
      %7930 = vst.msk [vmem:[#allocation3 + $0x38] sm:$0xff] %vm642, %v7903
      %7931 = vst.msk [vmem:[#allocation3 + $0x40] sm:$0xff] %vm642, %v7904
      %7932 = vst.msk [vmem:[#allocation3 + $0x48] sm:$0xff] %vm642, %v7905
      %7933 = vst.msk [vmem:[#allocation3 + $0x50] sm:$0xff] %vm642, %v7906
      %7934 = vst.msk [vmem:[#allocation3 + $0x58] sm:$0xff] %vm642, %v7907
      %7935 = vst.msk [vmem:[#allocation3 + $0x60] sm:$0xff] %vm642, %v7908
      %7936 = vst.msk [vmem:[#allocation3 + $0x68] sm:$0xff] %vm642, %v7909
      %7937 = vst.msk [vmem:[#allocation3 + $0x70] sm:$0xff] %vm642, %v7910
      %7938 = vst.msk [vmem:[#allocation3 + $0x78] sm:$0xff] %vm642, %v7911
      %7939 = vst.msk [vmem:[#allocation3 + $0x80] sm:$0xff] %vm642, %v7912
      %7940 = vst.msk [vmem:[#allocation3 + $0x88] sm:$0xff] %vm642, %v7913
      %7941 = vst.msk [vmem:[#allocation3 + $0x90] sm:$0xff] %vm642, %v7914
      %7942 = vst.msk [vmem:[#allocation3 + $0x98] sm:$0xff] %vm642, %v7915
      %7943 = vst.msk [vmem:[#allocation3 + $0xa0] sm:$0xff] %vm642, %v7916
      %7944 = vst.msk [vmem:[#allocation3 + $0xa8] sm:$0xff] %vm642, %v7917
      %7945 = vst.msk [vmem:[#allocation3 + $0xb0] sm:$0xff] %vm642, %v7918
      %7946 = vst.msk [vmem:[#allocation3 + $0xb8] sm:$0xff] %vm642, %v7919
      %7947 = vst.msk [vmem:[#allocation3 + $0xc0] sm:$0xff] %vm642, %v7920
      %7948 = vst.msk [vmem:[#allocation3 + $0xc8] sm:$0xff] %vm642, %v7921
      %7949 = vst.msk [vmem:[#allocation3 + $0xd0] sm:$0xff] %vm642, %v7922
      %v7950 = vld [vmem:[#allocation2 + $0x388] sm:$0xff]
      %v7951 = vld [vmem:[#allocation2 + $0x390] sm:$0xff]
      %v7952 = vld [vmem:[#allocation2 + $0x398] sm:$0xff]
      %v7953 = vld [vmem:[#allocation2 + $0x3a0] sm:$0xff]
      %v7954 = vld [vmem:[#allocation2 + $0x3a8] sm:$0xff]
      %v7955 = vld [vmem:[#allocation2 + $0x3b0] sm:$0xff]
      %v7956 = vld [vmem:[#allocation2 + $0x3b8] sm:$0xff]
      %v7957 = vld [vmem:[#allocation2 + $0x3c0] sm:$0xff]
      %v7958 = vld [vmem:[#allocation2 + $0x3c8] sm:$0xff]
      %v7959 = vld [vmem:[#allocation2 + $0x3d0] sm:$0xff]
      %v7960 = vld [vmem:[#allocation2 + $0x3d8] sm:$0xff]
      %v7961 = vld [vmem:[#allocation2 + $0x3e0] sm:$0xff]
      %v7962 = vld [vmem:[#allocation2 + $0x3e8] sm:$0xff]
      %v7963 = vld [vmem:[#allocation2 + $0x3f0] sm:$0xff]
      %v7964 = vld [vmem:[#allocation2 + $0x3f8] sm:$0xff]
      %v7965 = vld [vmem:[#allocation2 + $0x400] sm:$0xff]
      %v7966 = vld [vmem:[#allocation2 + $0x408] sm:$0xff]
      %v7967 = vld [vmem:[#allocation2 + $0x410] sm:$0xff]
      %v7968 = vld [vmem:[#allocation2 + $0x418] sm:$0xff]
      %v7969 = vld [vmem:[#allocation2 + $0x420] sm:$0xff]
      %v7970 = vld [vmem:[#allocation2 + $0x428] sm:$0xff]
      %v7971 = vld [vmem:[#allocation2 + $0x430] sm:$0xff]
      %v7972 = vld [vmem:[#allocation2 + $0x438] sm:$0xff]
      %v7973 = vld [vmem:[#allocation2 + $0x440] sm:$0xff]
      %v7974 = vld [vmem:[#allocation2 + $0x448] sm:$0xff]
      %v7975 = vld [vmem:[#allocation2 + $0x450] sm:$0xff]
      %v7976 = vld [vmem:[#allocation2 + $0x458] sm:$0xff]
      %v7977 = vld [vmem:[%s3 + $0x1e0] sm:$0xff]
      %v7978 = vld [vmem:[%s3 + $0x1e8] sm:$0xff]
      %v7979 = vld [vmem:[%s3 + $0x1f0] sm:$0xff]
      %v7980 = vld [vmem:[%s3 + $0x1f8] sm:$0xff]
      %v7982 = vsel %vm1968, %v7950, 0
      %v7985 = vsel %vm1968, %v7951, 0
      %v7988 = vsel %vm1968, %v7952, 0
      %v7991 = vsel %vm1968, %v7953, 0
      %v7994 = vsel %vm1968, %v7954, 0
      %v7997 = vsel %vm1968, %v7955, 0
      %v8000 = vsel %vm1968, %v7956, 0
      %v8003 = vsel %vm1968, %v7957, 0
      %v8006 = vsel %vm1968, %v7958, 0
      %v8009 = vsel %vm1968, %v7959, 0
      %v8012 = vsel %vm1968, %v7960, 0
      %v8015 = vsel %vm1968, %v7961, 0
      %v8018 = vsel %vm1968, %v7962, 0
      %v8021 = vsel %vm1968, %v7963, 0
      %v8024 = vsel %vm1968, %v7964, 0
      %v8027 = vsel %vm1968, %v7965, 0
      %v8030 = vsel %vm1968, %v7966, 0
      %v8033 = vsel %vm1968, %v7967, 0
      %v8036 = vsel %vm1968, %v7968, 0
      %v8039 = vsel %vm1968, %v7969, 0
      %v8042 = vsel %vm1968, %v7970, 0
      %v8045 = vsel %vm1968, %v7971, 0
      %v8048 = vsel %vm1968, %v7972, 0
      %v8051 = vsel %vm1968, %v7973, 0
      %v8054 = vsel %vm1968, %v7974, 0
      %v8057 = vsel %vm1968, %v7975, 0
      %v8060 = vsel %vm1968, %v7976, 0
      %8062 = vmatprep.subr.mxu0 0.0
      %8063 = vmatpush1.msra.mxu0 0.0
      %8064 = vmatprep.subr.mxu0 0.0
      %8065 = vmatpush1.msra.mxu0 0.0
      %8066 = vmatprep.subr.mxu0 0.0
      %8067 = vmatpush1.msra.mxu0 0.0
      %8068 = vmatprep.subr.mxu0 0.0
      %8069 = vmatpush1.msra.mxu0 0.0
      %8070 = vmatprep.subr.mxu0 0.0
      %8071 = vmatpush1.msra.mxu0 0.0
      %8072 = vmatprep.subr.mxu0 0.0
      %8073 = vmatpush1.msra.mxu0 0.0
      %8074 = vmatprep.subr.mxu0 0.0
      %8075 = vmatpush1.msra.mxu0 0.0
      %8076 = vmatprep.subr.mxu0 0.0
      %8077 = vmatpush1.msra.mxu0 0.0
      %8078 = vmatprep.subr.mxu0 0.0
      %8079 = vmatpush1.msra.mxu0 0.0
      %8080 = vmatprep.subr.mxu0 0.0
      %8081 = vmatpush1.msra.mxu0 0.0
      %8082 = vmatprep.subr.mxu0 0.0
      %8083 = vmatpush1.msra.mxu0 0.0
      %8084 = vmatprep.subr.mxu0 0.0
      %8085 = vmatpush1.msra.mxu0 0.0
      %8086 = vmatprep.subr.mxu0 0.0
      %8087 = vmatpush1.msra.mxu0 %v7980
      %8088 = vmatprep.subr.mxu0 0.0
      %8089 = vmatpush1.msra.mxu0 %v7979
      %8090 = vmatprep.subr.mxu0 0.0
      %8091 = vmatpush1.msra.mxu0 %v7978
      %8092 = vmatprep.subr.mxu0 0.0
      %8093 = vmatpush1.msra.mxu0 %v7977
      %8094 = vmatprep.subr.mxu0 0.0
      %8095 = vmatpush2.msra.mxu0 0.0
      %8096 = vmatprep.subr.mxu0 0.0
      %8097 = vmatpush2.msra.mxu0 0.0
      %8098 = vmatprep.subr.mxu0 0.0
      %8099 = vmatpush2.msra.mxu0 0.0
      %8100 = vmatprep.subr.mxu0 0.0
      %8101 = vmatpush2.msra.mxu0 0.0
      %8102 = vmatprep.subr.mxu0 0.0
      %8103 = vmatpush2.msra.mxu0 0.0
      %8104 = vmatprep.subr.mxu0 0.0
      %8105 = vmatpush2.msra.mxu0 0.0
      %8106 = vmatprep.subr.mxu0 0.0
      %8107 = vmatpush2.msra.mxu0 0.0
      %8108 = vmatprep.subr.mxu0 0.0
      %8109 = vmatpush2.msra.mxu0 0.0
      %8110 = vmatprep.subr.mxu0 0.0
      %8111 = vmatpush2.msra.mxu0 0.0
      %8112 = vmatprep.subr.mxu0 0.0
      %8113 = vmatpush2.msra.mxu0 0.0
      %8114 = vmatprep.subr.mxu0 0.0
      %8115 = vmatpush2.msra.mxu0 0.0
      %8116 = vmatprep.subr.mxu0 0.0
      %8117 = vmatpush2.msra.mxu0 0.0
      %8118 = vmatprep.subr.mxu0 0.0
      %8119 = vmatpush2.msra.mxu0 0.0
      %8120 = vmatprep.subr.mxu0 0.0
      %8121 = vmatpush2.msra.mxu0 0.0
      %8122 = vmatprep.subr.mxu0 0.0
      %8123 = vmatpush2.msra.mxu0 0.0
      %8124 = vmatprep.subr.mxu0 0.0
      %8125 = vmatpush2.msra.mxu0 0.0
      %8126 = vmatprep.mubr.f32.mxu0 0.0
      %8127 = vmatmul.mubr.f32.gmra.mxu0 %v7982
      %v8128 = vpop.f32.mrf.mxu0
      %v8129 = vadd.f32 0.0, %v8128
      %v8130 = vpop.f32.mrf.mxu0
      %8131 = vmatprep.mubr.f32.mxu0 0.0
      %8132 = vmatmul.mubr.f32.gmra.mxu0 %v7985
      %v8133 = vpop.f32.mrf.mxu0
      %v8134 = vadd.f32 0.0, %v8133
      %v8135 = vpop.f32.mrf.mxu0
      %8136 = vmatprep.mubr.f32.mxu0 0.0
      %8137 = vmatmul.mubr.f32.gmra.mxu0 %v7988
      %v8138 = vpop.f32.mrf.mxu0
      %v8139 = vadd.f32 0.0, %v8138
      %v8140 = vpop.f32.mrf.mxu0
      %8141 = vmatprep.mubr.f32.mxu0 0.0
      %8142 = vmatmul.mubr.f32.gmra.mxu0 %v7991
      %v8143 = vpop.f32.mrf.mxu0
      %v8144 = vadd.f32 0.0, %v8143
      %v8145 = vpop.f32.mrf.mxu0
      %8146 = vmatprep.mubr.f32.mxu0 0.0
      %8147 = vmatmul.mubr.f32.gmra.mxu0 %v7994
      %v8148 = vpop.f32.mrf.mxu0
      %v8149 = vadd.f32 0.0, %v8148
      %v8150 = vpop.f32.mrf.mxu0
      %8151 = vmatprep.mubr.f32.mxu0 0.0
      %8152 = vmatmul.mubr.f32.gmra.mxu0 %v7997
      %v8153 = vpop.f32.mrf.mxu0
      %v8154 = vadd.f32 0.0, %v8153
      %v8155 = vpop.f32.mrf.mxu0
      %8156 = vmatprep.mubr.f32.mxu0 0.0
      %8157 = vmatmul.mubr.f32.gmra.mxu0 %v8000
      %v8158 = vpop.f32.mrf.mxu0
      %v8159 = vadd.f32 0.0, %v8158
      %v8160 = vpop.f32.mrf.mxu0
      %8161 = vmatprep.mubr.f32.mxu0 0.0
      %8162 = vmatmul.mubr.f32.gmra.mxu0 %v8003
      %v8163 = vpop.f32.mrf.mxu0
      %v8164 = vadd.f32 0.0, %v8163
      %v8165 = vpop.f32.mrf.mxu0
      %8166 = vmatprep.mubr.f32.mxu0 0.0
      %8167 = vmatmul.mubr.f32.gmra.mxu0 %v8006
      %v8168 = vpop.f32.mrf.mxu0
      %v8169 = vadd.f32 0.0, %v8168
      %v8170 = vpop.f32.mrf.mxu0
      %8171 = vmatprep.mubr.f32.mxu0 0.0
      %8172 = vmatmul.mubr.f32.gmra.mxu0 %v8009
      %v8173 = vpop.f32.mrf.mxu0
      %v8174 = vadd.f32 0.0, %v8173
      %v8175 = vpop.f32.mrf.mxu0
      %8176 = vmatprep.mubr.f32.mxu0 0.0
      %8177 = vmatmul.mubr.f32.gmra.mxu0 %v8012
      %v8178 = vpop.f32.mrf.mxu0
      %v8179 = vadd.f32 0.0, %v8178
      %v8180 = vpop.f32.mrf.mxu0
      %8181 = vmatprep.mubr.f32.mxu0 0.0
      %8182 = vmatmul.mubr.f32.gmra.mxu0 %v8015
      %v8183 = vpop.f32.mrf.mxu0
      %v8184 = vadd.f32 0.0, %v8183
      %v8185 = vpop.f32.mrf.mxu0
      %8186 = vmatprep.mubr.f32.mxu0 0.0
      %8187 = vmatmul.mubr.f32.gmra.mxu0 %v8018
      %v8188 = vpop.f32.mrf.mxu0
      %v8189 = vadd.f32 0.0, %v8188
      %v8190 = vpop.f32.mrf.mxu0
      %8191 = vmatprep.mubr.f32.mxu0 0.0
      %8192 = vmatmul.mubr.f32.gmra.mxu0 %v8021
      %v8193 = vpop.f32.mrf.mxu0
      %v8194 = vadd.f32 0.0, %v8193
      %v8195 = vpop.f32.mrf.mxu0
      %8196 = vmatprep.mubr.f32.mxu0 0.0
      %8197 = vmatmul.mubr.f32.gmra.mxu0 %v8024
      %v8198 = vpop.f32.mrf.mxu0
      %v8199 = vadd.f32 0.0, %v8198
      %v8200 = vpop.f32.mrf.mxu0
      %8201 = vmatprep.mubr.f32.mxu0 0.0
      %8202 = vmatmul.mubr.f32.gmra.mxu0 %v8027
      %v8203 = vpop.f32.mrf.mxu0
      %v8204 = vadd.f32 0.0, %v8203
      %v8205 = vpop.f32.mrf.mxu0
      %8206 = vmatprep.mubr.f32.mxu0 0.0
      %8207 = vmatmul.mubr.f32.gmra.mxu0 %v8030
      %v8208 = vpop.f32.mrf.mxu0
      %v8209 = vadd.f32 0.0, %v8208
      %v8210 = vpop.f32.mrf.mxu0
      %8211 = vmatprep.mubr.f32.mxu0 0.0
      %8212 = vmatmul.mubr.f32.gmra.mxu0 %v8033
      %v8213 = vpop.f32.mrf.mxu0
      %v8214 = vadd.f32 0.0, %v8213
      %v8215 = vpop.f32.mrf.mxu0
      %8216 = vmatprep.mubr.f32.mxu0 0.0
      %8217 = vmatmul.mubr.f32.gmra.mxu0 %v8036
      %v8218 = vpop.f32.mrf.mxu0
      %v8219 = vadd.f32 0.0, %v8218
      %v8220 = vpop.f32.mrf.mxu0
      %8221 = vmatprep.mubr.f32.mxu0 0.0
      %8222 = vmatmul.mubr.f32.gmra.mxu0 %v8039
      %v8223 = vpop.f32.mrf.mxu0
      %v8224 = vadd.f32 0.0, %v8223
      %v8225 = vpop.f32.mrf.mxu0
      %8226 = vmatprep.mubr.f32.mxu0 0.0
      %8227 = vmatmul.mubr.f32.gmra.mxu0 %v8042
      %v8228 = vpop.f32.mrf.mxu0
      %v8229 = vadd.f32 0.0, %v8228
      %v8230 = vpop.f32.mrf.mxu0
      %8231 = vmatprep.mubr.f32.mxu0 0.0
      %8232 = vmatmul.mubr.f32.gmra.mxu0 %v8045
      %v8233 = vpop.f32.mrf.mxu0
      %v8234 = vadd.f32 0.0, %v8233
      %v8235 = vpop.f32.mrf.mxu0
      %8236 = vmatprep.mubr.f32.mxu0 0.0
      %8237 = vmatmul.mubr.f32.gmra.mxu0 %v8048
      %v8238 = vpop.f32.mrf.mxu0
      %v8239 = vadd.f32 0.0, %v8238
      %v8240 = vpop.f32.mrf.mxu0
      %8241 = vmatprep.mubr.f32.mxu0 0.0
      %8242 = vmatmul.mubr.f32.gmra.mxu0 %v8051
      %v8243 = vpop.f32.mrf.mxu0
      %v8244 = vadd.f32 0.0, %v8243
      %v8245 = vpop.f32.mrf.mxu0
      %8246 = vmatprep.mubr.f32.mxu0 0.0
      %8247 = vmatmul.mubr.f32.gmra.mxu0 %v8054
      %v8248 = vpop.f32.mrf.mxu0
      %v8249 = vadd.f32 0.0, %v8248
      %v8250 = vpop.f32.mrf.mxu0
      %8251 = vmatprep.mubr.f32.mxu0 0.0
      %8252 = vmatmul.mubr.f32.gmra.mxu0 %v8057
      %v8253 = vpop.f32.mrf.mxu0
      %v8254 = vadd.f32 0.0, %v8253
      %v8255 = vpop.f32.mrf.mxu0
      %8256 = vmatprep.mubr.f32.mxu0 0.0
      %8257 = vmatmul.mubr.f32.gmra.mxu0 %v8060
      %v8258 = vpop.f32.mrf.mxu0
      %v8259 = vadd.f32 0.0, %v8258
      %v8260 = vpop.f32.mrf.mxu0
      %8261 = vdwg.mxu0
      %v8262 = vld [vmem:[#allocation3] sm:$0xff]
      %v8263 = vld [vmem:[#allocation3 + $0x8] sm:$0xff]
      %v8264 = vld [vmem:[#allocation3 + $0x10] sm:$0xff]
      %v8265 = vld [vmem:[#allocation3 + $0x18] sm:$0xff]
      %v8266 = vld [vmem:[#allocation3 + $0x20] sm:$0xff]
      %v8267 = vld [vmem:[#allocation3 + $0x28] sm:$0xff]
      %v8268 = vld [vmem:[#allocation3 + $0x30] sm:$0xff]
      %v8269 = vld [vmem:[#allocation3 + $0x38] sm:$0xff]
      %v8270 = vld [vmem:[#allocation3 + $0x40] sm:$0xff]
      %v8271 = vld [vmem:[#allocation3 + $0x48] sm:$0xff]
      %v8272 = vld [vmem:[#allocation3 + $0x50] sm:$0xff]
      %v8273 = vld [vmem:[#allocation3 + $0x58] sm:$0xff]
      %v8274 = vld [vmem:[#allocation3 + $0x60] sm:$0xff]
      %v8275 = vld [vmem:[#allocation3 + $0x68] sm:$0xff]
      %v8276 = vld [vmem:[#allocation3 + $0x70] sm:$0xff]
      %v8277 = vld [vmem:[#allocation3 + $0x78] sm:$0xff]
      %v8278 = vld [vmem:[#allocation3 + $0x80] sm:$0xff]
      %v8279 = vld [vmem:[#allocation3 + $0x88] sm:$0xff]
      %v8280 = vld [vmem:[#allocation3 + $0x90] sm:$0xff]
      %v8281 = vld [vmem:[#allocation3 + $0x98] sm:$0xff]
      %v8282 = vld [vmem:[#allocation3 + $0xa0] sm:$0xff]
      %v8283 = vld [vmem:[#allocation3 + $0xa8] sm:$0xff]
      %v8284 = vld [vmem:[#allocation3 + $0xb0] sm:$0xff]
      %v8285 = vld [vmem:[#allocation3 + $0xb8] sm:$0xff]
      %v8286 = vld [vmem:[#allocation3 + $0xc0] sm:$0xff]
      %v8287 = vld [vmem:[#allocation3 + $0xc8] sm:$0xff]
      %v8288 = vld [vmem:[#allocation3 + $0xd0] sm:$0xff]
      %v8289 = vadd.f32 %v8262, %v8129
      %v8290 = vadd.f32 %v8263, %v8134
      %v8291 = vadd.f32 %v8264, %v8139
      %v8292 = vadd.f32 %v8265, %v8144
      %v8293 = vadd.f32 %v8266, %v8149
      %v8294 = vadd.f32 %v8267, %v8154
      %v8295 = vadd.f32 %v8268, %v8159
      %v8296 = vadd.f32 %v8269, %v8164
      %v8297 = vadd.f32 %v8270, %v8169
      %v8298 = vadd.f32 %v8271, %v8174
      %v8299 = vadd.f32 %v8272, %v8179
      %v8300 = vadd.f32 %v8273, %v8184
      %v8301 = vadd.f32 %v8274, %v8189
      %v8302 = vadd.f32 %v8275, %v8194
      %v8303 = vadd.f32 %v8276, %v8199
      %v8304 = vadd.f32 %v8277, %v8204
      %v8305 = vadd.f32 %v8278, %v8209
      %v8306 = vadd.f32 %v8279, %v8214
      %v8307 = vadd.f32 %v8280, %v8219
      %v8308 = vadd.f32 %v8281, %v8224
      %v8309 = vadd.f32 %v8282, %v8229
      %v8310 = vadd.f32 %v8283, %v8234
      %v8311 = vadd.f32 %v8284, %v8239
      %v8312 = vadd.f32 %v8285, %v8244
      %v8313 = vadd.f32 %v8286, %v8249
      %v8314 = vadd.f32 %v8287, %v8254
      %v8315 = vadd.f32 %v8288, %v8259
      %8316 = vst.msk [vmem:[#allocation3] sm:$0xff] %vm642, %v8289
      %8317 = vst.msk [vmem:[#allocation3 + $0x8] sm:$0xff] %vm642, %v8290
      %8318 = vst.msk [vmem:[#allocation3 + $0x10] sm:$0xff] %vm642, %v8291
      %8319 = vst.msk [vmem:[#allocation3 + $0x18] sm:$0xff] %vm642, %v8292
      %8320 = vst.msk [vmem:[#allocation3 + $0x20] sm:$0xff] %vm642, %v8293
      %8321 = vst.msk [vmem:[#allocation3 + $0x28] sm:$0xff] %vm642, %v8294
      %8322 = vst.msk [vmem:[#allocation3 + $0x30] sm:$0xff] %vm642, %v8295
      %8323 = vst.msk [vmem:[#allocation3 + $0x38] sm:$0xff] %vm642, %v8296
      %8324 = vst.msk [vmem:[#allocation3 + $0x40] sm:$0xff] %vm642, %v8297
      %8325 = vst.msk [vmem:[#allocation3 + $0x48] sm:$0xff] %vm642, %v8298
      %8326 = vst.msk [vmem:[#allocation3 + $0x50] sm:$0xff] %vm642, %v8299
      %8327 = vst.msk [vmem:[#allocation3 + $0x58] sm:$0xff] %vm642, %v8300
      %8328 = vst.msk [vmem:[#allocation3 + $0x60] sm:$0xff] %vm642, %v8301
      %8329 = vst.msk [vmem:[#allocation3 + $0x68] sm:$0xff] %vm642, %v8302
      %8330 = vst.msk [vmem:[#allocation3 + $0x70] sm:$0xff] %vm642, %v8303
      %8331 = vst.msk [vmem:[#allocation3 + $0x78] sm:$0xff] %vm642, %v8304
      %8332 = vst.msk [vmem:[#allocation3 + $0x80] sm:$0xff] %vm642, %v8305
      %8333 = vst.msk [vmem:[#allocation3 + $0x88] sm:$0xff] %vm642, %v8306
      %8334 = vst.msk [vmem:[#allocation3 + $0x90] sm:$0xff] %vm642, %v8307
      %8335 = vst.msk [vmem:[#allocation3 + $0x98] sm:$0xff] %vm642, %v8308
      %8336 = vst.msk [vmem:[#allocation3 + $0xa0] sm:$0xff] %vm642, %v8309
      %8337 = vst.msk [vmem:[#allocation3 + $0xa8] sm:$0xff] %vm642, %v8310
      %8338 = vst.msk [vmem:[#allocation3 + $0xb0] sm:$0xff] %vm642, %v8311
      %8339 = vst.msk [vmem:[#allocation3 + $0xb8] sm:$0xff] %vm642, %v8312
      %8340 = vst.msk [vmem:[#allocation3 + $0xc0] sm:$0xff] %vm642, %v8313
      %8341 = vst.msk [vmem:[#allocation3 + $0xc8] sm:$0xff] %vm642, %v8314
      %8342 = vst.msk [vmem:[#allocation3 + $0xd0] sm:$0xff] %vm642, %v8315
      %v8343 = vld [vmem:[#allocation3] sm:$0xff]
      %v8344 = vld [vmem:[#allocation3 + $0x8] sm:$0xff]
      %v8345 = vld [vmem:[#allocation3 + $0x10] sm:$0xff]
      %v8346 = vld [vmem:[#allocation3 + $0x18] sm:$0xff]
      %v8347 = vld [vmem:[#allocation3 + $0x20] sm:$0xff]
      %v8348 = vld [vmem:[#allocation3 + $0x28] sm:$0xff]
      %v8349 = vld [vmem:[#allocation3 + $0x30] sm:$0xff]
      %v8350 = vld [vmem:[#allocation3 + $0x38] sm:$0xff]
      %v8351 = vld [vmem:[#allocation3 + $0x40] sm:$0xff]
      %v8352 = vld [vmem:[#allocation3 + $0x48] sm:$0xff]
      %v8353 = vld [vmem:[#allocation3 + $0x50] sm:$0xff]
      %v8354 = vld [vmem:[#allocation3 + $0x58] sm:$0xff]
      %v8355 = vld [vmem:[#allocation3 + $0x60] sm:$0xff]
      %v8356 = vld [vmem:[#allocation3 + $0x68] sm:$0xff]
      %v8357 = vld [vmem:[#allocation3 + $0x70] sm:$0xff]
      %v8358 = vld [vmem:[#allocation3 + $0x78] sm:$0xff]
      %v8359 = vld [vmem:[#allocation3 + $0x80] sm:$0xff]
      %v8360 = vld [vmem:[#allocation3 + $0x88] sm:$0xff]
      %v8361 = vld [vmem:[#allocation3 + $0x90] sm:$0xff]
      %v8362 = vld [vmem:[#allocation3 + $0x98] sm:$0xff]
      %v8363 = vld [vmem:[#allocation3 + $0xa0] sm:$0xff]
      %v8364 = vld [vmem:[#allocation3 + $0xa8] sm:$0xff]
      %v8365 = vld [vmem:[#allocation3 + $0xb0] sm:$0xff]
      %v8366 = vld [vmem:[#allocation3 + $0xb8] sm:$0xff]
      %v8367 = vld [vmem:[#allocation3 + $0xc0] sm:$0xff]
      %v8368 = vld [vmem:[#allocation3 + $0xc8] sm:$0xff]
      %v8369 = vld [vmem:[#allocation3 + $0xd0] sm:$0xff]
      %v8370 = vld [vmem:[%s4] sm:$0x1]
      %v8372 = vlaneseq
      %v8373 = vshrl.u32 %v8372, 7
      %v8374 = vsub.s32 0, %v8373
      %v8375 = vrot.slane %v8370, %v8374
      %v8377 = vadd.f32 %v8343, %v8375
      %v8378 = vadd.f32 %v8344, %v8375
      %v8379 = vadd.f32 %v8345, %v8375
      %v8380 = vadd.f32 %v8346, %v8375
      %v8381 = vadd.f32 %v8347, %v8375
      %v8382 = vadd.f32 %v8348, %v8375
      %v8383 = vadd.f32 %v8349, %v8375
      %v8384 = vadd.f32 %v8350, %v8375
      %v8385 = vadd.f32 %v8351, %v8375
      %v8386 = vadd.f32 %v8352, %v8375
      %v8387 = vadd.f32 %v8353, %v8375
      %v8388 = vadd.f32 %v8354, %v8375
      %v8389 = vadd.f32 %v8355, %v8375
      %v8390 = vadd.f32 %v8356, %v8375
      %v8391 = vadd.f32 %v8357, %v8375
      %v8392 = vadd.f32 %v8358, %v8375
      %v8393 = vadd.f32 %v8359, %v8375
      %v8394 = vadd.f32 %v8360, %v8375
      %v8395 = vadd.f32 %v8361, %v8375
      %v8396 = vadd.f32 %v8362, %v8375
      %v8397 = vadd.f32 %v8363, %v8375
      %v8398 = vadd.f32 %v8364, %v8375
      %v8399 = vadd.f32 %v8365, %v8375
      %v8400 = vadd.f32 %v8366, %v8375
      %v8401 = vadd.f32 %v8367, %v8375
      %v8402 = vadd.f32 %v8368, %v8375
      %v8403 = vadd.f32 %v8369, %v8375
      %v8404 = vmax.f32 %v8377, 0.0
      %v8405 = vmax.f32 %v8378, 0.0
      %v8406 = vmax.f32 %v8379, 0.0
      %v8407 = vmax.f32 %v8380, 0.0
      %v8408 = vmax.f32 %v8381, 0.0
      %v8409 = vmax.f32 %v8382, 0.0
      %v8410 = vmax.f32 %v8383, 0.0
      %v8411 = vmax.f32 %v8384, 0.0
      %v8412 = vmax.f32 %v8385, 0.0
      %v8413 = vmax.f32 %v8386, 0.0
      %v8414 = vmax.f32 %v8387, 0.0
      %v8415 = vmax.f32 %v8388, 0.0
      %v8416 = vmax.f32 %v8389, 0.0
      %v8417 = vmax.f32 %v8390, 0.0
      %v8418 = vmax.f32 %v8391, 0.0
      %v8419 = vmax.f32 %v8392, 0.0
      %v8420 = vmax.f32 %v8393, 0.0
      %v8421 = vmax.f32 %v8394, 0.0
      %v8422 = vmax.f32 %v8395, 0.0
      %v8423 = vmax.f32 %v8396, 0.0
      %v8424 = vmax.f32 %v8397, 0.0
      %v8425 = vmax.f32 %v8398, 0.0
      %v8426 = vmax.f32 %v8399, 0.0
      %v8427 = vmax.f32 %v8400, 0.0
      %v8428 = vmax.f32 %v8401, 0.0
      %v8429 = vmax.f32 %v8402, 0.0
      %v8430 = vmax.f32 %v8403, 0.0
      %8431 = vst.msk [vmem:[#allocation3] sm:$0xff] %vm642, %v8404
      %8432 = vst.msk [vmem:[#allocation3 + $0x8] sm:$0xff] %vm642, %v8405
      %8433 = vst.msk [vmem:[#allocation3 + $0x10] sm:$0xff] %vm642, %v8406
      %8434 = vst.msk [vmem:[#allocation3 + $0x18] sm:$0xff] %vm642, %v8407
      %8435 = vst.msk [vmem:[#allocation3 + $0x20] sm:$0xff] %vm642, %v8408
      %8436 = vst.msk [vmem:[#allocation3 + $0x28] sm:$0xff] %vm642, %v8409
      %8437 = vst.msk [vmem:[#allocation3 + $0x30] sm:$0xff] %vm642, %v8410
      %8438 = vst.msk [vmem:[#allocation3 + $0x38] sm:$0xff] %vm642, %v8411
      %8439 = vst.msk [vmem:[#allocation3 + $0x40] sm:$0xff] %vm642, %v8412
      %8440 = vst.msk [vmem:[#allocation3 + $0x48] sm:$0xff] %vm642, %v8413
      %8441 = vst.msk [vmem:[#allocation3 + $0x50] sm:$0xff] %vm642, %v8414
      %8442 = vst.msk [vmem:[#allocation3 + $0x58] sm:$0xff] %vm642, %v8415
      %8443 = vst.msk [vmem:[#allocation3 + $0x60] sm:$0xff] %vm642, %v8416
      %8444 = vst.msk [vmem:[#allocation3 + $0x68] sm:$0xff] %vm642, %v8417
      %8445 = vst.msk [vmem:[#allocation3 + $0x70] sm:$0xff] %vm642, %v8418
      %8446 = vst.msk [vmem:[#allocation3 + $0x78] sm:$0xff] %vm642, %v8419
      %8447 = vst.msk [vmem:[#allocation3 + $0x80] sm:$0xff] %vm642, %v8420
      %8448 = vst.msk [vmem:[#allocation3 + $0x88] sm:$0xff] %vm642, %v8421
      %8449 = vst.msk [vmem:[#allocation3 + $0x90] sm:$0xff] %vm642, %v8422
      %8450 = vst.msk [vmem:[#allocation3 + $0x98] sm:$0xff] %vm642, %v8423
      %8451 = vst.msk [vmem:[#allocation3 + $0xa0] sm:$0xff] %vm642, %v8424
      %8452 = vst.msk [vmem:[#allocation3 + $0xa8] sm:$0xff] %vm642, %v8425
      %8453 = vst.msk [vmem:[#allocation3 + $0xb0] sm:$0xff] %vm642, %v8426
      %8454 = vst.msk [vmem:[#allocation3 + $0xb8] sm:$0xff] %vm642, %v8427
      %8455 = vst.msk [vmem:[#allocation3 + $0xc0] sm:$0xff] %vm642, %v8428
      %8456 = vst.msk [vmem:[#allocation3 + $0xc8] sm:$0xff] %vm642, %v8429
      %8457 = vst.msk [vmem:[#allocation3 + $0xd0] sm:$0xff] %vm642, %v8430
      %v8458 = vld [vmem:[#allocation3] sm:$0xff]
      %v8459 = vld [vmem:[#allocation3 + $0x8] sm:$0xff]
      %v8460 = vld [vmem:[#allocation3 + $0x10] sm:$0xff]
      %v8461 = vld [vmem:[#allocation3 + $0x18] sm:$0xff]
      %v8462 = vld [vmem:[#allocation3 + $0x20] sm:$0xff]
      %v8463 = vld [vmem:[#allocation3 + $0x28] sm:$0xff]
      %v8464 = vld [vmem:[#allocation3 + $0x30] sm:$0xff]
      %v8465 = vld [vmem:[#allocation3 + $0x38] sm:$0xff]
      %v8466 = vld [vmem:[#allocation3 + $0x40] sm:$0xff]
      %v8467 = vld [vmem:[#allocation3 + $0x48] sm:$0xff]
      %v8468 = vld [vmem:[#allocation3 + $0x50] sm:$0xff]
      %v8469 = vld [vmem:[%s5] sm:$0xff]
      %v8470 = vld [vmem:[%s5 + $0x8] sm:$0xff]
      %v8471 = vld [vmem:[%s5 + $0x10] sm:$0xff]
      %v8472 = vld [vmem:[%s5 + $0x18] sm:$0xff]
      %v8473 = vld [vmem:[%s5 + $0x20] sm:$0xff]
      %v8474 = vld [vmem:[%s5 + $0x28] sm:$0xff]
      %v8475 = vld [vmem:[%s5 + $0x30] sm:$0xff]
      %v8476 = vld [vmem:[%s5 + $0x38] sm:$0xff]
      %v8478 = vsel %vm642, %v8458, 0
      %v8481 = vsel %vm642, %v8459, 0
      %v8484 = vsel %vm642, %v8460, 0
      %v8487 = vsel %vm642, %v8461, 0
      %v8490 = vsel %vm642, %v8462, 0
      %v8493 = vsel %vm642, %v8463, 0
      %v8496 = vsel %vm642, %v8464, 0
      %v8499 = vsel %vm642, %v8465, 0
      %v8502 = vsel %vm642, %v8466, 0
      %v8505 = vsel %vm642, %v8467, 0
      %v8508 = vsel %vm642, %v8468, 0
      %8510 = vmatprep.subr.mxu0 0.0
      %8511 = vmatpush1.msra.mxu0 0.0
      %8512 = vmatprep.subr.mxu0 0.0
      %8513 = vmatpush1.msra.mxu0 0.0
      %8514 = vmatprep.subr.mxu0 0.0
      %8515 = vmatpush1.msra.mxu0 0.0
      %8516 = vmatprep.subr.mxu0 0.0
      %8517 = vmatpush1.msra.mxu0 0.0
      %8518 = vmatprep.subr.mxu0 0.0
      %8519 = vmatpush1.msra.mxu0 0.0
      %8520 = vmatprep.subr.mxu0 0.0
      %8521 = vmatpush1.msra.mxu0 0.0
      %8522 = vmatprep.subr.mxu0 0.0
      %8523 = vmatpush1.msra.mxu0 0.0
      %8524 = vmatprep.subr.mxu0 0.0
      %8525 = vmatpush1.msra.mxu0 0.0
      %8526 = vmatprep.subr.mxu0 0.0
      %8527 = vmatpush1.msra.mxu0 %v8476
      %8528 = vmatprep.subr.mxu0 0.0
      %8529 = vmatpush1.msra.mxu0 %v8475
      %8530 = vmatprep.subr.mxu0 0.0
      %8531 = vmatpush1.msra.mxu0 %v8474
      %8532 = vmatprep.subr.mxu0 0.0
      %8533 = vmatpush1.msra.mxu0 %v8473
      %8534 = vmatprep.subr.mxu0 0.0
      %8535 = vmatpush1.msra.mxu0 %v8472
      %8536 = vmatprep.subr.mxu0 0.0
      %8537 = vmatpush1.msra.mxu0 %v8471
      %8538 = vmatprep.subr.mxu0 0.0
      %8539 = vmatpush1.msra.mxu0 %v8470
      %8540 = vmatprep.subr.mxu0 0.0
      %8541 = vmatpush1.msra.mxu0 %v8469
      %8542 = vmatprep.subr.mxu0 0.0
      %8543 = vmatpush2.msra.mxu0 0.0
      %8544 = vmatprep.subr.mxu0 0.0
      %8545 = vmatpush2.msra.mxu0 0.0
      %8546 = vmatprep.subr.mxu0 0.0
      %8547 = vmatpush2.msra.mxu0 0.0
      %8548 = vmatprep.subr.mxu0 0.0
      %8549 = vmatpush2.msra.mxu0 0.0
      %8550 = vmatprep.subr.mxu0 0.0
      %8551 = vmatpush2.msra.mxu0 0.0
      %8552 = vmatprep.subr.mxu0 0.0
      %8553 = vmatpush2.msra.mxu0 0.0
      %8554 = vmatprep.subr.mxu0 0.0
      %8555 = vmatpush2.msra.mxu0 0.0
      %8556 = vmatprep.subr.mxu0 0.0
      %8557 = vmatpush2.msra.mxu0 0.0
      %8558 = vmatprep.subr.mxu0 0.0
      %8559 = vmatpush2.msra.mxu0 0.0
      %8560 = vmatprep.subr.mxu0 0.0
      %8561 = vmatpush2.msra.mxu0 0.0
      %8562 = vmatprep.subr.mxu0 0.0
      %8563 = vmatpush2.msra.mxu0 0.0
      %8564 = vmatprep.subr.mxu0 0.0
      %8565 = vmatpush2.msra.mxu0 0.0
      %8566 = vmatprep.subr.mxu0 0.0
      %8567 = vmatpush2.msra.mxu0 0.0
      %8568 = vmatprep.subr.mxu0 0.0
      %8569 = vmatpush2.msra.mxu0 0.0
      %8570 = vmatprep.subr.mxu0 0.0
      %8571 = vmatpush2.msra.mxu0 0.0
      %8572 = vmatprep.subr.mxu0 0.0
      %8573 = vmatpush2.msra.mxu0 0.0
      %8574 = vmatprep.mubr.f32.mxu0 0.0
      %8575 = vmatmul.mubr.f32.gmra.mxu0 %v8478
      %v8576 = vpop.f32.mrf.mxu0
      %v8577 = vadd.f32 0.0, %v8576
      %v8578 = vpop.f32.mrf.mxu0
      %8579 = vmatprep.mubr.f32.mxu0 0.0
      %8580 = vmatmul.mubr.f32.gmra.mxu0 %v8481
      %v8581 = vpop.f32.mrf.mxu0
      %v8582 = vadd.f32 0.0, %v8581
      %v8583 = vpop.f32.mrf.mxu0
      %8584 = vmatprep.mubr.f32.mxu0 0.0
      %8585 = vmatmul.mubr.f32.gmra.mxu0 %v8484
      %v8586 = vpop.f32.mrf.mxu0
      %v8587 = vadd.f32 0.0, %v8586
      %v8588 = vpop.f32.mrf.mxu0
      %8589 = vmatprep.mubr.f32.mxu0 0.0
      %8590 = vmatmul.mubr.f32.gmra.mxu0 %v8487
      %v8591 = vpop.f32.mrf.mxu0
      %v8592 = vadd.f32 0.0, %v8591
      %v8593 = vpop.f32.mrf.mxu0
      %8594 = vmatprep.mubr.f32.mxu0 0.0
      %8595 = vmatmul.mubr.f32.gmra.mxu0 %v8490
      %v8596 = vpop.f32.mrf.mxu0
      %v8597 = vadd.f32 0.0, %v8596
      %v8598 = vpop.f32.mrf.mxu0
      %8599 = vmatprep.mubr.f32.mxu0 0.0
      %8600 = vmatmul.mubr.f32.gmra.mxu0 %v8493
      %v8601 = vpop.f32.mrf.mxu0
      %v8602 = vadd.f32 0.0, %v8601
      %v8603 = vpop.f32.mrf.mxu0
      %8604 = vmatprep.mubr.f32.mxu0 0.0
      %8605 = vmatmul.mubr.f32.gmra.mxu0 %v8496
      %v8606 = vpop.f32.mrf.mxu0
      %v8607 = vadd.f32 0.0, %v8606
      %v8608 = vpop.f32.mrf.mxu0
      %8609 = vmatprep.mubr.f32.mxu0 0.0
      %8610 = vmatmul.mubr.f32.gmra.mxu0 %v8499
      %v8611 = vpop.f32.mrf.mxu0
      %v8612 = vadd.f32 0.0, %v8611
      %v8613 = vpop.f32.mrf.mxu0
      %8614 = vmatprep.mubr.f32.mxu0 0.0
      %8615 = vmatmul.mubr.f32.gmra.mxu0 %v8502
      %v8616 = vpop.f32.mrf.mxu0
      %v8617 = vadd.f32 0.0, %v8616
      %v8618 = vpop.f32.mrf.mxu0
      %8619 = vmatprep.mubr.f32.mxu0 0.0
      %8620 = vmatmul.mubr.f32.gmra.mxu0 %v8505
      %v8621 = vpop.f32.mrf.mxu0
      %v8622 = vadd.f32 0.0, %v8621
      %v8623 = vpop.f32.mrf.mxu0
      %8624 = vmatprep.mubr.f32.mxu0 0.0
      %8625 = vmatmul.mubr.f32.gmra.mxu0 %v8508
      %v8626 = vpop.f32.mrf.mxu0
      %v8627 = vadd.f32 0.0, %v8626
      %v8628 = vpop.f32.mrf.mxu0
      %8629 = vdwg.mxu0
      %8630 = vst.msk [vmem:[#allocation4] sm:$0xff] %vm642, %v8577
      %8631 = vst.msk [vmem:[#allocation4 + $0x8] sm:$0xff] %vm642, %v8582
      %8632 = vst.msk [vmem:[#allocation4 + $0x10] sm:$0xff] %vm642, %v8587
      %8633 = vst.msk [vmem:[#allocation4 + $0x18] sm:$0xff] %vm642, %v8592
      %8634 = vst.msk [vmem:[#allocation4 + $0x20] sm:$0xff] %vm642, %v8597
      %8635 = vst.msk [vmem:[#allocation4 + $0x28] sm:$0xff] %vm642, %v8602
      %8636 = vst.msk [vmem:[#allocation4 + $0x30] sm:$0xff] %vm642, %v8607
      %8637 = vst.msk [vmem:[#allocation4 + $0x38] sm:$0xff] %vm642, %v8612
      %8638 = vst.msk [vmem:[#allocation4 + $0x40] sm:$0xff] %vm642, %v8617
      %8639 = vst.msk [vmem:[#allocation4 + $0x48] sm:$0xff] %vm642, %v8622
      %8640 = vst.msk [vmem:[#allocation4 + $0x50] sm:$0xff] %vm642, %v8627
      %v8641 = vld [vmem:[#allocation3 + $0x8] sm:$0xff]
      %v8642 = vld [vmem:[#allocation3 + $0x10] sm:$0xff]
      %v8643 = vld [vmem:[#allocation3 + $0x18] sm:$0xff]
      %v8644 = vld [vmem:[#allocation3 + $0x20] sm:$0xff]
      %v8645 = vld [vmem:[#allocation3 + $0x28] sm:$0xff]
      %v8646 = vld [vmem:[#allocation3 + $0x30] sm:$0xff]
      %v8647 = vld [vmem:[#allocation3 + $0x38] sm:$0xff]
      %v8648 = vld [vmem:[#allocation3 + $0x40] sm:$0xff]
      %v8649 = vld [vmem:[#allocation3 + $0x48] sm:$0xff]
      %v8650 = vld [vmem:[#allocation3 + $0x50] sm:$0xff]
      %v8651 = vld [vmem:[#allocation3 + $0x58] sm:$0xff]
      %v8652 = vld [vmem:[%s5 + $0x40] sm:$0xff]
      %v8653 = vld [vmem:[%s5 + $0x48] sm:$0xff]
      %v8654 = vld [vmem:[%s5 + $0x50] sm:$0xff]
      %v8655 = vld [vmem:[%s5 + $0x58] sm:$0xff]
      %v8656 = vld [vmem:[%s5 + $0x60] sm:$0xff]
      %v8657 = vld [vmem:[%s5 + $0x68] sm:$0xff]
      %v8658 = vld [vmem:[%s5 + $0x70] sm:$0xff]
      %v8659 = vld [vmem:[%s5 + $0x78] sm:$0xff]
      %v8661 = vsel %vm642, %v8641, 0
      %v8664 = vsel %vm642, %v8642, 0
      %v8667 = vsel %vm642, %v8643, 0
      %v8670 = vsel %vm642, %v8644, 0
      %v8673 = vsel %vm642, %v8645, 0
      %v8676 = vsel %vm642, %v8646, 0
      %v8679 = vsel %vm642, %v8647, 0
      %v8682 = vsel %vm642, %v8648, 0
      %v8685 = vsel %vm642, %v8649, 0
      %v8688 = vsel %vm642, %v8650, 0
      %v8691 = vsel %vm642, %v8651, 0
      %8693 = vmatprep.subr.mxu0 0.0
      %8694 = vmatpush1.msra.mxu0 0.0
      %8695 = vmatprep.subr.mxu0 0.0
      %8696 = vmatpush1.msra.mxu0 0.0
      %8697 = vmatprep.subr.mxu0 0.0
      %8698 = vmatpush1.msra.mxu0 0.0
      %8699 = vmatprep.subr.mxu0 0.0
      %8700 = vmatpush1.msra.mxu0 0.0
      %8701 = vmatprep.subr.mxu0 0.0
      %8702 = vmatpush1.msra.mxu0 0.0
      %8703 = vmatprep.subr.mxu0 0.0
      %8704 = vmatpush1.msra.mxu0 0.0
      %8705 = vmatprep.subr.mxu0 0.0
      %8706 = vmatpush1.msra.mxu0 0.0
      %8707 = vmatprep.subr.mxu0 0.0
      %8708 = vmatpush1.msra.mxu0 0.0
      %8709 = vmatprep.subr.mxu0 0.0
      %8710 = vmatpush1.msra.mxu0 %v8659
      %8711 = vmatprep.subr.mxu0 0.0
      %8712 = vmatpush1.msra.mxu0 %v8658
      %8713 = vmatprep.subr.mxu0 0.0
      %8714 = vmatpush1.msra.mxu0 %v8657
      %8715 = vmatprep.subr.mxu0 0.0
      %8716 = vmatpush1.msra.mxu0 %v8656
      %8717 = vmatprep.subr.mxu0 0.0
      %8718 = vmatpush1.msra.mxu0 %v8655
      %8719 = vmatprep.subr.mxu0 0.0
      %8720 = vmatpush1.msra.mxu0 %v8654
      %8721 = vmatprep.subr.mxu0 0.0
      %8722 = vmatpush1.msra.mxu0 %v8653
      %8723 = vmatprep.subr.mxu0 0.0
      %8724 = vmatpush1.msra.mxu0 %v8652
      %8725 = vmatprep.subr.mxu0 0.0
      %8726 = vmatpush2.msra.mxu0 0.0
      %8727 = vmatprep.subr.mxu0 0.0
      %8728 = vmatpush2.msra.mxu0 0.0
      %8729 = vmatprep.subr.mxu0 0.0
      %8730 = vmatpush2.msra.mxu0 0.0
      %8731 = vmatprep.subr.mxu0 0.0
      %8732 = vmatpush2.msra.mxu0 0.0
      %8733 = vmatprep.subr.mxu0 0.0
      %8734 = vmatpush2.msra.mxu0 0.0
      %8735 = vmatprep.subr.mxu0 0.0
      %8736 = vmatpush2.msra.mxu0 0.0
      %8737 = vmatprep.subr.mxu0 0.0
      %8738 = vmatpush2.msra.mxu0 0.0
      %8739 = vmatprep.subr.mxu0 0.0
      %8740 = vmatpush2.msra.mxu0 0.0
      %8741 = vmatprep.subr.mxu0 0.0
      %8742 = vmatpush2.msra.mxu0 0.0
      %8743 = vmatprep.subr.mxu0 0.0
      %8744 = vmatpush2.msra.mxu0 0.0
      %8745 = vmatprep.subr.mxu0 0.0
      %8746 = vmatpush2.msra.mxu0 0.0
      %8747 = vmatprep.subr.mxu0 0.0
      %8748 = vmatpush2.msra.mxu0 0.0
      %8749 = vmatprep.subr.mxu0 0.0
      %8750 = vmatpush2.msra.mxu0 0.0
      %8751 = vmatprep.subr.mxu0 0.0
      %8752 = vmatpush2.msra.mxu0 0.0
      %8753 = vmatprep.subr.mxu0 0.0
      %8754 = vmatpush2.msra.mxu0 0.0
      %8755 = vmatprep.subr.mxu0 0.0
      %8756 = vmatpush2.msra.mxu0 0.0
      %8757 = vmatprep.mubr.f32.mxu0 0.0
      %8758 = vmatmul.mubr.f32.gmra.mxu0 %v8661
      %v8759 = vpop.f32.mrf.mxu0
      %v8760 = vadd.f32 0.0, %v8759
      %v8761 = vpop.f32.mrf.mxu0
      %8762 = vmatprep.mubr.f32.mxu0 0.0
      %8763 = vmatmul.mubr.f32.gmra.mxu0 %v8664
      %v8764 = vpop.f32.mrf.mxu0
      %v8765 = vadd.f32 0.0, %v8764
      %v8766 = vpop.f32.mrf.mxu0
      %8767 = vmatprep.mubr.f32.mxu0 0.0
      %8768 = vmatmul.mubr.f32.gmra.mxu0 %v8667
      %v8769 = vpop.f32.mrf.mxu0
      %v8770 = vadd.f32 0.0, %v8769
      %v8771 = vpop.f32.mrf.mxu0
      %8772 = vmatprep.mubr.f32.mxu0 0.0
      %8773 = vmatmul.mubr.f32.gmra.mxu0 %v8670
      %v8774 = vpop.f32.mrf.mxu0
      %v8775 = vadd.f32 0.0, %v8774
      %v8776 = vpop.f32.mrf.mxu0
      %8777 = vmatprep.mubr.f32.mxu0 0.0
      %8778 = vmatmul.mubr.f32.gmra.mxu0 %v8673
      %v8779 = vpop.f32.mrf.mxu0
      %v8780 = vadd.f32 0.0, %v8779
      %v8781 = vpop.f32.mrf.mxu0
      %8782 = vmatprep.mubr.f32.mxu0 0.0
      %8783 = vmatmul.mubr.f32.gmra.mxu0 %v8676
      %v8784 = vpop.f32.mrf.mxu0
      %v8785 = vadd.f32 0.0, %v8784
      %v8786 = vpop.f32.mrf.mxu0
      %8787 = vmatprep.mubr.f32.mxu0 0.0
      %8788 = vmatmul.mubr.f32.gmra.mxu0 %v8679
      %v8789 = vpop.f32.mrf.mxu0
      %v8790 = vadd.f32 0.0, %v8789
      %v8791 = vpop.f32.mrf.mxu0
      %8792 = vmatprep.mubr.f32.mxu0 0.0
      %8793 = vmatmul.mubr.f32.gmra.mxu0 %v8682
      %v8794 = vpop.f32.mrf.mxu0
      %v8795 = vadd.f32 0.0, %v8794
      %v8796 = vpop.f32.mrf.mxu0
      %8797 = vmatprep.mubr.f32.mxu0 0.0
      %8798 = vmatmul.mubr.f32.gmra.mxu0 %v8685
      %v8799 = vpop.f32.mrf.mxu0
      %v8800 = vadd.f32 0.0, %v8799
      %v8801 = vpop.f32.mrf.mxu0
      %8802 = vmatprep.mubr.f32.mxu0 0.0
      %8803 = vmatmul.mubr.f32.gmra.mxu0 %v8688
      %v8804 = vpop.f32.mrf.mxu0
      %v8805 = vadd.f32 0.0, %v8804
      %v8806 = vpop.f32.mrf.mxu0
      %8807 = vmatprep.mubr.f32.mxu0 0.0
      %8808 = vmatmul.mubr.f32.gmra.mxu0 %v8691
      %v8809 = vpop.f32.mrf.mxu0
      %v8810 = vadd.f32 0.0, %v8809
      %v8811 = vpop.f32.mrf.mxu0
      %8812 = vdwg.mxu0
      %v8813 = vld [vmem:[#allocation4] sm:$0xff]
      %v8814 = vld [vmem:[#allocation4 + $0x8] sm:$0xff]
      %v8815 = vld [vmem:[#allocation4 + $0x10] sm:$0xff]
      %v8816 = vld [vmem:[#allocation4 + $0x18] sm:$0xff]
      %v8817 = vld [vmem:[#allocation4 + $0x20] sm:$0xff]
      %v8818 = vld [vmem:[#allocation4 + $0x28] sm:$0xff]
      %v8819 = vld [vmem:[#allocation4 + $0x30] sm:$0xff]
      %v8820 = vld [vmem:[#allocation4 + $0x38] sm:$0xff]
      %v8821 = vld [vmem:[#allocation4 + $0x40] sm:$0xff]
      %v8822 = vld [vmem:[#allocation4 + $0x48] sm:$0xff]
      %v8823 = vld [vmem:[#allocation4 + $0x50] sm:$0xff]
      %v8824 = vadd.f32 %v8813, %v8760
      %v8825 = vadd.f32 %v8814, %v8765
      %v8826 = vadd.f32 %v8815, %v8770
      %v8827 = vadd.f32 %v8816, %v8775
      %v8828 = vadd.f32 %v8817, %v8780
      %v8829 = vadd.f32 %v8818, %v8785
      %v8830 = vadd.f32 %v8819, %v8790
      %v8831 = vadd.f32 %v8820, %v8795
      %v8832 = vadd.f32 %v8821, %v8800
      %v8833 = vadd.f32 %v8822, %v8805
      %v8834 = vadd.f32 %v8823, %v8810
      %8835 = vst.msk [vmem:[#allocation4] sm:$0xff] %vm642, %v8824
      %8836 = vst.msk [vmem:[#allocation4 + $0x8] sm:$0xff] %vm642, %v8825
      %8837 = vst.msk [vmem:[#allocation4 + $0x10] sm:$0xff] %vm642, %v8826
      %8838 = vst.msk [vmem:[#allocation4 + $0x18] sm:$0xff] %vm642, %v8827
      %8839 = vst.msk [vmem:[#allocation4 + $0x20] sm:$0xff] %vm642, %v8828
      %8840 = vst.msk [vmem:[#allocation4 + $0x28] sm:$0xff] %vm642, %v8829
      %8841 = vst.msk [vmem:[#allocation4 + $0x30] sm:$0xff] %vm642, %v8830
      %8842 = vst.msk [vmem:[#allocation4 + $0x38] sm:$0xff] %vm642, %v8831
      %8843 = vst.msk [vmem:[#allocation4 + $0x40] sm:$0xff] %vm642, %v8832
      %8844 = vst.msk [vmem:[#allocation4 + $0x48] sm:$0xff] %vm642, %v8833
      %8845 = vst.msk [vmem:[#allocation4 + $0x50] sm:$0xff] %vm642, %v8834
      %v8846 = vld [vmem:[#allocation3 + $0x10] sm:$0xff]
      %v8847 = vld [vmem:[#allocation3 + $0x18] sm:$0xff]
      %v8848 = vld [vmem:[#allocation3 + $0x20] sm:$0xff]
      %v8849 = vld [vmem:[#allocation3 + $0x28] sm:$0xff]
      %v8850 = vld [vmem:[#allocation3 + $0x30] sm:$0xff]
      %v8851 = vld [vmem:[#allocation3 + $0x38] sm:$0xff]
      %v8852 = vld [vmem:[#allocation3 + $0x40] sm:$0xff]
      %v8853 = vld [vmem:[#allocation3 + $0x48] sm:$0xff]
      %v8854 = vld [vmem:[#allocation3 + $0x50] sm:$0xff]
      %v8855 = vld [vmem:[#allocation3 + $0x58] sm:$0xff]
      %v8856 = vld [vmem:[#allocation3 + $0x60] sm:$0xff]
      %v8857 = vld [vmem:[%s5 + $0x80] sm:$0xff]
      %v8858 = vld [vmem:[%s5 + $0x88] sm:$0xff]
      %v8859 = vld [vmem:[%s5 + $0x90] sm:$0xff]
      %v8860 = vld [vmem:[%s5 + $0x98] sm:$0xff]
      %v8861 = vld [vmem:[%s5 + $0xa0] sm:$0xff]
      %v8862 = vld [vmem:[%s5 + $0xa8] sm:$0xff]
      %v8863 = vld [vmem:[%s5 + $0xb0] sm:$0xff]
      %v8864 = vld [vmem:[%s5 + $0xb8] sm:$0xff]
      %v8866 = vsel %vm642, %v8846, 0
      %v8869 = vsel %vm642, %v8847, 0
      %v8872 = vsel %vm642, %v8848, 0
      %v8875 = vsel %vm642, %v8849, 0
      %v8878 = vsel %vm642, %v8850, 0
      %v8881 = vsel %vm642, %v8851, 0
      %v8884 = vsel %vm642, %v8852, 0
      %v8887 = vsel %vm642, %v8853, 0
      %v8890 = vsel %vm642, %v8854, 0
      %v8893 = vsel %vm642, %v8855, 0
      %v8896 = vsel %vm642, %v8856, 0
      %8898 = vmatprep.subr.mxu0 0.0
      %8899 = vmatpush1.msra.mxu0 0.0
      %8900 = vmatprep.subr.mxu0 0.0
      %8901 = vmatpush1.msra.mxu0 0.0
      %8902 = vmatprep.subr.mxu0 0.0
      %8903 = vmatpush1.msra.mxu0 0.0
      %8904 = vmatprep.subr.mxu0 0.0
      %8905 = vmatpush1.msra.mxu0 0.0
      %8906 = vmatprep.subr.mxu0 0.0
      %8907 = vmatpush1.msra.mxu0 0.0
      %8908 = vmatprep.subr.mxu0 0.0
      %8909 = vmatpush1.msra.mxu0 0.0
      %8910 = vmatprep.subr.mxu0 0.0
      %8911 = vmatpush1.msra.mxu0 0.0
      %8912 = vmatprep.subr.mxu0 0.0
      %8913 = vmatpush1.msra.mxu0 0.0
      %8914 = vmatprep.subr.mxu0 0.0
      %8915 = vmatpush1.msra.mxu0 %v8864
      %8916 = vmatprep.subr.mxu0 0.0
      %8917 = vmatpush1.msra.mxu0 %v8863
      %8918 = vmatprep.subr.mxu0 0.0
      %8919 = vmatpush1.msra.mxu0 %v8862
      %8920 = vmatprep.subr.mxu0 0.0
      %8921 = vmatpush1.msra.mxu0 %v8861
      %8922 = vmatprep.subr.mxu0 0.0
      %8923 = vmatpush1.msra.mxu0 %v8860
      %8924 = vmatprep.subr.mxu0 0.0
      %8925 = vmatpush1.msra.mxu0 %v8859
      %8926 = vmatprep.subr.mxu0 0.0
      %8927 = vmatpush1.msra.mxu0 %v8858
      %8928 = vmatprep.subr.mxu0 0.0
      %8929 = vmatpush1.msra.mxu0 %v8857
      %8930 = vmatprep.subr.mxu0 0.0
      %8931 = vmatpush2.msra.mxu0 0.0
      %8932 = vmatprep.subr.mxu0 0.0
      %8933 = vmatpush2.msra.mxu0 0.0
      %8934 = vmatprep.subr.mxu0 0.0
      %8935 = vmatpush2.msra.mxu0 0.0
      %8936 = vmatprep.subr.mxu0 0.0
      %8937 = vmatpush2.msra.mxu0 0.0
      %8938 = vmatprep.subr.mxu0 0.0
      %8939 = vmatpush2.msra.mxu0 0.0
      %8940 = vmatprep.subr.mxu0 0.0
      %8941 = vmatpush2.msra.mxu0 0.0
      %8942 = vmatprep.subr.mxu0 0.0
      %8943 = vmatpush2.msra.mxu0 0.0
      %8944 = vmatprep.subr.mxu0 0.0
      %8945 = vmatpush2.msra.mxu0 0.0
      %8946 = vmatprep.subr.mxu0 0.0
      %8947 = vmatpush2.msra.mxu0 0.0
      %8948 = vmatprep.subr.mxu0 0.0
      %8949 = vmatpush2.msra.mxu0 0.0
      %8950 = vmatprep.subr.mxu0 0.0
      %8951 = vmatpush2.msra.mxu0 0.0
      %8952 = vmatprep.subr.mxu0 0.0
      %8953 = vmatpush2.msra.mxu0 0.0
      %8954 = vmatprep.subr.mxu0 0.0
      %8955 = vmatpush2.msra.mxu0 0.0
      %8956 = vmatprep.subr.mxu0 0.0
      %8957 = vmatpush2.msra.mxu0 0.0
      %8958 = vmatprep.subr.mxu0 0.0
      %8959 = vmatpush2.msra.mxu0 0.0
      %8960 = vmatprep.subr.mxu0 0.0
      %8961 = vmatpush2.msra.mxu0 0.0
      %8962 = vmatprep.mubr.f32.mxu0 0.0
      %8963 = vmatmul.mubr.f32.gmra.mxu0 %v8866
      %v8964 = vpop.f32.mrf.mxu0
      %v8965 = vadd.f32 0.0, %v8964
      %v8966 = vpop.f32.mrf.mxu0
      %8967 = vmatprep.mubr.f32.mxu0 0.0
      %8968 = vmatmul.mubr.f32.gmra.mxu0 %v8869
      %v8969 = vpop.f32.mrf.mxu0
      %v8970 = vadd.f32 0.0, %v8969
      %v8971 = vpop.f32.mrf.mxu0
      %8972 = vmatprep.mubr.f32.mxu0 0.0
      %8973 = vmatmul.mubr.f32.gmra.mxu0 %v8872
      %v8974 = vpop.f32.mrf.mxu0
      %v8975 = vadd.f32 0.0, %v8974
      %v8976 = vpop.f32.mrf.mxu0
      %8977 = vmatprep.mubr.f32.mxu0 0.0
      %8978 = vmatmul.mubr.f32.gmra.mxu0 %v8875
      %v8979 = vpop.f32.mrf.mxu0
      %v8980 = vadd.f32 0.0, %v8979
      %v8981 = vpop.f32.mrf.mxu0
      %8982 = vmatprep.mubr.f32.mxu0 0.0
      %8983 = vmatmul.mubr.f32.gmra.mxu0 %v8878
      %v8984 = vpop.f32.mrf.mxu0
      %v8985 = vadd.f32 0.0, %v8984
      %v8986 = vpop.f32.mrf.mxu0
      %8987 = vmatprep.mubr.f32.mxu0 0.0
      %8988 = vmatmul.mubr.f32.gmra.mxu0 %v8881
      %v8989 = vpop.f32.mrf.mxu0
      %v8990 = vadd.f32 0.0, %v8989
      %v8991 = vpop.f32.mrf.mxu0
      %8992 = vmatprep.mubr.f32.mxu0 0.0
      %8993 = vmatmul.mubr.f32.gmra.mxu0 %v8884
      %v8994 = vpop.f32.mrf.mxu0
      %v8995 = vadd.f32 0.0, %v8994
      %v8996 = vpop.f32.mrf.mxu0
      %8997 = vmatprep.mubr.f32.mxu0 0.0
      %8998 = vmatmul.mubr.f32.gmra.mxu0 %v8887
      %v8999 = vpop.f32.mrf.mxu0
      %v9000 = vadd.f32 0.0, %v8999
      %v9001 = vpop.f32.mrf.mxu0
      %9002 = vmatprep.mubr.f32.mxu0 0.0
      %9003 = vmatmul.mubr.f32.gmra.mxu0 %v8890
      %v9004 = vpop.f32.mrf.mxu0
      %v9005 = vadd.f32 0.0, %v9004
      %v9006 = vpop.f32.mrf.mxu0
      %9007 = vmatprep.mubr.f32.mxu0 0.0
      %9008 = vmatmul.mubr.f32.gmra.mxu0 %v8893
      %v9009 = vpop.f32.mrf.mxu0
      %v9010 = vadd.f32 0.0, %v9009
      %v9011 = vpop.f32.mrf.mxu0
      %9012 = vmatprep.mubr.f32.mxu0 0.0
      %9013 = vmatmul.mubr.f32.gmra.mxu0 %v8896
      %v9014 = vpop.f32.mrf.mxu0
      %v9015 = vadd.f32 0.0, %v9014
      %v9016 = vpop.f32.mrf.mxu0
      %9017 = vdwg.mxu0
      %v9018 = vld [vmem:[#allocation4] sm:$0xff]
      %v9019 = vld [vmem:[#allocation4 + $0x8] sm:$0xff]
      %v9020 = vld [vmem:[#allocation4 + $0x10] sm:$0xff]
      %v9021 = vld [vmem:[#allocation4 + $0x18] sm:$0xff]
      %v9022 = vld [vmem:[#allocation4 + $0x20] sm:$0xff]
      %v9023 = vld [vmem:[#allocation4 + $0x28] sm:$0xff]
      %v9024 = vld [vmem:[#allocation4 + $0x30] sm:$0xff]
      %v9025 = vld [vmem:[#allocation4 + $0x38] sm:$0xff]
      %v9026 = vld [vmem:[#allocation4 + $0x40] sm:$0xff]
      %v9027 = vld [vmem:[#allocation4 + $0x48] sm:$0xff]
      %v9028 = vld [vmem:[#allocation4 + $0x50] sm:$0xff]
      %v9029 = vadd.f32 %v9018, %v8965
      %v9030 = vadd.f32 %v9019, %v8970
      %v9031 = vadd.f32 %v9020, %v8975
      %v9032 = vadd.f32 %v9021, %v8980
      %v9033 = vadd.f32 %v9022, %v8985
      %v9034 = vadd.f32 %v9023, %v8990
      %v9035 = vadd.f32 %v9024, %v8995
      %v9036 = vadd.f32 %v9025, %v9000
      %v9037 = vadd.f32 %v9026, %v9005
      %v9038 = vadd.f32 %v9027, %v9010
      %v9039 = vadd.f32 %v9028, %v9015
      %9040 = vst.msk [vmem:[#allocation4] sm:$0xff] %vm642, %v9029
      %9041 = vst.msk [vmem:[#allocation4 + $0x8] sm:$0xff] %vm642, %v9030
      %9042 = vst.msk [vmem:[#allocation4 + $0x10] sm:$0xff] %vm642, %v9031
      %9043 = vst.msk [vmem:[#allocation4 + $0x18] sm:$0xff] %vm642, %v9032
      %9044 = vst.msk [vmem:[#allocation4 + $0x20] sm:$0xff] %vm642, %v9033
      %9045 = vst.msk [vmem:[#allocation4 + $0x28] sm:$0xff] %vm642, %v9034
      %9046 = vst.msk [vmem:[#allocation4 + $0x30] sm:$0xff] %vm642, %v9035
      %9047 = vst.msk [vmem:[#allocation4 + $0x38] sm:$0xff] %vm642, %v9036
      %9048 = vst.msk [vmem:[#allocation4 + $0x40] sm:$0xff] %vm642, %v9037
      %9049 = vst.msk [vmem:[#allocation4 + $0x48] sm:$0xff] %vm642, %v9038
      %9050 = vst.msk [vmem:[#allocation4 + $0x50] sm:$0xff] %vm642, %v9039
      %v9051 = vld [vmem:[#allocation3 + $0x38] sm:$0xff]
      %v9052 = vld [vmem:[#allocation3 + $0x40] sm:$0xff]
      %v9053 = vld [vmem:[#allocation3 + $0x48] sm:$0xff]
      %v9054 = vld [vmem:[#allocation3 + $0x50] sm:$0xff]
      %v9055 = vld [vmem:[#allocation3 + $0x58] sm:$0xff]
      %v9056 = vld [vmem:[#allocation3 + $0x60] sm:$0xff]
      %v9057 = vld [vmem:[#allocation3 + $0x68] sm:$0xff]
      %v9058 = vld [vmem:[#allocation3 + $0x70] sm:$0xff]
      %v9059 = vld [vmem:[#allocation3 + $0x78] sm:$0xff]
      %v9060 = vld [vmem:[#allocation3 + $0x80] sm:$0xff]
      %v9061 = vld [vmem:[#allocation3 + $0x88] sm:$0xff]
      %v9062 = vld [vmem:[%s5 + $0xc0] sm:$0xff]
      %v9063 = vld [vmem:[%s5 + $0xc8] sm:$0xff]
      %v9064 = vld [vmem:[%s5 + $0xd0] sm:$0xff]
      %v9065 = vld [vmem:[%s5 + $0xd8] sm:$0xff]
      %v9066 = vld [vmem:[%s5 + $0xe0] sm:$0xff]
      %v9067 = vld [vmem:[%s5 + $0xe8] sm:$0xff]
      %v9068 = vld [vmem:[%s5 + $0xf0] sm:$0xff]
      %v9069 = vld [vmem:[%s5 + $0xf8] sm:$0xff]
      %v9071 = vsel %vm642, %v9051, 0
      %v9074 = vsel %vm642, %v9052, 0
      %v9077 = vsel %vm642, %v9053, 0
      %v9080 = vsel %vm642, %v9054, 0
      %v9083 = vsel %vm642, %v9055, 0
      %v9086 = vsel %vm642, %v9056, 0
      %v9089 = vsel %vm642, %v9057, 0
      %v9092 = vsel %vm642, %v9058, 0
      %v9095 = vsel %vm642, %v9059, 0
      %v9098 = vsel %vm642, %v9060, 0
      %v9101 = vsel %vm642, %v9061, 0
      %9103 = vmatprep.subr.mxu0 0.0
      %9104 = vmatpush1.msra.mxu0 0.0
      %9105 = vmatprep.subr.mxu0 0.0
      %9106 = vmatpush1.msra.mxu0 0.0
      %9107 = vmatprep.subr.mxu0 0.0
      %9108 = vmatpush1.msra.mxu0 0.0
      %9109 = vmatprep.subr.mxu0 0.0
      %9110 = vmatpush1.msra.mxu0 0.0
      %9111 = vmatprep.subr.mxu0 0.0
      %9112 = vmatpush1.msra.mxu0 0.0
      %9113 = vmatprep.subr.mxu0 0.0
      %9114 = vmatpush1.msra.mxu0 0.0
      %9115 = vmatprep.subr.mxu0 0.0
      %9116 = vmatpush1.msra.mxu0 0.0
      %9117 = vmatprep.subr.mxu0 0.0
      %9118 = vmatpush1.msra.mxu0 0.0
      %9119 = vmatprep.subr.mxu0 0.0
      %9120 = vmatpush1.msra.mxu0 %v9069
      %9121 = vmatprep.subr.mxu0 0.0
      %9122 = vmatpush1.msra.mxu0 %v9068
      %9123 = vmatprep.subr.mxu0 0.0
      %9124 = vmatpush1.msra.mxu0 %v9067
      %9125 = vmatprep.subr.mxu0 0.0
      %9126 = vmatpush1.msra.mxu0 %v9066
      %9127 = vmatprep.subr.mxu0 0.0
      %9128 = vmatpush1.msra.mxu0 %v9065
      %9129 = vmatprep.subr.mxu0 0.0
      %9130 = vmatpush1.msra.mxu0 %v9064
      %9131 = vmatprep.subr.mxu0 0.0
      %9132 = vmatpush1.msra.mxu0 %v9063
      %9133 = vmatprep.subr.mxu0 0.0
      %9134 = vmatpush1.msra.mxu0 %v9062
      %9135 = vmatprep.subr.mxu0 0.0
      %9136 = vmatpush2.msra.mxu0 0.0
      %9137 = vmatprep.subr.mxu0 0.0
      %9138 = vmatpush2.msra.mxu0 0.0
      %9139 = vmatprep.subr.mxu0 0.0
      %9140 = vmatpush2.msra.mxu0 0.0
      %9141 = vmatprep.subr.mxu0 0.0
      %9142 = vmatpush2.msra.mxu0 0.0
      %9143 = vmatprep.subr.mxu0 0.0
      %9144 = vmatpush2.msra.mxu0 0.0
      %9145 = vmatprep.subr.mxu0 0.0
      %9146 = vmatpush2.msra.mxu0 0.0
      %9147 = vmatprep.subr.mxu0 0.0
      %9148 = vmatpush2.msra.mxu0 0.0
      %9149 = vmatprep.subr.mxu0 0.0
      %9150 = vmatpush2.msra.mxu0 0.0
      %9151 = vmatprep.subr.mxu0 0.0
      %9152 = vmatpush2.msra.mxu0 0.0
      %9153 = vmatprep.subr.mxu0 0.0
      %9154 = vmatpush2.msra.mxu0 0.0
      %9155 = vmatprep.subr.mxu0 0.0
      %9156 = vmatpush2.msra.mxu0 0.0
      %9157 = vmatprep.subr.mxu0 0.0
      %9158 = vmatpush2.msra.mxu0 0.0
      %9159 = vmatprep.subr.mxu0 0.0
      %9160 = vmatpush2.msra.mxu0 0.0
      %9161 = vmatprep.subr.mxu0 0.0
      %9162 = vmatpush2.msra.mxu0 0.0
      %9163 = vmatprep.subr.mxu0 0.0
      %9164 = vmatpush2.msra.mxu0 0.0
      %9165 = vmatprep.subr.mxu0 0.0
      %9166 = vmatpush2.msra.mxu0 0.0
      %9167 = vmatprep.mubr.f32.mxu0 0.0
      %9168 = vmatmul.mubr.f32.gmra.mxu0 %v9071
      %v9169 = vpop.f32.mrf.mxu0
      %v9170 = vadd.f32 0.0, %v9169
      %v9171 = vpop.f32.mrf.mxu0
      %9172 = vmatprep.mubr.f32.mxu0 0.0
      %9173 = vmatmul.mubr.f32.gmra.mxu0 %v9074
      %v9174 = vpop.f32.mrf.mxu0
      %v9175 = vadd.f32 0.0, %v9174
      %v9176 = vpop.f32.mrf.mxu0
      %9177 = vmatprep.mubr.f32.mxu0 0.0
      %9178 = vmatmul.mubr.f32.gmra.mxu0 %v9077
      %v9179 = vpop.f32.mrf.mxu0
      %v9180 = vadd.f32 0.0, %v9179
      %v9181 = vpop.f32.mrf.mxu0
      %9182 = vmatprep.mubr.f32.mxu0 0.0
      %9183 = vmatmul.mubr.f32.gmra.mxu0 %v9080
      %v9184 = vpop.f32.mrf.mxu0
      %v9185 = vadd.f32 0.0, %v9184
      %v9186 = vpop.f32.mrf.mxu0
      %9187 = vmatprep.mubr.f32.mxu0 0.0
      %9188 = vmatmul.mubr.f32.gmra.mxu0 %v9083
      %v9189 = vpop.f32.mrf.mxu0
      %v9190 = vadd.f32 0.0, %v9189
      %v9191 = vpop.f32.mrf.mxu0
      %9192 = vmatprep.mubr.f32.mxu0 0.0
      %9193 = vmatmul.mubr.f32.gmra.mxu0 %v9086
      %v9194 = vpop.f32.mrf.mxu0
      %v9195 = vadd.f32 0.0, %v9194
      %v9196 = vpop.f32.mrf.mxu0
      %9197 = vmatprep.mubr.f32.mxu0 0.0
      %9198 = vmatmul.mubr.f32.gmra.mxu0 %v9089
      %v9199 = vpop.f32.mrf.mxu0
      %v9200 = vadd.f32 0.0, %v9199
      %v9201 = vpop.f32.mrf.mxu0
      %9202 = vmatprep.mubr.f32.mxu0 0.0
      %9203 = vmatmul.mubr.f32.gmra.mxu0 %v9092
      %v9204 = vpop.f32.mrf.mxu0
      %v9205 = vadd.f32 0.0, %v9204
      %v9206 = vpop.f32.mrf.mxu0
      %9207 = vmatprep.mubr.f32.mxu0 0.0
      %9208 = vmatmul.mubr.f32.gmra.mxu0 %v9095
      %v9209 = vpop.f32.mrf.mxu0
      %v9210 = vadd.f32 0.0, %v9209
      %v9211 = vpop.f32.mrf.mxu0
      %9212 = vmatprep.mubr.f32.mxu0 0.0
      %9213 = vmatmul.mubr.f32.gmra.mxu0 %v9098
      %v9214 = vpop.f32.mrf.mxu0
      %v9215 = vadd.f32 0.0, %v9214
      %v9216 = vpop.f32.mrf.mxu0
      %9217 = vmatprep.mubr.f32.mxu0 0.0
      %9218 = vmatmul.mubr.f32.gmra.mxu0 %v9101
      %v9219 = vpop.f32.mrf.mxu0
      %v9220 = vadd.f32 0.0, %v9219
      %v9221 = vpop.f32.mrf.mxu0
      %9222 = vdwg.mxu0
      %v9223 = vld [vmem:[#allocation4] sm:$0xff]
      %v9224 = vld [vmem:[#allocation4 + $0x8] sm:$0xff]
      %v9225 = vld [vmem:[#allocation4 + $0x10] sm:$0xff]
      %v9226 = vld [vmem:[#allocation4 + $0x18] sm:$0xff]
      %v9227 = vld [vmem:[#allocation4 + $0x20] sm:$0xff]
      %v9228 = vld [vmem:[#allocation4 + $0x28] sm:$0xff]
      %v9229 = vld [vmem:[#allocation4 + $0x30] sm:$0xff]
      %v9230 = vld [vmem:[#allocation4 + $0x38] sm:$0xff]
      %v9231 = vld [vmem:[#allocation4 + $0x40] sm:$0xff]
      %v9232 = vld [vmem:[#allocation4 + $0x48] sm:$0xff]
      %v9233 = vld [vmem:[#allocation4 + $0x50] sm:$0xff]
      %v9234 = vadd.f32 %v9223, %v9170
      %v9235 = vadd.f32 %v9224, %v9175
      %v9236 = vadd.f32 %v9225, %v9180
      %v9237 = vadd.f32 %v9226, %v9185
      %v9238 = vadd.f32 %v9227, %v9190
      %v9239 = vadd.f32 %v9228, %v9195
      %v9240 = vadd.f32 %v9229, %v9200
      %v9241 = vadd.f32 %v9230, %v9205
      %v9242 = vadd.f32 %v9231, %v9210
      %v9243 = vadd.f32 %v9232, %v9215
      %v9244 = vadd.f32 %v9233, %v9220
      %9245 = vst.msk [vmem:[#allocation4] sm:$0xff] %vm642, %v9234
      %9246 = vst.msk [vmem:[#allocation4 + $0x8] sm:$0xff] %vm642, %v9235
      %9247 = vst.msk [vmem:[#allocation4 + $0x10] sm:$0xff] %vm642, %v9236
      %9248 = vst.msk [vmem:[#allocation4 + $0x18] sm:$0xff] %vm642, %v9237
      %9249 = vst.msk [vmem:[#allocation4 + $0x20] sm:$0xff] %vm642, %v9238
      %9250 = vst.msk [vmem:[#allocation4 + $0x28] sm:$0xff] %vm642, %v9239
      %9251 = vst.msk [vmem:[#allocation4 + $0x30] sm:$0xff] %vm642, %v9240
      %9252 = vst.msk [vmem:[#allocation4 + $0x38] sm:$0xff] %vm642, %v9241
      %9253 = vst.msk [vmem:[#allocation4 + $0x40] sm:$0xff] %vm642, %v9242
      %9254 = vst.msk [vmem:[#allocation4 + $0x48] sm:$0xff] %vm642, %v9243
      %9255 = vst.msk [vmem:[#allocation4 + $0x50] sm:$0xff] %vm642, %v9244
      %v9256 = vld [vmem:[#allocation3 + $0x40] sm:$0xff]
      %v9257 = vld [vmem:[#allocation3 + $0x48] sm:$0xff]
      %v9258 = vld [vmem:[#allocation3 + $0x50] sm:$0xff]
      %v9259 = vld [vmem:[#allocation3 + $0x58] sm:$0xff]
      %v9260 = vld [vmem:[#allocation3 + $0x60] sm:$0xff]
      %v9261 = vld [vmem:[#allocation3 + $0x68] sm:$0xff]
      %v9262 = vld [vmem:[#allocation3 + $0x70] sm:$0xff]
      %v9263 = vld [vmem:[#allocation3 + $0x78] sm:$0xff]
      %v9264 = vld [vmem:[#allocation3 + $0x80] sm:$0xff]
      %v9265 = vld [vmem:[#allocation3 + $0x88] sm:$0xff]
      %v9266 = vld [vmem:[#allocation3 + $0x90] sm:$0xff]
      %v9267 = vld [vmem:[%s5 + $0x100] sm:$0xff]
      %v9268 = vld [vmem:[%s5 + $0x108] sm:$0xff]
      %v9269 = vld [vmem:[%s5 + $0x110] sm:$0xff]
      %v9270 = vld [vmem:[%s5 + $0x118] sm:$0xff]
      %v9271 = vld [vmem:[%s5 + $0x120] sm:$0xff]
      %v9272 = vld [vmem:[%s5 + $0x128] sm:$0xff]
      %v9273 = vld [vmem:[%s5 + $0x130] sm:$0xff]
      %v9274 = vld [vmem:[%s5 + $0x138] sm:$0xff]
      %v9276 = vsel %vm642, %v9256, 0
      %v9279 = vsel %vm642, %v9257, 0
      %v9282 = vsel %vm642, %v9258, 0
      %v9285 = vsel %vm642, %v9259, 0
      %v9288 = vsel %vm642, %v9260, 0
      %v9291 = vsel %vm642, %v9261, 0
      %v9294 = vsel %vm642, %v9262, 0
      %v9297 = vsel %vm642, %v9263, 0
      %v9300 = vsel %vm642, %v9264, 0
      %v9303 = vsel %vm642, %v9265, 0
      %v9306 = vsel %vm642, %v9266, 0
      %9308 = vmatprep.subr.mxu0 0.0
      %9309 = vmatpush1.msra.mxu0 0.0
      %9310 = vmatprep.subr.mxu0 0.0
      %9311 = vmatpush1.msra.mxu0 0.0
      %9312 = vmatprep.subr.mxu0 0.0
      %9313 = vmatpush1.msra.mxu0 0.0
      %9314 = vmatprep.subr.mxu0 0.0
      %9315 = vmatpush1.msra.mxu0 0.0
      %9316 = vmatprep.subr.mxu0 0.0
      %9317 = vmatpush1.msra.mxu0 0.0
      %9318 = vmatprep.subr.mxu0 0.0
      %9319 = vmatpush1.msra.mxu0 0.0
      %9320 = vmatprep.subr.mxu0 0.0
      %9321 = vmatpush1.msra.mxu0 0.0
      %9322 = vmatprep.subr.mxu0 0.0
      %9323 = vmatpush1.msra.mxu0 0.0
      %9324 = vmatprep.subr.mxu0 0.0
      %9325 = vmatpush1.msra.mxu0 %v9274
      %9326 = vmatprep.subr.mxu0 0.0
      %9327 = vmatpush1.msra.mxu0 %v9273
      %9328 = vmatprep.subr.mxu0 0.0
      %9329 = vmatpush1.msra.mxu0 %v9272
      %9330 = vmatprep.subr.mxu0 0.0
      %9331 = vmatpush1.msra.mxu0 %v9271
      %9332 = vmatprep.subr.mxu0 0.0
      %9333 = vmatpush1.msra.mxu0 %v9270
      %9334 = vmatprep.subr.mxu0 0.0
      %9335 = vmatpush1.msra.mxu0 %v9269
      %9336 = vmatprep.subr.mxu0 0.0
      %9337 = vmatpush1.msra.mxu0 %v9268
      %9338 = vmatprep.subr.mxu0 0.0
      %9339 = vmatpush1.msra.mxu0 %v9267
      %9340 = vmatprep.subr.mxu0 0.0
      %9341 = vmatpush2.msra.mxu0 0.0
      %9342 = vmatprep.subr.mxu0 0.0
      %9343 = vmatpush2.msra.mxu0 0.0
      %9344 = vmatprep.subr.mxu0 0.0
      %9345 = vmatpush2.msra.mxu0 0.0
      %9346 = vmatprep.subr.mxu0 0.0
      %9347 = vmatpush2.msra.mxu0 0.0
      %9348 = vmatprep.subr.mxu0 0.0
      %9349 = vmatpush2.msra.mxu0 0.0
      %9350 = vmatprep.subr.mxu0 0.0
      %9351 = vmatpush2.msra.mxu0 0.0
      %9352 = vmatprep.subr.mxu0 0.0
      %9353 = vmatpush2.msra.mxu0 0.0
      %9354 = vmatprep.subr.mxu0 0.0
      %9355 = vmatpush2.msra.mxu0 0.0
      %9356 = vmatprep.subr.mxu0 0.0
      %9357 = vmatpush2.msra.mxu0 0.0
      %9358 = vmatprep.subr.mxu0 0.0
      %9359 = vmatpush2.msra.mxu0 0.0
      %9360 = vmatprep.subr.mxu0 0.0
      %9361 = vmatpush2.msra.mxu0 0.0
      %9362 = vmatprep.subr.mxu0 0.0
      %9363 = vmatpush2.msra.mxu0 0.0
      %9364 = vmatprep.subr.mxu0 0.0
      %9365 = vmatpush2.msra.mxu0 0.0
      %9366 = vmatprep.subr.mxu0 0.0
      %9367 = vmatpush2.msra.mxu0 0.0
      %9368 = vmatprep.subr.mxu0 0.0
      %9369 = vmatpush2.msra.mxu0 0.0
      %9370 = vmatprep.subr.mxu0 0.0
      %9371 = vmatpush2.msra.mxu0 0.0
      %9372 = vmatprep.mubr.f32.mxu0 0.0
      %9373 = vmatmul.mubr.f32.gmra.mxu0 %v9276
      %v9374 = vpop.f32.mrf.mxu0
      %v9375 = vadd.f32 0.0, %v9374
      %v9376 = vpop.f32.mrf.mxu0
      %9377 = vmatprep.mubr.f32.mxu0 0.0
      %9378 = vmatmul.mubr.f32.gmra.mxu0 %v9279
      %v9379 = vpop.f32.mrf.mxu0
      %v9380 = vadd.f32 0.0, %v9379
      %v9381 = vpop.f32.mrf.mxu0
      %9382 = vmatprep.mubr.f32.mxu0 0.0
      %9383 = vmatmul.mubr.f32.gmra.mxu0 %v9282
      %v9384 = vpop.f32.mrf.mxu0
      %v9385 = vadd.f32 0.0, %v9384
      %v9386 = vpop.f32.mrf.mxu0
      %9387 = vmatprep.mubr.f32.mxu0 0.0
      %9388 = vmatmul.mubr.f32.gmra.mxu0 %v9285
      %v9389 = vpop.f32.mrf.mxu0
      %v9390 = vadd.f32 0.0, %v9389
      %v9391 = vpop.f32.mrf.mxu0
      %9392 = vmatprep.mubr.f32.mxu0 0.0
      %9393 = vmatmul.mubr.f32.gmra.mxu0 %v9288
      %v9394 = vpop.f32.mrf.mxu0
      %v9395 = vadd.f32 0.0, %v9394
      %v9396 = vpop.f32.mrf.mxu0
      %9397 = vmatprep.mubr.f32.mxu0 0.0
      %9398 = vmatmul.mubr.f32.gmra.mxu0 %v9291
      %v9399 = vpop.f32.mrf.mxu0
      %v9400 = vadd.f32 0.0, %v9399
      %v9401 = vpop.f32.mrf.mxu0
      %9402 = vmatprep.mubr.f32.mxu0 0.0
      %9403 = vmatmul.mubr.f32.gmra.mxu0 %v9294
      %v9404 = vpop.f32.mrf.mxu0
      %v9405 = vadd.f32 0.0, %v9404
      %v9406 = vpop.f32.mrf.mxu0
      %9407 = vmatprep.mubr.f32.mxu0 0.0
      %9408 = vmatmul.mubr.f32.gmra.mxu0 %v9297
      %v9409 = vpop.f32.mrf.mxu0
      %v9410 = vadd.f32 0.0, %v9409
      %v9411 = vpop.f32.mrf.mxu0
      %9412 = vmatprep.mubr.f32.mxu0 0.0
      %9413 = vmatmul.mubr.f32.gmra.mxu0 %v9300
      %v9414 = vpop.f32.mrf.mxu0
      %v9415 = vadd.f32 0.0, %v9414
      %v9416 = vpop.f32.mrf.mxu0
      %9417 = vmatprep.mubr.f32.mxu0 0.0
      %9418 = vmatmul.mubr.f32.gmra.mxu0 %v9303
      %v9419 = vpop.f32.mrf.mxu0
      %v9420 = vadd.f32 0.0, %v9419
      %v9421 = vpop.f32.mrf.mxu0
      %9422 = vmatprep.mubr.f32.mxu0 0.0
      %9423 = vmatmul.mubr.f32.gmra.mxu0 %v9306
      %v9424 = vpop.f32.mrf.mxu0
      %v9425 = vadd.f32 0.0, %v9424
      %v9426 = vpop.f32.mrf.mxu0
      %9427 = vdwg.mxu0
      %v9428 = vld [vmem:[#allocation4] sm:$0xff]
      %v9429 = vld [vmem:[#allocation4 + $0x8] sm:$0xff]
      %v9430 = vld [vmem:[#allocation4 + $0x10] sm:$0xff]
      %v9431 = vld [vmem:[#allocation4 + $0x18] sm:$0xff]
      %v9432 = vld [vmem:[#allocation4 + $0x20] sm:$0xff]
      %v9433 = vld [vmem:[#allocation4 + $0x28] sm:$0xff]
      %v9434 = vld [vmem:[#allocation4 + $0x30] sm:$0xff]
      %v9435 = vld [vmem:[#allocation4 + $0x38] sm:$0xff]
      %v9436 = vld [vmem:[#allocation4 + $0x40] sm:$0xff]
      %v9437 = vld [vmem:[#allocation4 + $0x48] sm:$0xff]
      %v9438 = vld [vmem:[#allocation4 + $0x50] sm:$0xff]
      %v9439 = vadd.f32 %v9428, %v9375
      %v9440 = vadd.f32 %v9429, %v9380
      %v9441 = vadd.f32 %v9430, %v9385
      %v9442 = vadd.f32 %v9431, %v9390
      %v9443 = vadd.f32 %v9432, %v9395
      %v9444 = vadd.f32 %v9433, %v9400
      %v9445 = vadd.f32 %v9434, %v9405
      %v9446 = vadd.f32 %v9435, %v9410
      %v9447 = vadd.f32 %v9436, %v9415
      %v9448 = vadd.f32 %v9437, %v9420
      %v9449 = vadd.f32 %v9438, %v9425
      %9450 = vst.msk [vmem:[#allocation4] sm:$0xff] %vm642, %v9439
      %9451 = vst.msk [vmem:[#allocation4 + $0x8] sm:$0xff] %vm642, %v9440
      %9452 = vst.msk [vmem:[#allocation4 + $0x10] sm:$0xff] %vm642, %v9441
      %9453 = vst.msk [vmem:[#allocation4 + $0x18] sm:$0xff] %vm642, %v9442
      %9454 = vst.msk [vmem:[#allocation4 + $0x20] sm:$0xff] %vm642, %v9443
      %9455 = vst.msk [vmem:[#allocation4 + $0x28] sm:$0xff] %vm642, %v9444
      %9456 = vst.msk [vmem:[#allocation4 + $0x30] sm:$0xff] %vm642, %v9445
      %9457 = vst.msk [vmem:[#allocation4 + $0x38] sm:$0xff] %vm642, %v9446
      %9458 = vst.msk [vmem:[#allocation4 + $0x40] sm:$0xff] %vm642, %v9447
      %9459 = vst.msk [vmem:[#allocation4 + $0x48] sm:$0xff] %vm642, %v9448
      %9460 = vst.msk [vmem:[#allocation4 + $0x50] sm:$0xff] %vm642, %v9449
      %v9461 = vld [vmem:[#allocation3 + $0x48] sm:$0xff]
      %v9462 = vld [vmem:[#allocation3 + $0x50] sm:$0xff]
      %v9463 = vld [vmem:[#allocation3 + $0x58] sm:$0xff]
      %v9464 = vld [vmem:[#allocation3 + $0x60] sm:$0xff]
      %v9465 = vld [vmem:[#allocation3 + $0x68] sm:$0xff]
      %v9466 = vld [vmem:[#allocation3 + $0x70] sm:$0xff]
      %v9467 = vld [vmem:[#allocation3 + $0x78] sm:$0xff]
      %v9468 = vld [vmem:[#allocation3 + $0x80] sm:$0xff]
      %v9469 = vld [vmem:[#allocation3 + $0x88] sm:$0xff]
      %v9470 = vld [vmem:[#allocation3 + $0x90] sm:$0xff]
      %v9471 = vld [vmem:[#allocation3 + $0x98] sm:$0xff]
      %v9472 = vld [vmem:[%s5 + $0x140] sm:$0xff]
      %v9473 = vld [vmem:[%s5 + $0x148] sm:$0xff]
      %v9474 = vld [vmem:[%s5 + $0x150] sm:$0xff]
      %v9475 = vld [vmem:[%s5 + $0x158] sm:$0xff]
      %v9476 = vld [vmem:[%s5 + $0x160] sm:$0xff]
      %v9477 = vld [vmem:[%s5 + $0x168] sm:$0xff]
      %v9478 = vld [vmem:[%s5 + $0x170] sm:$0xff]
      %v9479 = vld [vmem:[%s5 + $0x178] sm:$0xff]
      %v9481 = vsel %vm642, %v9461, 0
      %v9484 = vsel %vm642, %v9462, 0
      %v9487 = vsel %vm642, %v9463, 0
      %v9490 = vsel %vm642, %v9464, 0
      %v9493 = vsel %vm642, %v9465, 0
      %v9496 = vsel %vm642, %v9466, 0
      %v9499 = vsel %vm642, %v9467, 0
      %v9502 = vsel %vm642, %v9468, 0
      %v9505 = vsel %vm642, %v9469, 0
      %v9508 = vsel %vm642, %v9470, 0
      %v9511 = vsel %vm642, %v9471, 0
      %9513 = vmatprep.subr.mxu0 0.0
      %9514 = vmatpush1.msra.mxu0 0.0
      %9515 = vmatprep.subr.mxu0 0.0
      %9516 = vmatpush1.msra.mxu0 0.0
      %9517 = vmatprep.subr.mxu0 0.0
      %9518 = vmatpush1.msra.mxu0 0.0
      %9519 = vmatprep.subr.mxu0 0.0
      %9520 = vmatpush1.msra.mxu0 0.0
      %9521 = vmatprep.subr.mxu0 0.0
      %9522 = vmatpush1.msra.mxu0 0.0
      %9523 = vmatprep.subr.mxu0 0.0
      %9524 = vmatpush1.msra.mxu0 0.0
      %9525 = vmatprep.subr.mxu0 0.0
      %9526 = vmatpush1.msra.mxu0 0.0
      %9527 = vmatprep.subr.mxu0 0.0
      %9528 = vmatpush1.msra.mxu0 0.0
      %9529 = vmatprep.subr.mxu0 0.0
      %9530 = vmatpush1.msra.mxu0 %v9479
      %9531 = vmatprep.subr.mxu0 0.0
      %9532 = vmatpush1.msra.mxu0 %v9478
      %9533 = vmatprep.subr.mxu0 0.0
      %9534 = vmatpush1.msra.mxu0 %v9477
      %9535 = vmatprep.subr.mxu0 0.0
      %9536 = vmatpush1.msra.mxu0 %v9476
      %9537 = vmatprep.subr.mxu0 0.0
      %9538 = vmatpush1.msra.mxu0 %v9475
      %9539 = vmatprep.subr.mxu0 0.0
      %9540 = vmatpush1.msra.mxu0 %v9474
      %9541 = vmatprep.subr.mxu0 0.0
      %9542 = vmatpush1.msra.mxu0 %v9473
      %9543 = vmatprep.subr.mxu0 0.0
      %9544 = vmatpush1.msra.mxu0 %v9472
      %9545 = vmatprep.subr.mxu0 0.0
      %9546 = vmatpush2.msra.mxu0 0.0
      %9547 = vmatprep.subr.mxu0 0.0
      %9548 = vmatpush2.msra.mxu0 0.0
      %9549 = vmatprep.subr.mxu0 0.0
      %9550 = vmatpush2.msra.mxu0 0.0
      %9551 = vmatprep.subr.mxu0 0.0
      %9552 = vmatpush2.msra.mxu0 0.0
      %9553 = vmatprep.subr.mxu0 0.0
      %9554 = vmatpush2.msra.mxu0 0.0
      %9555 = vmatprep.subr.mxu0 0.0
      %9556 = vmatpush2.msra.mxu0 0.0
      %9557 = vmatprep.subr.mxu0 0.0
      %9558 = vmatpush2.msra.mxu0 0.0
      %9559 = vmatprep.subr.mxu0 0.0
      %9560 = vmatpush2.msra.mxu0 0.0
      %9561 = vmatprep.subr.mxu0 0.0
      %9562 = vmatpush2.msra.mxu0 0.0
      %9563 = vmatprep.subr.mxu0 0.0
      %9564 = vmatpush2.msra.mxu0 0.0
      %9565 = vmatprep.subr.mxu0 0.0
      %9566 = vmatpush2.msra.mxu0 0.0
      %9567 = vmatprep.subr.mxu0 0.0
      %9568 = vmatpush2.msra.mxu0 0.0
      %9569 = vmatprep.subr.mxu0 0.0
      %9570 = vmatpush2.msra.mxu0 0.0
      %9571 = vmatprep.subr.mxu0 0.0
      %9572 = vmatpush2.msra.mxu0 0.0
      %9573 = vmatprep.subr.mxu0 0.0
      %9574 = vmatpush2.msra.mxu0 0.0
      %9575 = vmatprep.subr.mxu0 0.0
      %9576 = vmatpush2.msra.mxu0 0.0
      %9577 = vmatprep.mubr.f32.mxu0 0.0
      %9578 = vmatmul.mubr.f32.gmra.mxu0 %v9481
      %v9579 = vpop.f32.mrf.mxu0
      %v9580 = vadd.f32 0.0, %v9579
      %v9581 = vpop.f32.mrf.mxu0
      %9582 = vmatprep.mubr.f32.mxu0 0.0
      %9583 = vmatmul.mubr.f32.gmra.mxu0 %v9484
      %v9584 = vpop.f32.mrf.mxu0
      %v9585 = vadd.f32 0.0, %v9584
      %v9586 = vpop.f32.mrf.mxu0
      %9587 = vmatprep.mubr.f32.mxu0 0.0
      %9588 = vmatmul.mubr.f32.gmra.mxu0 %v9487
      %v9589 = vpop.f32.mrf.mxu0
      %v9590 = vadd.f32 0.0, %v9589
      %v9591 = vpop.f32.mrf.mxu0
      %9592 = vmatprep.mubr.f32.mxu0 0.0
      %9593 = vmatmul.mubr.f32.gmra.mxu0 %v9490
      %v9594 = vpop.f32.mrf.mxu0
      %v9595 = vadd.f32 0.0, %v9594
      %v9596 = vpop.f32.mrf.mxu0
      %9597 = vmatprep.mubr.f32.mxu0 0.0
      %9598 = vmatmul.mubr.f32.gmra.mxu0 %v9493
      %v9599 = vpop.f32.mrf.mxu0
      %v9600 = vadd.f32 0.0, %v9599
      %v9601 = vpop.f32.mrf.mxu0
      %9602 = vmatprep.mubr.f32.mxu0 0.0
      %9603 = vmatmul.mubr.f32.gmra.mxu0 %v9496
      %v9604 = vpop.f32.mrf.mxu0
      %v9605 = vadd.f32 0.0, %v9604
      %v9606 = vpop.f32.mrf.mxu0
      %9607 = vmatprep.mubr.f32.mxu0 0.0
      %9608 = vmatmul.mubr.f32.gmra.mxu0 %v9499
      %v9609 = vpop.f32.mrf.mxu0
      %v9610 = vadd.f32 0.0, %v9609
      %v9611 = vpop.f32.mrf.mxu0
      %9612 = vmatprep.mubr.f32.mxu0 0.0
      %9613 = vmatmul.mubr.f32.gmra.mxu0 %v9502
      %v9614 = vpop.f32.mrf.mxu0
      %v9615 = vadd.f32 0.0, %v9614
      %v9616 = vpop.f32.mrf.mxu0
      %9617 = vmatprep.mubr.f32.mxu0 0.0
      %9618 = vmatmul.mubr.f32.gmra.mxu0 %v9505
      %v9619 = vpop.f32.mrf.mxu0
      %v9620 = vadd.f32 0.0, %v9619
      %v9621 = vpop.f32.mrf.mxu0
      %9622 = vmatprep.mubr.f32.mxu0 0.0
      %9623 = vmatmul.mubr.f32.gmra.mxu0 %v9508
      %v9624 = vpop.f32.mrf.mxu0
      %v9625 = vadd.f32 0.0, %v9624
      %v9626 = vpop.f32.mrf.mxu0
      %9627 = vmatprep.mubr.f32.mxu0 0.0
      %9628 = vmatmul.mubr.f32.gmra.mxu0 %v9511
      %v9629 = vpop.f32.mrf.mxu0
      %v9630 = vadd.f32 0.0, %v9629
      %v9631 = vpop.f32.mrf.mxu0
      %9632 = vdwg.mxu0
      %v9633 = vld [vmem:[#allocation4] sm:$0xff]
      %v9634 = vld [vmem:[#allocation4 + $0x8] sm:$0xff]
      %v9635 = vld [vmem:[#allocation4 + $0x10] sm:$0xff]
      %v9636 = vld [vmem:[#allocation4 + $0x18] sm:$0xff]
      %v9637 = vld [vmem:[#allocation4 + $0x20] sm:$0xff]
      %v9638 = vld [vmem:[#allocation4 + $0x28] sm:$0xff]
      %v9639 = vld [vmem:[#allocation4 + $0x30] sm:$0xff]
      %v9640 = vld [vmem:[#allocation4 + $0x38] sm:$0xff]
      %v9641 = vld [vmem:[#allocation4 + $0x40] sm:$0xff]
      %v9642 = vld [vmem:[#allocation4 + $0x48] sm:$0xff]
      %v9643 = vld [vmem:[#allocation4 + $0x50] sm:$0xff]
      %v9644 = vadd.f32 %v9633, %v9580
      %v9645 = vadd.f32 %v9634, %v9585
      %v9646 = vadd.f32 %v9635, %v9590
      %v9647 = vadd.f32 %v9636, %v9595
      %v9648 = vadd.f32 %v9637, %v9600
      %v9649 = vadd.f32 %v9638, %v9605
      %v9650 = vadd.f32 %v9639, %v9610
      %v9651 = vadd.f32 %v9640, %v9615
      %v9652 = vadd.f32 %v9641, %v9620
      %v9653 = vadd.f32 %v9642, %v9625
      %v9654 = vadd.f32 %v9643, %v9630
      %9655 = vst.msk [vmem:[#allocation4] sm:$0xff] %vm642, %v9644
      %9656 = vst.msk [vmem:[#allocation4 + $0x8] sm:$0xff] %vm642, %v9645
      %9657 = vst.msk [vmem:[#allocation4 + $0x10] sm:$0xff] %vm642, %v9646
      %9658 = vst.msk [vmem:[#allocation4 + $0x18] sm:$0xff] %vm642, %v9647
      %9659 = vst.msk [vmem:[#allocation4 + $0x20] sm:$0xff] %vm642, %v9648
      %9660 = vst.msk [vmem:[#allocation4 + $0x28] sm:$0xff] %vm642, %v9649
      %9661 = vst.msk [vmem:[#allocation4 + $0x30] sm:$0xff] %vm642, %v9650
      %9662 = vst.msk [vmem:[#allocation4 + $0x38] sm:$0xff] %vm642, %v9651
      %9663 = vst.msk [vmem:[#allocation4 + $0x40] sm:$0xff] %vm642, %v9652
      %9664 = vst.msk [vmem:[#allocation4 + $0x48] sm:$0xff] %vm642, %v9653
      %9665 = vst.msk [vmem:[#allocation4 + $0x50] sm:$0xff] %vm642, %v9654
      %v9666 = vld [vmem:[#allocation3 + $0x70] sm:$0xff]
      %v9667 = vld [vmem:[#allocation3 + $0x78] sm:$0xff]
      %v9668 = vld [vmem:[#allocation3 + $0x80] sm:$0xff]
      %v9669 = vld [vmem:[#allocation3 + $0x88] sm:$0xff]
      %v9670 = vld [vmem:[#allocation3 + $0x90] sm:$0xff]
      %v9671 = vld [vmem:[#allocation3 + $0x98] sm:$0xff]
      %v9672 = vld [vmem:[#allocation3 + $0xa0] sm:$0xff]
      %v9673 = vld [vmem:[#allocation3 + $0xa8] sm:$0xff]
      %v9674 = vld [vmem:[#allocation3 + $0xb0] sm:$0xff]
      %v9675 = vld [vmem:[#allocation3 + $0xb8] sm:$0xff]
      %v9676 = vld [vmem:[#allocation3 + $0xc0] sm:$0xff]
      %v9677 = vld [vmem:[%s5 + $0x180] sm:$0xff]
      %v9678 = vld [vmem:[%s5 + $0x188] sm:$0xff]
      %v9679 = vld [vmem:[%s5 + $0x190] sm:$0xff]
      %v9680 = vld [vmem:[%s5 + $0x198] sm:$0xff]
      %v9681 = vld [vmem:[%s5 + $0x1a0] sm:$0xff]
      %v9682 = vld [vmem:[%s5 + $0x1a8] sm:$0xff]
      %v9683 = vld [vmem:[%s5 + $0x1b0] sm:$0xff]
      %v9684 = vld [vmem:[%s5 + $0x1b8] sm:$0xff]
      %v9686 = vsel %vm642, %v9666, 0
      %v9689 = vsel %vm642, %v9667, 0
      %v9692 = vsel %vm642, %v9668, 0
      %v9695 = vsel %vm642, %v9669, 0
      %v9698 = vsel %vm642, %v9670, 0
      %v9701 = vsel %vm642, %v9671, 0
      %v9704 = vsel %vm642, %v9672, 0
      %v9707 = vsel %vm642, %v9673, 0
      %v9710 = vsel %vm642, %v9674, 0
      %v9713 = vsel %vm642, %v9675, 0
      %v9716 = vsel %vm642, %v9676, 0
      %9718 = vmatprep.subr.mxu0 0.0
      %9719 = vmatpush1.msra.mxu0 0.0
      %9720 = vmatprep.subr.mxu0 0.0
      %9721 = vmatpush1.msra.mxu0 0.0
      %9722 = vmatprep.subr.mxu0 0.0
      %9723 = vmatpush1.msra.mxu0 0.0
      %9724 = vmatprep.subr.mxu0 0.0
      %9725 = vmatpush1.msra.mxu0 0.0
      %9726 = vmatprep.subr.mxu0 0.0
      %9727 = vmatpush1.msra.mxu0 0.0
      %9728 = vmatprep.subr.mxu0 0.0
      %9729 = vmatpush1.msra.mxu0 0.0
      %9730 = vmatprep.subr.mxu0 0.0
      %9731 = vmatpush1.msra.mxu0 0.0
      %9732 = vmatprep.subr.mxu0 0.0
      %9733 = vmatpush1.msra.mxu0 0.0
      %9734 = vmatprep.subr.mxu0 0.0
      %9735 = vmatpush1.msra.mxu0 %v9684
      %9736 = vmatprep.subr.mxu0 0.0
      %9737 = vmatpush1.msra.mxu0 %v9683
      %9738 = vmatprep.subr.mxu0 0.0
      %9739 = vmatpush1.msra.mxu0 %v9682
      %9740 = vmatprep.subr.mxu0 0.0
      %9741 = vmatpush1.msra.mxu0 %v9681
      %9742 = vmatprep.subr.mxu0 0.0
      %9743 = vmatpush1.msra.mxu0 %v9680
      %9744 = vmatprep.subr.mxu0 0.0
      %9745 = vmatpush1.msra.mxu0 %v9679
      %9746 = vmatprep.subr.mxu0 0.0
      %9747 = vmatpush1.msra.mxu0 %v9678
      %9748 = vmatprep.subr.mxu0 0.0
      %9749 = vmatpush1.msra.mxu0 %v9677
      %9750 = vmatprep.subr.mxu0 0.0
      %9751 = vmatpush2.msra.mxu0 0.0
      %9752 = vmatprep.subr.mxu0 0.0
      %9753 = vmatpush2.msra.mxu0 0.0
      %9754 = vmatprep.subr.mxu0 0.0
      %9755 = vmatpush2.msra.mxu0 0.0
      %9756 = vmatprep.subr.mxu0 0.0
      %9757 = vmatpush2.msra.mxu0 0.0
      %9758 = vmatprep.subr.mxu0 0.0
      %9759 = vmatpush2.msra.mxu0 0.0
      %9760 = vmatprep.subr.mxu0 0.0
      %9761 = vmatpush2.msra.mxu0 0.0
      %9762 = vmatprep.subr.mxu0 0.0
      %9763 = vmatpush2.msra.mxu0 0.0
      %9764 = vmatprep.subr.mxu0 0.0
      %9765 = vmatpush2.msra.mxu0 0.0
      %9766 = vmatprep.subr.mxu0 0.0
      %9767 = vmatpush2.msra.mxu0 0.0
      %9768 = vmatprep.subr.mxu0 0.0
      %9769 = vmatpush2.msra.mxu0 0.0
      %9770 = vmatprep.subr.mxu0 0.0
      %9771 = vmatpush2.msra.mxu0 0.0
      %9772 = vmatprep.subr.mxu0 0.0
      %9773 = vmatpush2.msra.mxu0 0.0
      %9774 = vmatprep.subr.mxu0 0.0
      %9775 = vmatpush2.msra.mxu0 0.0
      %9776 = vmatprep.subr.mxu0 0.0
      %9777 = vmatpush2.msra.mxu0 0.0
      %9778 = vmatprep.subr.mxu0 0.0
      %9779 = vmatpush2.msra.mxu0 0.0
      %9780 = vmatprep.subr.mxu0 0.0
      %9781 = vmatpush2.msra.mxu0 0.0
      %9782 = vmatprep.mubr.f32.mxu0 0.0
      %9783 = vmatmul.mubr.f32.gmra.mxu0 %v9686
      %v9784 = vpop.f32.mrf.mxu0
      %v9785 = vadd.f32 0.0, %v9784
      %v9786 = vpop.f32.mrf.mxu0
      %9787 = vmatprep.mubr.f32.mxu0 0.0
      %9788 = vmatmul.mubr.f32.gmra.mxu0 %v9689
      %v9789 = vpop.f32.mrf.mxu0
      %v9790 = vadd.f32 0.0, %v9789
      %v9791 = vpop.f32.mrf.mxu0
      %9792 = vmatprep.mubr.f32.mxu0 0.0
      %9793 = vmatmul.mubr.f32.gmra.mxu0 %v9692
      %v9794 = vpop.f32.mrf.mxu0
      %v9795 = vadd.f32 0.0, %v9794
      %v9796 = vpop.f32.mrf.mxu0
      %9797 = vmatprep.mubr.f32.mxu0 0.0
      %9798 = vmatmul.mubr.f32.gmra.mxu0 %v9695
      %v9799 = vpop.f32.mrf.mxu0
      %v9800 = vadd.f32 0.0, %v9799
      %v9801 = vpop.f32.mrf.mxu0
      %9802 = vmatprep.mubr.f32.mxu0 0.0
      %9803 = vmatmul.mubr.f32.gmra.mxu0 %v9698
      %v9804 = vpop.f32.mrf.mxu0
      %v9805 = vadd.f32 0.0, %v9804
      %v9806 = vpop.f32.mrf.mxu0
      %9807 = vmatprep.mubr.f32.mxu0 0.0
      %9808 = vmatmul.mubr.f32.gmra.mxu0 %v9701
      %v9809 = vpop.f32.mrf.mxu0
      %v9810 = vadd.f32 0.0, %v9809
      %v9811 = vpop.f32.mrf.mxu0
      %9812 = vmatprep.mubr.f32.mxu0 0.0
      %9813 = vmatmul.mubr.f32.gmra.mxu0 %v9704
      %v9814 = vpop.f32.mrf.mxu0
      %v9815 = vadd.f32 0.0, %v9814
      %v9816 = vpop.f32.mrf.mxu0
      %9817 = vmatprep.mubr.f32.mxu0 0.0
      %9818 = vmatmul.mubr.f32.gmra.mxu0 %v9707
      %v9819 = vpop.f32.mrf.mxu0
      %v9820 = vadd.f32 0.0, %v9819
      %v9821 = vpop.f32.mrf.mxu0
      %9822 = vmatprep.mubr.f32.mxu0 0.0
      %9823 = vmatmul.mubr.f32.gmra.mxu0 %v9710
      %v9824 = vpop.f32.mrf.mxu0
      %v9825 = vadd.f32 0.0, %v9824
      %v9826 = vpop.f32.mrf.mxu0
      %9827 = vmatprep.mubr.f32.mxu0 0.0
      %9828 = vmatmul.mubr.f32.gmra.mxu0 %v9713
      %v9829 = vpop.f32.mrf.mxu0
      %v9830 = vadd.f32 0.0, %v9829
      %v9831 = vpop.f32.mrf.mxu0
      %9832 = vmatprep.mubr.f32.mxu0 0.0
      %9833 = vmatmul.mubr.f32.gmra.mxu0 %v9716
      %v9834 = vpop.f32.mrf.mxu0
      %v9835 = vadd.f32 0.0, %v9834
      %v9836 = vpop.f32.mrf.mxu0
      %9837 = vdwg.mxu0
      %v9838 = vld [vmem:[#allocation4] sm:$0xff]
      %v9839 = vld [vmem:[#allocation4 + $0x8] sm:$0xff]
      %v9840 = vld [vmem:[#allocation4 + $0x10] sm:$0xff]
      %v9841 = vld [vmem:[#allocation4 + $0x18] sm:$0xff]
      %v9842 = vld [vmem:[#allocation4 + $0x20] sm:$0xff]
      %v9843 = vld [vmem:[#allocation4 + $0x28] sm:$0xff]
      %v9844 = vld [vmem:[#allocation4 + $0x30] sm:$0xff]
      %v9845 = vld [vmem:[#allocation4 + $0x38] sm:$0xff]
      %v9846 = vld [vmem:[#allocation4 + $0x40] sm:$0xff]
      %v9847 = vld [vmem:[#allocation4 + $0x48] sm:$0xff]
      %v9848 = vld [vmem:[#allocation4 + $0x50] sm:$0xff]
      %v9849 = vadd.f32 %v9838, %v9785
      %v9850 = vadd.f32 %v9839, %v9790
      %v9851 = vadd.f32 %v9840, %v9795
      %v9852 = vadd.f32 %v9841, %v9800
      %v9853 = vadd.f32 %v9842, %v9805
      %v9854 = vadd.f32 %v9843, %v9810
      %v9855 = vadd.f32 %v9844, %v9815
      %v9856 = vadd.f32 %v9845, %v9820
      %v9857 = vadd.f32 %v9846, %v9825
      %v9858 = vadd.f32 %v9847, %v9830
      %v9859 = vadd.f32 %v9848, %v9835
      %9860 = vst.msk [vmem:[#allocation4] sm:$0xff] %vm642, %v9849
      %9861 = vst.msk [vmem:[#allocation4 + $0x8] sm:$0xff] %vm642, %v9850
      %9862 = vst.msk [vmem:[#allocation4 + $0x10] sm:$0xff] %vm642, %v9851
      %9863 = vst.msk [vmem:[#allocation4 + $0x18] sm:$0xff] %vm642, %v9852
      %9864 = vst.msk [vmem:[#allocation4 + $0x20] sm:$0xff] %vm642, %v9853
      %9865 = vst.msk [vmem:[#allocation4 + $0x28] sm:$0xff] %vm642, %v9854
      %9866 = vst.msk [vmem:[#allocation4 + $0x30] sm:$0xff] %vm642, %v9855
      %9867 = vst.msk [vmem:[#allocation4 + $0x38] sm:$0xff] %vm642, %v9856
      %9868 = vst.msk [vmem:[#allocation4 + $0x40] sm:$0xff] %vm642, %v9857
      %9869 = vst.msk [vmem:[#allocation4 + $0x48] sm:$0xff] %vm642, %v9858
      %9870 = vst.msk [vmem:[#allocation4 + $0x50] sm:$0xff] %vm642, %v9859
      %v9871 = vld [vmem:[#allocation3 + $0x78] sm:$0xff]
      %v9872 = vld [vmem:[#allocation3 + $0x80] sm:$0xff]
      %v9873 = vld [vmem:[#allocation3 + $0x88] sm:$0xff]
      %v9874 = vld [vmem:[#allocation3 + $0x90] sm:$0xff]
      %v9875 = vld [vmem:[#allocation3 + $0x98] sm:$0xff]
      %v9876 = vld [vmem:[#allocation3 + $0xa0] sm:$0xff]
      %v9877 = vld [vmem:[#allocation3 + $0xa8] sm:$0xff]
      %v9878 = vld [vmem:[#allocation3 + $0xb0] sm:$0xff]
      %v9879 = vld [vmem:[#allocation3 + $0xb8] sm:$0xff]
      %v9880 = vld [vmem:[#allocation3 + $0xc0] sm:$0xff]
      %v9881 = vld [vmem:[#allocation3 + $0xc8] sm:$0xff]
      %v9882 = vld [vmem:[%s5 + $0x1c0] sm:$0xff]
      %v9883 = vld [vmem:[%s5 + $0x1c8] sm:$0xff]
      %v9884 = vld [vmem:[%s5 + $0x1d0] sm:$0xff]
      %v9885 = vld [vmem:[%s5 + $0x1d8] sm:$0xff]
      %v9886 = vld [vmem:[%s5 + $0x1e0] sm:$0xff]
      %v9887 = vld [vmem:[%s5 + $0x1e8] sm:$0xff]
      %v9888 = vld [vmem:[%s5 + $0x1f0] sm:$0xff]
      %v9889 = vld [vmem:[%s5 + $0x1f8] sm:$0xff]
      %v9891 = vsel %vm642, %v9871, 0
      %v9894 = vsel %vm642, %v9872, 0
      %v9897 = vsel %vm642, %v9873, 0
      %v9900 = vsel %vm642, %v9874, 0
      %v9903 = vsel %vm642, %v9875, 0
      %v9906 = vsel %vm642, %v9876, 0
      %v9909 = vsel %vm642, %v9877, 0
      %v9912 = vsel %vm642, %v9878, 0
      %v9915 = vsel %vm642, %v9879, 0
      %v9918 = vsel %vm642, %v9880, 0
      %v9921 = vsel %vm642, %v9881, 0
      %9923 = vmatprep.subr.mxu0 0.0
      %9924 = vmatpush1.msra.mxu0 0.0
      %9925 = vmatprep.subr.mxu0 0.0
      %9926 = vmatpush1.msra.mxu0 0.0
      %9927 = vmatprep.subr.mxu0 0.0
      %9928 = vmatpush1.msra.mxu0 0.0
      %9929 = vmatprep.subr.mxu0 0.0
      %9930 = vmatpush1.msra.mxu0 0.0
      %9931 = vmatprep.subr.mxu0 0.0
      %9932 = vmatpush1.msra.mxu0 0.0
      %9933 = vmatprep.subr.mxu0 0.0
      %9934 = vmatpush1.msra.mxu0 0.0
      %9935 = vmatprep.subr.mxu0 0.0
      %9936 = vmatpush1.msra.mxu0 0.0
      %9937 = vmatprep.subr.mxu0 0.0
      %9938 = vmatpush1.msra.mxu0 0.0
      %9939 = vmatprep.subr.mxu0 0.0
      %9940 = vmatpush1.msra.mxu0 %v9889
      %9941 = vmatprep.subr.mxu0 0.0
      %9942 = vmatpush1.msra.mxu0 %v9888
      %9943 = vmatprep.subr.mxu0 0.0
      %9944 = vmatpush1.msra.mxu0 %v9887
      %9945 = vmatprep.subr.mxu0 0.0
      %9946 = vmatpush1.msra.mxu0 %v9886
      %9947 = vmatprep.subr.mxu0 0.0
      %9948 = vmatpush1.msra.mxu0 %v9885
      %9949 = vmatprep.subr.mxu0 0.0
      %9950 = vmatpush1.msra.mxu0 %v9884
      %9951 = vmatprep.subr.mxu0 0.0
      %9952 = vmatpush1.msra.mxu0 %v9883
      %9953 = vmatprep.subr.mxu0 0.0
      %9954 = vmatpush1.msra.mxu0 %v9882
      %9955 = vmatprep.subr.mxu0 0.0
      %9956 = vmatpush2.msra.mxu0 0.0
      %9957 = vmatprep.subr.mxu0 0.0
      %9958 = vmatpush2.msra.mxu0 0.0
      %9959 = vmatprep.subr.mxu0 0.0
      %9960 = vmatpush2.msra.mxu0 0.0
      %9961 = vmatprep.subr.mxu0 0.0
      %9962 = vmatpush2.msra.mxu0 0.0
      %9963 = vmatprep.subr.mxu0 0.0
      %9964 = vmatpush2.msra.mxu0 0.0
      %9965 = vmatprep.subr.mxu0 0.0
      %9966 = vmatpush2.msra.mxu0 0.0
      %9967 = vmatprep.subr.mxu0 0.0
      %9968 = vmatpush2.msra.mxu0 0.0
      %9969 = vmatprep.subr.mxu0 0.0
      %9970 = vmatpush2.msra.mxu0 0.0
      %9971 = vmatprep.subr.mxu0 0.0
      %9972 = vmatpush2.msra.mxu0 0.0
      %9973 = vmatprep.subr.mxu0 0.0
      %9974 = vmatpush2.msra.mxu0 0.0
      %9975 = vmatprep.subr.mxu0 0.0
      %9976 = vmatpush2.msra.mxu0 0.0
      %9977 = vmatprep.subr.mxu0 0.0
      %9978 = vmatpush2.msra.mxu0 0.0
      %9979 = vmatprep.subr.mxu0 0.0
      %9980 = vmatpush2.msra.mxu0 0.0
      %9981 = vmatprep.subr.mxu0 0.0
      %9982 = vmatpush2.msra.mxu0 0.0
      %9983 = vmatprep.subr.mxu0 0.0
      %9984 = vmatpush2.msra.mxu0 0.0
      %9985 = vmatprep.subr.mxu0 0.0
      %9986 = vmatpush2.msra.mxu0 0.0
      %9987 = vmatprep.mubr.f32.mxu0 0.0
      %9988 = vmatmul.mubr.f32.gmra.mxu0 %v9891
      %v9989 = vpop.f32.mrf.mxu0
      %v9990 = vadd.f32 0.0, %v9989
      %v9991 = vpop.f32.mrf.mxu0
      %9992 = vmatprep.mubr.f32.mxu0 0.0
      %9993 = vmatmul.mubr.f32.gmra.mxu0 %v9894
      %v9994 = vpop.f32.mrf.mxu0
      %v9995 = vadd.f32 0.0, %v9994
      %v9996 = vpop.f32.mrf.mxu0
      %9997 = vmatprep.mubr.f32.mxu0 0.0
      %9998 = vmatmul.mubr.f32.gmra.mxu0 %v9897
      %v9999 = vpop.f32.mrf.mxu0
      %v10000 = vadd.f32 0.0, %v9999
      %v10001 = vpop.f32.mrf.mxu0
      %10002 = vmatprep.mubr.f32.mxu0 0.0
      %10003 = vmatmul.mubr.f32.gmra.mxu0 %v9900
      %v10004 = vpop.f32.mrf.mxu0
      %v10005 = vadd.f32 0.0, %v10004
      %v10006 = vpop.f32.mrf.mxu0
      %10007 = vmatprep.mubr.f32.mxu0 0.0
      %10008 = vmatmul.mubr.f32.gmra.mxu0 %v9903
      %v10009 = vpop.f32.mrf.mxu0
      %v10010 = vadd.f32 0.0, %v10009
      %v10011 = vpop.f32.mrf.mxu0
      %10012 = vmatprep.mubr.f32.mxu0 0.0
      %10013 = vmatmul.mubr.f32.gmra.mxu0 %v9906
      %v10014 = vpop.f32.mrf.mxu0
      %v10015 = vadd.f32 0.0, %v10014
      %v10016 = vpop.f32.mrf.mxu0
      %10017 = vmatprep.mubr.f32.mxu0 0.0
      %10018 = vmatmul.mubr.f32.gmra.mxu0 %v9909
      %v10019 = vpop.f32.mrf.mxu0
      %v10020 = vadd.f32 0.0, %v10019
      %v10021 = vpop.f32.mrf.mxu0
      %10022 = vmatprep.mubr.f32.mxu0 0.0
      %10023 = vmatmul.mubr.f32.gmra.mxu0 %v9912
      %v10024 = vpop.f32.mrf.mxu0
      %v10025 = vadd.f32 0.0, %v10024
      %v10026 = vpop.f32.mrf.mxu0
      %10027 = vmatprep.mubr.f32.mxu0 0.0
      %10028 = vmatmul.mubr.f32.gmra.mxu0 %v9915
      %v10029 = vpop.f32.mrf.mxu0
      %v10030 = vadd.f32 0.0, %v10029
      %v10031 = vpop.f32.mrf.mxu0
      %10032 = vmatprep.mubr.f32.mxu0 0.0
      %10033 = vmatmul.mubr.f32.gmra.mxu0 %v9918
      %v10034 = vpop.f32.mrf.mxu0
      %v10035 = vadd.f32 0.0, %v10034
      %v10036 = vpop.f32.mrf.mxu0
      %10037 = vmatprep.mubr.f32.mxu0 0.0
      %10038 = vmatmul.mubr.f32.gmra.mxu0 %v9921
      %v10039 = vpop.f32.mrf.mxu0
      %v10040 = vadd.f32 0.0, %v10039
      %v10041 = vpop.f32.mrf.mxu0
      %10042 = vdwg.mxu0
      %v10043 = vld [vmem:[#allocation4] sm:$0xff]
      %v10044 = vld [vmem:[#allocation4 + $0x8] sm:$0xff]
      %v10045 = vld [vmem:[#allocation4 + $0x10] sm:$0xff]
      %v10046 = vld [vmem:[#allocation4 + $0x18] sm:$0xff]
      %v10047 = vld [vmem:[#allocation4 + $0x20] sm:$0xff]
      %v10048 = vld [vmem:[#allocation4 + $0x28] sm:$0xff]
      %v10049 = vld [vmem:[#allocation4 + $0x30] sm:$0xff]
      %v10050 = vld [vmem:[#allocation4 + $0x38] sm:$0xff]
      %v10051 = vld [vmem:[#allocation4 + $0x40] sm:$0xff]
      %v10052 = vld [vmem:[#allocation4 + $0x48] sm:$0xff]
      %v10053 = vld [vmem:[#allocation4 + $0x50] sm:$0xff]
      %v10054 = vadd.f32 %v10043, %v9990
      %v10055 = vadd.f32 %v10044, %v9995
      %v10056 = vadd.f32 %v10045, %v10000
      %v10057 = vadd.f32 %v10046, %v10005
      %v10058 = vadd.f32 %v10047, %v10010
      %v10059 = vadd.f32 %v10048, %v10015
      %v10060 = vadd.f32 %v10049, %v10020
      %v10061 = vadd.f32 %v10050, %v10025
      %v10062 = vadd.f32 %v10051, %v10030
      %v10063 = vadd.f32 %v10052, %v10035
      %v10064 = vadd.f32 %v10053, %v10040
      %10065 = vst.msk [vmem:[#allocation4] sm:$0xff] %vm642, %v10054
      %10066 = vst.msk [vmem:[#allocation4 + $0x8] sm:$0xff] %vm642, %v10055
      %10067 = vst.msk [vmem:[#allocation4 + $0x10] sm:$0xff] %vm642, %v10056
      %10068 = vst.msk [vmem:[#allocation4 + $0x18] sm:$0xff] %vm642, %v10057
      %10069 = vst.msk [vmem:[#allocation4 + $0x20] sm:$0xff] %vm642, %v10058
      %10070 = vst.msk [vmem:[#allocation4 + $0x28] sm:$0xff] %vm642, %v10059
      %10071 = vst.msk [vmem:[#allocation4 + $0x30] sm:$0xff] %vm642, %v10060
      %10072 = vst.msk [vmem:[#allocation4 + $0x38] sm:$0xff] %vm642, %v10061
      %10073 = vst.msk [vmem:[#allocation4 + $0x40] sm:$0xff] %vm642, %v10062
      %10074 = vst.msk [vmem:[#allocation4 + $0x48] sm:$0xff] %vm642, %v10063
      %10075 = vst.msk [vmem:[#allocation4 + $0x50] sm:$0xff] %vm642, %v10064
      %v10076 = vld [vmem:[#allocation3 + $0x80] sm:$0xff]
      %v10077 = vld [vmem:[#allocation3 + $0x88] sm:$0xff]
      %v10078 = vld [vmem:[#allocation3 + $0x90] sm:$0xff]
      %v10079 = vld [vmem:[#allocation3 + $0x98] sm:$0xff]
      %v10080 = vld [vmem:[#allocation3 + $0xa0] sm:$0xff]
      %v10081 = vld [vmem:[#allocation3 + $0xa8] sm:$0xff]
      %v10082 = vld [vmem:[#allocation3 + $0xb0] sm:$0xff]
      %v10083 = vld [vmem:[#allocation3 + $0xb8] sm:$0xff]
      %v10084 = vld [vmem:[#allocation3 + $0xc0] sm:$0xff]
      %v10085 = vld [vmem:[#allocation3 + $0xc8] sm:$0xff]
      %v10086 = vld [vmem:[#allocation3 + $0xd0] sm:$0xff]
      %v10087 = vld [vmem:[%s5 + $0x200] sm:$0xff]
      %v10088 = vld [vmem:[%s5 + $0x208] sm:$0xff]
      %v10089 = vld [vmem:[%s5 + $0x210] sm:$0xff]
      %v10090 = vld [vmem:[%s5 + $0x218] sm:$0xff]
      %v10091 = vld [vmem:[%s5 + $0x220] sm:$0xff]
      %v10092 = vld [vmem:[%s5 + $0x228] sm:$0xff]
      %v10093 = vld [vmem:[%s5 + $0x230] sm:$0xff]
      %v10094 = vld [vmem:[%s5 + $0x238] sm:$0xff]
      %v10096 = vsel %vm642, %v10076, 0
      %v10099 = vsel %vm642, %v10077, 0
      %v10102 = vsel %vm642, %v10078, 0
      %v10105 = vsel %vm642, %v10079, 0
      %v10108 = vsel %vm642, %v10080, 0
      %v10111 = vsel %vm642, %v10081, 0
      %v10114 = vsel %vm642, %v10082, 0
      %v10117 = vsel %vm642, %v10083, 0
      %v10120 = vsel %vm642, %v10084, 0
      %v10123 = vsel %vm642, %v10085, 0
      %v10126 = vsel %vm642, %v10086, 0
      %10128 = vmatprep.subr.mxu0 0.0
      %10129 = vmatpush1.msra.mxu0 0.0
      %10130 = vmatprep.subr.mxu0 0.0
      %10131 = vmatpush1.msra.mxu0 0.0
      %10132 = vmatprep.subr.mxu0 0.0
      %10133 = vmatpush1.msra.mxu0 0.0
      %10134 = vmatprep.subr.mxu0 0.0
      %10135 = vmatpush1.msra.mxu0 0.0
      %10136 = vmatprep.subr.mxu0 0.0
      %10137 = vmatpush1.msra.mxu0 0.0
      %10138 = vmatprep.subr.mxu0 0.0
      %10139 = vmatpush1.msra.mxu0 0.0
      %10140 = vmatprep.subr.mxu0 0.0
      %10141 = vmatpush1.msra.mxu0 0.0
      %10142 = vmatprep.subr.mxu0 0.0
      %10143 = vmatpush1.msra.mxu0 0.0
      %10144 = vmatprep.subr.mxu0 0.0
      %10145 = vmatpush1.msra.mxu0 %v10094
      %10146 = vmatprep.subr.mxu0 0.0
      %10147 = vmatpush1.msra.mxu0 %v10093
      %10148 = vmatprep.subr.mxu0 0.0
      %10149 = vmatpush1.msra.mxu0 %v10092
      %10150 = vmatprep.subr.mxu0 0.0
      %10151 = vmatpush1.msra.mxu0 %v10091
      %10152 = vmatprep.subr.mxu0 0.0
      %10153 = vmatpush1.msra.mxu0 %v10090
      %10154 = vmatprep.subr.mxu0 0.0
      %10155 = vmatpush1.msra.mxu0 %v10089
      %10156 = vmatprep.subr.mxu0 0.0
      %10157 = vmatpush1.msra.mxu0 %v10088
      %10158 = vmatprep.subr.mxu0 0.0
      %10159 = vmatpush1.msra.mxu0 %v10087
      %10160 = vmatprep.subr.mxu0 0.0
      %10161 = vmatpush2.msra.mxu0 0.0
      %10162 = vmatprep.subr.mxu0 0.0
      %10163 = vmatpush2.msra.mxu0 0.0
      %10164 = vmatprep.subr.mxu0 0.0
      %10165 = vmatpush2.msra.mxu0 0.0
      %10166 = vmatprep.subr.mxu0 0.0
      %10167 = vmatpush2.msra.mxu0 0.0
      %10168 = vmatprep.subr.mxu0 0.0
      %10169 = vmatpush2.msra.mxu0 0.0
      %10170 = vmatprep.subr.mxu0 0.0
      %10171 = vmatpush2.msra.mxu0 0.0
      %10172 = vmatprep.subr.mxu0 0.0
      %10173 = vmatpush2.msra.mxu0 0.0
      %10174 = vmatprep.subr.mxu0 0.0
      %10175 = vmatpush2.msra.mxu0 0.0
      %10176 = vmatprep.subr.mxu0 0.0
      %10177 = vmatpush2.msra.mxu0 0.0
      %10178 = vmatprep.subr.mxu0 0.0
      %10179 = vmatpush2.msra.mxu0 0.0
      %10180 = vmatprep.subr.mxu0 0.0
      %10181 = vmatpush2.msra.mxu0 0.0
      %10182 = vmatprep.subr.mxu0 0.0
      %10183 = vmatpush2.msra.mxu0 0.0
      %10184 = vmatprep.subr.mxu0 0.0
      %10185 = vmatpush2.msra.mxu0 0.0
      %10186 = vmatprep.subr.mxu0 0.0
      %10187 = vmatpush2.msra.mxu0 0.0
      %10188 = vmatprep.subr.mxu0 0.0
      %10189 = vmatpush2.msra.mxu0 0.0
      %10190 = vmatprep.subr.mxu0 0.0
      %10191 = vmatpush2.msra.mxu0 0.0
      %10192 = vmatprep.mubr.f32.mxu0 0.0
      %10193 = vmatmul.mubr.f32.gmra.mxu0 %v10096
      %v10194 = vpop.f32.mrf.mxu0
      %v10195 = vadd.f32 0.0, %v10194
      %v10196 = vpop.f32.mrf.mxu0
      %10197 = vmatprep.mubr.f32.mxu0 0.0
      %10198 = vmatmul.mubr.f32.gmra.mxu0 %v10099
      %v10199 = vpop.f32.mrf.mxu0
      %v10200 = vadd.f32 0.0, %v10199
      %v10201 = vpop.f32.mrf.mxu0
      %10202 = vmatprep.mubr.f32.mxu0 0.0
      %10203 = vmatmul.mubr.f32.gmra.mxu0 %v10102
      %v10204 = vpop.f32.mrf.mxu0
      %v10205 = vadd.f32 0.0, %v10204
      %v10206 = vpop.f32.mrf.mxu0
      %10207 = vmatprep.mubr.f32.mxu0 0.0
      %10208 = vmatmul.mubr.f32.gmra.mxu0 %v10105
      %v10209 = vpop.f32.mrf.mxu0
      %v10210 = vadd.f32 0.0, %v10209
      %v10211 = vpop.f32.mrf.mxu0
      %10212 = vmatprep.mubr.f32.mxu0 0.0
      %10213 = vmatmul.mubr.f32.gmra.mxu0 %v10108
      %v10214 = vpop.f32.mrf.mxu0
      %v10215 = vadd.f32 0.0, %v10214
      %v10216 = vpop.f32.mrf.mxu0
      %10217 = vmatprep.mubr.f32.mxu0 0.0
      %10218 = vmatmul.mubr.f32.gmra.mxu0 %v10111
      %v10219 = vpop.f32.mrf.mxu0
      %v10220 = vadd.f32 0.0, %v10219
      %v10221 = vpop.f32.mrf.mxu0
      %10222 = vmatprep.mubr.f32.mxu0 0.0
      %10223 = vmatmul.mubr.f32.gmra.mxu0 %v10114
      %v10224 = vpop.f32.mrf.mxu0
      %v10225 = vadd.f32 0.0, %v10224
      %v10226 = vpop.f32.mrf.mxu0
      %10227 = vmatprep.mubr.f32.mxu0 0.0
      %10228 = vmatmul.mubr.f32.gmra.mxu0 %v10117
      %v10229 = vpop.f32.mrf.mxu0
      %v10230 = vadd.f32 0.0, %v10229
      %v10231 = vpop.f32.mrf.mxu0
      %10232 = vmatprep.mubr.f32.mxu0 0.0
      %10233 = vmatmul.mubr.f32.gmra.mxu0 %v10120
      %v10234 = vpop.f32.mrf.mxu0
      %v10235 = vadd.f32 0.0, %v10234
      %v10236 = vpop.f32.mrf.mxu0
      %10237 = vmatprep.mubr.f32.mxu0 0.0
      %10238 = vmatmul.mubr.f32.gmra.mxu0 %v10123
      %v10239 = vpop.f32.mrf.mxu0
      %v10240 = vadd.f32 0.0, %v10239
      %v10241 = vpop.f32.mrf.mxu0
      %10242 = vmatprep.mubr.f32.mxu0 0.0
      %10243 = vmatmul.mubr.f32.gmra.mxu0 %v10126
      %v10244 = vpop.f32.mrf.mxu0
      %v10245 = vadd.f32 0.0, %v10244
      %v10246 = vpop.f32.mrf.mxu0
      %10247 = vdwg.mxu0
      %v10248 = vld [vmem:[#allocation4] sm:$0xff]
      %v10249 = vld [vmem:[#allocation4 + $0x8] sm:$0xff]
      %v10250 = vld [vmem:[#allocation4 + $0x10] sm:$0xff]
      %v10251 = vld [vmem:[#allocation4 + $0x18] sm:$0xff]
      %v10252 = vld [vmem:[#allocation4 + $0x20] sm:$0xff]
      %v10253 = vld [vmem:[#allocation4 + $0x28] sm:$0xff]
      %v10254 = vld [vmem:[#allocation4 + $0x30] sm:$0xff]
      %v10255 = vld [vmem:[#allocation4 + $0x38] sm:$0xff]
      %v10256 = vld [vmem:[#allocation4 + $0x40] sm:$0xff]
      %v10257 = vld [vmem:[#allocation4 + $0x48] sm:$0xff]
      %v10258 = vld [vmem:[#allocation4 + $0x50] sm:$0xff]
      %v10259 = vadd.f32 %v10248, %v10195
      %v10260 = vadd.f32 %v10249, %v10200
      %v10261 = vadd.f32 %v10250, %v10205
      %v10262 = vadd.f32 %v10251, %v10210
      %v10263 = vadd.f32 %v10252, %v10215
      %v10264 = vadd.f32 %v10253, %v10220
      %v10265 = vadd.f32 %v10254, %v10225
      %v10266 = vadd.f32 %v10255, %v10230
      %v10267 = vadd.f32 %v10256, %v10235
      %v10268 = vadd.f32 %v10257, %v10240
      %v10269 = vadd.f32 %v10258, %v10245
      %10270 = vst.msk [vmem:[#allocation4] sm:$0xff] %vm642, %v10259
      %10271 = vst.msk [vmem:[#allocation4 + $0x8] sm:$0xff] %vm642, %v10260
      %10272 = vst.msk [vmem:[#allocation4 + $0x10] sm:$0xff] %vm642, %v10261
      %10273 = vst.msk [vmem:[#allocation4 + $0x18] sm:$0xff] %vm642, %v10262
      %10274 = vst.msk [vmem:[#allocation4 + $0x20] sm:$0xff] %vm642, %v10263
      %10275 = vst.msk [vmem:[#allocation4 + $0x28] sm:$0xff] %vm642, %v10264
      %10276 = vst.msk [vmem:[#allocation4 + $0x30] sm:$0xff] %vm642, %v10265
      %10277 = vst.msk [vmem:[#allocation4 + $0x38] sm:$0xff] %vm642, %v10266
      %10278 = vst.msk [vmem:[#allocation4 + $0x40] sm:$0xff] %vm642, %v10267
      %10279 = vst.msk [vmem:[#allocation4 + $0x48] sm:$0xff] %vm642, %v10268
      %10280 = vst.msk [vmem:[#allocation4 + $0x50] sm:$0xff] %vm642, %v10269
      %v10281 = vld [vmem:[#allocation4] sm:$0xff]
      %v10282 = vld [vmem:[#allocation4 + $0x8] sm:$0xff]
      %v10283 = vld [vmem:[#allocation4 + $0x10] sm:$0xff]
      %v10284 = vld [vmem:[#allocation4 + $0x18] sm:$0xff]
      %v10285 = vld [vmem:[#allocation4 + $0x20] sm:$0xff]
      %v10286 = vld [vmem:[#allocation4 + $0x28] sm:$0xff]
      %v10287 = vld [vmem:[#allocation4 + $0x30] sm:$0xff]
      %v10288 = vld [vmem:[#allocation4 + $0x38] sm:$0xff]
      %v10289 = vld [vmem:[#allocation4 + $0x40] sm:$0xff]
      %v10290 = vld [vmem:[#allocation4 + $0x48] sm:$0xff]
      %v10291 = vld [vmem:[#allocation4 + $0x50] sm:$0xff]
      %v10292 = vld [vmem:[%s6] sm:$0x1]
      %v10294 = vlaneseq
      %v10295 = vshrl.u32 %v10294, 7
      %v10296 = vsub.s32 0, %v10295
      %v10297 = vrot.slane %v10292, %v10296
      %v10299 = vadd.f32 %v10281, %v10297
      %v10300 = vadd.f32 %v10282, %v10297
      %v10301 = vadd.f32 %v10283, %v10297
      %v10302 = vadd.f32 %v10284, %v10297
      %v10303 = vadd.f32 %v10285, %v10297
      %v10304 = vadd.f32 %v10286, %v10297
      %v10305 = vadd.f32 %v10287, %v10297
      %v10306 = vadd.f32 %v10288, %v10297
      %v10307 = vadd.f32 %v10289, %v10297
      %v10308 = vadd.f32 %v10290, %v10297
      %v10309 = vadd.f32 %v10291, %v10297
      %v10310 = vmax.f32 %v10299, 0.0
      %v10311 = vmax.f32 %v10300, 0.0
      %v10312 = vmax.f32 %v10301, 0.0
      %v10313 = vmax.f32 %v10302, 0.0
      %v10314 = vmax.f32 %v10303, 0.0
      %v10315 = vmax.f32 %v10304, 0.0
      %v10316 = vmax.f32 %v10305, 0.0
      %v10317 = vmax.f32 %v10306, 0.0
      %v10318 = vmax.f32 %v10307, 0.0
      %v10319 = vmax.f32 %v10308, 0.0
      %v10320 = vmax.f32 %v10309, 0.0
      %10321 = vst.msk [vmem:[#allocation4] sm:$0xff] %vm642, %v10310
      %10322 = vst.msk [vmem:[#allocation4 + $0x8] sm:$0xff] %vm642, %v10311
      %10323 = vst.msk [vmem:[#allocation4 + $0x10] sm:$0xff] %vm642, %v10312
      %10324 = vst.msk [vmem:[#allocation4 + $0x18] sm:$0xff] %vm642, %v10313
      %10325 = vst.msk [vmem:[#allocation4 + $0x20] sm:$0xff] %vm642, %v10314
      %10326 = vst.msk [vmem:[#allocation4 + $0x28] sm:$0xff] %vm642, %v10315
      %10327 = vst.msk [vmem:[#allocation4 + $0x30] sm:$0xff] %vm642, %v10316
      %10328 = vst.msk [vmem:[#allocation4 + $0x38] sm:$0xff] %vm642, %v10317
      %10329 = vst.msk [vmem:[#allocation4 + $0x40] sm:$0xff] %vm642, %v10318
      %10330 = vst.msk [vmem:[#allocation4 + $0x48] sm:$0xff] %vm642, %v10319
      %10331 = vst.msk [vmem:[#allocation4 + $0x50] sm:$0xff] %vm642, %v10320
      %v10332 = vld [vmem:[#allocation4] sm:$0xff]
      %v10333 = vld [vmem:[%s7] sm:$0xff]
      %v10334 = vld [vmem:[%s7 + $0x8] sm:$0xff]
      %v10335 = vld [vmem:[%s7 + $0x10] sm:$0xff]
      %v10336 = vld [vmem:[%s7 + $0x18] sm:$0xff]
      %v10337 = vld [vmem:[%s7 + $0x20] sm:$0xff]
      %v10338 = vld [vmem:[%s7 + $0x28] sm:$0xff]
      %v10339 = vld [vmem:[%s7 + $0x30] sm:$0xff]
      %v10340 = vld [vmem:[%s7 + $0x38] sm:$0xff]
      %v10341 = vld [vmem:[#allocation4 + $0x8] sm:$0xff]
      %v10342 = vld [vmem:[%s7 + $0x40] sm:$0xff]
      %v10343 = vld [vmem:[%s7 + $0x48] sm:$0xff]
      %v10344 = vld [vmem:[%s7 + $0x50] sm:$0xff]
      %v10345 = vld [vmem:[%s7 + $0x58] sm:$0xff]
      %v10346 = vld [vmem:[%s7 + $0x60] sm:$0xff]
      %v10347 = vld [vmem:[%s7 + $0x68] sm:$0xff]
      %v10348 = vld [vmem:[%s7 + $0x70] sm:$0xff]
      %v10349 = vld [vmem:[%s7 + $0x78] sm:$0xff]
      %v10351 = vsel %vm642, %v10341, 0
      %10353 = vmatprep.subr.mxu0 0.0
      %10354 = vmatpush1.msra.mxu0 0.0
      %10355 = vmatprep.subr.mxu0 0.0
      %10356 = vmatpush1.msra.mxu0 0.0
      %10357 = vmatprep.subr.mxu0 0.0
      %10358 = vmatpush1.msra.mxu0 0.0
      %10359 = vmatprep.subr.mxu0 0.0
      %10360 = vmatpush1.msra.mxu0 0.0
      %10361 = vmatprep.subr.mxu0 0.0
      %10362 = vmatpush1.msra.mxu0 0.0
      %10363 = vmatprep.subr.mxu0 0.0
      %10364 = vmatpush1.msra.mxu0 0.0
      %10365 = vmatprep.subr.mxu0 0.0
      %10366 = vmatpush1.msra.mxu0 0.0
      %10367 = vmatprep.subr.mxu0 0.0
      %10368 = vmatpush1.msra.mxu0 0.0
      %10369 = vmatprep.subr.mxu0 0.0
      %10370 = vmatpush1.msra.mxu0 %v10349
      %10371 = vmatprep.subr.mxu0 0.0
      %10372 = vmatpush1.msra.mxu0 %v10348
      %10373 = vmatprep.subr.mxu0 0.0
      %10374 = vmatpush1.msra.mxu0 %v10347
      %10375 = vmatprep.subr.mxu0 0.0
      %10376 = vmatpush1.msra.mxu0 %v10346
      %10377 = vmatprep.subr.mxu0 0.0
      %10378 = vmatpush1.msra.mxu0 %v10345
      %10379 = vmatprep.subr.mxu0 0.0
      %10380 = vmatpush1.msra.mxu0 %v10344
      %10381 = vmatprep.subr.mxu0 0.0
      %10382 = vmatpush1.msra.mxu0 %v10343
      %10383 = vmatprep.subr.mxu0 0.0
      %10384 = vmatpush1.msra.mxu0 %v10342
      %10385 = vmatprep.subr.mxu0 0.0
      %10386 = vmatpush2.msra.mxu0 0.0
      %10387 = vmatprep.subr.mxu0 0.0
      %10388 = vmatpush2.msra.mxu0 0.0
      %10389 = vmatprep.subr.mxu0 0.0
      %10390 = vmatpush2.msra.mxu0 0.0
      %10391 = vmatprep.subr.mxu0 0.0
      %10392 = vmatpush2.msra.mxu0 0.0
      %10393 = vmatprep.subr.mxu0 0.0
      %10394 = vmatpush2.msra.mxu0 0.0
      %10395 = vmatprep.subr.mxu0 0.0
      %10396 = vmatpush2.msra.mxu0 0.0
      %10397 = vmatprep.subr.mxu0 0.0
      %10398 = vmatpush2.msra.mxu0 0.0
      %10399 = vmatprep.subr.mxu0 0.0
      %10400 = vmatpush2.msra.mxu0 0.0
      %10401 = vmatprep.subr.mxu0 0.0
      %10402 = vmatpush2.msra.mxu0 0.0
      %10403 = vmatprep.subr.mxu0 0.0
      %10404 = vmatpush2.msra.mxu0 0.0
      %10405 = vmatprep.subr.mxu0 0.0
      %10406 = vmatpush2.msra.mxu0 0.0
      %10407 = vmatprep.subr.mxu0 0.0
      %10408 = vmatpush2.msra.mxu0 0.0
      %10409 = vmatprep.subr.mxu0 0.0
      %10410 = vmatpush2.msra.mxu0 0.0
      %10411 = vmatprep.subr.mxu0 0.0
      %10412 = vmatpush2.msra.mxu0 0.0
      %10413 = vmatprep.subr.mxu0 0.0
      %10414 = vmatpush2.msra.mxu0 0.0
      %10415 = vmatprep.subr.mxu0 0.0
      %10416 = vmatpush2.msra.mxu0 0.0
      %10417 = vmatprep.mubr.f32.mxu0 0.0
      %10418 = vmatmul.mubr.f32.gmra.mxu0 %v10351
      %v10419 = vpop.f32.mrf.mxu0
      %v10420 = vadd.f32 0.0, %v10419
      %v10421 = vpop.f32.mrf.mxu0
      %10422 = vdwg.mxu0
      %v10424 = vsel %vm642, %v10332, 0
      %10426 = vmatprep.subr.mxu0 0.0
      %10427 = vmatpush1.msra.mxu0 0.0
      %10428 = vmatprep.subr.mxu0 0.0
      %10429 = vmatpush1.msra.mxu0 0.0
      %10430 = vmatprep.subr.mxu0 0.0
      %10431 = vmatpush1.msra.mxu0 0.0
      %10432 = vmatprep.subr.mxu0 0.0
      %10433 = vmatpush1.msra.mxu0 0.0
      %10434 = vmatprep.subr.mxu0 0.0
      %10435 = vmatpush1.msra.mxu0 0.0
      %10436 = vmatprep.subr.mxu0 0.0
      %10437 = vmatpush1.msra.mxu0 0.0
      %10438 = vmatprep.subr.mxu0 0.0
      %10439 = vmatpush1.msra.mxu0 0.0
      %10440 = vmatprep.subr.mxu0 0.0
      %10441 = vmatpush1.msra.mxu0 0.0
      %10442 = vmatprep.subr.mxu0 0.0
      %10443 = vmatpush1.msra.mxu0 %v10340
      %10444 = vmatprep.subr.mxu0 0.0
      %10445 = vmatpush1.msra.mxu0 %v10339
      %10446 = vmatprep.subr.mxu0 0.0
      %10447 = vmatpush1.msra.mxu0 %v10338
      %10448 = vmatprep.subr.mxu0 0.0
      %10449 = vmatpush1.msra.mxu0 %v10337
      %10450 = vmatprep.subr.mxu0 0.0
      %10451 = vmatpush1.msra.mxu0 %v10336
      %10452 = vmatprep.subr.mxu0 0.0
      %10453 = vmatpush1.msra.mxu0 %v10335
      %10454 = vmatprep.subr.mxu0 0.0
      %10455 = vmatpush1.msra.mxu0 %v10334
      %10456 = vmatprep.subr.mxu0 0.0
      %10457 = vmatpush1.msra.mxu0 %v10333
      %10458 = vmatprep.subr.mxu0 0.0
      %10459 = vmatpush2.msra.mxu0 0.0
      %10460 = vmatprep.subr.mxu0 0.0
      %10461 = vmatpush2.msra.mxu0 0.0
      %10462 = vmatprep.subr.mxu0 0.0
      %10463 = vmatpush2.msra.mxu0 0.0
      %10464 = vmatprep.subr.mxu0 0.0
      %10465 = vmatpush2.msra.mxu0 0.0
      %10466 = vmatprep.subr.mxu0 0.0
      %10467 = vmatpush2.msra.mxu0 0.0
      %10468 = vmatprep.subr.mxu0 0.0
      %10469 = vmatpush2.msra.mxu0 0.0
      %10470 = vmatprep.subr.mxu0 0.0
      %10471 = vmatpush2.msra.mxu0 0.0
      %10472 = vmatprep.subr.mxu0 0.0
      %10473 = vmatpush2.msra.mxu0 0.0
      %10474 = vmatprep.subr.mxu0 0.0
      %10475 = vmatpush2.msra.mxu0 0.0
      %10476 = vmatprep.subr.mxu0 0.0
      %10477 = vmatpush2.msra.mxu0 0.0
      %10478 = vmatprep.subr.mxu0 0.0
      %10479 = vmatpush2.msra.mxu0 0.0
      %10480 = vmatprep.subr.mxu0 0.0
      %10481 = vmatpush2.msra.mxu0 0.0
      %10482 = vmatprep.subr.mxu0 0.0
      %10483 = vmatpush2.msra.mxu0 0.0
      %10484 = vmatprep.subr.mxu0 0.0
      %10485 = vmatpush2.msra.mxu0 0.0
      %10486 = vmatprep.subr.mxu0 0.0
      %10487 = vmatpush2.msra.mxu0 0.0
      %10488 = vmatprep.subr.mxu0 0.0
      %10489 = vmatpush2.msra.mxu0 0.0
      %10490 = vmatprep.mubr.f32.mxu0 0.0
      %10491 = vmatmul.mubr.f32.gmra.mxu0 %v10424
      %v10492 = vpop.f32.mrf.mxu0
      %v10493 = vadd.f32 %v10420, %v10492
      %v10494 = vpop.f32.mrf.mxu0
      %10495 = vdwg.mxu0
      %v10496 = vld [vmem:[#allocation4 + $0x10] sm:$0xff]
      %v10497 = vld [vmem:[%s7 + $0x80] sm:$0xff]
      %v10498 = vld [vmem:[%s7 + $0x88] sm:$0xff]
      %v10499 = vld [vmem:[%s7 + $0x90] sm:$0xff]
      %v10500 = vld [vmem:[%s7 + $0x98] sm:$0xff]
      %v10501 = vld [vmem:[%s7 + $0xa0] sm:$0xff]
      %v10502 = vld [vmem:[%s7 + $0xa8] sm:$0xff]
      %v10503 = vld [vmem:[%s7 + $0xb0] sm:$0xff]
      %v10504 = vld [vmem:[%s7 + $0xb8] sm:$0xff]
      %v10506 = vsel %vm642, %v10496, 0
      %10508 = vmatprep.subr.mxu0 0.0
      %10509 = vmatpush1.msra.mxu0 0.0
      %10510 = vmatprep.subr.mxu0 0.0
      %10511 = vmatpush1.msra.mxu0 0.0
      %10512 = vmatprep.subr.mxu0 0.0
      %10513 = vmatpush1.msra.mxu0 0.0
      %10514 = vmatprep.subr.mxu0 0.0
      %10515 = vmatpush1.msra.mxu0 0.0
      %10516 = vmatprep.subr.mxu0 0.0
      %10517 = vmatpush1.msra.mxu0 0.0
      %10518 = vmatprep.subr.mxu0 0.0
      %10519 = vmatpush1.msra.mxu0 0.0
      %10520 = vmatprep.subr.mxu0 0.0
      %10521 = vmatpush1.msra.mxu0 0.0
      %10522 = vmatprep.subr.mxu0 0.0
      %10523 = vmatpush1.msra.mxu0 0.0
      %10524 = vmatprep.subr.mxu0 0.0
      %10525 = vmatpush1.msra.mxu0 %v10504
      %10526 = vmatprep.subr.mxu0 0.0
      %10527 = vmatpush1.msra.mxu0 %v10503
      %10528 = vmatprep.subr.mxu0 0.0
      %10529 = vmatpush1.msra.mxu0 %v10502
      %10530 = vmatprep.subr.mxu0 0.0
      %10531 = vmatpush1.msra.mxu0 %v10501
      %10532 = vmatprep.subr.mxu0 0.0
      %10533 = vmatpush1.msra.mxu0 %v10500
      %10534 = vmatprep.subr.mxu0 0.0
      %10535 = vmatpush1.msra.mxu0 %v10499
      %10536 = vmatprep.subr.mxu0 0.0
      %10537 = vmatpush1.msra.mxu0 %v10498
      %10538 = vmatprep.subr.mxu0 0.0
      %10539 = vmatpush1.msra.mxu0 %v10497
      %10540 = vmatprep.subr.mxu0 0.0
      %10541 = vmatpush2.msra.mxu0 0.0
      %10542 = vmatprep.subr.mxu0 0.0
      %10543 = vmatpush2.msra.mxu0 0.0
      %10544 = vmatprep.subr.mxu0 0.0
      %10545 = vmatpush2.msra.mxu0 0.0
      %10546 = vmatprep.subr.mxu0 0.0
      %10547 = vmatpush2.msra.mxu0 0.0
      %10548 = vmatprep.subr.mxu0 0.0
      %10549 = vmatpush2.msra.mxu0 0.0
      %10550 = vmatprep.subr.mxu0 0.0
      %10551 = vmatpush2.msra.mxu0 0.0
      %10552 = vmatprep.subr.mxu0 0.0
      %10553 = vmatpush2.msra.mxu0 0.0
      %10554 = vmatprep.subr.mxu0 0.0
      %10555 = vmatpush2.msra.mxu0 0.0
      %10556 = vmatprep.subr.mxu0 0.0
      %10557 = vmatpush2.msra.mxu0 0.0
      %10558 = vmatprep.subr.mxu0 0.0
      %10559 = vmatpush2.msra.mxu0 0.0
      %10560 = vmatprep.subr.mxu0 0.0
      %10561 = vmatpush2.msra.mxu0 0.0
      %10562 = vmatprep.subr.mxu0 0.0
      %10563 = vmatpush2.msra.mxu0 0.0
      %10564 = vmatprep.subr.mxu0 0.0
      %10565 = vmatpush2.msra.mxu0 0.0
      %10566 = vmatprep.subr.mxu0 0.0
      %10567 = vmatpush2.msra.mxu0 0.0
      %10568 = vmatprep.subr.mxu0 0.0
      %10569 = vmatpush2.msra.mxu0 0.0
      %10570 = vmatprep.subr.mxu0 0.0
      %10571 = vmatpush2.msra.mxu0 0.0
      %10572 = vmatprep.mubr.f32.mxu0 0.0
      %10573 = vmatmul.mubr.f32.gmra.mxu0 %v10506
      %v10574 = vpop.f32.mrf.mxu0
      %v10575 = vadd.f32 0.0, %v10574
      %v10576 = vpop.f32.mrf.mxu0
      %10577 = vdwg.mxu0
      %v10578 = vadd.f32 %v10493, %v10575
      %v10579 = vld [vmem:[#allocation4 + $0x18] sm:$0xff]
      %v10580 = vld [vmem:[%s7 + $0xc0] sm:$0xff]
      %v10581 = vld [vmem:[%s7 + $0xc8] sm:$0xff]
      %v10582 = vld [vmem:[%s7 + $0xd0] sm:$0xff]
      %v10583 = vld [vmem:[%s7 + $0xd8] sm:$0xff]
      %v10584 = vld [vmem:[%s7 + $0xe0] sm:$0xff]
      %v10585 = vld [vmem:[%s7 + $0xe8] sm:$0xff]
      %v10586 = vld [vmem:[%s7 + $0xf0] sm:$0xff]
      %v10587 = vld [vmem:[%s7 + $0xf8] sm:$0xff]
      %v10589 = vsel %vm642, %v10579, 0
      %10591 = vmatprep.subr.mxu0 0.0
      %10592 = vmatpush1.msra.mxu0 0.0
      %10593 = vmatprep.subr.mxu0 0.0
      %10594 = vmatpush1.msra.mxu0 0.0
      %10595 = vmatprep.subr.mxu0 0.0
      %10596 = vmatpush1.msra.mxu0 0.0
      %10597 = vmatprep.subr.mxu0 0.0
      %10598 = vmatpush1.msra.mxu0 0.0
      %10599 = vmatprep.subr.mxu0 0.0
      %10600 = vmatpush1.msra.mxu0 0.0
      %10601 = vmatprep.subr.mxu0 0.0
      %10602 = vmatpush1.msra.mxu0 0.0
      %10603 = vmatprep.subr.mxu0 0.0
      %10604 = vmatpush1.msra.mxu0 0.0
      %10605 = vmatprep.subr.mxu0 0.0
      %10606 = vmatpush1.msra.mxu0 0.0
      %10607 = vmatprep.subr.mxu0 0.0
      %10608 = vmatpush1.msra.mxu0 %v10587
      %10609 = vmatprep.subr.mxu0 0.0
      %10610 = vmatpush1.msra.mxu0 %v10586
      %10611 = vmatprep.subr.mxu0 0.0
      %10612 = vmatpush1.msra.mxu0 %v10585
      %10613 = vmatprep.subr.mxu0 0.0
      %10614 = vmatpush1.msra.mxu0 %v10584
      %10615 = vmatprep.subr.mxu0 0.0
      %10616 = vmatpush1.msra.mxu0 %v10583
      %10617 = vmatprep.subr.mxu0 0.0
      %10618 = vmatpush1.msra.mxu0 %v10582
      %10619 = vmatprep.subr.mxu0 0.0
      %10620 = vmatpush1.msra.mxu0 %v10581
      %10621 = vmatprep.subr.mxu0 0.0
      %10622 = vmatpush1.msra.mxu0 %v10580
      %10623 = vmatprep.subr.mxu0 0.0
      %10624 = vmatpush2.msra.mxu0 0.0
      %10625 = vmatprep.subr.mxu0 0.0
      %10626 = vmatpush2.msra.mxu0 0.0
      %10627 = vmatprep.subr.mxu0 0.0
      %10628 = vmatpush2.msra.mxu0 0.0
      %10629 = vmatprep.subr.mxu0 0.0
      %10630 = vmatpush2.msra.mxu0 0.0
      %10631 = vmatprep.subr.mxu0 0.0
      %10632 = vmatpush2.msra.mxu0 0.0
      %10633 = vmatprep.subr.mxu0 0.0
      %10634 = vmatpush2.msra.mxu0 0.0
      %10635 = vmatprep.subr.mxu0 0.0
      %10636 = vmatpush2.msra.mxu0 0.0
      %10637 = vmatprep.subr.mxu0 0.0
      %10638 = vmatpush2.msra.mxu0 0.0
      %10639 = vmatprep.subr.mxu0 0.0
      %10640 = vmatpush2.msra.mxu0 0.0
      %10641 = vmatprep.subr.mxu0 0.0
      %10642 = vmatpush2.msra.mxu0 0.0
      %10643 = vmatprep.subr.mxu0 0.0
      %10644 = vmatpush2.msra.mxu0 0.0
      %10645 = vmatprep.subr.mxu0 0.0
      %10646 = vmatpush2.msra.mxu0 0.0
      %10647 = vmatprep.subr.mxu0 0.0
      %10648 = vmatpush2.msra.mxu0 0.0
      %10649 = vmatprep.subr.mxu0 0.0
      %10650 = vmatpush2.msra.mxu0 0.0
      %10651 = vmatprep.subr.mxu0 0.0
      %10652 = vmatpush2.msra.mxu0 0.0
      %10653 = vmatprep.subr.mxu0 0.0
      %10654 = vmatpush2.msra.mxu0 0.0
      %10655 = vmatprep.mubr.f32.mxu0 0.0
      %10656 = vmatmul.mubr.f32.gmra.mxu0 %v10589
      %v10657 = vpop.f32.mrf.mxu0
      %v10658 = vadd.f32 0.0, %v10657
      %v10659 = vpop.f32.mrf.mxu0
      %10660 = vdwg.mxu0
      %v10661 = vadd.f32 %v10578, %v10658
      %v10662 = vld [vmem:[#allocation4 + $0x38] sm:$0xff]
      %v10663 = vld [vmem:[%s7 + $0x100] sm:$0xff]
      %v10664 = vld [vmem:[%s7 + $0x108] sm:$0xff]
      %v10665 = vld [vmem:[%s7 + $0x110] sm:$0xff]
      %v10666 = vld [vmem:[%s7 + $0x118] sm:$0xff]
      %v10667 = vld [vmem:[%s7 + $0x120] sm:$0xff]
      %v10668 = vld [vmem:[%s7 + $0x128] sm:$0xff]
      %v10669 = vld [vmem:[%s7 + $0x130] sm:$0xff]
      %v10670 = vld [vmem:[%s7 + $0x138] sm:$0xff]
      %v10672 = vsel %vm642, %v10662, 0
      %10674 = vmatprep.subr.mxu0 0.0
      %10675 = vmatpush1.msra.mxu0 0.0
      %10676 = vmatprep.subr.mxu0 0.0
      %10677 = vmatpush1.msra.mxu0 0.0
      %10678 = vmatprep.subr.mxu0 0.0
      %10679 = vmatpush1.msra.mxu0 0.0
      %10680 = vmatprep.subr.mxu0 0.0
      %10681 = vmatpush1.msra.mxu0 0.0
      %10682 = vmatprep.subr.mxu0 0.0
      %10683 = vmatpush1.msra.mxu0 0.0
      %10684 = vmatprep.subr.mxu0 0.0
      %10685 = vmatpush1.msra.mxu0 0.0
      %10686 = vmatprep.subr.mxu0 0.0
      %10687 = vmatpush1.msra.mxu0 0.0
      %10688 = vmatprep.subr.mxu0 0.0
      %10689 = vmatpush1.msra.mxu0 0.0
      %10690 = vmatprep.subr.mxu0 0.0
      %10691 = vmatpush1.msra.mxu0 %v10670
      %10692 = vmatprep.subr.mxu0 0.0
      %10693 = vmatpush1.msra.mxu0 %v10669
      %10694 = vmatprep.subr.mxu0 0.0
      %10695 = vmatpush1.msra.mxu0 %v10668
      %10696 = vmatprep.subr.mxu0 0.0
      %10697 = vmatpush1.msra.mxu0 %v10667
      %10698 = vmatprep.subr.mxu0 0.0
      %10699 = vmatpush1.msra.mxu0 %v10666
      %10700 = vmatprep.subr.mxu0 0.0
      %10701 = vmatpush1.msra.mxu0 %v10665
      %10702 = vmatprep.subr.mxu0 0.0
      %10703 = vmatpush1.msra.mxu0 %v10664
      %10704 = vmatprep.subr.mxu0 0.0
      %10705 = vmatpush1.msra.mxu0 %v10663
      %10706 = vmatprep.subr.mxu0 0.0
      %10707 = vmatpush2.msra.mxu0 0.0
      %10708 = vmatprep.subr.mxu0 0.0
      %10709 = vmatpush2.msra.mxu0 0.0
      %10710 = vmatprep.subr.mxu0 0.0
      %10711 = vmatpush2.msra.mxu0 0.0
      %10712 = vmatprep.subr.mxu0 0.0
      %10713 = vmatpush2.msra.mxu0 0.0
      %10714 = vmatprep.subr.mxu0 0.0
      %10715 = vmatpush2.msra.mxu0 0.0
      %10716 = vmatprep.subr.mxu0 0.0
      %10717 = vmatpush2.msra.mxu0 0.0
      %10718 = vmatprep.subr.mxu0 0.0
      %10719 = vmatpush2.msra.mxu0 0.0
      %10720 = vmatprep.subr.mxu0 0.0
      %10721 = vmatpush2.msra.mxu0 0.0
      %10722 = vmatprep.subr.mxu0 0.0
      %10723 = vmatpush2.msra.mxu0 0.0
      %10724 = vmatprep.subr.mxu0 0.0
      %10725 = vmatpush2.msra.mxu0 0.0
      %10726 = vmatprep.subr.mxu0 0.0
      %10727 = vmatpush2.msra.mxu0 0.0
      %10728 = vmatprep.subr.mxu0 0.0
      %10729 = vmatpush2.msra.mxu0 0.0
      %10730 = vmatprep.subr.mxu0 0.0
      %10731 = vmatpush2.msra.mxu0 0.0
      %10732 = vmatprep.subr.mxu0 0.0
      %10733 = vmatpush2.msra.mxu0 0.0
      %10734 = vmatprep.subr.mxu0 0.0
      %10735 = vmatpush2.msra.mxu0 0.0
      %10736 = vmatprep.subr.mxu0 0.0
      %10737 = vmatpush2.msra.mxu0 0.0
      %10738 = vmatprep.mubr.f32.mxu0 0.0
      %10739 = vmatmul.mubr.f32.gmra.mxu0 %v10672
      %v10740 = vpop.f32.mrf.mxu0
      %v10741 = vadd.f32 0.0, %v10740
      %v10742 = vpop.f32.mrf.mxu0
      %10743 = vdwg.mxu0
      %v10744 = vadd.f32 %v10661, %v10741
      %v10745 = vld [vmem:[#allocation4 + $0x40] sm:$0xff]
      %v10746 = vld [vmem:[%s7 + $0x140] sm:$0xff]
      %v10747 = vld [vmem:[%s7 + $0x148] sm:$0xff]
      %v10748 = vld [vmem:[%s7 + $0x150] sm:$0xff]
      %v10749 = vld [vmem:[%s7 + $0x158] sm:$0xff]
      %v10750 = vld [vmem:[%s7 + $0x160] sm:$0xff]
      %v10751 = vld [vmem:[%s7 + $0x168] sm:$0xff]
      %v10752 = vld [vmem:[%s7 + $0x170] sm:$0xff]
      %v10753 = vld [vmem:[%s7 + $0x178] sm:$0xff]
      %v10755 = vsel %vm642, %v10745, 0
      %10757 = vmatprep.subr.mxu0 0.0
      %10758 = vmatpush1.msra.mxu0 0.0
      %10759 = vmatprep.subr.mxu0 0.0
      %10760 = vmatpush1.msra.mxu0 0.0
      %10761 = vmatprep.subr.mxu0 0.0
      %10762 = vmatpush1.msra.mxu0 0.0
      %10763 = vmatprep.subr.mxu0 0.0
      %10764 = vmatpush1.msra.mxu0 0.0
      %10765 = vmatprep.subr.mxu0 0.0
      %10766 = vmatpush1.msra.mxu0 0.0
      %10767 = vmatprep.subr.mxu0 0.0
      %10768 = vmatpush1.msra.mxu0 0.0
      %10769 = vmatprep.subr.mxu0 0.0
      %10770 = vmatpush1.msra.mxu0 0.0
      %10771 = vmatprep.subr.mxu0 0.0
      %10772 = vmatpush1.msra.mxu0 0.0
      %10773 = vmatprep.subr.mxu0 0.0
      %10774 = vmatpush1.msra.mxu0 %v10753
      %10775 = vmatprep.subr.mxu0 0.0
      %10776 = vmatpush1.msra.mxu0 %v10752
      %10777 = vmatprep.subr.mxu0 0.0
      %10778 = vmatpush1.msra.mxu0 %v10751
      %10779 = vmatprep.subr.mxu0 0.0
      %10780 = vmatpush1.msra.mxu0 %v10750
      %10781 = vmatprep.subr.mxu0 0.0
      %10782 = vmatpush1.msra.mxu0 %v10749
      %10783 = vmatprep.subr.mxu0 0.0
      %10784 = vmatpush1.msra.mxu0 %v10748
      %10785 = vmatprep.subr.mxu0 0.0
      %10786 = vmatpush1.msra.mxu0 %v10747
      %10787 = vmatprep.subr.mxu0 0.0
      %10788 = vmatpush1.msra.mxu0 %v10746
      %10789 = vmatprep.subr.mxu0 0.0
      %10790 = vmatpush2.msra.mxu0 0.0
      %10791 = vmatprep.subr.mxu0 0.0
      %10792 = vmatpush2.msra.mxu0 0.0
      %10793 = vmatprep.subr.mxu0 0.0
      %10794 = vmatpush2.msra.mxu0 0.0
      %10795 = vmatprep.subr.mxu0 0.0
      %10796 = vmatpush2.msra.mxu0 0.0
      %10797 = vmatprep.subr.mxu0 0.0
      %10798 = vmatpush2.msra.mxu0 0.0
      %10799 = vmatprep.subr.mxu0 0.0
      %10800 = vmatpush2.msra.mxu0 0.0
      %10801 = vmatprep.subr.mxu0 0.0
      %10802 = vmatpush2.msra.mxu0 0.0
      %10803 = vmatprep.subr.mxu0 0.0
      %10804 = vmatpush2.msra.mxu0 0.0
      %10805 = vmatprep.subr.mxu0 0.0
      %10806 = vmatpush2.msra.mxu0 0.0
      %10807 = vmatprep.subr.mxu0 0.0
      %10808 = vmatpush2.msra.mxu0 0.0
      %10809 = vmatprep.subr.mxu0 0.0
      %10810 = vmatpush2.msra.mxu0 0.0
      %10811 = vmatprep.subr.mxu0 0.0
      %10812 = vmatpush2.msra.mxu0 0.0
      %10813 = vmatprep.subr.mxu0 0.0
      %10814 = vmatpush2.msra.mxu0 0.0
      %10815 = vmatprep.subr.mxu0 0.0
      %10816 = vmatpush2.msra.mxu0 0.0
      %10817 = vmatprep.subr.mxu0 0.0
      %10818 = vmatpush2.msra.mxu0 0.0
      %10819 = vmatprep.subr.mxu0 0.0
      %10820 = vmatpush2.msra.mxu0 0.0
      %10821 = vmatprep.mubr.f32.mxu0 0.0
      %10822 = vmatmul.mubr.f32.gmra.mxu0 %v10755
      %v10823 = vpop.f32.mrf.mxu0
      %v10824 = vadd.f32 0.0, %v10823
      %v10825 = vpop.f32.mrf.mxu0
      %10826 = vdwg.mxu0
      %v10827 = vadd.f32 %v10744, %v10824
      %v10828 = vld [vmem:[#allocation4 + $0x48] sm:$0xff]
      %v10829 = vld [vmem:[%s7 + $0x180] sm:$0xff]
      %v10830 = vld [vmem:[%s7 + $0x188] sm:$0xff]
      %v10831 = vld [vmem:[%s7 + $0x190] sm:$0xff]
      %v10832 = vld [vmem:[%s7 + $0x198] sm:$0xff]
      %v10833 = vld [vmem:[%s7 + $0x1a0] sm:$0xff]
      %v10834 = vld [vmem:[%s7 + $0x1a8] sm:$0xff]
      %v10835 = vld [vmem:[%s7 + $0x1b0] sm:$0xff]
      %v10836 = vld [vmem:[%s7 + $0x1b8] sm:$0xff]
      %v10838 = vsel %vm642, %v10828, 0
      %10840 = vmatprep.subr.mxu0 0.0
      %10841 = vmatpush1.msra.mxu0 0.0
      %10842 = vmatprep.subr.mxu0 0.0
      %10843 = vmatpush1.msra.mxu0 0.0
      %10844 = vmatprep.subr.mxu0 0.0
      %10845 = vmatpush1.msra.mxu0 0.0
      %10846 = vmatprep.subr.mxu0 0.0
      %10847 = vmatpush1.msra.mxu0 0.0
      %10848 = vmatprep.subr.mxu0 0.0
      %10849 = vmatpush1.msra.mxu0 0.0
      %10850 = vmatprep.subr.mxu0 0.0
      %10851 = vmatpush1.msra.mxu0 0.0
      %10852 = vmatprep.subr.mxu0 0.0
      %10853 = vmatpush1.msra.mxu0 0.0
      %10854 = vmatprep.subr.mxu0 0.0
      %10855 = vmatpush1.msra.mxu0 0.0
      %10856 = vmatprep.subr.mxu0 0.0
      %10857 = vmatpush1.msra.mxu0 %v10836
      %10858 = vmatprep.subr.mxu0 0.0
      %10859 = vmatpush1.msra.mxu0 %v10835
      %10860 = vmatprep.subr.mxu0 0.0
      %10861 = vmatpush1.msra.mxu0 %v10834
      %10862 = vmatprep.subr.mxu0 0.0
      %10863 = vmatpush1.msra.mxu0 %v10833
      %10864 = vmatprep.subr.mxu0 0.0
      %10865 = vmatpush1.msra.mxu0 %v10832
      %10866 = vmatprep.subr.mxu0 0.0
      %10867 = vmatpush1.msra.mxu0 %v10831
      %10868 = vmatprep.subr.mxu0 0.0
      %10869 = vmatpush1.msra.mxu0 %v10830
      %10870 = vmatprep.subr.mxu0 0.0
      %10871 = vmatpush1.msra.mxu0 %v10829
      %10872 = vmatprep.subr.mxu0 0.0
      %10873 = vmatpush2.msra.mxu0 0.0
      %10874 = vmatprep.subr.mxu0 0.0
      %10875 = vmatpush2.msra.mxu0 0.0
      %10876 = vmatprep.subr.mxu0 0.0
      %10877 = vmatpush2.msra.mxu0 0.0
      %10878 = vmatprep.subr.mxu0 0.0
      %10879 = vmatpush2.msra.mxu0 0.0
      %10880 = vmatprep.subr.mxu0 0.0
      %10881 = vmatpush2.msra.mxu0 0.0
      %10882 = vmatprep.subr.mxu0 0.0
      %10883 = vmatpush2.msra.mxu0 0.0
      %10884 = vmatprep.subr.mxu0 0.0
      %10885 = vmatpush2.msra.mxu0 0.0
      %10886 = vmatprep.subr.mxu0 0.0
      %10887 = vmatpush2.msra.mxu0 0.0
      %10888 = vmatprep.subr.mxu0 0.0
      %10889 = vmatpush2.msra.mxu0 0.0
      %10890 = vmatprep.subr.mxu0 0.0
      %10891 = vmatpush2.msra.mxu0 0.0
      %10892 = vmatprep.subr.mxu0 0.0
      %10893 = vmatpush2.msra.mxu0 0.0
      %10894 = vmatprep.subr.mxu0 0.0
      %10895 = vmatpush2.msra.mxu0 0.0
      %10896 = vmatprep.subr.mxu0 0.0
      %10897 = vmatpush2.msra.mxu0 0.0
      %10898 = vmatprep.subr.mxu0 0.0
      %10899 = vmatpush2.msra.mxu0 0.0
      %10900 = vmatprep.subr.mxu0 0.0
      %10901 = vmatpush2.msra.mxu0 0.0
      %10902 = vmatprep.subr.mxu0 0.0
      %10903 = vmatpush2.msra.mxu0 0.0
      %10904 = vmatprep.mubr.f32.mxu0 0.0
      %10905 = vmatmul.mubr.f32.gmra.mxu0 %v10838
      %v10906 = vpop.f32.mrf.mxu0
      %v10907 = vadd.f32 0.0, %v10906
      %v10908 = vpop.f32.mrf.mxu0
      %10909 = vdwg.mxu0
      %v10910 = vadd.f32 %v10827, %v10907
      %v10911 = vld [vmem:[#allocation4 + $0x50] sm:$0xff]
      %v10912 = vld [vmem:[%s7 + $0x1c0] sm:$0xff]
      %v10913 = vld [vmem:[%s7 + $0x1c8] sm:$0xff]
      %v10914 = vld [vmem:[%s7 + $0x1d0] sm:$0xff]
      %v10915 = vld [vmem:[%s7 + $0x1d8] sm:$0xff]
      %v10916 = vld [vmem:[%s7 + $0x1e0] sm:$0xff]
      %v10917 = vld [vmem:[%s7 + $0x1e8] sm:$0xff]
      %v10918 = vld [vmem:[%s7 + $0x1f0] sm:$0xff]
      %v10919 = vld [vmem:[%s7 + $0x1f8] sm:$0xff]
      %v10921 = vsel %vm642, %v10911, 0
      %10923 = vmatprep.subr.mxu0 0.0
      %10924 = vmatpush1.msra.mxu0 0.0
      %10925 = vmatprep.subr.mxu0 0.0
      %10926 = vmatpush1.msra.mxu0 0.0
      %10927 = vmatprep.subr.mxu0 0.0
      %10928 = vmatpush1.msra.mxu0 0.0
      %10929 = vmatprep.subr.mxu0 0.0
      %10930 = vmatpush1.msra.mxu0 0.0
      %10931 = vmatprep.subr.mxu0 0.0
      %10932 = vmatpush1.msra.mxu0 0.0
      %10933 = vmatprep.subr.mxu0 0.0
      %10934 = vmatpush1.msra.mxu0 0.0
      %10935 = vmatprep.subr.mxu0 0.0
      %10936 = vmatpush1.msra.mxu0 0.0
      %10937 = vmatprep.subr.mxu0 0.0
      %10938 = vmatpush1.msra.mxu0 0.0
      %10939 = vmatprep.subr.mxu0 0.0
      %10940 = vmatpush1.msra.mxu0 %v10919
      %10941 = vmatprep.subr.mxu0 0.0
      %10942 = vmatpush1.msra.mxu0 %v10918
      %10943 = vmatprep.subr.mxu0 0.0
      %10944 = vmatpush1.msra.mxu0 %v10917
      %10945 = vmatprep.subr.mxu0 0.0
      %10946 = vmatpush1.msra.mxu0 %v10916
      %10947 = vmatprep.subr.mxu0 0.0
      %10948 = vmatpush1.msra.mxu0 %v10915
      %10949 = vmatprep.subr.mxu0 0.0
      %10950 = vmatpush1.msra.mxu0 %v10914
      %10951 = vmatprep.subr.mxu0 0.0
      %10952 = vmatpush1.msra.mxu0 %v10913
      %10953 = vmatprep.subr.mxu0 0.0
      %10954 = vmatpush1.msra.mxu0 %v10912
      %10955 = vmatprep.subr.mxu0 0.0
      %10956 = vmatpush2.msra.mxu0 0.0
      %10957 = vmatprep.subr.mxu0 0.0
      %10958 = vmatpush2.msra.mxu0 0.0
      %10959 = vmatprep.subr.mxu0 0.0
      %10960 = vmatpush2.msra.mxu0 0.0
      %10961 = vmatprep.subr.mxu0 0.0
      %10962 = vmatpush2.msra.mxu0 0.0
      %10963 = vmatprep.subr.mxu0 0.0
      %10964 = vmatpush2.msra.mxu0 0.0
      %10965 = vmatprep.subr.mxu0 0.0
      %10966 = vmatpush2.msra.mxu0 0.0
      %10967 = vmatprep.subr.mxu0 0.0
      %10968 = vmatpush2.msra.mxu0 0.0
      %10969 = vmatprep.subr.mxu0 0.0
      %10970 = vmatpush2.msra.mxu0 0.0
      %10971 = vmatprep.subr.mxu0 0.0
      %10972 = vmatpush2.msra.mxu0 0.0
      %10973 = vmatprep.subr.mxu0 0.0
      %10974 = vmatpush2.msra.mxu0 0.0
      %10975 = vmatprep.subr.mxu0 0.0
      %10976 = vmatpush2.msra.mxu0 0.0
      %10977 = vmatprep.subr.mxu0 0.0
      %10978 = vmatpush2.msra.mxu0 0.0
      %10979 = vmatprep.subr.mxu0 0.0
      %10980 = vmatpush2.msra.mxu0 0.0
      %10981 = vmatprep.subr.mxu0 0.0
      %10982 = vmatpush2.msra.mxu0 0.0
      %10983 = vmatprep.subr.mxu0 0.0
      %10984 = vmatpush2.msra.mxu0 0.0
      %10985 = vmatprep.subr.mxu0 0.0
      %10986 = vmatpush2.msra.mxu0 0.0
      %10987 = vmatprep.mubr.f32.mxu0 0.0
      %10988 = vmatmul.mubr.f32.gmra.mxu0 %v10921
      %v10989 = vpop.f32.mrf.mxu0
      %v10990 = vadd.f32 0.0, %v10989
      %v10991 = vpop.f32.mrf.mxu0
      %10992 = vdwg.mxu0
      %v10993 = vadd.f32 %v10910, %v10990
      %v10994 = vld [vmem:[%s8] sm:$0x1]
      %v10996 = vlaneseq
      %v10997 = vshrl.u32 %v10996, 7
      %v10998 = vsub.s32 0, %v10997
      %v10999 = vrot.slane %v10994, %v10998
      %v11001 = vadd.f32 %v10993, %v10999
      %11002 = vst [vmem:[%s330] sm:$0xff] %v11001
      %p11003 = scmp.lt.s32.totalorder %s20, 1
      %s11004 = scalar_select %p11003, %s20, 1
      %s11005 = smul.addr %s11004, 8
      %s11006 = scalar_lea.vmem %s9, %s11005
      // Predicated region
      $region57: #{nature_cnn_forward.1} parent=55 // pred_check
        %p11007 = pneg %p232
      $region58: #{nature_cnn_forward.1} parent=55 // pred_check_branch
        %11009 = sbr.rel (%p11007) target = $region60
      $region59: #{nature_cnn_forward.1} parent=55 // pred_region
        _
      $region60: #{nature_cnn_forward.1} parent=55 // pred_fallthru
        _
    $region56: #{nature_cnn_forward.1} parent=5 // pred_fallthru
      _
    %p11010 = scmp.le.s32.totalorder 2, %s15
    // Predicated region
    $region61: #{nature_cnn_forward.1} parent=5 // pred_check
      %p11011 = pneg %p11010
    $region62: #{nature_cnn_forward.1} parent=5 // pred_check_branch
      %11013 = sbr.rel (%p11011) target = $region64
    $region63: #{nature_cnn_forward.1} parent=5 // pred_region
      %s11014 = ssub.s32 %s15, 2
      // Predicated region
      $region65: #{nature_cnn_forward.1} parent=63 // pred_check
        %p11015 = pneg %p238
      $region66: #{nature_cnn_forward.1} parent=63 // pred_check_branch
        %11017 = sbr.rel (%p11015) target = $region68
      $region67: #{nature_cnn_forward.1} parent=63 // pred_region
        %p11018 = scmp.lt.s32.totalorder %s21, 1
        %s11019 = scalar_select %p11018, %s21, 1
        %s11020 = smul.addr %s11019, 8
        %s11021 = scalar_lea.vmem %s9, %s11020
      $region68: #{nature_cnn_forward.1} parent=63 // pred_fallthru
        _
    $region64: #{nature_cnn_forward.1} parent=5 // pred_fallthru
      _
  $region6: #{nature_cnn_forward.1} parent=0 // loop_footer
    %s19 = sadd.s32 1, %s15
  $region7: #{nature_cnn_forward.1} parent=0 // loop_footer_branch
    %14 = sbr.rel target = $region3
  $region8: #{nature_cnn_forward.1} parent=0 // loop_exit
    _

</llo_original>
